<compile_context>
chip_gen: v7x
topology: tpu7x:2x2x1
jax: 0.10.0
libtpu: 0.0.40
codegen_flags: <defaults>
</compile_context>

<pallas_src>
import functools

import jax
import jax.numpy as jnp
from jax.experimental import pallas as pl
from jax.experimental.pallas import tpu as pltpu


# --------------------------------------------------------------------------
# 1) Conv1d bank (kernel sizes 1..k) + ReLU + BN(eval) + MaxPool1d(2,1,pad=1)
#    x_ref is the time-padded input: left pad = max_pad+1, right pad = max_pad
#    (the extra left column lets us compute conv at t=-1 so the max-pool
#     shift needs no in-kernel concatenation/roll).
# --------------------------------------------------------------------------
def conv_bank_pool_kernel(x_ref, *args, k, pad, T):
    w_refs = args[:k]
    b_ref, s_ref, sh_ref, o_ref = args[k], args[k + 1], args[k + 2], args[k + 3]
    nb = o_ref.shape[0]
    for b in range(nb):
        for i in range(k):
            ks = i + 1
            p_i = ks // 2
            off = pad - p_i
            cout = w_refs[i].shape[-1]
            # conv output for t = -1 .. T-1  (T+1 rows)
            acc = jnp.zeros((T + 1, cout), jnp.float32)
            for j in range(ks):
                acc = acc + jnp.dot(
                    x_ref[b, off + j: off + j + T + 1, :], w_refs[i][j],
                    preferred_element_type=jnp.float32)
            y_ext = jnp.maximum(acc + b_ref[i], 0.0) * s_ref[i] + sh_ref[i]
            y = y_ext[1:, :]                      # rows t = 0..T-1
            prev = y_ext[:T, :]                   # rows t = -1..T-2
            tidx = jax.lax.broadcasted_iota(jnp.int32, (T, cout), 0)
            prev = jnp.where(tidx == 0, -jnp.inf, prev)   # MaxPool left pad=-inf
            o_ref[b, :, i * cout:(i + 1) * cout] = jnp.maximum(y, prev)


# --------------------------------------------------------------------------
# 2) Conv1d (odd kernel) + ReLU + BN(eval); x_ref is zero-padded in time.
# --------------------------------------------------------------------------
def conv_bn_relu_kernel(x_ref, w_ref, b_ref, s_ref, sh_ref, o_ref, *, ks):
    nb, T, cout = o_ref.shape
    for b in range(nb):
        acc = jnp.zeros((T, cout), jnp.float32)
        for j in range(ks):
            acc = acc + jnp.dot(x_ref[b, j:j + T, :], w_ref[j],
                                preferred_element_type=jnp.float32)
        y = jnp.maximum(acc + b_ref[...], 0.0)
        o_ref[b] = y * s_ref[...] + sh_ref[...]


# --------------------------------------------------------------------------
# 3) residual add + 4 highway layers (fused)
# --------------------------------------------------------------------------
def highway_kernel(y_ref, x_ref, wr_ref, br_ref, wg_ref, bg_ref, o_ref, *, L):
    out = y_ref[...] + x_ref[...]
    for l in range(L):
        relu = jnp.maximum(
            jnp.dot(out, wr_ref[l], preferred_element_type=jnp.float32) + br_ref[l],
            0.0)
        sig = jax.nn.sigmoid(
            jnp.dot(out, wg_ref[l], preferred_element_type=jnp.float32) + bg_ref[l])
        out = relu * sig + out * (1.0 - sig)
    o_ref[...] = out


# --------------------------------------------------------------------------
# 4) plain linear (used to precompute GRU input gates for both directions)
# --------------------------------------------------------------------------
def linear_kernel(x_ref, w_ref, b_ref, o_ref):
    o_ref[...] = (jnp.dot(x_ref[...], w_ref[...],
                          preferred_element_type=jnp.float32) + b_ref[...])


# --------------------------------------------------------------------------
# 5) GRU recurrent step (grid = (direction, time)); gate order (r, z, n).
#    Input gates (x @ W_ih + b_ih) are precomputed outside the loop.
# --------------------------------------------------------------------------
def bigru_layer_kernel(gi_ref, whh_ref, bhh_ref, o_ref, h_scr, *, H):
    t = pl.program_id(1)

    @pl.when(t == 0)
    def _():
        h_scr[...] = jnp.zeros_like(h_scr)

    gi = gi_ref[0, 0]                                     # (nb, 3H)
    h = h_scr[...]
    gh = jnp.dot(h, whh_ref[0], preferred_element_type=jnp.float32) + bhh_ref[0]
    r = jax.nn.sigmoid(gi[:, :H] + gh[:, :H])
    z = jax.nn.sigmoid(gi[:, H:2 * H] + gh[:, H:2 * H])
    n = jnp.tanh(gi[:, 2 * H:] + r * gh[:, 2 * H:])
    h_new = (1.0 - z) * n + z * h
    h_scr[...] = h_new
    o_ref[0, 0] = h_new


def bigru_layer(x_btf, wih, whh, bih, bhh, hidden):
    """One bidirectional GRU layer. x_btf: (nb, T, in). Returns (nb, T, 2H)."""
    nb, T, din = x_btf.shape
    H3 = 3 * hidden

    # Hoist the h-independent input projections out of the recurrence:
    # one matmul covering both directions.
    w_cat = jnp.concatenate([wih[0], wih[1]], axis=1)      # (in, 6H)
    b_cat = jnp.concatenate([bih[0], bih[1]], axis=1)      # (1, 6H)
    gi = pl.pallas_call(
        linear_kernel,
        out_shape=jax.ShapeDtypeStruct((nb * T, 2 * H3), jnp.float32),
    )(x_btf.reshape(nb * T, din), w_cat, b_cat)
    gi = gi.reshape(nb, T, 2 * H3)

    gi_f = jnp.transpose(gi[:, :, :H3], (1, 0, 2))         # (T, nb, 3H)
    gi_b = jnp.transpose(gi[:, ::-1, H3:], (1, 0, 2))      # reversed time
    gi_stack = jnp.stack([gi_f, gi_b], axis=0)             # (2, T, nb, 3H)

    out = pl.pallas_call(
        functools.partial(bigru_layer_kernel, H=hidden),
        out_shape=jax.ShapeDtypeStruct((2, T, nb, hidden), jnp.float32),
        grid_spec=pltpu.PrefetchScalarGridSpec(
            num_scalar_prefetch=0,
            grid=(2, T),
            in_specs=[
                pl.BlockSpec((1, 1, nb, H3), lambda d, t: (d, t, 0, 0)),
                pl.BlockSpec((1, hidden, H3), lambda d, t: (d, 0, 0)),
                pl.BlockSpec((1, 1, H3), lambda d, t: (d, 0, 0)),
            ],
            out_specs=pl.BlockSpec((1, 1, nb, hidden), lambda d, t: (d, t, 0, 0)),
            scratch_shapes=[pltpu.VMEM((nb, hidden), jnp.float32)],
        ),
        compiler_params=pltpu.CompilerParams(
            dimension_semantics=("arbitrary", "arbitrary")),
    )(gi_stack, whh, bhh)

    h_f = jnp.transpose(out[0], (1, 0, 2))                 # (nb, T, H)
    h_b = jnp.transpose(out[1], (1, 0, 2))[:, ::-1, :]     # undo time reversal
    return jnp.concatenate([h_f, h_b], axis=-1)            # (nb, T, 2H)


# --------------------------------------------------------------------------
# Full CBHG forward (Pallas path)
# --------------------------------------------------------------------------
def cbhg_forward(x_ncw, p, k, hidden, proj):
    eps = 1e-5
    nb, _, T = x_ncw.shape
    x_t = jnp.transpose(x_ncw, (0, 2, 1)).astype(jnp.float32)   # (nb, T, C)

    def bn_affine(gamma, beta, mean, var):
        s = gamma / jnp.sqrt(var + eps)
        return s, beta - mean * s

    # --- conv1d bank + ReLU + BN + MaxPool (one fused kernel) ---
    P = k // 2
    x_pad = jnp.pad(x_t, ((0, 0), (P + 1, P), (0, 0)))
    bank_s, bank_sh = bn_affine(p['bank_gamma'], p['bank_beta'],
                                p['bank_mean'], p['bank_var'])
    pooled = pl.pallas_call(
        functools.partial(conv_bank_pool_kernel, k=k, pad=P, T=T),
        out_shape=jax.ShapeDtypeStruct((nb, T, k * hidden), jnp.float32),
    )(x_pad, *p['bank_w'], p['bank_b'], bank_s, bank_sh)

    # --- conv projection 1 ---
    s1, sh1 = bn_affine(p['p1_gamma'], p['p1_beta'], p['p1_mean'], p['p1_var'])
    h = pl.pallas_call(
        functools.partial(conv_bn_relu_kernel, ks=3),
        out_shape=jax.ShapeDtypeStruct((nb, T, hidden), jnp.float32),
    )(jnp.pad(pooled, ((0, 0), (1, 1), (0, 0))), p['p1_w'], p['p1_b'], s1, sh1)

    # --- conv projection 2 ---
    s2, sh2 = bn_affine(p['p2_gamma'], p['p2_beta'], p['p2_mean'], p['p2_var'])
    h = pl.pallas_call(
        functools.partial(conv_bn_relu_kernel, ks=3),
        out_shape=jax.ShapeDtypeStruct((nb, T, proj), jnp.float32),
    )(jnp.pad(h, ((0, 0), (1, 1), (0, 0))), p['p2_w'], p['p2_b'], s2, sh2)

    # --- residual add + highway (fused) ---
    L_hw = p['hw_wr'].shape[0]
    hw = pl.pallas_call(
        functools.partial(highway_kernel, L=L_hw),
        out_shape=jax.ShapeDtypeStruct((nb * T, proj), jnp.float32),
    )(h.reshape(nb * T, proj), x_t.reshape(nb * T, proj),
      p['hw_wr'], p['hw_br'], p['hw_ws'], p['hw_bs'])
    seq = hw.reshape(nb, T, proj)

    # --- 2-layer bidirectional GRU ---
    for l in range(2):
        seq = bigru_layer(seq, p['gru_wih'][l], p['gru_whh'][l],
                          p['gru_bih'][l], p['gru_bhh'][l], hidden)
    return seq


# --------------------------------------------------------------------------
# Pure-JAX reference (mirrors the PyTorch forward, eval-mode BatchNorm)
# --------------------------------------------------------------------------
def _ref_conv_relu_bn(h_ncw, w, b, gamma, beta, mean, var, T):
    ks = w.shape[0]
    pad_ = ks // 2
    w_oik = jnp.transpose(w, (2, 1, 0))                   # (cout, cin, ks)
    y = jax.lax.conv_general_dilated(
        h_ncw, w_oik, window_strides=(1,), padding=[(pad_, pad_)],
        dimension_numbers=('NCH', 'OIH', 'NCH'))[:, :, :T]
    y = jax.nn.relu(y + b[0][None, :, None])
    s = (gamma[0] / jnp.sqrt(var[0] + 1e-5))[None, :, None]
    return (y - mean[0][None, :, None]) * s + beta[0][None, :, None]


def reference_forward(x_ncw, p, k, hidden, proj):
    nb, _, T = x_ncw.shape
    outs = []
    for i in range(k):
        outs.append(_ref_conv_relu_bn(
            x_ncw, p['bank_w'][i], p['bank_b'][i], p['bank_gamma'][i],
            p['bank_beta'][i], p['bank_mean'][i], p['bank_var'][i], T))
    cat = jnp.concatenate(outs, axis=1)                   # (nb, k*hidden, T)
    prev = jnp.concatenate(
        [jnp.full_like(cat[:, :, :1], -jnp.inf), cat[:, :, :-1]], axis=2)
    pooled = jnp.maximum(cat, prev)                       # MaxPool1d(2,1,pad=1)[:T]

    h = _ref_conv_relu_bn(pooled, p['p1_w'], p['p1_b'], p['p1_gamma'],
                          p['p1_beta'], p['p1_mean'], p['p1_var'], T)
    h = _ref_conv_relu_bn(h, p['p2_w'], p['p2_b'], p['p2_gamma'],
                          p['p2_beta'], p['p2_mean'], p['p2_var'], T)

    out = jnp.transpose(h + x_ncw, (0, 2, 1))             # (nb, T, proj)
    for l in range(p['hw_wr'].shape[0]):
        relu = jax.nn.relu(out @ p['hw_wr'][l] + p['hw_br'][l])
        sig = jax.nn.sigmoid(out @ p['hw_ws'][l] + p['hw_bs'][l])
        out = relu * sig + out * (1.0 - sig)

    H = hidden

    def run_dir(x_seq, wih, whh, bih, bhh, reverse):
        h_ = jnp.zeros((nb, H), jnp.float32)
        ys = [None] * T
        order = range(T - 1, -1, -1) if reverse else range(T)
        for t in order:
            gi = x_seq[:, t, :] @ wih + bih[0]
            gh = h_ @ whh + bhh[0]
            r = jax.nn.sigmoid(gi[:, :H] + gh[:, :H])
            z = jax.nn.sigmoid(gi[:, H:2 * H] + gh[:, H:2 * H])
            n = jnp.tanh(gi[:, 2 * H:] + r * gh[:, 2 * H:])
            h_ = (1.0 - z) * n + z * h_
            ys[t] = h_
        return jnp.stack(ys, axis=1)

    seq = out
    for l in range(2):
        f = run_dir(seq, p['gru_wih'][l][0], p['gru_whh'][l][0],
                    p['gru_bih'][l][0], p['gru_bhh'][l][0], False)
        bwd = run_dir(seq, p['gru_wih'][l][1], p['gru_whh'][l][1],
                      p['gru_bih'][l][1], p['gru_bhh'][l][1], True)
        seq = jnp.concatenate([f, bwd], axis=-1)
    return seq


if __name__ == "__main__":
    k, hidden, proj = 8, 128, 128        # CBHG(k=8, hidden_dim=128, proj_dim=128)
    nb, T = 2, 16
    L_hw = 4

    def nrm(key, shape, scale):
        return (scale * jax.random.normal(key, shape)).astype(jnp.float32)

    keys = iter(jax.random.split(jax.random.PRNGKey(0), 128))

    p = {}
    p['bank_w'] = [nrm(next(keys), (i + 1, proj, hidden), 0.05) for i in range(k)]
    p['bank_b'] = nrm(next(keys), (k, 1, hidden), 0.05)
    p['bank_gamma'] = 1.0 + nrm(next(keys), (k, 1, hidden), 0.1)
    p['bank_beta'] = nrm(next(keys), (k, 1, hidden), 0.1)
    p['bank_mean'] = nrm(next(keys), (k, 1, hidden), 0.1)
    p['bank_var'] = 0.5 + jax.random.uniform(next(keys), (k, 1, hidden),
                                             dtype=jnp.float32)

    p['p1_w'] = nrm(next(keys), (3, k * hidden, hidden), 0.02)
    p['p1_b'] = nrm(next(keys), (1, hidden), 0.05)
    p['p1_gamma'] = 1.0 + nrm(next(keys), (1, hidden), 0.1)
    p['p1_beta'] = nrm(next(keys), (1, hidden), 0.1)
    p['p1_mean'] = nrm(next(keys), (1, hidden), 0.1)
    p['p1_var'] = 0.5 + jax.random.uniform(next(keys), (1, hidden),
                                           dtype=jnp.float32)

    p['p2_w'] = nrm(next(keys), (3, hidden, proj), 0.05)
    p['p2_b'] = nrm(next(keys), (1, proj), 0.05)
    p['p2_gamma'] = 1.0 + nrm(next(keys), (1, proj), 0.1)
    p['p2_beta'] = nrm(next(keys), (1, proj), 0.1)
    p['p2_mean'] = nrm(next(keys), (1, proj), 0.1)
    p['p2_var'] = 0.5 + jax.random.uniform(next(keys), (1, proj),
                                           dtype=jnp.float32)

    p['hw_wr'] = nrm(next(keys), (L_hw, proj, proj), 0.05)
    p['hw_br'] = nrm(next(keys), (L_hw, 1, proj), 0.05)
    p['hw_ws'] = nrm(next(keys), (L_hw, proj, proj), 0.05)
    p['hw_bs'] = nrm(next(keys), (L_hw, 1, proj), 0.05)

    p['gru_wih'], p['gru_whh'], p['gru_bih'], p['gru_bhh'] = [], [], [], []
    in_dims = [proj, 2 * hidden]
    for l in range(2):
        p['gru_wih'].append(nrm(next(keys), (2, in_dims[l], 3 * hidden), 0.05))
        p['gru_whh'].append(nrm(next(keys), (2, hidden, 3 * hidden), 0.05))
        p['gru_bih'].append(nrm(next(keys), (2, 1, 3 * hidden), 0.05))
        p['gru_bhh'].append(nrm(next(keys), (2, 1, 3 * hidden), 0.05))

    x = nrm(next(keys), (nb, proj, T), 0.5)               # (bs, proj_dim, T) NCW

    out = cbhg_forward(x, p, k, hidden, proj)
    out = jax.block_until_ready(out)

    ref = reference_forward(x, p, k, hidden, proj)
    assert out.shape == (nb, T, 2 * hidden), out.shape
    assert bool(jnp.all(jnp.isfinite(out)))
    max_err = float(jnp.max(jnp.abs(out - ref)))
    assert max_err < 3e-2, f"max abs err vs reference: {max_err}"

    print("KERNEL_OK")
</pallas_src>

<mosaic_0001>
module attributes {stable_mosaic.version = 11 : i64} {
  func.func @conv_bank_pool_kernel(%arg0: memref<2x25x128xf32, #tpu.memory_space<vmem>>, %arg1: memref<1x128x128xf32, #tpu.memory_space<vmem>>, %arg2: memref<2x128x128xf32, #tpu.memory_space<vmem>>, %arg3: memref<3x128x128xf32, #tpu.memory_space<vmem>>, %arg4: memref<4x128x128xf32, #tpu.memory_space<vmem>>, %arg5: memref<5x128x128xf32, #tpu.memory_space<vmem>>, %arg6: memref<6x128x128xf32, #tpu.memory_space<vmem>>, %arg7: memref<7x128x128xf32, #tpu.memory_space<vmem>>, %arg8: memref<8x128x128xf32, #tpu.memory_space<vmem>>, %arg9: memref<8x1x128xf32, #tpu.memory_space<vmem>>, %arg10: memref<8x1x128xf32, #tpu.memory_space<vmem>>, %arg11: memref<8x1x128xf32, #tpu.memory_space<vmem>>, %arg12: memref<2x16x1024xf32, #tpu.memory_space<vmem>>) attributes {dimension_semantics = [], scalar_prefetch = 0 : i64, scratch_operands = 0 : i64, tpu.core_type = #tpu.core_type<tc>} {
    %cst = arith.constant 0.000000e+00 : f32
    %0 = vector.broadcast %cst : f32 to vector<17x128xf32>
    %c0 = arith.constant 0 : index
    %c4 = arith.constant 4 : index
    %c0_0 = arith.constant 0 : index
    %1 = vector.load %arg0[%c0, %c4, %c0_0] : memref<2x25x128xf32, #tpu.memory_space<vmem>>, vector<1x17x128xf32>
    %2 = vector.shape_cast %1 : vector<1x17x128xf32> to vector<17x128xf32>
    %c0_1 = arith.constant 0 : index
    %c0_2 = arith.constant 0 : index
    %c0_3 = arith.constant 0 : index
    %3 = vector.load %arg1[%c0_1, %c0_2, %c0_3] : memref<1x128x128xf32, #tpu.memory_space<vmem>>, vector<1x128x128xf32>
    %4 = vector.shape_cast %3 : vector<1x128x128xf32> to vector<128x128xf32>
    %cst_4 = arith.constant dense<0.000000e+00> : vector<17x128xf32>
    %5 = tpu.matmul %2, %4, %cst_4 {dimension_numbers = #tpu.dot_dimension_numbers<[1], [0], [0], [1], [0, 0, 1, 1], [], []>} : vector<17x128xf32>, vector<128x128xf32>, vector<17x128xf32> -> vector<17x128xf32>
    %6 = arith.addf %0, %5 : vector<17x128xf32>
    %c0_5 = arith.constant 0 : index
    %c0_6 = arith.constant 0 : index
    %c0_7 = arith.constant 0 : index
    %7 = vector.load %arg9[%c0_5, %c0_6, %c0_7] : memref<8x1x128xf32, #tpu.memory_space<vmem>>, vector<1x1x128xf32>
    %8 = vector.shape_cast %7 : vector<1x1x128xf32> to vector<1x128xf32>
    %9 = vector.broadcast %8 : vector<1x128xf32> to vector<17x128xf32>
    %10 = arith.addf %6, %9 : vector<17x128xf32>
    %cst_8 = arith.constant 0.000000e+00 : f32
    %11 = vector.broadcast %cst_8 : f32 to vector<17x128xf32>
    %12 = arith.maximumf %10, %11 : vector<17x128xf32>
    %c0_9 = arith.constant 0 : index
    %c0_10 = arith.constant 0 : index
    %c0_11 = arith.constant 0 : index
    %13 = vector.load %arg10[%c0_9, %c0_10, %c0_11] : memref<8x1x128xf32, #tpu.memory_space<vmem>>, vector<1x1x128xf32>
    %14 = vector.shape_cast %13 : vector<1x1x128xf32> to vector<1x128xf32>
    %15 = vector.broadcast %14 : vector<1x128xf32> to vector<17x128xf32>
    %16 = arith.mulf %12, %15 : vector<17x128xf32>
    %c0_12 = arith.constant 0 : index
    %c0_13 = arith.constant 0 : index
    %c0_14 = arith.constant 0 : index
    %17 = vector.load %arg11[%c0_12, %c0_13, %c0_14] : memref<8x1x128xf32, #tpu.memory_space<vmem>>, vector<1x1x128xf32>
    %18 = vector.shape_cast %17 : vector<1x1x128xf32> to vector<1x128xf32>
    %19 = vector.broadcast %18 : vector<1x128xf32> to vector<17x128xf32>
    %20 = arith.addf %16, %19 : vector<17x128xf32>
    %21 = vector.extract_strided_slice %20 {offsets = [1, 0], sizes = [16, 128], strides = [1, 1]} : vector<17x128xf32> to vector<16x128xf32>
    %22 = vector.extract_strided_slice %20 {offsets = [0, 0], sizes = [16, 128], strides = [1, 1]} : vector<17x128xf32> to vector<16x128xf32>
    %23 = tpu.iota {dimensions = array<i32: 0>} : vector<16x128xi32>
    %c0_i32 = arith.constant 0 : i32
    %24 = vector.broadcast %c0_i32 : i32 to vector<16x128xi32>
    %25 = arith.cmpi eq, %23, %24 : vector<16x128xi32>
    %cst_15 = arith.constant 0xFF800000 : f32
    %26 = vector.broadcast %cst_15 : f32 to vector<16x128xf32>
    %27 = arith.select %25, %26, %22 : vector<16x128xi1>, vector<16x128xf32>
    %28 = arith.maximumf %21, %27 : vector<16x128xf32>
    %c0_16 = arith.constant 0 : index
    %c0_17 = arith.constant 0 : index
    %c0_18 = arith.constant 0 : index
    %29 = vector.load %arg12[%c0_16, %c0_17, %c0_18] : memref<2x16x1024xf32, #tpu.memory_space<vmem>>, vector<1x16x128xf32>
    %30 = vector.shape_cast %29 : vector<1x16x128xf32> to vector<16x128xf32>
    %31 = vector.shape_cast %28 : vector<16x128xf32> to vector<1x16x128xf32>
    tpu.vector_store %arg12[%c0_16, %c0_17, %c0_18], %31 {strides = array<i32>} : memref<2x16x1024xf32, #tpu.memory_space<vmem>>, vector<1x16x128xf32>,
    %cst_19 = arith.constant 0.000000e+00 : f32
    %32 = vector.broadcast %cst_19 : f32 to vector<17x128xf32>
    %c0_20 = arith.constant 0 : index
    %c3 = arith.constant 3 : index
    %c0_21 = arith.constant 0 : index
    %33 = vector.load %arg0[%c0_20, %c3, %c0_21] : memref<2x25x128xf32, #tpu.memory_space<vmem>>, vector<1x17x128xf32>
    %34 = vector.shape_cast %33 : vector<1x17x128xf32> to vector<17x128xf32>
    %c0_22 = arith.constant 0 : index
    %c0_23 = arith.constant 0 : index
    %c0_24 = arith.constant 0 : index
    %35 = vector.load %arg2[%c0_22, %c0_23, %c0_24] : memref<2x128x128xf32, #tpu.memory_space<vmem>>, vector<1x128x128xf32>
    %36 = vector.shape_cast %35 : vector<1x128x128xf32> to vector<128x128xf32>
    %cst_25 = arith.constant dense<0.000000e+00> : vector<17x128xf32>
    %37 = tpu.matmul %34, %36, %cst_25 {dimension_numbers = #tpu.dot_dimension_numbers<[1], [0], [0], [1], [0, 0, 1, 1], [], []>} : vector<17x128xf32>, vector<128x128xf32>, vector<17x128xf32> -> vector<17x128xf32>
    %38 = arith.addf %32, %37 : vector<17x128xf32>
    %c0_26 = arith.constant 0 : index
    %c4_27 = arith.constant 4 : index
    %c0_28 = arith.constant 0 : index
    %39 = vector.load %arg0[%c0_26, %c4_27, %c0_28] : memref<2x25x128xf32, #tpu.memory_space<vmem>>, vector<1x17x128xf32>
    %40 = vector.shape_cast %39 : vector<1x17x128xf32> to vector<17x128xf32>
    %c1 = arith.constant 1 : index
    %c0_29 = arith.constant 0 : index
    %c0_30 = arith.constant 0 : index
    %41 = vector.load %arg2[%c1, %c0_29, %c0_30] : memref<2x128x128xf32, #tpu.memory_space<vmem>>, vector<1x128x128xf32>
    %42 = vector.shape_cast %41 : vector<1x128x128xf32> to vector<128x128xf32>
    %cst_31 = arith.constant dense<0.000000e+00> : vector<17x128xf32>
    %43 = tpu.matmul %40, %42, %cst_31 {dimension_numbers = #tpu.dot_dimension_numbers<[1], [0], [0], [1], [0, 0, 1, 1], [], []>} : vector<17x128xf32>, vector<128x128xf32>, vector<17x128xf32> -> vector<17x128xf32>
    %44 = arith.addf %38, %43 : vector<17x128xf32>
    %c1_32 = arith.constant 1 : index
    %c0_33 = arith.constant 0 : index
    %c0_34 = arith.constant 0 : index
    %45 = vector.load %arg9[%c1_32, %c0_33, %c0_34] : memref<8x1x128xf32, #tpu.memory_space<vmem>>, vector<1x1x128xf32>
    %46 = vector.shape_cast %45 : vector<1x1x128xf32> to vector<1x128xf32>
    %47 = vector.broadcast %46 : vector<1x128xf32> to vector<17x128xf32>
    %48 = arith.addf %44, %47 : vector<17x128xf32>
    %cst_35 = arith.constant 0.000000e+00 : f32
    %49 = vector.broadcast %cst_35 : f32 to vector<17x128xf32>
    %50 = arith.maximumf %48, %49 : vector<17x128xf32>
    %c1_36 = arith.constant 1 : index
    %c0_37 = arith.constant 0 : index
    %c0_38 = arith.constant 0 : index
    %51 = vector.load %arg10[%c1_36, %c0_37, %c0_38] : memref<8x1x128xf32, #tpu.memory_space<vmem>>, vector<1x1x128xf32>
    %52 = vector.shape_cast %51 : vector<1x1x128xf32> to vector<1x128xf32>
    %53 = vector.broadcast %52 : vector<1x128xf32> to vector<17x128xf32>
    %54 = arith.mulf %50, %53 : vector<17x128xf32>
    %c1_39 = arith.constant 1 : index
    %c0_40 = arith.constant 0 : index
    %c0_41 = arith.constant 0 : index
    %55 = vector.load %arg11[%c1_39, %c0_40, %c0_41] : memref<8x1x128xf32, #tpu.memory_space<vmem>>, vector<1x1x128xf32>
    %56 = vector.shape_cast %55 : vector<1x1x128xf32> to vector<1x128xf32>
    %57 = vector.broadcast %56 : vector<1x128xf32> to vector<17x128xf32>
    %58 = arith.addf %54, %57 : vector<17x128xf32>
    %59 = vector.extract_strided_slice %58 {offsets = [1, 0], sizes = [16, 128], strides = [1, 1]} : vector<17x128xf32> to vector<16x128xf32>
    %60 = vector.extract_strided_slice %58 {offsets = [0, 0], sizes = [16, 128], strides = [1, 1]} : vector<17x128xf32> to vector<16x128xf32>
    %61 = tpu.iota {dimensions = array<i32: 0>} : vector<16x128xi32>
    %c0_i32_42 = arith.constant 0 : i32
    %62 = vector.broadcast %c0_i32_42 : i32 to vector<16x128xi32>
    %63 = arith.cmpi eq, %61, %62 : vector<16x128xi32>
    %cst_43 = arith.constant 0xFF800000 : f32
    %64 = vector.broadcast %cst_43 : f32 to vector<16x128xf32>
    %65 = arith.select %63, %64, %60 : vector<16x128xi1>, vector<16x128xf32>
    %66 = arith.maximumf %59, %65 : vector<16x128xf32>
    %c0_44 = arith.constant 0 : index
    %c0_45 = arith.constant 0 : index
    %c128 = arith.constant 128 : index
    %67 = vector.load %arg12[%c0_44, %c0_45, %c128] : memref<2x16x1024xf32, #tpu.memory_space<vmem>>, vector<1x16x128xf32>
    %68 = vector.shape_cast %67 : vector<1x16x128xf32> to vector<16x128xf32>
    %69 = vector.shape_cast %66 : vector<16x128xf32> to vector<1x16x128xf32>
    tpu.vector_store %arg12[%c0_44, %c0_45, %c128], %69 {strides = array<i32>} : memref<2x16x1024xf32, #tpu.memory_space<vmem>>, vector<1x16x128xf32>,
    %cst_46 = arith.constant 0.000000e+00 : f32
    %70 = vector.broadcast %cst_46 : f32 to vector<17x128xf32>
    %c0_47 = arith.constant 0 : index
    %c3_48 = arith.constant 3 : index
    %c0_49 = arith.constant 0 : index
    %71 = vector.load %arg0[%c0_47, %c3_48, %c0_49] : memref<2x25x128xf32, #tpu.memory_space<vmem>>, vector<1x17x128xf32>
    %72 = vector.shape_cast %71 : vector<1x17x128xf32> to vector<17x128xf32>
    %c0_50 = arith.constant 0 : index
    %c0_51 = arith.constant 0 : index
    %c0_52 = arith.constant 0 : index
    %73 = vector.load %arg3[%c0_50, %c0_51, %c0_52] : memref<3x128x128xf32, #tpu.memory_space<vmem>>, vector<1x128x128xf32>
    %74 = vector.shape_cast %73 : vector<1x128x128xf32> to vector<128x128xf32>
    %cst_53 = arith.constant dense<0.000000e+00> : vector<17x128xf32>
    %75 = tpu.matmul %72, %74, %cst_53 {dimension_numbers = #tpu.dot_dimension_numbers<[1], [0], [0], [1], [0, 0, 1, 1], [], []>} : vector<17x128xf32>, vector<128x128xf32>, vector<17x128xf32> -> vector<17x128xf32>
    %76 = arith.addf %70, %75 : vector<17x128xf32>
    %c0_54 = arith.constant 0 : index
    %c4_55 = arith.constant 4 : index
    %c0_56 = arith.constant 0 : index
    %77 = vector.load %arg0[%c0_54, %c4_55, %c0_56] : memref<2x25x128xf32, #tpu.memory_space<vmem>>, vector<1x17x128xf32>
    %78 = vector.shape_cast %77 : vector<1x17x128xf32> to vector<17x128xf32>
    %c1_57 = arith.constant 1 : index
    %c0_58 = arith.constant 0 : index
    %c0_59 = arith.constant 0 : index
    %79 = vector.load %arg3[%c1_57, %c0_58, %c0_59] : memref<3x128x128xf32, #tpu.memory_space<vmem>>, vector<1x128x128xf32>
    %80 = vector.shape_cast %79 : vector<1x128x128xf32> to vector<128x128xf32>
    %cst_60 = arith.constant dense<0.000000e+00> : vector<17x128xf32>
    %81 = tpu.matmul %78, %80, %cst_60 {dimension_numbers = #tpu.dot_dimension_numbers<[1], [0], [0], [1], [0, 0, 1, 1], [], []>} : vector<17x128xf32>, vector<128x128xf32>, vector<17x128xf32> -> vector<17x128xf32>
    %82 = arith.addf %76, %81 : vector<17x128xf32>
    %c0_61 = arith.constant 0 : index
    %c5 = arith.constant 5 : index
    %c0_62 = arith.constant 0 : index
    %83 = vector.load %arg0[%c0_61, %c5, %c0_62] : memref<2x25x128xf32, #tpu.memory_space<vmem>>, vector<1x17x128xf32>
    %84 = vector.shape_cast %83 : vector<1x17x128xf32> to vector<17x128xf32>
    %c2 = arith.constant 2 : index
    %c0_63 = arith.constant 0 : index
    %c0_64 = arith.constant 0 : index
    %85 = vector.load %arg3[%c2, %c0_63, %c0_64] : memref<3x128x128xf32, #tpu.memory_space<vmem>>, vector<1x128x128xf32>
    %86 = vector.shape_cast %85 : vector<1x128x128xf32> to vector<128x128xf32>
    %cst_65 = arith.constant dense<0.000000e+00> : vector<17x128xf32>
    %87 = tpu.matmul %84, %86, %cst_65 {dimension_numbers = #tpu.dot_dimension_numbers<[1], [0], [0], [1], [0, 0, 1, 1], [], []>} : vector<17x128xf32>, vector<128x128xf32>, vector<17x128xf32> -> vector<17x128xf32>
    %88 = arith.addf %82, %87 : vector<17x128xf32>
    %c2_66 = arith.constant 2 : index
    %c0_67 = arith.constant 0 : index
    %c0_68 = arith.constant 0 : index
    %89 = vector.load %arg9[%c2_66, %c0_67, %c0_68] : memref<8x1x128xf32, #tpu.memory_space<vmem>>, vector<1x1x128xf32>
    %90 = vector.shape_cast %89 : vector<1x1x128xf32> to vector<1x128xf32>
    %91 = vector.broadcast %90 : vector<1x128xf32> to vector<17x128xf32>
    %92 = arith.addf %88, %91 : vector<17x128xf32>
    %cst_69 = arith.constant 0.000000e+00 : f32
    %93 = vector.broadcast %cst_69 : f32 to vector<17x128xf32>
    %94 = arith.maximumf %92, %93 : vector<17x128xf32>
    %c2_70 = arith.constant 2 : index
    %c0_71 = arith.constant 0 : index
    %c0_72 = arith.constant 0 : index
    %95 = vector.load %arg10[%c2_70, %c0_71, %c0_72] : memref<8x1x128xf32, #tpu.memory_space<vmem>>, vector<1x1x128xf32>
    %96 = vector.shape_cast %95 : vector<1x1x128xf32> to vector<1x128xf32>
    %97 = vector.broadcast %96 : vector<1x128xf32> to vector<17x128xf32>
    %98 = arith.mulf %94, %97 : vector<17x128xf32>
    %c2_73 = arith.constant 2 : index
    %c0_74 = arith.constant 0 : index
    %c0_75 = arith.constant 0 : index
    %99 = vector.load %arg11[%c2_73, %c0_74, %c0_75] : memref<8x1x128xf32, #tpu.memory_space<vmem>>, vector<1x1x128xf32>
    %100 = vector.shape_cast %99 : vector<1x1x128xf32> to vector<1x128xf32>
    %101 = vector.broadcast %100 : vector<1x128xf32> to vector<17x128xf32>
    %102 = arith.addf %98, %101 : vector<17x128xf32>
    %103 = vector.extract_strided_slice %102 {offsets = [1, 0], sizes = [16, 128], strides = [1, 1]} : vector<17x128xf32> to vector<16x128xf32>
    %104 = vector.extract_strided_slice %102 {offsets = [0, 0], sizes = [16, 128], strides = [1, 1]} : vector<17x128xf32> to vector<16x128xf32>
    %105 = tpu.iota {dimensions = array<i32: 0>} : vector<16x128xi32>
    %c0_i32_76 = arith.constant 0 : i32
    %106 = vector.broadcast %c0_i32_76 : i32 to vector<16x128xi32>
    %107 = arith.cmpi eq, %105, %106 : vector<16x128xi32>
    %cst_77 = arith.constant 0xFF800000 : f32
    %108 = vector.broadcast %cst_77 : f32 to vector<16x128xf32>
    %109 = arith.select %107, %108, %104 : vector<16x128xi1>, vector<16x128xf32>
    %110 = arith.maximumf %103, %109 : vector<16x128xf32>
    %c0_78 = arith.constant 0 : index
    %c0_79 = arith.constant 0 : index
    %c256 = arith.constant 256 : index
    %111 = vector.load %arg12[%c0_78, %c0_79, %c256] : memref<2x16x1024xf32, #tpu.memory_space<vmem>>, vector<1x16x128xf32>
    %112 = vector.shape_cast %111 : vector<1x16x128xf32> to vector<16x128xf32>
    %113 = vector.shape_cast %110 : vector<16x128xf32> to vector<1x16x128xf32>
    tpu.vector_store %arg12[%c0_78, %c0_79, %c256], %113 {strides = array<i32>} : memref<2x16x1024xf32, #tpu.memory_space<vmem>>, vector<1x16x128xf32>,
    %cst_80 = arith.constant 0.000000e+00 : f32
    %114 = vector.broadcast %cst_80 : f32 to vector<17x128xf32>
    %c0_81 = arith.constant 0 : index
    %c2_82 = arith.constant 2 : index
    %c0_83 = arith.constant 0 : index
    %115 = vector.load %arg0[%c0_81, %c2_82, %c0_83] : memref<2x25x128xf32, #tpu.memory_space<vmem>>, vector<1x17x128xf32>
    %116 = vector.shape_cast %115 : vector<1x17x128xf32> to vector<17x128xf32>
    %c0_84 = arith.constant 0 : index
    %c0_85 = arith.constant 0 : index
    %c0_86 = arith.constant 0 : index
    %117 = vector.load %arg4[%c0_84, %c0_85, %c0_86] : memref<4x128x128xf32, #tpu.memory_space<vmem>>, vector<1x128x128xf32>
    %118 = vector.shape_cast %117 : vector<1x128x128xf32> to vector<128x128xf32>
    %cst_87 = arith.constant dense<0.000000e+00> : vector<17x128xf32>
    %119 = tpu.matmul %116, %118, %cst_87 {dimension_numbers = #tpu.dot_dimension_numbers<[1], [0], [0], [1], [0, 0, 1, 1], [], []>} : vector<17x128xf32>, vector<128x128xf32>, vector<17x128xf32> -> vector<17x128xf32>
    %120 = arith.addf %114, %119 : vector<17x128xf32>
    %c0_88 = arith.constant 0 : index
    %c3_89 = arith.constant 3 : index
    %c0_90 = arith.constant 0 : index
    %121 = vector.load %arg0[%c0_88, %c3_89, %c0_90] : memref<2x25x128xf32, #tpu.memory_space<vmem>>, vector<1x17x128xf32>
    %122 = vector.shape_cast %121 : vector<1x17x128xf32> to vector<17x128xf32>
    %c1_91 = arith.constant 1 : index
    %c0_92 = arith.constant 0 : index
    %c0_93 = arith.constant 0 : index
    %123 = vector.load %arg4[%c1_91, %c0_92, %c0_93] : memref<4x128x128xf32, #tpu.memory_space<vmem>>, vector<1x128x128xf32>
    %124 = vector.shape_cast %123 : vector<1x128x128xf32> to vector<128x128xf32>
    %cst_94 = arith.constant dense<0.000000e+00> : vector<17x128xf32>
    %125 = tpu.matmul %122, %124, %cst_94 {dimension_numbers = #tpu.dot_dimension_numbers<[1], [0], [0], [1], [0, 0, 1, 1], [], []>} : vector<17x128xf32>, vector<128x128xf32>, vector<17x128xf32> -> vector<17x128xf32>
    %126 = arith.addf %120, %125 : vector<17x128xf32>
    %c0_95 = arith.constant 0 : index
    %c4_96 = arith.constant 4 : index
    %c0_97 = arith.constant 0 : index
    %127 = vector.load %arg0[%c0_95, %c4_96, %c0_97] : memref<2x25x128xf32, #tpu.memory_space<vmem>>, vector<1x17x128xf32>
    %128 = vector.shape_cast %127 : vector<1x17x128xf32> to vector<17x128xf32>
    %c2_98 = arith.constant 2 : index
    %c0_99 = arith.constant 0 : index
    %c0_100 = arith.constant 0 : index
    %129 = vector.load %arg4[%c2_98, %c0_99, %c0_100] : memref<4x128x128xf32, #tpu.memory_space<vmem>>, vector<1x128x128xf32>
    %130 = vector.shape_cast %129 : vector<1x128x128xf32> to vector<128x128xf32>
    %cst_101 = arith.constant dense<0.000000e+00> : vector<17x128xf32>
    %131 = tpu.matmul %128, %130, %cst_101 {dimension_numbers = #tpu.dot_dimension_numbers<[1], [0], [0], [1], [0, 0, 1, 1], [], []>} : vector<17x128xf32>, vector<128x128xf32>, vector<17x128xf32> -> vector<17x128xf32>
    %132 = arith.addf %126, %131 : vector<17x128xf32>
    %c0_102 = arith.constant 0 : index
    %c5_103 = arith.constant 5 : index
    %c0_104 = arith.constant 0 : index
    %133 = vector.load %arg0[%c0_102, %c5_103, %c0_104] : memref<2x25x128xf32, #tpu.memory_space<vmem>>, vector<1x17x128xf32>
    %134 = vector.shape_cast %133 : vector<1x17x128xf32> to vector<17x128xf32>
    %c3_105 = arith.constant 3 : index
    %c0_106 = arith.constant 0 : index
    %c0_107 = arith.constant 0 : index
    %135 = vector.load %arg4[%c3_105, %c0_106, %c0_107] : memref<4x128x128xf32, #tpu.memory_space<vmem>>, vector<1x128x128xf32>
    %136 = vector.shape_cast %135 : vector<1x128x128xf32> to vector<128x128xf32>
    %cst_108 = arith.constant dense<0.000000e+00> : vector<17x128xf32>
    %137 = tpu.matmul %134, %136, %cst_108 {dimension_numbers = #tpu.dot_dimension_numbers<[1], [0], [0], [1], [0, 0, 1, 1], [], []>} : vector<17x128xf32>, vector<128x128xf32>, vector<17x128xf32> -> vector<17x128xf32>
    %138 = arith.addf %132, %137 : vector<17x128xf32>
    %c3_109 = arith.constant 3 : index
    %c0_110 = arith.constant 0 : index
    %c0_111 = arith.constant 0 : index
    %139 = vector.load %arg9[%c3_109, %c0_110, %c0_111] : memref<8x1x128xf32, #tpu.memory_space<vmem>>, vector<1x1x128xf32>
    %140 = vector.shape_cast %139 : vector<1x1x128xf32> to vector<1x128xf32>
    %141 = vector.broadcast %140 : vector<1x128xf32> to vector<17x128xf32>
    %142 = arith.addf %138, %141 : vector<17x128xf32>
    %cst_112 = arith.constant 0.000000e+00 : f32
    %143 = vector.broadcast %cst_112 : f32 to vector<17x128xf32>
    %144 = arith.maximumf %142, %143 : vector<17x128xf32>
    %c3_113 = arith.constant 3 : index
    %c0_114 = arith.constant 0 : index
    %c0_115 = arith.constant 0 : index
    %145 = vector.load %arg10[%c3_113, %c0_114, %c0_115] : memref<8x1x128xf32, #tpu.memory_space<vmem>>, vector<1x1x128xf32>
    %146 = vector.shape_cast %145 : vector<1x1x128xf32> to vector<1x128xf32>
    %147 = vector.broadcast %146 : vector<1x128xf32> to vector<17x128xf32>
    %148 = arith.mulf %144, %147 : vector<17x128xf32>
    %c3_116 = arith.constant 3 : index
    %c0_117 = arith.constant 0 : index
    %c0_118 = arith.constant 0 : index
    %149 = vector.load %arg11[%c3_116, %c0_117, %c0_118] : memref<8x1x128xf32, #tpu.memory_space<vmem>>, vector<1x1x128xf32>
    %150 = vector.shape_cast %149 : vector<1x1x128xf32> to vector<1x128xf32>
    %151 = vector.broadcast %150 : vector<1x128xf32> to vector<17x128xf32>
    %152 = arith.addf %148, %151 : vector<17x128xf32>
    %153 = vector.extract_strided_slice %152 {offsets = [1, 0], sizes = [16, 128], strides = [1, 1]} : vector<17x128xf32> to vector<16x128xf32>
    %154 = vector.extract_strided_slice %152 {offsets = [0, 0], sizes = [16, 128], strides = [1, 1]} : vector<17x128xf32> to vector<16x128xf32>
    %155 = tpu.iota {dimensions = array<i32: 0>} : vector<16x128xi32>
    %c0_i32_119 = arith.constant 0 : i32
    %156 = vector.broadcast %c0_i32_119 : i32 to vector<16x128xi32>
    %157 = arith.cmpi eq, %155, %156 : vector<16x128xi32>
    %cst_120 = arith.constant 0xFF800000 : f32
    %158 = vector.broadcast %cst_120 : f32 to vector<16x128xf32>
    %159 = arith.select %157, %158, %154 : vector<16x128xi1>, vector<16x128xf32>
    %160 = arith.maximumf %153, %159 : vector<16x128xf32>
    %c0_121 = arith.constant 0 : index
    %c0_122 = arith.constant 0 : index
    %c384 = arith.constant 384 : index
    %161 = vector.load %arg12[%c0_121, %c0_122, %c384] : memref<2x16x1024xf32, #tpu.memory_space<vmem>>, vector<1x16x128xf32>
    %162 = vector.shape_cast %161 : vector<1x16x128xf32> to vector<16x128xf32>
    %163 = vector.shape_cast %160 : vector<16x128xf32> to vector<1x16x128xf32>
    tpu.vector_store %arg12[%c0_121, %c0_122, %c384], %163 {strides = array<i32>} : memref<2x16x1024xf32, #tpu.memory_space<vmem>>, vector<1x16x128xf32>,
    %cst_123 = arith.constant 0.000000e+00 : f32
    %164 = vector.broadcast %cst_123 : f32 to vector<17x128xf32>
    %c0_124 = arith.constant 0 : index
    %c2_125 = arith.constant 2 : index
    %c0_126 = arith.constant 0 : index
    %165 = vector.load %arg0[%c0_124, %c2_125, %c0_126] : memref<2x25x128xf32, #tpu.memory_space<vmem>>, vector<1x17x128xf32>
    %166 = vector.shape_cast %165 : vector<1x17x128xf32> to vector<17x128xf32>
    %c0_127 = arith.constant 0 : index
    %c0_128 = arith.constant 0 : index
    %c0_129 = arith.constant 0 : index
    %167 = vector.load %arg5[%c0_127, %c0_128, %c0_129] : memref<5x128x128xf32, #tpu.memory_space<vmem>>, vector<1x128x128xf32>
    %168 = vector.shape_cast %167 : vector<1x128x128xf32> to vector<128x128xf32>
    %cst_130 = arith.constant dense<0.000000e+00> : vector<17x128xf32>
    %169 = tpu.matmul %166, %168, %cst_130 {dimension_numbers = #tpu.dot_dimension_numbers<[1], [0], [0], [1], [0, 0, 1, 1], [], []>} : vector<17x128xf32>, vector<128x128xf32>, vector<17x128xf32> -> vector<17x128xf32>
    %170 = arith.addf %164, %169 : vector<17x128xf32>
    %c0_131 = arith.constant 0 : index
    %c3_132 = arith.constant 3 : index
    %c0_133 = arith.constant 0 : index
    %171 = vector.load %arg0[%c0_131, %c3_132, %c0_133] : memref<2x25x128xf32, #tpu.memory_space<vmem>>, vector<1x17x128xf32>
    %172 = vector.shape_cast %171 : vector<1x17x128xf32> to vector<17x128xf32>
    %c1_134 = arith.constant 1 : index
    %c0_135 = arith.constant 0 : index
    %c0_136 = arith.constant 0 : index
    %173 = vector.load %arg5[%c1_134, %c0_135, %c0_136] : memref<5x128x128xf32, #tpu.memory_space<vmem>>, vector<1x128x128xf32>
    %174 = vector.shape_cast %173 : vector<1x128x128xf32> to vector<128x128xf32>
    %cst_137 = arith.constant dense<0.000000e+00> : vector<17x128xf32>
    %175 = tpu.matmul %172, %174, %cst_137 {dimension_numbers = #tpu.dot_dimension_numbers<[1], [0], [0], [1], [0, 0, 1, 1], [], []>} : vector<17x128xf32>, vector<128x128xf32>, vector<17x128xf32> -> vector<17x128xf32>
    %176 = arith.addf %170, %175 : vector<17x128xf32>
    %c0_138 = arith.constant 0 : index
    %c4_139 = arith.constant 4 : index
    %c0_140 = arith.constant 0 : index
    %177 = vector.load %arg0[%c0_138, %c4_139, %c0_140] : memref<2x25x128xf32, #tpu.memory_space<vmem>>, vector<1x17x128xf32>
    %178 = vector.shape_cast %177 : vector<1x17x128xf32> to vector<17x128xf32>
    %c2_141 = arith.constant 2 : index
    %c0_142 = arith.constant 0 : index
    %c0_143 = arith.constant 0 : index
    %179 = vector.load %arg5[%c2_141, %c0_142, %c0_143] : memref<5x128x128xf32, #tpu.memory_space<vmem>>, vector<1x128x128xf32>
    %180 = vector.shape_cast %179 : vector<1x128x128xf32> to vector<128x128xf32>
    %cst_144 = arith.constant dense<0.000000e+00> : vector<17x128xf32>
    %181 = tpu.matmul %178, %180, %cst_144 {dimension_numbers = #tpu.dot_dimension_numbers<[1], [0], [0], [1], [0, 0, 1, 1], [], []>} : vector<17x128xf32>, vector<128x128xf32>, vector<17x128xf32> -> vector<17x128xf32>
    %182 = arith.addf %176, %181 : vector<17x128xf32>
    %c0_145 = arith.constant 0 : index
    %c5_146 = arith.constant 5 : index
    %c0_147 = arith.constant 0 : index
    %183 = vector.load %arg0[%c0_145, %c5_146, %c0_147] : memref<2x25x128xf32, #tpu.memory_space<vmem>>, vector<1x17x128xf32>
    %184 = vector.shape_cast %183 : vector<1x17x128xf32> to vector<17x128xf32>
    %c3_148 = arith.constant 3 : index
    %c0_149 = arith.constant 0 : index
    %c0_150 = arith.constant 0 : index
    %185 = vector.load %arg5[%c3_148, %c0_149, %c0_150] : memref<5x128x128xf32, #tpu.memory_space<vmem>>, vector<1x128x128xf32>
    %186 = vector.shape_cast %185 : vector<1x128x128xf32> to vector<128x128xf32>
    %cst_151 = arith.constant dense<0.000000e+00> : vector<17x128xf32>
    %187 = tpu.matmul %184, %186, %cst_151 {dimension_numbers = #tpu.dot_dimension_numbers<[1], [0], [0], [1], [0, 0, 1, 1], [], []>} : vector<17x128xf32>, vector<128x128xf32>, vector<17x128xf32> -> vector<17x128xf32>
    %188 = arith.addf %182, %187 : vector<17x128xf32>
    %c0_152 = arith.constant 0 : index
    %c6 = arith.constant 6 : index
    %c0_153 = arith.constant 0 : index
    %189 = vector.load %arg0[%c0_152, %c6, %c0_153] : memref<2x25x128xf32, #tpu.memory_space<vmem>>, vector<1x17x128xf32>
    %190 = vector.shape_cast %189 : vector<1x17x128xf32> to vector<17x128xf32>
    %c4_154 = arith.constant 4 : index
    %c0_155 = arith.constant 0 : index
    %c0_156 = arith.constant 0 : index
    %191 = vector.load %arg5[%c4_154, %c0_155, %c0_156] : memref<5x128x128xf32, #tpu.memory_space<vmem>>, vector<1x128x128xf32>
    %192 = vector.shape_cast %191 : vector<1x128x128xf32> to vector<128x128xf32>
    %cst_157 = arith.constant dense<0.000000e+00> : vector<17x128xf32>
    %193 = tpu.matmul %190, %192, %cst_157 {dimension_numbers = #tpu.dot_dimension_numbers<[1], [0], [0], [1], [0, 0, 1, 1], [], []>} : vector<17x128xf32>, vector<128x128xf32>, vector<17x128xf32> -> vector<17x128xf32>
    %194 = arith.addf %188, %193 : vector<17x128xf32>
    %c4_158 = arith.constant 4 : index
    %c0_159 = arith.constant 0 : index
    %c0_160 = arith.constant 0 : index
    %195 = vector.load %arg9[%c4_158, %c0_159, %c0_160] : memref<8x1x128xf32, #tpu.memory_space<vmem>>, vector<1x1x128xf32>
    %196 = vector.shape_cast %195 : vector<1x1x128xf32> to vector<1x128xf32>
    %197 = vector.broadcast %196 : vector<1x128xf32> to vector<17x128xf32>
    %198 = arith.addf %194, %197 : vector<17x128xf32>
    %cst_161 = arith.constant 0.000000e+00 : f32
    %199 = vector.broadcast %cst_161 : f32 to vector<17x128xf32>
    %200 = arith.maximumf %198, %199 : vector<17x128xf32>
    %c4_162 = arith.constant 4 : index
    %c0_163 = arith.constant 0 : index
    %c0_164 = arith.constant 0 : index
    %201 = vector.load %arg10[%c4_162, %c0_163, %c0_164] : memref<8x1x128xf32, #tpu.memory_space<vmem>>, vector<1x1x128xf32>
    %202 = vector.shape_cast %201 : vector<1x1x128xf32> to vector<1x128xf32>
    %203 = vector.broadcast %202 : vector<1x128xf32> to vector<17x128xf32>
    %204 = arith.mulf %200, %203 : vector<17x128xf32>
    %c4_165 = arith.constant 4 : index
    %c0_166 = arith.constant 0 : index
    %c0_167 = arith.constant 0 : index
    %205 = vector.load %arg11[%c4_165, %c0_166, %c0_167] : memref<8x1x128xf32, #tpu.memory_space<vmem>>, vector<1x1x128xf32>
    %206 = vector.shape_cast %205 : vector<1x1x128xf32> to vector<1x128xf32>
    %207 = vector.broadcast %206 : vector<1x128xf32> to vector<17x128xf32>
    %208 = arith.addf %204, %207 : vector<17x128xf32>
    %209 = vector.extract_strided_slice %208 {offsets = [1, 0], sizes = [16, 128], strides = [1, 1]} : vector<17x128xf32> to vector<16x128xf32>
    %210 = vector.extract_strided_slice %208 {offsets = [0, 0], sizes = [16, 128], strides = [1, 1]} : vector<17x128xf32> to vector<16x128xf32>
    %211 = tpu.iota {dimensions = array<i32: 0>} : vector<16x128xi32>
    %c0_i32_168 = arith.constant 0 : i32
    %212 = vector.broadcast %c0_i32_168 : i32 to vector<16x128xi32>
    %213 = arith.cmpi eq, %211, %212 : vector<16x128xi32>
    %cst_169 = arith.constant 0xFF800000 : f32
    %214 = vector.broadcast %cst_169 : f32 to vector<16x128xf32>
    %215 = arith.select %213, %214, %210 : vector<16x128xi1>, vector<16x128xf32>
    %216 = arith.maximumf %209, %215 : vector<16x128xf32>
    %c0_170 = arith.constant 0 : index
    %c0_171 = arith.constant 0 : index
    %c512 = arith.constant 512 : index
    %217 = vector.load %arg12[%c0_170, %c0_171, %c512] : memref<2x16x1024xf32, #tpu.memory_space<vmem>>, vector<1x16x128xf32>
    %218 = vector.shape_cast %217 : vector<1x16x128xf32> to vector<16x128xf32>
    %219 = vector.shape_cast %216 : vector<16x128xf32> to vector<1x16x128xf32>
    tpu.vector_store %arg12[%c0_170, %c0_171, %c512], %219 {strides = array<i32>} : memref<2x16x1024xf32, #tpu.memory_space<vmem>>, vector<1x16x128xf32>,
    %cst_172 = arith.constant 0.000000e+00 : f32
    %220 = vector.broadcast %cst_172 : f32 to vector<17x128xf32>
    %c0_173 = arith.constant 0 : index
    %c1_174 = arith.constant 1 : index
    %c0_175 = arith.constant 0 : index
    %221 = vector.load %arg0[%c0_173, %c1_174, %c0_175] : memref<2x25x128xf32, #tpu.memory_space<vmem>>, vector<1x17x128xf32>
    %222 = vector.shape_cast %221 : vector<1x17x128xf32> to vector<17x128xf32>
    %c0_176 = arith.constant 0 : index
    %c0_177 = arith.constant 0 : index
    %c0_178 = arith.constant 0 : index
    %223 = vector.load %arg6[%c0_176, %c0_177, %c0_178] : memref<6x128x128xf32, #tpu.memory_space<vmem>>, vector<1x128x128xf32>
    %224 = vector.shape_cast %223 : vector<1x128x128xf32> to vector<128x128xf32>
    %cst_179 = arith.constant dense<0.000000e+00> : vector<17x128xf32>
    %225 = tpu.matmul %222, %224, %cst_179 {dimension_numbers = #tpu.dot_dimension_numbers<[1], [0], [0], [1], [0, 0, 1, 1], [], []>} : vector<17x128xf32>, vector<128x128xf32>, vector<17x128xf32> -> vector<17x128xf32>
    %226 = arith.addf %220, %225 : vector<17x128xf32>
    %c0_180 = arith.constant 0 : index
    %c2_181 = arith.constant 2 : index
    %c0_182 = arith.constant 0 : index
    %227 = vector.load %arg0[%c0_180, %c2_181, %c0_182] : memref<2x25x128xf32, #tpu.memory_space<vmem>>, vector<1x17x128xf32>
    %228 = vector.shape_cast %227 : vector<1x17x128xf32> to vector<17x128xf32>
    %c1_183 = arith.constant 1 : index
    %c0_184 = arith.constant 0 : index
    %c0_185 = arith.constant 0 : index
    %229 = vector.load %arg6[%c1_183, %c0_184, %c0_185] : memref<6x128x128xf32, #tpu.memory_space<vmem>>, vector<1x128x128xf32>
    %230 = vector.shape_cast %229 : vector<1x128x128xf32> to vector<128x128xf32>
    %cst_186 = arith.constant dense<0.000000e+00> : vector<17x128xf32>
    %231 = tpu.matmul %228, %230, %cst_186 {dimension_numbers = #tpu.dot_dimension_numbers<[1], [0], [0], [1], [0, 0, 1, 1], [], []>} : vector<17x128xf32>, vector<128x128xf32>, vector<17x128xf32> -> vector<17x128xf32>
    %232 = arith.addf %226, %231 : vector<17x128xf32>
    %c0_187 = arith.constant 0 : index
    %c3_188 = arith.constant 3 : index
    %c0_189 = arith.constant 0 : index
    %233 = vector.load %arg0[%c0_187, %c3_188, %c0_189] : memref<2x25x128xf32, #tpu.memory_space<vmem>>, vector<1x17x128xf32>
    %234 = vector.shape_cast %233 : vector<1x17x128xf32> to vector<17x128xf32>
    %c2_190 = arith.constant 2 : index
    %c0_191 = arith.constant 0 : index
    %c0_192 = arith.constant 0 : index
    %235 = vector.load %arg6[%c2_190, %c0_191, %c0_192] : memref<6x128x128xf32, #tpu.memory_space<vmem>>, vector<1x128x128xf32>
    %236 = vector.shape_cast %235 : vector<1x128x128xf32> to vector<128x128xf32>
    %cst_193 = arith.constant dense<0.000000e+00> : vector<17x128xf32>
    %237 = tpu.matmul %234, %236, %cst_193 {dimension_numbers = #tpu.dot_dimension_numbers<[1], [0], [0], [1], [0, 0, 1, 1], [], []>} : vector<17x128xf32>, vector<128x128xf32>, vector<17x128xf32> -> vector<17x128xf32>
    %238 = arith.addf %232, %237 : vector<17x128xf32>
    %c0_194 = arith.constant 0 : index
    %c4_195 = arith.constant 4 : index
    %c0_196 = arith.constant 0 : index
    %239 = vector.load %arg0[%c0_194, %c4_195, %c0_196] : memref<2x25x128xf32, #tpu.memory_space<vmem>>, vector<1x17x128xf32>
    %240 = vector.shape_cast %239 : vector<1x17x128xf32> to vector<17x128xf32>
    %c3_197 = arith.constant 3 : index
    %c0_198 = arith.constant 0 : index
    %c0_199 = arith.constant 0 : index
    %241 = vector.load %arg6[%c3_197, %c0_198, %c0_199] : memref<6x128x128xf32, #tpu.memory_space<vmem>>, vector<1x128x128xf32>
    %242 = vector.shape_cast %241 : vector<1x128x128xf32> to vector<128x128xf32>
    %cst_200 = arith.constant dense<0.000000e+00> : vector<17x128xf32>
    %243 = tpu.matmul %240, %242, %cst_200 {dimension_numbers = #tpu.dot_dimension_numbers<[1], [0], [0], [1], [0, 0, 1, 1], [], []>} : vector<17x128xf32>, vector<128x128xf32>, vector<17x128xf32> -> vector<17x128xf32>
    %244 = arith.addf %238, %243 : vector<17x128xf32>
    %c0_201 = arith.constant 0 : index
    %c5_202 = arith.constant 5 : index
    %c0_203 = arith.constant 0 : index
    %245 = vector.load %arg0[%c0_201, %c5_202, %c0_203] : memref<2x25x128xf32, #tpu.memory_space<vmem>>, vector<1x17x128xf32>
    %246 = vector.shape_cast %245 : vector<1x17x128xf32> to vector<17x128xf32>
    %c4_204 = arith.constant 4 : index
    %c0_205 = arith.constant 0 : index
    %c0_206 = arith.constant 0 : index
    %247 = vector.load %arg6[%c4_204, %c0_205, %c0_206] : memref<6x128x128xf32, #tpu.memory_space<vmem>>, vector<1x128x128xf32>
    %248 = vector.shape_cast %247 : vector<1x128x128xf32> to vector<128x128xf32>
    %cst_207 = arith.constant dense<0.000000e+00> : vector<17x128xf32>
    %249 = tpu.matmul %246, %248, %cst_207 {dimension_numbers = #tpu.dot_dimension_numbers<[1], [0], [0], [1], [0, 0, 1, 1], [], []>} : vector<17x128xf32>, vector<128x128xf32>, vector<17x128xf32> -> vector<17x128xf32>
    %250 = arith.addf %244, %249 : vector<17x128xf32>
    %c0_208 = arith.constant 0 : index
    %c6_209 = arith.constant 6 : index
    %c0_210 = arith.constant 0 : index
    %251 = vector.load %arg0[%c0_208, %c6_209, %c0_210] : memref<2x25x128xf32, #tpu.memory_space<vmem>>, vector<1x17x128xf32>
    %252 = vector.shape_cast %251 : vector<1x17x128xf32> to vector<17x128xf32>
    %c5_211 = arith.constant 5 : index
    %c0_212 = arith.constant 0 : index
    %c0_213 = arith.constant 0 : index
    %253 = vector.load %arg6[%c5_211, %c0_212, %c0_213] : memref<6x128x128xf32, #tpu.memory_space<vmem>>, vector<1x128x128xf32>
    %254 = vector.shape_cast %253 : vector<1x128x128xf32> to vector<128x128xf32>
    %cst_214 = arith.constant dense<0.000000e+00> : vector<17x128xf32>
    %255 = tpu.matmul %252, %254, %cst_214 {dimension_numbers = #tpu.dot_dimension_numbers<[1], [0], [0], [1], [0, 0, 1, 1], [], []>} : vector<17x128xf32>, vector<128x128xf32>, vector<17x128xf32> -> vector<17x128xf32>
    %256 = arith.addf %250, %255 : vector<17x128xf32>
    %c5_215 = arith.constant 5 : index
    %c0_216 = arith.constant 0 : index
    %c0_217 = arith.constant 0 : index
    %257 = vector.load %arg9[%c5_215, %c0_216, %c0_217] : memref<8x1x128xf32, #tpu.memory_space<vmem>>, vector<1x1x128xf32>
    %258 = vector.shape_cast %257 : vector<1x1x128xf32> to vector<1x128xf32>
    %259 = vector.broadcast %258 : vector<1x128xf32> to vector<17x128xf32>
    %260 = arith.addf %256, %259 : vector<17x128xf32>
    %cst_218 = arith.constant 0.000000e+00 : f32
    %261 = vector.broadcast %cst_218 : f32 to vector<17x128xf32>
    %262 = arith.maximumf %260, %261 : vector<17x128xf32>
    %c5_219 = arith.constant 5 : index
    %c0_220 = arith.constant 0 : index
    %c0_221 = arith.constant 0 : index
    %263 = vector.load %arg10[%c5_219, %c0_220, %c0_221] : memref<8x1x128xf32, #tpu.memory_space<vmem>>, vector<1x1x128xf32>
    %264 = vector.shape_cast %263 : vector<1x1x128xf32> to vector<1x128xf32>
    %265 = vector.broadcast %264 : vector<1x128xf32> to vector<17x128xf32>
    %266 = arith.mulf %262, %265 : vector<17x128xf32>
    %c5_222 = arith.constant 5 : index
    %c0_223 = arith.constant 0 : index
    %c0_224 = arith.constant 0 : index
    %267 = vector.load %arg11[%c5_222, %c0_223, %c0_224] : memref<8x1x128xf32, #tpu.memory_space<vmem>>, vector<1x1x128xf32>
    %268 = vector.shape_cast %267 : vector<1x1x128xf32> to vector<1x128xf32>
    %269 = vector.broadcast %268 : vector<1x128xf32> to vector<17x128xf32>
    %270 = arith.addf %266, %269 : vector<17x128xf32>
    %271 = vector.extract_strided_slice %270 {offsets = [1, 0], sizes = [16, 128], strides = [1, 1]} : vector<17x128xf32> to vector<16x128xf32>
    %272 = vector.extract_strided_slice %270 {offsets = [0, 0], sizes = [16, 128], strides = [1, 1]} : vector<17x128xf32> to vector<16x128xf32>
    %273 = tpu.iota {dimensions = array<i32: 0>} : vector<16x128xi32>
    %c0_i32_225 = arith.constant 0 : i32
    %274 = vector.broadcast %c0_i32_225 : i32 to vector<16x128xi32>
    %275 = arith.cmpi eq, %273, %274 : vector<16x128xi32>
    %cst_226 = arith.constant 0xFF800000 : f32
    %276 = vector.broadcast %cst_226 : f32 to vector<16x128xf32>
    %277 = arith.select %275, %276, %272 : vector<16x128xi1>, vector<16x128xf32>
    %278 = arith.maximumf %271, %277 : vector<16x128xf32>
    %c0_227 = arith.constant 0 : index
    %c0_228 = arith.constant 0 : index
    %c640 = arith.constant 640 : index
    %279 = vector.load %arg12[%c0_227, %c0_228, %c640] : memref<2x16x1024xf32, #tpu.memory_space<vmem>>, vector<1x16x128xf32>
    %280 = vector.shape_cast %279 : vector<1x16x128xf32> to vector<16x128xf32>
    %281 = vector.shape_cast %278 : vector<16x128xf32> to vector<1x16x128xf32>
    tpu.vector_store %arg12[%c0_227, %c0_228, %c640], %281 {strides = array<i32>} : memref<2x16x1024xf32, #tpu.memory_space<vmem>>, vector<1x16x128xf32>,
    %cst_229 = arith.constant 0.000000e+00 : f32
    %282 = vector.broadcast %cst_229 : f32 to vector<17x128xf32>
    %c0_230 = arith.constant 0 : index
    %c1_231 = arith.constant 1 : index
    %c0_232 = arith.constant 0 : index
    %283 = vector.load %arg0[%c0_230, %c1_231, %c0_232] : memref<2x25x128xf32, #tpu.memory_space<vmem>>, vector<1x17x128xf32>
    %284 = vector.shape_cast %283 : vector<1x17x128xf32> to vector<17x128xf32>
    %c0_233 = arith.constant 0 : index
    %c0_234 = arith.constant 0 : index
    %c0_235 = arith.constant 0 : index
    %285 = vector.load %arg7[%c0_233, %c0_234, %c0_235] : memref<7x128x128xf32, #tpu.memory_space<vmem>>, vector<1x128x128xf32>
    %286 = vector.shape_cast %285 : vector<1x128x128xf32> to vector<128x128xf32>
    %cst_236 = arith.constant dense<0.000000e+00> : vector<17x128xf32>
    %287 = tpu.matmul %284, %286, %cst_236 {dimension_numbers = #tpu.dot_dimension_numbers<[1], [0], [0], [1], [0, 0, 1, 1], [], []>} : vector<17x128xf32>, vector<128x128xf32>, vector<17x128xf32> -> vector<17x128xf32>
    %288 = arith.addf %282, %287 : vector<17x128xf32>
    %c0_237 = arith.constant 0 : index
    %c2_238 = arith.constant 2 : index
    %c0_239 = arith.constant 0 : index
    %289 = vector.load %arg0[%c0_237, %c2_238, %c0_239] : memref<2x25x128xf32, #tpu.memory_space<vmem>>, vector<1x17x128xf32>
    %290 = vector.shape_cast %289 : vector<1x17x128xf32> to vector<17x128xf32>
    %c1_240 = arith.constant 1 : index
    %c0_241 = arith.constant 0 : index
    %c0_242 = arith.constant 0 : index
    %291 = vector.load %arg7[%c1_240, %c0_241, %c0_242] : memref<7x128x128xf32, #tpu.memory_space<vmem>>, vector<1x128x128xf32>
    %292 = vector.shape_cast %291 : vector<1x128x128xf32> to vector<128x128xf32>
    %cst_243 = arith.constant dense<0.000000e+00> : vector<17x128xf32>
    %293 = tpu.matmul %290, %292, %cst_243 {dimension_numbers = #tpu.dot_dimension_numbers<[1], [0], [0], [1], [0, 0, 1, 1], [], []>} : vector<17x128xf32>, vector<128x128xf32>, vector<17x128xf32> -> vector<17x128xf32>
    %294 = arith.addf %288, %293 : vector<17x128xf32>
    %c0_244 = arith.constant 0 : index
    %c3_245 = arith.constant 3 : index
    %c0_246 = arith.constant 0 : index
    %295 = vector.load %arg0[%c0_244, %c3_245, %c0_246] : memref<2x25x128xf32, #tpu.memory_space<vmem>>, vector<1x17x128xf32>
    %296 = vector.shape_cast %295 : vector<1x17x128xf32> to vector<17x128xf32>
    %c2_247 = arith.constant 2 : index
    %c0_248 = arith.constant 0 : index
    %c0_249 = arith.constant 0 : index
    %297 = vector.load %arg7[%c2_247, %c0_248, %c0_249] : memref<7x128x128xf32, #tpu.memory_space<vmem>>, vector<1x128x128xf32>
    %298 = vector.shape_cast %297 : vector<1x128x128xf32> to vector<128x128xf32>
    %cst_250 = arith.constant dense<0.000000e+00> : vector<17x128xf32>
    %299 = tpu.matmul %296, %298, %cst_250 {dimension_numbers = #tpu.dot_dimension_numbers<[1], [0], [0], [1], [0, 0, 1, 1], [], []>} : vector<17x128xf32>, vector<128x128xf32>, vector<17x128xf32> -> vector<17x128xf32>
    %300 = arith.addf %294, %299 : vector<17x128xf32>
    %c0_251 = arith.constant 0 : index
    %c4_252 = arith.constant 4 : index
    %c0_253 = arith.constant 0 : index
    %301 = vector.load %arg0[%c0_251, %c4_252, %c0_253] : memref<2x25x128xf32, #tpu.memory_space<vmem>>, vector<1x17x128xf32>
    %302 = vector.shape_cast %301 : vector<1x17x128xf32> to vector<17x128xf32>
    %c3_254 = arith.constant 3 : index
    %c0_255 = arith.constant 0 : index
    %c0_256 = arith.constant 0 : index
    %303 = vector.load %arg7[%c3_254, %c0_255, %c0_256] : memref<7x128x128xf32, #tpu.memory_space<vmem>>, vector<1x128x128xf32>
    %304 = vector.shape_cast %303 : vector<1x128x128xf32> to vector<128x128xf32>
    %cst_257 = arith.constant dense<0.000000e+00> : vector<17x128xf32>
    %305 = tpu.matmul %302, %304, %cst_257 {dimension_numbers = #tpu.dot_dimension_numbers<[1], [0], [0], [1], [0, 0, 1, 1], [], []>} : vector<17x128xf32>, vector<128x128xf32>, vector<17x128xf32> -> vector<17x128xf32>
    %306 = arith.addf %300, %305 : vector<17x128xf32>
    %c0_258 = arith.constant 0 : index
    %c5_259 = arith.constant 5 : index
    %c0_260 = arith.constant 0 : index
    %307 = vector.load %arg0[%c0_258, %c5_259, %c0_260] : memref<2x25x128xf32, #tpu.memory_space<vmem>>, vector<1x17x128xf32>
    %308 = vector.shape_cast %307 : vector<1x17x128xf32> to vector<17x128xf32>
    %c4_261 = arith.constant 4 : index
    %c0_262 = arith.constant 0 : index
    %c0_263 = arith.constant 0 : index
    %309 = vector.load %arg7[%c4_261, %c0_262, %c0_263] : memref<7x128x128xf32, #tpu.memory_space<vmem>>, vector<1x128x128xf32>
    %310 = vector.shape_cast %309 : vector<1x128x128xf32> to vector<128x128xf32>
    %cst_264 = arith.constant dense<0.000000e+00> : vector<17x128xf32>
    %311 = tpu.matmul %308, %310, %cst_264 {dimension_numbers = #tpu.dot_dimension_numbers<[1], [0], [0], [1], [0, 0, 1, 1], [], []>} : vector<17x128xf32>, vector<128x128xf32>, vector<17x128xf32> -> vector<17x128xf32>
    %312 = arith.addf %306, %311 : vector<17x128xf32>
    %c0_265 = arith.constant 0 : index
    %c6_266 = arith.constant 6 : index
    %c0_267 = arith.constant 0 : index
    %313 = vector.load %arg0[%c0_265, %c6_266, %c0_267] : memref<2x25x128xf32, #tpu.memory_space<vmem>>, vector<1x17x128xf32>
    %314 = vector.shape_cast %313 : vector<1x17x128xf32> to vector<17x128xf32>
    %c5_268 = arith.constant 5 : index
    %c0_269 = arith.constant 0 : index
    %c0_270 = arith.constant 0 : index
    %315 = vector.load %arg7[%c5_268, %c0_269, %c0_270] : memref<7x128x128xf32, #tpu.memory_space<vmem>>, vector<1x128x128xf32>
    %316 = vector.shape_cast %315 : vector<1x128x128xf32> to vector<128x128xf32>
    %cst_271 = arith.constant dense<0.000000e+00> : vector<17x128xf32>
    %317 = tpu.matmul %314, %316, %cst_271 {dimension_numbers = #tpu.dot_dimension_numbers<[1], [0], [0], [1], [0, 0, 1, 1], [], []>} : vector<17x128xf32>, vector<128x128xf32>, vector<17x128xf32> -> vector<17x128xf32>
    %318 = arith.addf %312, %317 : vector<17x128xf32>
    %c0_272 = arith.constant 0 : index
    %c7 = arith.constant 7 : index
    %c0_273 = arith.constant 0 : index
    %319 = vector.load %arg0[%c0_272, %c7, %c0_273] : memref<2x25x128xf32, #tpu.memory_space<vmem>>, vector<1x17x128xf32>
    %320 = vector.shape_cast %319 : vector<1x17x128xf32> to vector<17x128xf32>
    %c6_274 = arith.constant 6 : index
    %c0_275 = arith.constant 0 : index
    %c0_276 = arith.constant 0 : index
    %321 = vector.load %arg7[%c6_274, %c0_275, %c0_276] : memref<7x128x128xf32, #tpu.memory_space<vmem>>, vector<1x128x128xf32>
    %322 = vector.shape_cast %321 : vector<1x128x128xf32> to vector<128x128xf32>
    %cst_277 = arith.constant dense<0.000000e+00> : vector<17x128xf32>
    %323 = tpu.matmul %320, %322, %cst_277 {dimension_numbers = #tpu.dot_dimension_numbers<[1], [0], [0], [1], [0, 0, 1, 1], [], []>} : vector<17x128xf32>, vector<128x128xf32>, vector<17x128xf32> -> vector<17x128xf32>
    %324 = arith.addf %318, %323 : vector<17x128xf32>
    %c6_278 = arith.constant 6 : index
    %c0_279 = arith.constant 0 : index
    %c0_280 = arith.constant 0 : index
    %325 = vector.load %arg9[%c6_278, %c0_279, %c0_280] : memref<8x1x128xf32, #tpu.memory_space<vmem>>, vector<1x1x128xf32>
    %326 = vector.shape_cast %325 : vector<1x1x128xf32> to vector<1x128xf32>
    %327 = vector.broadcast %326 : vector<1x128xf32> to vector<17x128xf32>
    %328 = arith.addf %324, %327 : vector<17x128xf32>
    %cst_281 = arith.constant 0.000000e+00 : f32
    %329 = vector.broadcast %cst_281 : f32 to vector<17x128xf32>
    %330 = arith.maximumf %328, %329 : vector<17x128xf32>
    %c6_282 = arith.constant 6 : index
    %c0_283 = arith.constant 0 : index
    %c0_284 = arith.constant 0 : index
    %331 = vector.load %arg10[%c6_282, %c0_283, %c0_284] : memref<8x1x128xf32, #tpu.memory_space<vmem>>, vector<1x1x128xf32>
    %332 = vector.shape_cast %331 : vector<1x1x128xf32> to vector<1x128xf32>
    %333 = vector.broadcast %332 : vector<1x128xf32> to vector<17x128xf32>
    %334 = arith.mulf %330, %333 : vector<17x128xf32>
    %c6_285 = arith.constant 6 : index
    %c0_286 = arith.constant 0 : index
    %c0_287 = arith.constant 0 : index
    %335 = vector.load %arg11[%c6_285, %c0_286, %c0_287] : memref<8x1x128xf32, #tpu.memory_space<vmem>>, vector<1x1x128xf32>
    %336 = vector.shape_cast %335 : vector<1x1x128xf32> to vector<1x128xf32>
    %337 = vector.broadcast %336 : vector<1x128xf32> to vector<17x128xf32>
    %338 = arith.addf %334, %337 : vector<17x128xf32>
    %339 = vector.extract_strided_slice %338 {offsets = [1, 0], sizes = [16, 128], strides = [1, 1]} : vector<17x128xf32> to vector<16x128xf32>
    %340 = vector.extract_strided_slice %338 {offsets = [0, 0], sizes = [16, 128], strides = [1, 1]} : vector<17x128xf32> to vector<16x128xf32>
    %341 = tpu.iota {dimensions = array<i32: 0>} : vector<16x128xi32>
    %c0_i32_288 = arith.constant 0 : i32
    %342 = vector.broadcast %c0_i32_288 : i32 to vector<16x128xi32>
    %343 = arith.cmpi eq, %341, %342 : vector<16x128xi32>
    %cst_289 = arith.constant 0xFF800000 : f32
    %344 = vector.broadcast %cst_289 : f32 to vector<16x128xf32>
    %345 = arith.select %343, %344, %340 : vector<16x128xi1>, vector<16x128xf32>
    %346 = arith.maximumf %339, %345 : vector<16x128xf32>
    %c0_290 = arith.constant 0 : index
    %c0_291 = arith.constant 0 : index
    %c768 = arith.constant 768 : index
    %347 = vector.load %arg12[%c0_290, %c0_291, %c768] : memref<2x16x1024xf32, #tpu.memory_space<vmem>>, vector<1x16x128xf32>
    %348 = vector.shape_cast %347 : vector<1x16x128xf32> to vector<16x128xf32>
    %349 = vector.shape_cast %346 : vector<16x128xf32> to vector<1x16x128xf32>
    tpu.vector_store %arg12[%c0_290, %c0_291, %c768], %349 {strides = array<i32>} : memref<2x16x1024xf32, #tpu.memory_space<vmem>>, vector<1x16x128xf32>,
    %cst_292 = arith.constant 0.000000e+00 : f32
    %350 = vector.broadcast %cst_292 : f32 to vector<17x128xf32>
    %c0_293 = arith.constant 0 : index
    %c0_294 = arith.constant 0 : index
    %c0_295 = arith.constant 0 : index
    %351 = vector.load %arg0[%c0_293, %c0_294, %c0_295] : memref<2x25x128xf32, #tpu.memory_space<vmem>>, vector<1x17x128xf32>
    %352 = vector.shape_cast %351 : vector<1x17x128xf32> to vector<17x128xf32>
    %c0_296 = arith.constant 0 : index
    %c0_297 = arith.constant 0 : index
    %c0_298 = arith.constant 0 : index
    %353 = vector.load %arg8[%c0_296, %c0_297, %c0_298] : memref<8x128x128xf32, #tpu.memory_space<vmem>>, vector<1x128x128xf32>
    %354 = vector.shape_cast %353 : vector<1x128x128xf32> to vector<128x128xf32>
    %cst_299 = arith.constant dense<0.000000e+00> : vector<17x128xf32>
    %355 = tpu.matmul %352, %354, %cst_299 {dimension_numbers = #tpu.dot_dimension_numbers<[1], [0], [0], [1], [0, 0, 1, 1], [], []>} : vector<17x128xf32>, vector<128x128xf32>, vector<17x128xf32> -> vector<17x128xf32>
    %356 = arith.addf %350, %355 : vector<17x128xf32>
    %c0_300 = arith.constant 0 : index
    %c1_301 = arith.constant 1 : index
    %c0_302 = arith.constant 0 : index
    %357 = vector.load %arg0[%c0_300, %c1_301, %c0_302] : memref<2x25x128xf32, #tpu.memory_space<vmem>>, vector<1x17x128xf32>
    %358 = vector.shape_cast %357 : vector<1x17x128xf32> to vector<17x128xf32>
    %c1_303 = arith.constant 1 : index
    %c0_304 = arith.constant 0 : index
    %c0_305 = arith.constant 0 : index
    %359 = vector.load %arg8[%c1_303, %c0_304, %c0_305] : memref<8x128x128xf32, #tpu.memory_space<vmem>>, vector<1x128x128xf32>
    %360 = vector.shape_cast %359 : vector<1x128x128xf32> to vector<128x128xf32>
    %cst_306 = arith.constant dense<0.000000e+00> : vector<17x128xf32>
    %361 = tpu.matmul %358, %360, %cst_306 {dimension_numbers = #tpu.dot_dimension_numbers<[1], [0], [0], [1], [0, 0, 1, 1], [], []>} : vector<17x128xf32>, vector<128x128xf32>, vector<17x128xf32> -> vector<17x128xf32>
    %362 = arith.addf %356, %361 : vector<17x128xf32>
    %c0_307 = arith.constant 0 : index
    %c2_308 = arith.constant 2 : index
    %c0_309 = arith.constant 0 : index
    %363 = vector.load %arg0[%c0_307, %c2_308, %c0_309] : memref<2x25x128xf32, #tpu.memory_space<vmem>>, vector<1x17x128xf32>
    %364 = vector.shape_cast %363 : vector<1x17x128xf32> to vector<17x128xf32>
    %c2_310 = arith.constant 2 : index
    %c0_311 = arith.constant 0 : index
    %c0_312 = arith.constant 0 : index
    %365 = vector.load %arg8[%c2_310, %c0_311, %c0_312] : memref<8x128x128xf32, #tpu.memory_space<vmem>>, vector<1x128x128xf32>
    %366 = vector.shape_cast %365 : vector<1x128x128xf32> to vector<128x128xf32>
    %cst_313 = arith.constant dense<0.000000e+00> : vector<17x128xf32>
    %367 = tpu.matmul %364, %366, %cst_313 {dimension_numbers = #tpu.dot_dimension_numbers<[1], [0], [0], [1], [0, 0, 1, 1], [], []>} : vector<17x128xf32>, vector<128x128xf32>, vector<17x128xf32> -> vector<17x128xf32>
    %368 = arith.addf %362, %367 : vector<17x128xf32>
    %c0_314 = arith.constant 0 : index
    %c3_315 = arith.constant 3 : index
    %c0_316 = arith.constant 0 : index
    %369 = vector.load %arg0[%c0_314, %c3_315, %c0_316] : memref<2x25x128xf32, #tpu.memory_space<vmem>>, vector<1x17x128xf32>
    %370 = vector.shape_cast %369 : vector<1x17x128xf32> to vector<17x128xf32>
    %c3_317 = arith.constant 3 : index
    %c0_318 = arith.constant 0 : index
    %c0_319 = arith.constant 0 : index
    %371 = vector.load %arg8[%c3_317, %c0_318, %c0_319] : memref<8x128x128xf32, #tpu.memory_space<vmem>>, vector<1x128x128xf32>
    %372 = vector.shape_cast %371 : vector<1x128x128xf32> to vector<128x128xf32>
    %cst_320 = arith.constant dense<0.000000e+00> : vector<17x128xf32>
    %373 = tpu.matmul %370, %372, %cst_320 {dimension_numbers = #tpu.dot_dimension_numbers<[1], [0], [0], [1], [0, 0, 1, 1], [], []>} : vector<17x128xf32>, vector<128x128xf32>, vector<17x128xf32> -> vector<17x128xf32>
    %374 = arith.addf %368, %373 : vector<17x128xf32>
    %c0_321 = arith.constant 0 : index
    %c4_322 = arith.constant 4 : index
    %c0_323 = arith.constant 0 : index
    %375 = vector.load %arg0[%c0_321, %c4_322, %c0_323] : memref<2x25x128xf32, #tpu.memory_space<vmem>>, vector<1x17x128xf32>
    %376 = vector.shape_cast %375 : vector<1x17x128xf32> to vector<17x128xf32>
    %c4_324 = arith.constant 4 : index
    %c0_325 = arith.constant 0 : index
    %c0_326 = arith.constant 0 : index
    %377 = vector.load %arg8[%c4_324, %c0_325, %c0_326] : memref<8x128x128xf32, #tpu.memory_space<vmem>>, vector<1x128x128xf32>
    %378 = vector.shape_cast %377 : vector<1x128x128xf32> to vector<128x128xf32>
    %cst_327 = arith.constant dense<0.000000e+00> : vector<17x128xf32>
    %379 = tpu.matmul %376, %378, %cst_327 {dimension_numbers = #tpu.dot_dimension_numbers<[1], [0], [0], [1], [0, 0, 1, 1], [], []>} : vector<17x128xf32>, vector<128x128xf32>, vector<17x128xf32> -> vector<17x128xf32>
    %380 = arith.addf %374, %379 : vector<17x128xf32>
    %c0_328 = arith.constant 0 : index
    %c5_329 = arith.constant 5 : index
    %c0_330 = arith.constant 0 : index
    %381 = vector.load %arg0[%c0_328, %c5_329, %c0_330] : memref<2x25x128xf32, #tpu.memory_space<vmem>>, vector<1x17x128xf32>
    %382 = vector.shape_cast %381 : vector<1x17x128xf32> to vector<17x128xf32>
    %c5_331 = arith.constant 5 : index
    %c0_332 = arith.constant 0 : index
    %c0_333 = arith.constant 0 : index
    %383 = vector.load %arg8[%c5_331, %c0_332, %c0_333] : memref<8x128x128xf32, #tpu.memory_space<vmem>>, vector<1x128x128xf32>
    %384 = vector.shape_cast %383 : vector<1x128x128xf32> to vector<128x128xf32>
    %cst_334 = arith.constant dense<0.000000e+00> : vector<17x128xf32>
    %385 = tpu.matmul %382, %384, %cst_334 {dimension_numbers = #tpu.dot_dimension_numbers<[1], [0], [0], [1], [0, 0, 1, 1], [], []>} : vector<17x128xf32>, vector<128x128xf32>, vector<17x128xf32> -> vector<17x128xf32>
    %386 = arith.addf %380, %385 : vector<17x128xf32>
    %c0_335 = arith.constant 0 : index
    %c6_336 = arith.constant 6 : index
    %c0_337 = arith.constant 0 : index
    %387 = vector.load %arg0[%c0_335, %c6_336, %c0_337] : memref<2x25x128xf32, #tpu.memory_space<vmem>>, vector<1x17x128xf32>
    %388 = vector.shape_cast %387 : vector<1x17x128xf32> to vector<17x128xf32>
    %c6_338 = arith.constant 6 : index
    %c0_339 = arith.constant 0 : index
    %c0_340 = arith.constant 0 : index
    %389 = vector.load %arg8[%c6_338, %c0_339, %c0_340] : memref<8x128x128xf32, #tpu.memory_space<vmem>>, vector<1x128x128xf32>
    %390 = vector.shape_cast %389 : vector<1x128x128xf32> to vector<128x128xf32>
    %cst_341 = arith.constant dense<0.000000e+00> : vector<17x128xf32>
    %391 = tpu.matmul %388, %390, %cst_341 {dimension_numbers = #tpu.dot_dimension_numbers<[1], [0], [0], [1], [0, 0, 1, 1], [], []>} : vector<17x128xf32>, vector<128x128xf32>, vector<17x128xf32> -> vector<17x128xf32>
    %392 = arith.addf %386, %391 : vector<17x128xf32>
    %c0_342 = arith.constant 0 : index
    %c7_343 = arith.constant 7 : index
    %c0_344 = arith.constant 0 : index
    %393 = vector.load %arg0[%c0_342, %c7_343, %c0_344] : memref<2x25x128xf32, #tpu.memory_space<vmem>>, vector<1x17x128xf32>
    %394 = vector.shape_cast %393 : vector<1x17x128xf32> to vector<17x128xf32>
    %c7_345 = arith.constant 7 : index
    %c0_346 = arith.constant 0 : index
    %c0_347 = arith.constant 0 : index
    %395 = vector.load %arg8[%c7_345, %c0_346, %c0_347] : memref<8x128x128xf32, #tpu.memory_space<vmem>>, vector<1x128x128xf32>
    %396 = vector.shape_cast %395 : vector<1x128x128xf32> to vector<128x128xf32>
    %cst_348 = arith.constant dense<0.000000e+00> : vector<17x128xf32>
    %397 = tpu.matmul %394, %396, %cst_348 {dimension_numbers = #tpu.dot_dimension_numbers<[1], [0], [0], [1], [0, 0, 1, 1], [], []>} : vector<17x128xf32>, vector<128x128xf32>, vector<17x128xf32> -> vector<17x128xf32>
    %398 = arith.addf %392, %397 : vector<17x128xf32>
    %c7_349 = arith.constant 7 : index
    %c0_350 = arith.constant 0 : index
    %c0_351 = arith.constant 0 : index
    %399 = vector.load %arg9[%c7_349, %c0_350, %c0_351] : memref<8x1x128xf32, #tpu.memory_space<vmem>>, vector<1x1x128xf32>
    %400 = vector.shape_cast %399 : vector<1x1x128xf32> to vector<1x128xf32>
    %401 = vector.broadcast %400 : vector<1x128xf32> to vector<17x128xf32>
    %402 = arith.addf %398, %401 : vector<17x128xf32>
    %cst_352 = arith.constant 0.000000e+00 : f32
    %403 = vector.broadcast %cst_352 : f32 to vector<17x128xf32>
    %404 = arith.maximumf %402, %403 : vector<17x128xf32>
    %c7_353 = arith.constant 7 : index
    %c0_354 = arith.constant 0 : index
    %c0_355 = arith.constant 0 : index
    %405 = vector.load %arg10[%c7_353, %c0_354, %c0_355] : memref<8x1x128xf32, #tpu.memory_space<vmem>>, vector<1x1x128xf32>
    %406 = vector.shape_cast %405 : vector<1x1x128xf32> to vector<1x128xf32>
    %407 = vector.broadcast %406 : vector<1x128xf32> to vector<17x128xf32>
    %408 = arith.mulf %404, %407 : vector<17x128xf32>
    %c7_356 = arith.constant 7 : index
    %c0_357 = arith.constant 0 : index
    %c0_358 = arith.constant 0 : index
    %409 = vector.load %arg11[%c7_356, %c0_357, %c0_358] : memref<8x1x128xf32, #tpu.memory_space<vmem>>, vector<1x1x128xf32>
    %410 = vector.shape_cast %409 : vector<1x1x128xf32> to vector<1x128xf32>
    %411 = vector.broadcast %410 : vector<1x128xf32> to vector<17x128xf32>
    %412 = arith.addf %408, %411 : vector<17x128xf32>
    %413 = vector.extract_strided_slice %412 {offsets = [1, 0], sizes = [16, 128], strides = [1, 1]} : vector<17x128xf32> to vector<16x128xf32>
    %414 = vector.extract_strided_slice %412 {offsets = [0, 0], sizes = [16, 128], strides = [1, 1]} : vector<17x128xf32> to vector<16x128xf32>
    %415 = tpu.iota {dimensions = array<i32: 0>} : vector<16x128xi32>
    %c0_i32_359 = arith.constant 0 : i32
    %416 = vector.broadcast %c0_i32_359 : i32 to vector<16x128xi32>
    %417 = arith.cmpi eq, %415, %416 : vector<16x128xi32>
    %cst_360 = arith.constant 0xFF800000 : f32
    %418 = vector.broadcast %cst_360 : f32 to vector<16x128xf32>
    %419 = arith.select %417, %418, %414 : vector<16x128xi1>, vector<16x128xf32>
    %420 = arith.maximumf %413, %419 : vector<16x128xf32>
    %c0_361 = arith.constant 0 : index
    %c0_362 = arith.constant 0 : index
    %c896 = arith.constant 896 : index
    %421 = vector.load %arg12[%c0_361, %c0_362, %c896] : memref<2x16x1024xf32, #tpu.memory_space<vmem>>, vector<1x16x128xf32>
    %422 = vector.shape_cast %421 : vector<1x16x128xf32> to vector<16x128xf32>
    %423 = vector.shape_cast %420 : vector<16x128xf32> to vector<1x16x128xf32>
    tpu.vector_store %arg12[%c0_361, %c0_362, %c896], %423 {strides = array<i32>} : memref<2x16x1024xf32, #tpu.memory_space<vmem>>, vector<1x16x128xf32>,
    %cst_363 = arith.constant 0.000000e+00 : f32
    %424 = vector.broadcast %cst_363 : f32 to vector<17x128xf32>
    %c1_364 = arith.constant 1 : index
    %c4_365 = arith.constant 4 : index
    %c0_366 = arith.constant 0 : index
    %425 = vector.load %arg0[%c1_364, %c4_365, %c0_366] : memref<2x25x128xf32, #tpu.memory_space<vmem>>, vector<1x17x128xf32>
    %426 = vector.shape_cast %425 : vector<1x17x128xf32> to vector<17x128xf32>
    %c0_367 = arith.constant 0 : index
    %c0_368 = arith.constant 0 : index
    %c0_369 = arith.constant 0 : index
    %427 = vector.load %arg1[%c0_367, %c0_368, %c0_369] : memref<1x128x128xf32, #tpu.memory_space<vmem>>, vector<1x128x128xf32>
    %428 = vector.shape_cast %427 : vector<1x128x128xf32> to vector<128x128xf32>
    %cst_370 = arith.constant dense<0.000000e+00> : vector<17x128xf32>
    %429 = tpu.matmul %426, %428, %cst_370 {dimension_numbers = #tpu.dot_dimension_numbers<[1], [0], [0], [1], [0, 0, 1, 1], [], []>} : vector<17x128xf32>, vector<128x128xf32>, vector<17x128xf32> -> vector<17x128xf32>
    %430 = arith.addf %424, %429 : vector<17x128xf32>
    %c0_371 = arith.constant 0 : index
    %c0_372 = arith.constant 0 : index
    %c0_373 = arith.constant 0 : index
    %431 = vector.load %arg9[%c0_371, %c0_372, %c0_373] : memref<8x1x128xf32, #tpu.memory_space<vmem>>, vector<1x1x128xf32>
    %432 = vector.shape_cast %431 : vector<1x1x128xf32> to vector<1x128xf32>
    %433 = vector.broadcast %432 : vector<1x128xf32> to vector<17x128xf32>
    %434 = arith.addf %430, %433 : vector<17x128xf32>
    %cst_374 = arith.constant 0.000000e+00 : f32
    %435 = vector.broadcast %cst_374 : f32 to vector<17x128xf32>
    %436 = arith.maximumf %434, %435 : vector<17x128xf32>
    %c0_375 = arith.constant 0 : index
    %c0_376 = arith.constant 0 : index
    %c0_377 = arith.constant 0 : index
    %437 = vector.load %arg10[%c0_375, %c0_376, %c0_377] : memref<8x1x128xf32, #tpu.memory_space<vmem>>, vector<1x1x128xf32>
    %438 = vector.shape_cast %437 : vector<1x1x128xf32> to vector<1x128xf32>
    %439 = vector.broadcast %438 : vector<1x128xf32> to vector<17x128xf32>
    %440 = arith.mulf %436, %439 : vector<17x128xf32>
    %c0_378 = arith.constant 0 : index
    %c0_379 = arith.constant 0 : index
    %c0_380 = arith.constant 0 : index
    %441 = vector.load %arg11[%c0_378, %c0_379, %c0_380] : memref<8x1x128xf32, #tpu.memory_space<vmem>>, vector<1x1x128xf32>
    %442 = vector.shape_cast %441 : vector<1x1x128xf32> to vector<1x128xf32>
    %443 = vector.broadcast %442 : vector<1x128xf32> to vector<17x128xf32>
    %444 = arith.addf %440, %443 : vector<17x128xf32>
    %445 = vector.extract_strided_slice %444 {offsets = [1, 0], sizes = [16, 128], strides = [1, 1]} : vector<17x128xf32> to vector<16x128xf32>
    %446 = vector.extract_strided_slice %444 {offsets = [0, 0], sizes = [16, 128], strides = [1, 1]} : vector<17x128xf32> to vector<16x128xf32>
    %447 = tpu.iota {dimensions = array<i32: 0>} : vector<16x128xi32>
    %c0_i32_381 = arith.constant 0 : i32
    %448 = vector.broadcast %c0_i32_381 : i32 to vector<16x128xi32>
    %449 = arith.cmpi eq, %447, %448 : vector<16x128xi32>
    %cst_382 = arith.constant 0xFF800000 : f32
    %450 = vector.broadcast %cst_382 : f32 to vector<16x128xf32>
    %451 = arith.select %449, %450, %446 : vector<16x128xi1>, vector<16x128xf32>
    %452 = arith.maximumf %445, %451 : vector<16x128xf32>
    %c1_383 = arith.constant 1 : index
    %c0_384 = arith.constant 0 : index
    %c0_385 = arith.constant 0 : index
    %453 = vector.load %arg12[%c1_383, %c0_384, %c0_385] : memref<2x16x1024xf32, #tpu.memory_space<vmem>>, vector<1x16x128xf32>
    %454 = vector.shape_cast %453 : vector<1x16x128xf32> to vector<16x128xf32>
    %455 = vector.shape_cast %452 : vector<16x128xf32> to vector<1x16x128xf32>
    tpu.vector_store %arg12[%c1_383, %c0_384, %c0_385], %455 {strides = array<i32>} : memref<2x16x1024xf32, #tpu.memory_space<vmem>>, vector<1x16x128xf32>,
    %cst_386 = arith.constant 0.000000e+00 : f32
    %456 = vector.broadcast %cst_386 : f32 to vector<17x128xf32>
    %c1_387 = arith.constant 1 : index
    %c3_388 = arith.constant 3 : index
    %c0_389 = arith.constant 0 : index
    %457 = vector.load %arg0[%c1_387, %c3_388, %c0_389] : memref<2x25x128xf32, #tpu.memory_space<vmem>>, vector<1x17x128xf32>
    %458 = vector.shape_cast %457 : vector<1x17x128xf32> to vector<17x128xf32>
    %c0_390 = arith.constant 0 : index
    %c0_391 = arith.constant 0 : index
    %c0_392 = arith.constant 0 : index
    %459 = vector.load %arg2[%c0_390, %c0_391, %c0_392] : memref<2x128x128xf32, #tpu.memory_space<vmem>>, vector<1x128x128xf32>
    %460 = vector.shape_cast %459 : vector<1x128x128xf32> to vector<128x128xf32>
    %cst_393 = arith.constant dense<0.000000e+00> : vector<17x128xf32>
    %461 = tpu.matmul %458, %460, %cst_393 {dimension_numbers = #tpu.dot_dimension_numbers<[1], [0], [0], [1], [0, 0, 1, 1], [], []>} : vector<17x128xf32>, vector<128x128xf32>, vector<17x128xf32> -> vector<17x128xf32>
    %462 = arith.addf %456, %461 : vector<17x128xf32>
    %c1_394 = arith.constant 1 : index
    %c4_395 = arith.constant 4 : index
    %c0_396 = arith.constant 0 : index
    %463 = vector.load %arg0[%c1_394, %c4_395, %c0_396] : memref<2x25x128xf32, #tpu.memory_space<vmem>>, vector<1x17x128xf32>
    %464 = vector.shape_cast %463 : vector<1x17x128xf32> to vector<17x128xf32>
    %c1_397 = arith.constant 1 : index
    %c0_398 = arith.constant 0 : index
    %c0_399 = arith.constant 0 : index
    %465 = vector.load %arg2[%c1_397, %c0_398, %c0_399] : memref<2x128x128xf32, #tpu.memory_space<vmem>>, vector<1x128x128xf32>
    %466 = vector.shape_cast %465 : vector<1x128x128xf32> to vector<128x128xf32>
    %cst_400 = arith.constant dense<0.000000e+00> : vector<17x128xf32>
    %467 = tpu.matmul %464, %466, %cst_400 {dimension_numbers = #tpu.dot_dimension_numbers<[1], [0], [0], [1], [0, 0, 1, 1], [], []>} : vector<17x128xf32>, vector<128x128xf32>, vector<17x128xf32> -> vector<17x128xf32>
    %468 = arith.addf %462, %467 : vector<17x128xf32>
    %c1_401 = arith.constant 1 : index
    %c0_402 = arith.constant 0 : index
    %c0_403 = arith.constant 0 : index
    %469 = vector.load %arg9[%c1_401, %c0_402, %c0_403] : memref<8x1x128xf32, #tpu.memory_space<vmem>>, vector<1x1x128xf32>
    %470 = vector.shape_cast %469 : vector<1x1x128xf32> to vector<1x128xf32>
    %471 = vector.broadcast %470 : vector<1x128xf32> to vector<17x128xf32>
    %472 = arith.addf %468, %471 : vector<17x128xf32>
    %cst_404 = arith.constant 0.000000e+00 : f32
    %473 = vector.broadcast %cst_404 : f32 to vector<17x128xf32>
    %474 = arith.maximumf %472, %473 : vector<17x128xf32>
    %c1_405 = arith.constant 1 : index
    %c0_406 = arith.constant 0 : index
    %c0_407 = arith.constant 0 : index
    %475 = vector.load %arg10[%c1_405, %c0_406, %c0_407] : memref<8x1x128xf32, #tpu.memory_space<vmem>>, vector<1x1x128xf32>
    %476 = vector.shape_cast %475 : vector<1x1x128xf32> to vector<1x128xf32>
    %477 = vector.broadcast %476 : vector<1x128xf32> to vector<17x128xf32>
    %478 = arith.mulf %474, %477 : vector<17x128xf32>
    %c1_408 = arith.constant 1 : index
    %c0_409 = arith.constant 0 : index
    %c0_410 = arith.constant 0 : index
    %479 = vector.load %arg11[%c1_408, %c0_409, %c0_410] : memref<8x1x128xf32, #tpu.memory_space<vmem>>, vector<1x1x128xf32>
    %480 = vector.shape_cast %479 : vector<1x1x128xf32> to vector<1x128xf32>
    %481 = vector.broadcast %480 : vector<1x128xf32> to vector<17x128xf32>
    %482 = arith.addf %478, %481 : vector<17x128xf32>
    %483 = vector.extract_strided_slice %482 {offsets = [1, 0], sizes = [16, 128], strides = [1, 1]} : vector<17x128xf32> to vector<16x128xf32>
    %484 = vector.extract_strided_slice %482 {offsets = [0, 0], sizes = [16, 128], strides = [1, 1]} : vector<17x128xf32> to vector<16x128xf32>
    %485 = tpu.iota {dimensions = array<i32: 0>} : vector<16x128xi32>
    %c0_i32_411 = arith.constant 0 : i32
    %486 = vector.broadcast %c0_i32_411 : i32 to vector<16x128xi32>
    %487 = arith.cmpi eq, %485, %486 : vector<16x128xi32>
    %cst_412 = arith.constant 0xFF800000 : f32
    %488 = vector.broadcast %cst_412 : f32 to vector<16x128xf32>
    %489 = arith.select %487, %488, %484 : vector<16x128xi1>, vector<16x128xf32>
    %490 = arith.maximumf %483, %489 : vector<16x128xf32>
    %c1_413 = arith.constant 1 : index
    %c0_414 = arith.constant 0 : index
    %c128_415 = arith.constant 128 : index
    %491 = vector.load %arg12[%c1_413, %c0_414, %c128_415] : memref<2x16x1024xf32, #tpu.memory_space<vmem>>, vector<1x16x128xf32>
    %492 = vector.shape_cast %491 : vector<1x16x128xf32> to vector<16x128xf32>
    %493 = vector.shape_cast %490 : vector<16x128xf32> to vector<1x16x128xf32>
    tpu.vector_store %arg12[%c1_413, %c0_414, %c128_415], %493 {strides = array<i32>} : memref<2x16x1024xf32, #tpu.memory_space<vmem>>, vector<1x16x128xf32>,
    %cst_416 = arith.constant 0.000000e+00 : f32
    %494 = vector.broadcast %cst_416 : f32 to vector<17x128xf32>
    %c1_417 = arith.constant 1 : index
    %c3_418 = arith.constant 3 : index
    %c0_419 = arith.constant 0 : index
    %495 = vector.load %arg0[%c1_417, %c3_418, %c0_419] : memref<2x25x128xf32, #tpu.memory_space<vmem>>, vector<1x17x128xf32>
    %496 = vector.shape_cast %495 : vector<1x17x128xf32> to vector<17x128xf32>
    %c0_420 = arith.constant 0 : index
    %c0_421 = arith.constant 0 : index
    %c0_422 = arith.constant 0 : index
    %497 = vector.load %arg3[%c0_420, %c0_421, %c0_422] : memref<3x128x128xf32, #tpu.memory_space<vmem>>, vector<1x128x128xf32>
    %498 = vector.shape_cast %497 : vector<1x128x128xf32> to vector<128x128xf32>
    %cst_423 = arith.constant dense<0.000000e+00> : vector<17x128xf32>
    %499 = tpu.matmul %496, %498, %cst_423 {dimension_numbers = #tpu.dot_dimension_numbers<[1], [0], [0], [1], [0, 0, 1, 1], [], []>} : vector<17x128xf32>, vector<128x128xf32>, vector<17x128xf32> -> vector<17x128xf32>
    %500 = arith.addf %494, %499 : vector<17x128xf32>
    %c1_424 = arith.constant 1 : index
    %c4_425 = arith.constant 4 : index
    %c0_426 = arith.constant 0 : index
    %501 = vector.load %arg0[%c1_424, %c4_425, %c0_426] : memref<2x25x128xf32, #tpu.memory_space<vmem>>, vector<1x17x128xf32>
    %502 = vector.shape_cast %501 : vector<1x17x128xf32> to vector<17x128xf32>
    %c1_427 = arith.constant 1 : index
    %c0_428 = arith.constant 0 : index
    %c0_429 = arith.constant 0 : index
    %503 = vector.load %arg3[%c1_427, %c0_428, %c0_429] : memref<3x128x128xf32, #tpu.memory_space<vmem>>, vector<1x128x128xf32>
    %504 = vector.shape_cast %503 : vector<1x128x128xf32> to vector<128x128xf32>
    %cst_430 = arith.constant dense<0.000000e+00> : vector<17x128xf32>
    %505 = tpu.matmul %502, %504, %cst_430 {dimension_numbers = #tpu.dot_dimension_numbers<[1], [0], [0], [1], [0, 0, 1, 1], [], []>} : vector<17x128xf32>, vector<128x128xf32>, vector<17x128xf32> -> vector<17x128xf32>
    %506 = arith.addf %500, %505 : vector<17x128xf32>
    %c1_431 = arith.constant 1 : index
    %c5_432 = arith.constant 5 : index
    %c0_433 = arith.constant 0 : index
    %507 = vector.load %arg0[%c1_431, %c5_432, %c0_433] : memref<2x25x128xf32, #tpu.memory_space<vmem>>, vector<1x17x128xf32>
    %508 = vector.shape_cast %507 : vector<1x17x128xf32> to vector<17x128xf32>
    %c2_434 = arith.constant 2 : index
    %c0_435 = arith.constant 0 : index
    %c0_436 = arith.constant 0 : index
    %509 = vector.load %arg3[%c2_434, %c0_435, %c0_436] : memref<3x128x128xf32, #tpu.memory_space<vmem>>, vector<1x128x128xf32>
    %510 = vector.shape_cast %509 : vector<1x128x128xf32> to vector<128x128xf32>
    %cst_437 = arith.constant dense<0.000000e+00> : vector<17x128xf32>
    %511 = tpu.matmul %508, %510, %cst_437 {dimension_numbers = #tpu.dot_dimension_numbers<[1], [0], [0], [1], [0, 0, 1, 1], [], []>} : vector<17x128xf32>, vector<128x128xf32>, vector<17x128xf32> -> vector<17x128xf32>
    %512 = arith.addf %506, %511 : vector<17x128xf32>
    %c2_438 = arith.constant 2 : index
    %c0_439 = arith.constant 0 : index
    %c0_440 = arith.constant 0 : index
    %513 = vector.load %arg9[%c2_438, %c0_439, %c0_440] : memref<8x1x128xf32, #tpu.memory_space<vmem>>, vector<1x1x128xf32>
    %514 = vector.shape_cast %513 : vector<1x1x128xf32> to vector<1x128xf32>
    %515 = vector.broadcast %514 : vector<1x128xf32> to vector<17x128xf32>
    %516 = arith.addf %512, %515 : vector<17x128xf32>
    %cst_441 = arith.constant 0.000000e+00 : f32
    %517 = vector.broadcast %cst_441 : f32 to vector<17x128xf32>
    %518 = arith.maximumf %516, %517 : vector<17x128xf32>
    %c2_442 = arith.constant 2 : index
    %c0_443 = arith.constant 0 : index
    %c0_444 = arith.constant 0 : index
    %519 = vector.load %arg10[%c2_442, %c0_443, %c0_444] : memref<8x1x128xf32, #tpu.memory_space<vmem>>, vector<1x1x128xf32>
    %520 = vector.shape_cast %519 : vector<1x1x128xf32> to vector<1x128xf32>
    %521 = vector.broadcast %520 : vector<1x128xf32> to vector<17x128xf32>
    %522 = arith.mulf %518, %521 : vector<17x128xf32>
    %c2_445 = arith.constant 2 : index
    %c0_446 = arith.constant 0 : index
    %c0_447 = arith.constant 0 : index
    %523 = vector.load %arg11[%c2_445, %c0_446, %c0_447] : memref<8x1x128xf32, #tpu.memory_space<vmem>>, vector<1x1x128xf32>
    %524 = vector.shape_cast %523 : vector<1x1x128xf32> to vector<1x128xf32>
    %525 = vector.broadcast %524 : vector<1x128xf32> to vector<17x128xf32>
    %526 = arith.addf %522, %525 : vector<17x128xf32>
    %527 = vector.extract_strided_slice %526 {offsets = [1, 0], sizes = [16, 128], strides = [1, 1]} : vector<17x128xf32> to vector<16x128xf32>
    %528 = vector.extract_strided_slice %526 {offsets = [0, 0], sizes = [16, 128], strides = [1, 1]} : vector<17x128xf32> to vector<16x128xf32>
    %529 = tpu.iota {dimensions = array<i32: 0>} : vector<16x128xi32>
    %c0_i32_448 = arith.constant 0 : i32
    %530 = vector.broadcast %c0_i32_448 : i32 to vector<16x128xi32>
    %531 = arith.cmpi eq, %529, %530 : vector<16x128xi32>
    %cst_449 = arith.constant 0xFF800000 : f32
    %532 = vector.broadcast %cst_449 : f32 to vector<16x128xf32>
    %533 = arith.select %531, %532, %528 : vector<16x128xi1>, vector<16x128xf32>
    %534 = arith.maximumf %527, %533 : vector<16x128xf32>
    %c1_450 = arith.constant 1 : index
    %c0_451 = arith.constant 0 : index
    %c256_452 = arith.constant 256 : index
    %535 = vector.load %arg12[%c1_450, %c0_451, %c256_452] : memref<2x16x1024xf32, #tpu.memory_space<vmem>>, vector<1x16x128xf32>
    %536 = vector.shape_cast %535 : vector<1x16x128xf32> to vector<16x128xf32>
    %537 = vector.shape_cast %534 : vector<16x128xf32> to vector<1x16x128xf32>
    tpu.vector_store %arg12[%c1_450, %c0_451, %c256_452], %537 {strides = array<i32>} : memref<2x16x1024xf32, #tpu.memory_space<vmem>>, vector<1x16x128xf32>,
    %cst_453 = arith.constant 0.000000e+00 : f32
    %538 = vector.broadcast %cst_453 : f32 to vector<17x128xf32>
    %c1_454 = arith.constant 1 : index
    %c2_455 = arith.constant 2 : index
    %c0_456 = arith.constant 0 : index
    %539 = vector.load %arg0[%c1_454, %c2_455, %c0_456] : memref<2x25x128xf32, #tpu.memory_space<vmem>>, vector<1x17x128xf32>
    %540 = vector.shape_cast %539 : vector<1x17x128xf32> to vector<17x128xf32>
    %c0_457 = arith.constant 0 : index
    %c0_458 = arith.constant 0 : index
    %c0_459 = arith.constant 0 : index
    %541 = vector.load %arg4[%c0_457, %c0_458, %c0_459] : memref<4x128x128xf32, #tpu.memory_space<vmem>>, vector<1x128x128xf32>
    %542 = vector.shape_cast %541 : vector<1x128x128xf32> to vector<128x128xf32>
    %cst_460 = arith.constant dense<0.000000e+00> : vector<17x128xf32>
    %543 = tpu.matmul %540, %542, %cst_460 {dimension_numbers = #tpu.dot_dimension_numbers<[1], [0], [0], [1], [0, 0, 1, 1], [], []>} : vector<17x128xf32>, vector<128x128xf32>, vector<17x128xf32> -> vector<17x128xf32>
    %544 = arith.addf %538, %543 : vector<17x128xf32>
    %c1_461 = arith.constant 1 : index
    %c3_462 = arith.constant 3 : index
    %c0_463 = arith.constant 0 : index
    %545 = vector.load %arg0[%c1_461, %c3_462, %c0_463] : memref<2x25x128xf32, #tpu.memory_space<vmem>>, vector<1x17x128xf32>
    %546 = vector.shape_cast %545 : vector<1x17x128xf32> to vector<17x128xf32>
    %c1_464 = arith.constant 1 : index
    %c0_465 = arith.constant 0 : index
    %c0_466 = arith.constant 0 : index
    %547 = vector.load %arg4[%c1_464, %c0_465, %c0_466] : memref<4x128x128xf32, #tpu.memory_space<vmem>>, vector<1x128x128xf32>
    %548 = vector.shape_cast %547 : vector<1x128x128xf32> to vector<128x128xf32>
    %cst_467 = arith.constant dense<0.000000e+00> : vector<17x128xf32>
    %549 = tpu.matmul %546, %548, %cst_467 {dimension_numbers = #tpu.dot_dimension_numbers<[1], [0], [0], [1], [0, 0, 1, 1], [], []>} : vector<17x128xf32>, vector<128x128xf32>, vector<17x128xf32> -> vector<17x128xf32>
    %550 = arith.addf %544, %549 : vector<17x128xf32>
    %c1_468 = arith.constant 1 : index
    %c4_469 = arith.constant 4 : index
    %c0_470 = arith.constant 0 : index
    %551 = vector.load %arg0[%c1_468, %c4_469, %c0_470] : memref<2x25x128xf32, #tpu.memory_space<vmem>>, vector<1x17x128xf32>
    %552 = vector.shape_cast %551 : vector<1x17x128xf32> to vector<17x128xf32>
    %c2_471 = arith.constant 2 : index
    %c0_472 = arith.constant 0 : index
    %c0_473 = arith.constant 0 : index
    %553 = vector.load %arg4[%c2_471, %c0_472, %c0_473] : memref<4x128x128xf32, #tpu.memory_space<vmem>>, vector<1x128x128xf32>
    %554 = vector.shape_cast %553 : vector<1x128x128xf32> to vector<128x128xf32>
    %cst_474 = arith.constant dense<0.000000e+00> : vector<17x128xf32>
    %555 = tpu.matmul %552, %554, %cst_474 {dimension_numbers = #tpu.dot_dimension_numbers<[1], [0], [0], [1], [0, 0, 1, 1], [], []>} : vector<17x128xf32>, vector<128x128xf32>, vector<17x128xf32> -> vector<17x128xf32>
    %556 = arith.addf %550, %555 : vector<17x128xf32>
    %c1_475 = arith.constant 1 : index
    %c5_476 = arith.constant 5 : index
    %c0_477 = arith.constant 0 : index
    %557 = vector.load %arg0[%c1_475, %c5_476, %c0_477] : memref<2x25x128xf32, #tpu.memory_space<vmem>>, vector<1x17x128xf32>
    %558 = vector.shape_cast %557 : vector<1x17x128xf32> to vector<17x128xf32>
    %c3_478 = arith.constant 3 : index
    %c0_479 = arith.constant 0 : index
    %c0_480 = arith.constant 0 : index
    %559 = vector.load %arg4[%c3_478, %c0_479, %c0_480] : memref<4x128x128xf32, #tpu.memory_space<vmem>>, vector<1x128x128xf32>
    %560 = vector.shape_cast %559 : vector<1x128x128xf32> to vector<128x128xf32>
    %cst_481 = arith.constant dense<0.000000e+00> : vector<17x128xf32>
    %561 = tpu.matmul %558, %560, %cst_481 {dimension_numbers = #tpu.dot_dimension_numbers<[1], [0], [0], [1], [0, 0, 1, 1], [], []>} : vector<17x128xf32>, vector<128x128xf32>, vector<17x128xf32> -> vector<17x128xf32>
    %562 = arith.addf %556, %561 : vector<17x128xf32>
    %c3_482 = arith.constant 3 : index
    %c0_483 = arith.constant 0 : index
    %c0_484 = arith.constant 0 : index
    %563 = vector.load %arg9[%c3_482, %c0_483, %c0_484] : memref<8x1x128xf32, #tpu.memory_space<vmem>>, vector<1x1x128xf32>
    %564 = vector.shape_cast %563 : vector<1x1x128xf32> to vector<1x128xf32>
    %565 = vector.broadcast %564 : vector<1x128xf32> to vector<17x128xf32>
    %566 = arith.addf %562, %565 : vector<17x128xf32>
    %cst_485 = arith.constant 0.000000e+00 : f32
    %567 = vector.broadcast %cst_485 : f32 to vector<17x128xf32>
    %568 = arith.maximumf %566, %567 : vector<17x128xf32>
    %c3_486 = arith.constant 3 : index
    %c0_487 = arith.constant 0 : index
    %c0_488 = arith.constant 0 : index
    %569 = vector.load %arg10[%c3_486, %c0_487, %c0_488] : memref<8x1x128xf32, #tpu.memory_space<vmem>>, vector<1x1x128xf32>
    %570 = vector.shape_cast %569 : vector<1x1x128xf32> to vector<1x128xf32>
    %571 = vector.broadcast %570 : vector<1x128xf32> to vector<17x128xf32>
    %572 = arith.mulf %568, %571 : vector<17x128xf32>
    %c3_489 = arith.constant 3 : index
    %c0_490 = arith.constant 0 : index
    %c0_491 = arith.constant 0 : index
    %573 = vector.load %arg11[%c3_489, %c0_490, %c0_491] : memref<8x1x128xf32, #tpu.memory_space<vmem>>, vector<1x1x128xf32>
    %574 = vector.shape_cast %573 : vector<1x1x128xf32> to vector<1x128xf32>
    %575 = vector.broadcast %574 : vector<1x128xf32> to vector<17x128xf32>
    %576 = arith.addf %572, %575 : vector<17x128xf32>
    %577 = vector.extract_strided_slice %576 {offsets = [1, 0], sizes = [16, 128], strides = [1, 1]} : vector<17x128xf32> to vector<16x128xf32>
    %578 = vector.extract_strided_slice %576 {offsets = [0, 0], sizes = [16, 128], strides = [1, 1]} : vector<17x128xf32> to vector<16x128xf32>
    %579 = tpu.iota {dimensions = array<i32: 0>} : vector<16x128xi32>
    %c0_i32_492 = arith.constant 0 : i32
    %580 = vector.broadcast %c0_i32_492 : i32 to vector<16x128xi32>
    %581 = arith.cmpi eq, %579, %580 : vector<16x128xi32>
    %cst_493 = arith.constant 0xFF800000 : f32
    %582 = vector.broadcast %cst_493 : f32 to vector<16x128xf32>
    %583 = arith.select %581, %582, %578 : vector<16x128xi1>, vector<16x128xf32>
    %584 = arith.maximumf %577, %583 : vector<16x128xf32>
    %c1_494 = arith.constant 1 : index
    %c0_495 = arith.constant 0 : index
    %c384_496 = arith.constant 384 : index
    %585 = vector.load %arg12[%c1_494, %c0_495, %c384_496] : memref<2x16x1024xf32, #tpu.memory_space<vmem>>, vector<1x16x128xf32>
    %586 = vector.shape_cast %585 : vector<1x16x128xf32> to vector<16x128xf32>
    %587 = vector.shape_cast %584 : vector<16x128xf32> to vector<1x16x128xf32>
    tpu.vector_store %arg12[%c1_494, %c0_495, %c384_496], %587 {strides = array<i32>} : memref<2x16x1024xf32, #tpu.memory_space<vmem>>, vector<1x16x128xf32>,
    %cst_497 = arith.constant 0.000000e+00 : f32
    %588 = vector.broadcast %cst_497 : f32 to vector<17x128xf32>
    %c1_498 = arith.constant 1 : index
    %c2_499 = arith.constant 2 : index
    %c0_500 = arith.constant 0 : index
    %589 = vector.load %arg0[%c1_498, %c2_499, %c0_500] : memref<2x25x128xf32, #tpu.memory_space<vmem>>, vector<1x17x128xf32>
    %590 = vector.shape_cast %589 : vector<1x17x128xf32> to vector<17x128xf32>
    %c0_501 = arith.constant 0 : index
    %c0_502 = arith.constant 0 : index
    %c0_503 = arith.constant 0 : index
    %591 = vector.load %arg5[%c0_501, %c0_502, %c0_503] : memref<5x128x128xf32, #tpu.memory_space<vmem>>, vector<1x128x128xf32>
    %592 = vector.shape_cast %591 : vector<1x128x128xf32> to vector<128x128xf32>
    %cst_504 = arith.constant dense<0.000000e+00> : vector<17x128xf32>
    %593 = tpu.matmul %590, %592, %cst_504 {dimension_numbers = #tpu.dot_dimension_numbers<[1], [0], [0], [1], [0, 0, 1, 1], [], []>} : vector<17x128xf32>, vector<128x128xf32>, vector<17x128xf32> -> vector<17x128xf32>
    %594 = arith.addf %588, %593 : vector<17x128xf32>
    %c1_505 = arith.constant 1 : index
    %c3_506 = arith.constant 3 : index
    %c0_507 = arith.constant 0 : index
    %595 = vector.load %arg0[%c1_505, %c3_506, %c0_507] : memref<2x25x128xf32, #tpu.memory_space<vmem>>, vector<1x17x128xf32>
    %596 = vector.shape_cast %595 : vector<1x17x128xf32> to vector<17x128xf32>
    %c1_508 = arith.constant 1 : index
    %c0_509 = arith.constant 0 : index
    %c0_510 = arith.constant 0 : index
    %597 = vector.load %arg5[%c1_508, %c0_509, %c0_510] : memref<5x128x128xf32, #tpu.memory_space<vmem>>, vector<1x128x128xf32>
    %598 = vector.shape_cast %597 : vector<1x128x128xf32> to vector<128x128xf32>
    %cst_511 = arith.constant dense<0.000000e+00> : vector<17x128xf32>
    %599 = tpu.matmul %596, %598, %cst_511 {dimension_numbers = #tpu.dot_dimension_numbers<[1], [0], [0], [1], [0, 0, 1, 1], [], []>} : vector<17x128xf32>, vector<128x128xf32>, vector<17x128xf32> -> vector<17x128xf32>
    %600 = arith.addf %594, %599 : vector<17x128xf32>
    %c1_512 = arith.constant 1 : index
    %c4_513 = arith.constant 4 : index
    %c0_514 = arith.constant 0 : index
    %601 = vector.load %arg0[%c1_512, %c4_513, %c0_514] : memref<2x25x128xf32, #tpu.memory_space<vmem>>, vector<1x17x128xf32>
    %602 = vector.shape_cast %601 : vector<1x17x128xf32> to vector<17x128xf32>
    %c2_515 = arith.constant 2 : index
    %c0_516 = arith.constant 0 : index
    %c0_517 = arith.constant 0 : index
    %603 = vector.load %arg5[%c2_515, %c0_516, %c0_517] : memref<5x128x128xf32, #tpu.memory_space<vmem>>, vector<1x128x128xf32>
    %604 = vector.shape_cast %603 : vector<1x128x128xf32> to vector<128x128xf32>
    %cst_518 = arith.constant dense<0.000000e+00> : vector<17x128xf32>
    %605 = tpu.matmul %602, %604, %cst_518 {dimension_numbers = #tpu.dot_dimension_numbers<[1], [0], [0], [1], [0, 0, 1, 1], [], []>} : vector<17x128xf32>, vector<128x128xf32>, vector<17x128xf32> -> vector<17x128xf32>
    %606 = arith.addf %600, %605 : vector<17x128xf32>
    %c1_519 = arith.constant 1 : index
    %c5_520 = arith.constant 5 : index
    %c0_521 = arith.constant 0 : index
    %607 = vector.load %arg0[%c1_519, %c5_520, %c0_521] : memref<2x25x128xf32, #tpu.memory_space<vmem>>, vector<1x17x128xf32>
    %608 = vector.shape_cast %607 : vector<1x17x128xf32> to vector<17x128xf32>
    %c3_522 = arith.constant 3 : index
    %c0_523 = arith.constant 0 : index
    %c0_524 = arith.constant 0 : index
    %609 = vector.load %arg5[%c3_522, %c0_523, %c0_524] : memref<5x128x128xf32, #tpu.memory_space<vmem>>, vector<1x128x128xf32>
    %610 = vector.shape_cast %609 : vector<1x128x128xf32> to vector<128x128xf32>
    %cst_525 = arith.constant dense<0.000000e+00> : vector<17x128xf32>
    %611 = tpu.matmul %608, %610, %cst_525 {dimension_numbers = #tpu.dot_dimension_numbers<[1], [0], [0], [1], [0, 0, 1, 1], [], []>} : vector<17x128xf32>, vector<128x128xf32>, vector<17x128xf32> -> vector<17x128xf32>
    %612 = arith.addf %606, %611 : vector<17x128xf32>
    %c1_526 = arith.constant 1 : index
    %c6_527 = arith.constant 6 : index
    %c0_528 = arith.constant 0 : index
    %613 = vector.load %arg0[%c1_526, %c6_527, %c0_528] : memref<2x25x128xf32, #tpu.memory_space<vmem>>, vector<1x17x128xf32>
    %614 = vector.shape_cast %613 : vector<1x17x128xf32> to vector<17x128xf32>
    %c4_529 = arith.constant 4 : index
    %c0_530 = arith.constant 0 : index
    %c0_531 = arith.constant 0 : index
    %615 = vector.load %arg5[%c4_529, %c0_530, %c0_531] : memref<5x128x128xf32, #tpu.memory_space<vmem>>, vector<1x128x128xf32>
    %616 = vector.shape_cast %615 : vector<1x128x128xf32> to vector<128x128xf32>
    %cst_532 = arith.constant dense<0.000000e+00> : vector<17x128xf32>
    %617 = tpu.matmul %614, %616, %cst_532 {dimension_numbers = #tpu.dot_dimension_numbers<[1], [0], [0], [1], [0, 0, 1, 1], [], []>} : vector<17x128xf32>, vector<128x128xf32>, vector<17x128xf32> -> vector<17x128xf32>
    %618 = arith.addf %612, %617 : vector<17x128xf32>
    %c4_533 = arith.constant 4 : index
    %c0_534 = arith.constant 0 : index
    %c0_535 = arith.constant 0 : index
    %619 = vector.load %arg9[%c4_533, %c0_534, %c0_535] : memref<8x1x128xf32, #tpu.memory_space<vmem>>, vector<1x1x128xf32>
    %620 = vector.shape_cast %619 : vector<1x1x128xf32> to vector<1x128xf32>
    %621 = vector.broadcast %620 : vector<1x128xf32> to vector<17x128xf32>
    %622 = arith.addf %618, %621 : vector<17x128xf32>
    %cst_536 = arith.constant 0.000000e+00 : f32
    %623 = vector.broadcast %cst_536 : f32 to vector<17x128xf32>
    %624 = arith.maximumf %622, %623 : vector<17x128xf32>
    %c4_537 = arith.constant 4 : index
    %c0_538 = arith.constant 0 : index
    %c0_539 = arith.constant 0 : index
    %625 = vector.load %arg10[%c4_537, %c0_538, %c0_539] : memref<8x1x128xf32, #tpu.memory_space<vmem>>, vector<1x1x128xf32>
    %626 = vector.shape_cast %625 : vector<1x1x128xf32> to vector<1x128xf32>
    %627 = vector.broadcast %626 : vector<1x128xf32> to vector<17x128xf32>
    %628 = arith.mulf %624, %627 : vector<17x128xf32>
    %c4_540 = arith.constant 4 : index
    %c0_541 = arith.constant 0 : index
    %c0_542 = arith.constant 0 : index
    %629 = vector.load %arg11[%c4_540, %c0_541, %c0_542] : memref<8x1x128xf32, #tpu.memory_space<vmem>>, vector<1x1x128xf32>
    %630 = vector.shape_cast %629 : vector<1x1x128xf32> to vector<1x128xf32>
    %631 = vector.broadcast %630 : vector<1x128xf32> to vector<17x128xf32>
    %632 = arith.addf %628, %631 : vector<17x128xf32>
    %633 = vector.extract_strided_slice %632 {offsets = [1, 0], sizes = [16, 128], strides = [1, 1]} : vector<17x128xf32> to vector<16x128xf32>
    %634 = vector.extract_strided_slice %632 {offsets = [0, 0], sizes = [16, 128], strides = [1, 1]} : vector<17x128xf32> to vector<16x128xf32>
    %635 = tpu.iota {dimensions = array<i32: 0>} : vector<16x128xi32>
    %c0_i32_543 = arith.constant 0 : i32
    %636 = vector.broadcast %c0_i32_543 : i32 to vector<16x128xi32>
    %637 = arith.cmpi eq, %635, %636 : vector<16x128xi32>
    %cst_544 = arith.constant 0xFF800000 : f32
    %638 = vector.broadcast %cst_544 : f32 to vector<16x128xf32>
    %639 = arith.select %637, %638, %634 : vector<16x128xi1>, vector<16x128xf32>
    %640 = arith.maximumf %633, %639 : vector<16x128xf32>
    %c1_545 = arith.constant 1 : index
    %c0_546 = arith.constant 0 : index
    %c512_547 = arith.constant 512 : index
    %641 = vector.load %arg12[%c1_545, %c0_546, %c512_547] : memref<2x16x1024xf32, #tpu.memory_space<vmem>>, vector<1x16x128xf32>
    %642 = vector.shape_cast %641 : vector<1x16x128xf32> to vector<16x128xf32>
    %643 = vector.shape_cast %640 : vector<16x128xf32> to vector<1x16x128xf32>
    tpu.vector_store %arg12[%c1_545, %c0_546, %c512_547], %643 {strides = array<i32>} : memref<2x16x1024xf32, #tpu.memory_space<vmem>>, vector<1x16x128xf32>,
    %cst_548 = arith.constant 0.000000e+00 : f32
    %644 = vector.broadcast %cst_548 : f32 to vector<17x128xf32>
    %c1_549 = arith.constant 1 : index
    %c1_550 = arith.constant 1 : index
    %c0_551 = arith.constant 0 : index
    %645 = vector.load %arg0[%c1_549, %c1_550, %c0_551] : memref<2x25x128xf32, #tpu.memory_space<vmem>>, vector<1x17x128xf32>
    %646 = vector.shape_cast %645 : vector<1x17x128xf32> to vector<17x128xf32>
    %c0_552 = arith.constant 0 : index
    %c0_553 = arith.constant 0 : index
    %c0_554 = arith.constant 0 : index
    %647 = vector.load %arg6[%c0_552, %c0_553, %c0_554] : memref<6x128x128xf32, #tpu.memory_space<vmem>>, vector<1x128x128xf32>
    %648 = vector.shape_cast %647 : vector<1x128x128xf32> to vector<128x128xf32>
    %cst_555 = arith.constant dense<0.000000e+00> : vector<17x128xf32>
    %649 = tpu.matmul %646, %648, %cst_555 {dimension_numbers = #tpu.dot_dimension_numbers<[1], [0], [0], [1], [0, 0, 1, 1], [], []>} : vector<17x128xf32>, vector<128x128xf32>, vector<17x128xf32> -> vector<17x128xf32>
    %650 = arith.addf %644, %649 : vector<17x128xf32>
    %c1_556 = arith.constant 1 : index
    %c2_557 = arith.constant 2 : index
    %c0_558 = arith.constant 0 : index
    %651 = vector.load %arg0[%c1_556, %c2_557, %c0_558] : memref<2x25x128xf32, #tpu.memory_space<vmem>>, vector<1x17x128xf32>
    %652 = vector.shape_cast %651 : vector<1x17x128xf32> to vector<17x128xf32>
    %c1_559 = arith.constant 1 : index
    %c0_560 = arith.constant 0 : index
    %c0_561 = arith.constant 0 : index
    %653 = vector.load %arg6[%c1_559, %c0_560, %c0_561] : memref<6x128x128xf32, #tpu.memory_space<vmem>>, vector<1x128x128xf32>
    %654 = vector.shape_cast %653 : vector<1x128x128xf32> to vector<128x128xf32>
    %cst_562 = arith.constant dense<0.000000e+00> : vector<17x128xf32>
    %655 = tpu.matmul %652, %654, %cst_562 {dimension_numbers = #tpu.dot_dimension_numbers<[1], [0], [0], [1], [0, 0, 1, 1], [], []>} : vector<17x128xf32>, vector<128x128xf32>, vector<17x128xf32> -> vector<17x128xf32>
    %656 = arith.addf %650, %655 : vector<17x128xf32>
    %c1_563 = arith.constant 1 : index
    %c3_564 = arith.constant 3 : index
    %c0_565 = arith.constant 0 : index
    %657 = vector.load %arg0[%c1_563, %c3_564, %c0_565] : memref<2x25x128xf32, #tpu.memory_space<vmem>>, vector<1x17x128xf32>
    %658 = vector.shape_cast %657 : vector<1x17x128xf32> to vector<17x128xf32>
    %c2_566 = arith.constant 2 : index
    %c0_567 = arith.constant 0 : index
    %c0_568 = arith.constant 0 : index
    %659 = vector.load %arg6[%c2_566, %c0_567, %c0_568] : memref<6x128x128xf32, #tpu.memory_space<vmem>>, vector<1x128x128xf32>
    %660 = vector.shape_cast %659 : vector<1x128x128xf32> to vector<128x128xf32>
    %cst_569 = arith.constant dense<0.000000e+00> : vector<17x128xf32>
    %661 = tpu.matmul %658, %660, %cst_569 {dimension_numbers = #tpu.dot_dimension_numbers<[1], [0], [0], [1], [0, 0, 1, 1], [], []>} : vector<17x128xf32>, vector<128x128xf32>, vector<17x128xf32> -> vector<17x128xf32>
    %662 = arith.addf %656, %661 : vector<17x128xf32>
    %c1_570 = arith.constant 1 : index
    %c4_571 = arith.constant 4 : index
    %c0_572 = arith.constant 0 : index
    %663 = vector.load %arg0[%c1_570, %c4_571, %c0_572] : memref<2x25x128xf32, #tpu.memory_space<vmem>>, vector<1x17x128xf32>
    %664 = vector.shape_cast %663 : vector<1x17x128xf32> to vector<17x128xf32>
    %c3_573 = arith.constant 3 : index
    %c0_574 = arith.constant 0 : index
    %c0_575 = arith.constant 0 : index
    %665 = vector.load %arg6[%c3_573, %c0_574, %c0_575] : memref<6x128x128xf32, #tpu.memory_space<vmem>>, vector<1x128x128xf32>
    %666 = vector.shape_cast %665 : vector<1x128x128xf32> to vector<128x128xf32>
    %cst_576 = arith.constant dense<0.000000e+00> : vector<17x128xf32>
    %667 = tpu.matmul %664, %666, %cst_576 {dimension_numbers = #tpu.dot_dimension_numbers<[1], [0], [0], [1], [0, 0, 1, 1], [], []>} : vector<17x128xf32>, vector<128x128xf32>, vector<17x128xf32> -> vector<17x128xf32>
    %668 = arith.addf %662, %667 : vector<17x128xf32>
    %c1_577 = arith.constant 1 : index
    %c5_578 = arith.constant 5 : index
    %c0_579 = arith.constant 0 : index
    %669 = vector.load %arg0[%c1_577, %c5_578, %c0_579] : memref<2x25x128xf32, #tpu.memory_space<vmem>>, vector<1x17x128xf32>
    %670 = vector.shape_cast %669 : vector<1x17x128xf32> to vector<17x128xf32>
    %c4_580 = arith.constant 4 : index
    %c0_581 = arith.constant 0 : index
    %c0_582 = arith.constant 0 : index
    %671 = vector.load %arg6[%c4_580, %c0_581, %c0_582] : memref<6x128x128xf32, #tpu.memory_space<vmem>>, vector<1x128x128xf32>
    %672 = vector.shape_cast %671 : vector<1x128x128xf32> to vector<128x128xf32>
    %cst_583 = arith.constant dense<0.000000e+00> : vector<17x128xf32>
    %673 = tpu.matmul %670, %672, %cst_583 {dimension_numbers = #tpu.dot_dimension_numbers<[1], [0], [0], [1], [0, 0, 1, 1], [], []>} : vector<17x128xf32>, vector<128x128xf32>, vector<17x128xf32> -> vector<17x128xf32>
    %674 = arith.addf %668, %673 : vector<17x128xf32>
    %c1_584 = arith.constant 1 : index
    %c6_585 = arith.constant 6 : index
    %c0_586 = arith.constant 0 : index
    %675 = vector.load %arg0[%c1_584, %c6_585, %c0_586] : memref<2x25x128xf32, #tpu.memory_space<vmem>>, vector<1x17x128xf32>
    %676 = vector.shape_cast %675 : vector<1x17x128xf32> to vector<17x128xf32>
    %c5_587 = arith.constant 5 : index
    %c0_588 = arith.constant 0 : index
    %c0_589 = arith.constant 0 : index
    %677 = vector.load %arg6[%c5_587, %c0_588, %c0_589] : memref<6x128x128xf32, #tpu.memory_space<vmem>>, vector<1x128x128xf32>
    %678 = vector.shape_cast %677 : vector<1x128x128xf32> to vector<128x128xf32>
    %cst_590 = arith.constant dense<0.000000e+00> : vector<17x128xf32>
    %679 = tpu.matmul %676, %678, %cst_590 {dimension_numbers = #tpu.dot_dimension_numbers<[1], [0], [0], [1], [0, 0, 1, 1], [], []>} : vector<17x128xf32>, vector<128x128xf32>, vector<17x128xf32> -> vector<17x128xf32>
    %680 = arith.addf %674, %679 : vector<17x128xf32>
    %c5_591 = arith.constant 5 : index
    %c0_592 = arith.constant 0 : index
    %c0_593 = arith.constant 0 : index
    %681 = vector.load %arg9[%c5_591, %c0_592, %c0_593] : memref<8x1x128xf32, #tpu.memory_space<vmem>>, vector<1x1x128xf32>
    %682 = vector.shape_cast %681 : vector<1x1x128xf32> to vector<1x128xf32>
    %683 = vector.broadcast %682 : vector<1x128xf32> to vector<17x128xf32>
    %684 = arith.addf %680, %683 : vector<17x128xf32>
    %cst_594 = arith.constant 0.000000e+00 : f32
    %685 = vector.broadcast %cst_594 : f32 to vector<17x128xf32>
    %686 = arith.maximumf %684, %685 : vector<17x128xf32>
    %c5_595 = arith.constant 5 : index
    %c0_596 = arith.constant 0 : index
    %c0_597 = arith.constant 0 : index
    %687 = vector.load %arg10[%c5_595, %c0_596, %c0_597] : memref<8x1x128xf32, #tpu.memory_space<vmem>>, vector<1x1x128xf32>
    %688 = vector.shape_cast %687 : vector<1x1x128xf32> to vector<1x128xf32>
    %689 = vector.broadcast %688 : vector<1x128xf32> to vector<17x128xf32>
    %690 = arith.mulf %686, %689 : vector<17x128xf32>
    %c5_598 = arith.constant 5 : index
    %c0_599 = arith.constant 0 : index
    %c0_600 = arith.constant 0 : index
    %691 = vector.load %arg11[%c5_598, %c0_599, %c0_600] : memref<8x1x128xf32, #tpu.memory_space<vmem>>, vector<1x1x128xf32>
    %692 = vector.shape_cast %691 : vector<1x1x128xf32> to vector<1x128xf32>
    %693 = vector.broadcast %692 : vector<1x128xf32> to vector<17x128xf32>
    %694 = arith.addf %690, %693 : vector<17x128xf32>
    %695 = vector.extract_strided_slice %694 {offsets = [1, 0], sizes = [16, 128], strides = [1, 1]} : vector<17x128xf32> to vector<16x128xf32>
    %696 = vector.extract_strided_slice %694 {offsets = [0, 0], sizes = [16, 128], strides = [1, 1]} : vector<17x128xf32> to vector<16x128xf32>
    %697 = tpu.iota {dimensions = array<i32: 0>} : vector<16x128xi32>
    %c0_i32_601 = arith.constant 0 : i32
    %698 = vector.broadcast %c0_i32_601 : i32 to vector<16x128xi32>
    %699 = arith.cmpi eq, %697, %698 : vector<16x128xi32>
    %cst_602 = arith.constant 0xFF800000 : f32
    %700 = vector.broadcast %cst_602 : f32 to vector<16x128xf32>
    %701 = arith.select %699, %700, %696 : vector<16x128xi1>, vector<16x128xf32>
    %702 = arith.maximumf %695, %701 : vector<16x128xf32>
    %c1_603 = arith.constant 1 : index
    %c0_604 = arith.constant 0 : index
    %c640_605 = arith.constant 640 : index
    %703 = vector.load %arg12[%c1_603, %c0_604, %c640_605] : memref<2x16x1024xf32, #tpu.memory_space<vmem>>, vector<1x16x128xf32>
    %704 = vector.shape_cast %703 : vector<1x16x128xf32> to vector<16x128xf32>
    %705 = vector.shape_cast %702 : vector<16x128xf32> to vector<1x16x128xf32>
    tpu.vector_store %arg12[%c1_603, %c0_604, %c640_605], %705 {strides = array<i32>} : memref<2x16x1024xf32, #tpu.memory_space<vmem>>, vector<1x16x128xf32>,
    %cst_606 = arith.constant 0.000000e+00 : f32
    %706 = vector.broadcast %cst_606 : f32 to vector<17x128xf32>
    %c1_607 = arith.constant 1 : index
    %c1_608 = arith.constant 1 : index
    %c0_609 = arith.constant 0 : index
    %707 = vector.load %arg0[%c1_607, %c1_608, %c0_609] : memref<2x25x128xf32, #tpu.memory_space<vmem>>, vector<1x17x128xf32>
    %708 = vector.shape_cast %707 : vector<1x17x128xf32> to vector<17x128xf32>
    %c0_610 = arith.constant 0 : index
    %c0_611 = arith.constant 0 : index
    %c0_612 = arith.constant 0 : index
    %709 = vector.load %arg7[%c0_610, %c0_611, %c0_612] : memref<7x128x128xf32, #tpu.memory_space<vmem>>, vector<1x128x128xf32>
    %710 = vector.shape_cast %709 : vector<1x128x128xf32> to vector<128x128xf32>
    %cst_613 = arith.constant dense<0.000000e+00> : vector<17x128xf32>
    %711 = tpu.matmul %708, %710, %cst_613 {dimension_numbers = #tpu.dot_dimension_numbers<[1], [0], [0], [1], [0, 0, 1, 1], [], []>} : vector<17x128xf32>, vector<128x128xf32>, vector<17x128xf32> -> vector<17x128xf32>
    %712 = arith.addf %706, %711 : vector<17x128xf32>
    %c1_614 = arith.constant 1 : index
    %c2_615 = arith.constant 2 : index
    %c0_616 = arith.constant 0 : index
    %713 = vector.load %arg0[%c1_614, %c2_615, %c0_616] : memref<2x25x128xf32, #tpu.memory_space<vmem>>, vector<1x17x128xf32>
    %714 = vector.shape_cast %713 : vector<1x17x128xf32> to vector<17x128xf32>
    %c1_617 = arith.constant 1 : index
    %c0_618 = arith.constant 0 : index
    %c0_619 = arith.constant 0 : index
    %715 = vector.load %arg7[%c1_617, %c0_618, %c0_619] : memref<7x128x128xf32, #tpu.memory_space<vmem>>, vector<1x128x128xf32>
    %716 = vector.shape_cast %715 : vector<1x128x128xf32> to vector<128x128xf32>
    %cst_620 = arith.constant dense<0.000000e+00> : vector<17x128xf32>
    %717 = tpu.matmul %714, %716, %cst_620 {dimension_numbers = #tpu.dot_dimension_numbers<[1], [0], [0], [1], [0, 0, 1, 1], [], []>} : vector<17x128xf32>, vector<128x128xf32>, vector<17x128xf32> -> vector<17x128xf32>
    %718 = arith.addf %712, %717 : vector<17x128xf32>
    %c1_621 = arith.constant 1 : index
    %c3_622 = arith.constant 3 : index
    %c0_623 = arith.constant 0 : index
    %719 = vector.load %arg0[%c1_621, %c3_622, %c0_623] : memref<2x25x128xf32, #tpu.memory_space<vmem>>, vector<1x17x128xf32>
    %720 = vector.shape_cast %719 : vector<1x17x128xf32> to vector<17x128xf32>
    %c2_624 = arith.constant 2 : index
    %c0_625 = arith.constant 0 : index
    %c0_626 = arith.constant 0 : index
    %721 = vector.load %arg7[%c2_624, %c0_625, %c0_626] : memref<7x128x128xf32, #tpu.memory_space<vmem>>, vector<1x128x128xf32>
    %722 = vector.shape_cast %721 : vector<1x128x128xf32> to vector<128x128xf32>
    %cst_627 = arith.constant dense<0.000000e+00> : vector<17x128xf32>
    %723 = tpu.matmul %720, %722, %cst_627 {dimension_numbers = #tpu.dot_dimension_numbers<[1], [0], [0], [1], [0, 0, 1, 1], [], []>} : vector<17x128xf32>, vector<128x128xf32>, vector<17x128xf32> -> vector<17x128xf32>
    %724 = arith.addf %718, %723 : vector<17x128xf32>
    %c1_628 = arith.constant 1 : index
    %c4_629 = arith.constant 4 : index
    %c0_630 = arith.constant 0 : index
    %725 = vector.load %arg0[%c1_628, %c4_629, %c0_630] : memref<2x25x128xf32, #tpu.memory_space<vmem>>, vector<1x17x128xf32>
    %726 = vector.shape_cast %725 : vector<1x17x128xf32> to vector<17x128xf32>
    %c3_631 = arith.constant 3 : index
    %c0_632 = arith.constant 0 : index
    %c0_633 = arith.constant 0 : index
    %727 = vector.load %arg7[%c3_631, %c0_632, %c0_633] : memref<7x128x128xf32, #tpu.memory_space<vmem>>, vector<1x128x128xf32>
    %728 = vector.shape_cast %727 : vector<1x128x128xf32> to vector<128x128xf32>
    %cst_634 = arith.constant dense<0.000000e+00> : vector<17x128xf32>
    %729 = tpu.matmul %726, %728, %cst_634 {dimension_numbers = #tpu.dot_dimension_numbers<[1], [0], [0], [1], [0, 0, 1, 1], [], []>} : vector<17x128xf32>, vector<128x128xf32>, vector<17x128xf32> -> vector<17x128xf32>
    %730 = arith.addf %724, %729 : vector<17x128xf32>
    %c1_635 = arith.constant 1 : index
    %c5_636 = arith.constant 5 : index
    %c0_637 = arith.constant 0 : index
    %731 = vector.load %arg0[%c1_635, %c5_636, %c0_637] : memref<2x25x128xf32, #tpu.memory_space<vmem>>, vector<1x17x128xf32>
    %732 = vector.shape_cast %731 : vector<1x17x128xf32> to vector<17x128xf32>
    %c4_638 = arith.constant 4 : index
    %c0_639 = arith.constant 0 : index
    %c0_640 = arith.constant 0 : index
    %733 = vector.load %arg7[%c4_638, %c0_639, %c0_640] : memref<7x128x128xf32, #tpu.memory_space<vmem>>, vector<1x128x128xf32>
    %734 = vector.shape_cast %733 : vector<1x128x128xf32> to vector<128x128xf32>
    %cst_641 = arith.constant dense<0.000000e+00> : vector<17x128xf32>
    %735 = tpu.matmul %732, %734, %cst_641 {dimension_numbers = #tpu.dot_dimension_numbers<[1], [0], [0], [1], [0, 0, 1, 1], [], []>} : vector<17x128xf32>, vector<128x128xf32>, vector<17x128xf32> -> vector<17x128xf32>
    %736 = arith.addf %730, %735 : vector<17x128xf32>
    %c1_642 = arith.constant 1 : index
    %c6_643 = arith.constant 6 : index
    %c0_644 = arith.constant 0 : index
    %737 = vector.load %arg0[%c1_642, %c6_643, %c0_644] : memref<2x25x128xf32, #tpu.memory_space<vmem>>, vector<1x17x128xf32>
    %738 = vector.shape_cast %737 : vector<1x17x128xf32> to vector<17x128xf32>
    %c5_645 = arith.constant 5 : index
    %c0_646 = arith.constant 0 : index
    %c0_647 = arith.constant 0 : index
    %739 = vector.load %arg7[%c5_645, %c0_646, %c0_647] : memref<7x128x128xf32, #tpu.memory_space<vmem>>, vector<1x128x128xf32>
    %740 = vector.shape_cast %739 : vector<1x128x128xf32> to vector<128x128xf32>
    %cst_648 = arith.constant dense<0.000000e+00> : vector<17x128xf32>
    %741 = tpu.matmul %738, %740, %cst_648 {dimension_numbers = #tpu.dot_dimension_numbers<[1], [0], [0], [1], [0, 0, 1, 1], [], []>} : vector<17x128xf32>, vector<128x128xf32>, vector<17x128xf32> -> vector<17x128xf32>
    %742 = arith.addf %736, %741 : vector<17x128xf32>
    %c1_649 = arith.constant 1 : index
    %c7_650 = arith.constant 7 : index
    %c0_651 = arith.constant 0 : index
    %743 = vector.load %arg0[%c1_649, %c7_650, %c0_651] : memref<2x25x128xf32, #tpu.memory_space<vmem>>, vector<1x17x128xf32>
    %744 = vector.shape_cast %743 : vector<1x17x128xf32> to vector<17x128xf32>
    %c6_652 = arith.constant 6 : index
    %c0_653 = arith.constant 0 : index
    %c0_654 = arith.constant 0 : index
    %745 = vector.load %arg7[%c6_652, %c0_653, %c0_654] : memref<7x128x128xf32, #tpu.memory_space<vmem>>, vector<1x128x128xf32>
    %746 = vector.shape_cast %745 : vector<1x128x128xf32> to vector<128x128xf32>
    %cst_655 = arith.constant dense<0.000000e+00> : vector<17x128xf32>
    %747 = tpu.matmul %744, %746, %cst_655 {dimension_numbers = #tpu.dot_dimension_numbers<[1], [0], [0], [1], [0, 0, 1, 1], [], []>} : vector<17x128xf32>, vector<128x128xf32>, vector<17x128xf32> -> vector<17x128xf32>
    %748 = arith.addf %742, %747 : vector<17x128xf32>
    %c6_656 = arith.constant 6 : index
    %c0_657 = arith.constant 0 : index
    %c0_658 = arith.constant 0 : index
    %749 = vector.load %arg9[%c6_656, %c0_657, %c0_658] : memref<8x1x128xf32, #tpu.memory_space<vmem>>, vector<1x1x128xf32>
    %750 = vector.shape_cast %749 : vector<1x1x128xf32> to vector<1x128xf32>
    %751 = vector.broadcast %750 : vector<1x128xf32> to vector<17x128xf32>
    %752 = arith.addf %748, %751 : vector<17x128xf32>
    %cst_659 = arith.constant 0.000000e+00 : f32
    %753 = vector.broadcast %cst_659 : f32 to vector<17x128xf32>
    %754 = arith.maximumf %752, %753 : vector<17x128xf32>
    %c6_660 = arith.constant 6 : index
    %c0_661 = arith.constant 0 : index
    %c0_662 = arith.constant 0 : index
    %755 = vector.load %arg10[%c6_660, %c0_661, %c0_662] : memref<8x1x128xf32, #tpu.memory_space<vmem>>, vector<1x1x128xf32>
    %756 = vector.shape_cast %755 : vector<1x1x128xf32> to vector<1x128xf32>
    %757 = vector.broadcast %756 : vector<1x128xf32> to vector<17x128xf32>
    %758 = arith.mulf %754, %757 : vector<17x128xf32>
    %c6_663 = arith.constant 6 : index
    %c0_664 = arith.constant 0 : index
    %c0_665 = arith.constant 0 : index
    %759 = vector.load %arg11[%c6_663, %c0_664, %c0_665] : memref<8x1x128xf32, #tpu.memory_space<vmem>>, vector<1x1x128xf32>
    %760 = vector.shape_cast %759 : vector<1x1x128xf32> to vector<1x128xf32>
    %761 = vector.broadcast %760 : vector<1x128xf32> to vector<17x128xf32>
    %762 = arith.addf %758, %761 : vector<17x128xf32>
    %763 = vector.extract_strided_slice %762 {offsets = [1, 0], sizes = [16, 128], strides = [1, 1]} : vector<17x128xf32> to vector<16x128xf32>
    %764 = vector.extract_strided_slice %762 {offsets = [0, 0], sizes = [16, 128], strides = [1, 1]} : vector<17x128xf32> to vector<16x128xf32>
    %765 = tpu.iota {dimensions = array<i32: 0>} : vector<16x128xi32>
    %c0_i32_666 = arith.constant 0 : i32
    %766 = vector.broadcast %c0_i32_666 : i32 to vector<16x128xi32>
    %767 = arith.cmpi eq, %765, %766 : vector<16x128xi32>
    %cst_667 = arith.constant 0xFF800000 : f32
    %768 = vector.broadcast %cst_667 : f32 to vector<16x128xf32>
    %769 = arith.select %767, %768, %764 : vector<16x128xi1>, vector<16x128xf32>
    %770 = arith.maximumf %763, %769 : vector<16x128xf32>
    %c1_668 = arith.constant 1 : index
    %c0_669 = arith.constant 0 : index
    %c768_670 = arith.constant 768 : index
    %771 = vector.load %arg12[%c1_668, %c0_669, %c768_670] : memref<2x16x1024xf32, #tpu.memory_space<vmem>>, vector<1x16x128xf32>
    %772 = vector.shape_cast %771 : vector<1x16x128xf32> to vector<16x128xf32>
    %773 = vector.shape_cast %770 : vector<16x128xf32> to vector<1x16x128xf32>
    tpu.vector_store %arg12[%c1_668, %c0_669, %c768_670], %773 {strides = array<i32>} : memref<2x16x1024xf32, #tpu.memory_space<vmem>>, vector<1x16x128xf32>,
    %cst_671 = arith.constant 0.000000e+00 : f32
    %774 = vector.broadcast %cst_671 : f32 to vector<17x128xf32>
    %c1_672 = arith.constant 1 : index
    %c0_673 = arith.constant 0 : index
    %c0_674 = arith.constant 0 : index
    %775 = vector.load %arg0[%c1_672, %c0_673, %c0_674] : memref<2x25x128xf32, #tpu.memory_space<vmem>>, vector<1x17x128xf32>
    %776 = vector.shape_cast %775 : vector<1x17x128xf32> to vector<17x128xf32>
    %c0_675 = arith.constant 0 : index
    %c0_676 = arith.constant 0 : index
    %c0_677 = arith.constant 0 : index
    %777 = vector.load %arg8[%c0_675, %c0_676, %c0_677] : memref<8x128x128xf32, #tpu.memory_space<vmem>>, vector<1x128x128xf32>
    %778 = vector.shape_cast %777 : vector<1x128x128xf32> to vector<128x128xf32>
    %cst_678 = arith.constant dense<0.000000e+00> : vector<17x128xf32>
    %779 = tpu.matmul %776, %778, %cst_678 {dimension_numbers = #tpu.dot_dimension_numbers<[1], [0], [0], [1], [0, 0, 1, 1], [], []>} : vector<17x128xf32>, vector<128x128xf32>, vector<17x128xf32> -> vector<17x128xf32>
    %780 = arith.addf %774, %779 : vector<17x128xf32>
    %c1_679 = arith.constant 1 : index
    %c1_680 = arith.constant 1 : index
    %c0_681 = arith.constant 0 : index
    %781 = vector.load %arg0[%c1_679, %c1_680, %c0_681] : memref<2x25x128xf32, #tpu.memory_space<vmem>>, vector<1x17x128xf32>
    %782 = vector.shape_cast %781 : vector<1x17x128xf32> to vector<17x128xf32>
    %c1_682 = arith.constant 1 : index
    %c0_683 = arith.constant 0 : index
    %c0_684 = arith.constant 0 : index
    %783 = vector.load %arg8[%c1_682, %c0_683, %c0_684] : memref<8x128x128xf32, #tpu.memory_space<vmem>>, vector<1x128x128xf32>
    %784 = vector.shape_cast %783 : vector<1x128x128xf32> to vector<128x128xf32>
    %cst_685 = arith.constant dense<0.000000e+00> : vector<17x128xf32>
    %785 = tpu.matmul %782, %784, %cst_685 {dimension_numbers = #tpu.dot_dimension_numbers<[1], [0], [0], [1], [0, 0, 1, 1], [], []>} : vector<17x128xf32>, vector<128x128xf32>, vector<17x128xf32> -> vector<17x128xf32>
    %786 = arith.addf %780, %785 : vector<17x128xf32>
    %c1_686 = arith.constant 1 : index
    %c2_687 = arith.constant 2 : index
    %c0_688 = arith.constant 0 : index
    %787 = vector.load %arg0[%c1_686, %c2_687, %c0_688] : memref<2x25x128xf32, #tpu.memory_space<vmem>>, vector<1x17x128xf32>
    %788 = vector.shape_cast %787 : vector<1x17x128xf32> to vector<17x128xf32>
    %c2_689 = arith.constant 2 : index
    %c0_690 = arith.constant 0 : index
    %c0_691 = arith.constant 0 : index
    %789 = vector.load %arg8[%c2_689, %c0_690, %c0_691] : memref<8x128x128xf32, #tpu.memory_space<vmem>>, vector<1x128x128xf32>
    %790 = vector.shape_cast %789 : vector<1x128x128xf32> to vector<128x128xf32>
    %cst_692 = arith.constant dense<0.000000e+00> : vector<17x128xf32>
    %791 = tpu.matmul %788, %790, %cst_692 {dimension_numbers = #tpu.dot_dimension_numbers<[1], [0], [0], [1], [0, 0, 1, 1], [], []>} : vector<17x128xf32>, vector<128x128xf32>, vector<17x128xf32> -> vector<17x128xf32>
    %792 = arith.addf %786, %791 : vector<17x128xf32>
    %c1_693 = arith.constant 1 : index
    %c3_694 = arith.constant 3 : index
    %c0_695 = arith.constant 0 : index
    %793 = vector.load %arg0[%c1_693, %c3_694, %c0_695] : memref<2x25x128xf32, #tpu.memory_space<vmem>>, vector<1x17x128xf32>
    %794 = vector.shape_cast %793 : vector<1x17x128xf32> to vector<17x128xf32>
    %c3_696 = arith.constant 3 : index
    %c0_697 = arith.constant 0 : index
    %c0_698 = arith.constant 0 : index
    %795 = vector.load %arg8[%c3_696, %c0_697, %c0_698] : memref<8x128x128xf32, #tpu.memory_space<vmem>>, vector<1x128x128xf32>
    %796 = vector.shape_cast %795 : vector<1x128x128xf32> to vector<128x128xf32>
    %cst_699 = arith.constant dense<0.000000e+00> : vector<17x128xf32>
    %797 = tpu.matmul %794, %796, %cst_699 {dimension_numbers = #tpu.dot_dimension_numbers<[1], [0], [0], [1], [0, 0, 1, 1], [], []>} : vector<17x128xf32>, vector<128x128xf32>, vector<17x128xf32> -> vector<17x128xf32>
    %798 = arith.addf %792, %797 : vector<17x128xf32>
    %c1_700 = arith.constant 1 : index
    %c4_701 = arith.constant 4 : index
    %c0_702 = arith.constant 0 : index
    %799 = vector.load %arg0[%c1_700, %c4_701, %c0_702] : memref<2x25x128xf32, #tpu.memory_space<vmem>>, vector<1x17x128xf32>
    %800 = vector.shape_cast %799 : vector<1x17x128xf32> to vector<17x128xf32>
    %c4_703 = arith.constant 4 : index
    %c0_704 = arith.constant 0 : index
    %c0_705 = arith.constant 0 : index
    %801 = vector.load %arg8[%c4_703, %c0_704, %c0_705] : memref<8x128x128xf32, #tpu.memory_space<vmem>>, vector<1x128x128xf32>
    %802 = vector.shape_cast %801 : vector<1x128x128xf32> to vector<128x128xf32>
    %cst_706 = arith.constant dense<0.000000e+00> : vector<17x128xf32>
    %803 = tpu.matmul %800, %802, %cst_706 {dimension_numbers = #tpu.dot_dimension_numbers<[1], [0], [0], [1], [0, 0, 1, 1], [], []>} : vector<17x128xf32>, vector<128x128xf32>, vector<17x128xf32> -> vector<17x128xf32>
    %804 = arith.addf %798, %803 : vector<17x128xf32>
    %c1_707 = arith.constant 1 : index
    %c5_708 = arith.constant 5 : index
    %c0_709 = arith.constant 0 : index
    %805 = vector.load %arg0[%c1_707, %c5_708, %c0_709] : memref<2x25x128xf32, #tpu.memory_space<vmem>>, vector<1x17x128xf32>
    %806 = vector.shape_cast %805 : vector<1x17x128xf32> to vector<17x128xf32>
    %c5_710 = arith.constant 5 : index
    %c0_711 = arith.constant 0 : index
    %c0_712 = arith.constant 0 : index
    %807 = vector.load %arg8[%c5_710, %c0_711, %c0_712] : memref<8x128x128xf32, #tpu.memory_space<vmem>>, vector<1x128x128xf32>
    %808 = vector.shape_cast %807 : vector<1x128x128xf32> to vector<128x128xf32>
    %cst_713 = arith.constant dense<0.000000e+00> : vector<17x128xf32>
    %809 = tpu.matmul %806, %808, %cst_713 {dimension_numbers = #tpu.dot_dimension_numbers<[1], [0], [0], [1], [0, 0, 1, 1], [], []>} : vector<17x128xf32>, vector<128x128xf32>, vector<17x128xf32> -> vector<17x128xf32>
    %810 = arith.addf %804, %809 : vector<17x128xf32>
    %c1_714 = arith.constant 1 : index
    %c6_715 = arith.constant 6 : index
    %c0_716 = arith.constant 0 : index
    %811 = vector.load %arg0[%c1_714, %c6_715, %c0_716] : memref<2x25x128xf32, #tpu.memory_space<vmem>>, vector<1x17x128xf32>
    %812 = vector.shape_cast %811 : vector<1x17x128xf32> to vector<17x128xf32>
    %c6_717 = arith.constant 6 : index
    %c0_718 = arith.constant 0 : index
    %c0_719 = arith.constant 0 : index
    %813 = vector.load %arg8[%c6_717, %c0_718, %c0_719] : memref<8x128x128xf32, #tpu.memory_space<vmem>>, vector<1x128x128xf32>
    %814 = vector.shape_cast %813 : vector<1x128x128xf32> to vector<128x128xf32>
    %cst_720 = arith.constant dense<0.000000e+00> : vector<17x128xf32>
    %815 = tpu.matmul %812, %814, %cst_720 {dimension_numbers = #tpu.dot_dimension_numbers<[1], [0], [0], [1], [0, 0, 1, 1], [], []>} : vector<17x128xf32>, vector<128x128xf32>, vector<17x128xf32> -> vector<17x128xf32>
    %816 = arith.addf %810, %815 : vector<17x128xf32>
    %c1_721 = arith.constant 1 : index
    %c7_722 = arith.constant 7 : index
    %c0_723 = arith.constant 0 : index
    %817 = vector.load %arg0[%c1_721, %c7_722, %c0_723] : memref<2x25x128xf32, #tpu.memory_space<vmem>>, vector<1x17x128xf32>
    %818 = vector.shape_cast %817 : vector<1x17x128xf32> to vector<17x128xf32>
    %c7_724 = arith.constant 7 : index
    %c0_725 = arith.constant 0 : index
    %c0_726 = arith.constant 0 : index
    %819 = vector.load %arg8[%c7_724, %c0_725, %c0_726] : memref<8x128x128xf32, #tpu.memory_space<vmem>>, vector<1x128x128xf32>
    %820 = vector.shape_cast %819 : vector<1x128x128xf32> to vector<128x128xf32>
    %cst_727 = arith.constant dense<0.000000e+00> : vector<17x128xf32>
    %821 = tpu.matmul %818, %820, %cst_727 {dimension_numbers = #tpu.dot_dimension_numbers<[1], [0], [0], [1], [0, 0, 1, 1], [], []>} : vector<17x128xf32>, vector<128x128xf32>, vector<17x128xf32> -> vector<17x128xf32>
    %822 = arith.addf %816, %821 : vector<17x128xf32>
    %c7_728 = arith.constant 7 : index
    %c0_729 = arith.constant 0 : index
    %c0_730 = arith.constant 0 : index
    %823 = vector.load %arg9[%c7_728, %c0_729, %c0_730] : memref<8x1x128xf32, #tpu.memory_space<vmem>>, vector<1x1x128xf32>
    %824 = vector.shape_cast %823 : vector<1x1x128xf32> to vector<1x128xf32>
    %825 = vector.broadcast %824 : vector<1x128xf32> to vector<17x128xf32>
    %826 = arith.addf %822, %825 : vector<17x128xf32>
    %cst_731 = arith.constant 0.000000e+00 : f32
    %827 = vector.broadcast %cst_731 : f32 to vector<17x128xf32>
    %828 = arith.maximumf %826, %827 : vector<17x128xf32>
    %c7_732 = arith.constant 7 : index
    %c0_733 = arith.constant 0 : index
    %c0_734 = arith.constant 0 : index
    %829 = vector.load %arg10[%c7_732, %c0_733, %c0_734] : memref<8x1x128xf32, #tpu.memory_space<vmem>>, vector<1x1x128xf32>
    %830 = vector.shape_cast %829 : vector<1x1x128xf32> to vector<1x128xf32>
    %831 = vector.broadcast %830 : vector<1x128xf32> to vector<17x128xf32>
    %832 = arith.mulf %828, %831 : vector<17x128xf32>
    %c7_735 = arith.constant 7 : index
    %c0_736 = arith.constant 0 : index
    %c0_737 = arith.constant 0 : index
    %833 = vector.load %arg11[%c7_735, %c0_736, %c0_737] : memref<8x1x128xf32, #tpu.memory_space<vmem>>, vector<1x1x128xf32>
    %834 = vector.shape_cast %833 : vector<1x1x128xf32> to vector<1x128xf32>
    %835 = vector.broadcast %834 : vector<1x128xf32> to vector<17x128xf32>
    %836 = arith.addf %832, %835 : vector<17x128xf32>
    %837 = vector.extract_strided_slice %836 {offsets = [1, 0], sizes = [16, 128], strides = [1, 1]} : vector<17x128xf32> to vector<16x128xf32>
    %838 = vector.extract_strided_slice %836 {offsets = [0, 0], sizes = [16, 128], strides = [1, 1]} : vector<17x128xf32> to vector<16x128xf32>
    %839 = tpu.iota {dimensions = array<i32: 0>} : vector<16x128xi32>
    %c0_i32_738 = arith.constant 0 : i32
    %840 = vector.broadcast %c0_i32_738 : i32 to vector<16x128xi32>
    %841 = arith.cmpi eq, %839, %840 : vector<16x128xi32>
    %cst_739 = arith.constant 0xFF800000 : f32
    %842 = vector.broadcast %cst_739 : f32 to vector<16x128xf32>
    %843 = arith.select %841, %842, %838 : vector<16x128xi1>, vector<16x128xf32>
    %844 = arith.maximumf %837, %843 : vector<16x128xf32>
    %c1_740 = arith.constant 1 : index
    %c0_741 = arith.constant 0 : index
    %c896_742 = arith.constant 896 : index
    %845 = vector.load %arg12[%c1_740, %c0_741, %c896_742] : memref<2x16x1024xf32, #tpu.memory_space<vmem>>, vector<1x16x128xf32>
    %846 = vector.shape_cast %845 : vector<1x16x128xf32> to vector<16x128xf32>
    %847 = vector.shape_cast %844 : vector<16x128xf32> to vector<1x16x128xf32>
    tpu.vector_store %arg12[%c1_740, %c0_741, %c896_742], %847 {strides = array<i32>} : memref<2x16x1024xf32, #tpu.memory_space<vmem>>, vector<1x16x128xf32>,
    return
  }
}

</mosaic_0001>

<llo_original>
// kernel: tpu_custom_call.1
$region0: #{tpu_custom_call.1}
  #allocation0 [shape = 'u32[]', space=smem, size = 0x4, offset = 0x4, fixed_abs, tag = 'smem constant byte address 0x4 - core index']
  #allocation1 [shape = 'u32[144,128]{1,0:T(1,128)}', space=vmem, size = 0x12000, scoped, tag = 'internal scratch']
  %s0 = inlined_call_operand.vmem [shape: f32[2,25,128], index: 0, kind: input, shape index: {}]
  %s1 = inlined_call_operand.hbm [shape: f32[1,128,128], index: 1, kind: input, shape index: {}]
  %s2 = inlined_call_operand.hbm [shape: f32[2,128,128], index: 2, kind: input, shape index: {}]
  %s3 = inlined_call_operand.hbm [shape: f32[3,128,128], index: 3, kind: input, shape index: {}]
  %s4 = inlined_call_operand.hbm [shape: f32[4,128,128], index: 4, kind: input, shape index: {}]
  %s5 = inlined_call_operand.hbm [shape: f32[5,128,128], index: 5, kind: input, shape index: {}]
  %s6 = inlined_call_operand.hbm [shape: f32[6,128,128], index: 6, kind: input, shape index: {}]
  %s7 = inlined_call_operand.hbm [shape: f32[7,128,128], index: 7, kind: input, shape index: {}]
  %s8 = inlined_call_operand.hbm [shape: f32[8,128,128], index: 8, kind: input, shape index: {}]
  %s9 = inlined_call_operand.vmem [shape: f32[8,1,128], index: 9, kind: input, shape index: {}]
  %s10 = inlined_call_operand.vmem [shape: f32[8,1,128], index: 10, kind: input, shape index: {}]
  %s11 = inlined_call_operand.vmem [shape: f32[8,1,128], index: 11, kind: input, shape index: {}]
  %s12 = inlined_call_operand.hbm [shape: f32[2,16,1024], index: 12, kind: output, shape index: {}]
  %s13 = sld [smem:[#allocation0]]
  $region90: #{tpu_custom_call.1} parent=0
    _
  %s15 = ssub.s32 1, %s13
  %s16 = scalar_select 0, %s15, %s13
  $region1: #{tpu_custom_call.1} parent=0
    #allocation2 [shape = 'u8[65536]{0}', space=vmem, size = 0x10000, scoped, tag = 'input window, operand 1, single buffered']
    #allocation3 [shape = 's32[1]{0}', space=sflag, size = 0x4, scoped, tag = 'scoped memory for tpu_custom_call.1']
    #allocation4 [shape = 's32[1]{0}', space=sflag, size = 0x4, scoped, tag = 'scoped memory for tpu_custom_call.1']
    #allocation5 [shape = 'u8[131072]{0}', space=vmem, size = 0x20000, scoped, tag = 'input window, operand 2, single buffered']
    #allocation6 [shape = 's32[1]{0}', space=sflag, size = 0x4, scoped, tag = 'scoped memory for tpu_custom_call.1']
    #allocation7 [shape = 'u8[196608]{0}', space=vmem, size = 0x30000, scoped, tag = 'input window, operand 3, single buffered']
    #allocation8 [shape = 'u8[262144]{0}', space=vmem, size = 0x40000, scoped, tag = 'input window, operand 4, single buffered']
    #allocation9 [shape = 's32[1]{0}', space=sflag, size = 0x4, scoped, tag = 'scoped memory for tpu_custom_call.1']
    #allocation10 [shape = 'u8[327680]{0}', space=vmem, size = 0x50000, scoped, tag = 'input window, operand 5, single buffered']
    #allocation11 [shape = 'u8[393216]{0}', space=vmem, size = 0x60000, scoped, tag = 'input window, operand 6, single buffered']
    #allocation12 [shape = 's32[1]{0}', space=sflag, size = 0x4, scoped, tag = 'scoped memory for tpu_custom_call.1']
    #allocation13 [shape = 'u8[458752]{0}', space=vmem, size = 0x70000, scoped, tag = 'input window, operand 7, single buffered']
    #allocation14 [shape = 'u8[524288]{0}', space=vmem, size = 0x80000, scoped, tag = 'input window, operand 8, single buffered']
    #allocation15 [shape = 's32[1]{0}', space=sflag, size = 0x4, scoped, tag = 'scoped memory for tpu_custom_call.1']
    #allocation16 [shape = 'u8[131072]{0}', space=vmem, size = 0x20000, scoped, tag = 'output window, operand 0, single buffered']
    %17 = vsyncpa [#allocation3], 0
    %18 = vsyncpa [#allocation6], 0
    %19 = vsyncpa [#allocation9], 0
    %20 = vsyncpa [#allocation12], 0
    %21 = vsyncpa [#allocation15], 0
    %22 = vsyncpa [#allocation4], 0
    // Predicated region
    $region2: #{tpu_custom_call.1} parent=1 // pred_check
      _
    $region3: #{tpu_custom_call.1} parent=1 // pred_check_branch
      %24 = sbr.rel (0) target = $region5
    $region4: #{tpu_custom_call.1} parent=1 // pred_region
      _
    $region5: #{tpu_custom_call.1} parent=1 // pred_fallthru
      _
    // Predicated region
    $region6: #{tpu_custom_call.1} parent=1 // pred_check
      _
    $region7: #{tpu_custom_call.1} parent=1 // pred_check_branch
      %26 = sbr.rel (0) target = $region9
    $region8: #{tpu_custom_call.1} parent=1 // pred_region
      %s28 = ssub.s32 2048, 2048
      %29 = vsyncadd [#allocation3], %s28
      %s30 = sshll.u32 [#allocation2], 4
      %s31 = int_to_ptr.vmem [resolvable:$true] %s30
      %36 = dma.hbm_to_vmem [thread:$0]  %s1, 2048, %s31, [#allocation3], 128, 128, 8
    $region9: #{tpu_custom_call.1} parent=1 // pred_fallthru
      _
    // Predicated region
    $region10: #{tpu_custom_call.1} parent=1 // pred_check
      _
    $region11: #{tpu_custom_call.1} parent=1 // pred_check_branch
      %38 = sbr.rel (0) target = $region13
    $region12: #{tpu_custom_call.1} parent=1 // pred_region
      %s40 = ssub.s32 4096, 4096
      %41 = vsyncadd [#allocation6], %s40
      %s42 = sshll.u32 [#allocation5], 4
      %s43 = int_to_ptr.vmem [resolvable:$true] %s42
      %48 = dma.hbm_to_vmem [thread:$0]  %s2, 4096, %s43, [#allocation6], 128, 128, 8
    $region13: #{tpu_custom_call.1} parent=1 // pred_fallthru
      _
    // Predicated region
    $region14: #{tpu_custom_call.1} parent=1 // pred_check
      _
    $region15: #{tpu_custom_call.1} parent=1 // pred_check_branch
      %50 = sbr.rel (0) target = $region17
    $region16: #{tpu_custom_call.1} parent=1 // pred_region
      %s52 = ssub.s32 6144, 6144
      %53 = vsyncadd [#allocation6], %s52
      %s54 = sshll.u32 [#allocation7], 4
      %s55 = int_to_ptr.vmem [resolvable:$true] %s54
      %60 = dma.hbm_to_vmem [thread:$0]  %s3, 6144, %s55, [#allocation6], 128, 128, 8
    $region17: #{tpu_custom_call.1} parent=1 // pred_fallthru
      _
    // Predicated region
    $region18: #{tpu_custom_call.1} parent=1 // pred_check
      _
    $region19: #{tpu_custom_call.1} parent=1 // pred_check_branch
      %62 = sbr.rel (0) target = $region21
    $region20: #{tpu_custom_call.1} parent=1 // pred_region
      %s64 = ssub.s32 8192, 8192
      %65 = vsyncadd [#allocation9], %s64
      %s66 = sshll.u32 [#allocation8], 4
      %s67 = int_to_ptr.vmem [resolvable:$true] %s66
      %72 = dma.hbm_to_vmem [thread:$0]  %s4, 8192, %s67, [#allocation9], 128, 128, 8
    $region21: #{tpu_custom_call.1} parent=1 // pred_fallthru
      _
    // Predicated region
    $region22: #{tpu_custom_call.1} parent=1 // pred_check
      _
    $region23: #{tpu_custom_call.1} parent=1 // pred_check_branch
      %74 = sbr.rel (0) target = $region25
    $region24: #{tpu_custom_call.1} parent=1 // pred_region
      %s76 = ssub.s32 10240, 10240
      %77 = vsyncadd [#allocation9], %s76
      %s78 = sshll.u32 [#allocation10], 4
      %s79 = int_to_ptr.vmem [resolvable:$true] %s78
      %84 = dma.hbm_to_vmem [thread:$0]  %s5, 10240, %s79, [#allocation9], 128, 128, 8
    $region25: #{tpu_custom_call.1} parent=1 // pred_fallthru
      _
    // Predicated region
    $region26: #{tpu_custom_call.1} parent=1 // pred_check
      _
    $region27: #{tpu_custom_call.1} parent=1 // pred_check_branch
      %86 = sbr.rel (0) target = $region29
    $region28: #{tpu_custom_call.1} parent=1 // pred_region
      %s88 = ssub.s32 12288, 12288
      %89 = vsyncadd [#allocation12], %s88
      %s90 = sshll.u32 [#allocation11], 4
      %s91 = int_to_ptr.vmem [resolvable:$true] %s90
      %96 = dma.hbm_to_vmem [thread:$0]  %s6, 12288, %s91, [#allocation12], 128, 128, 8
    $region29: #{tpu_custom_call.1} parent=1 // pred_fallthru
      _
    // Predicated region
    $region30: #{tpu_custom_call.1} parent=1 // pred_check
      _
    $region31: #{tpu_custom_call.1} parent=1 // pred_check_branch
      %98 = sbr.rel (0) target = $region33
    $region32: #{tpu_custom_call.1} parent=1 // pred_region
      %s100 = ssub.s32 14336, 14336
      %101 = vsyncadd [#allocation12], %s100
      %s102 = sshll.u32 [#allocation13], 4
      %s103 = int_to_ptr.vmem [resolvable:$true] %s102
      %108 = dma.hbm_to_vmem [thread:$0]  %s7, 14336, %s103, [#allocation12], 128, 128, 8
    $region33: #{tpu_custom_call.1} parent=1 // pred_fallthru
      _
    // Predicated region
    $region34: #{tpu_custom_call.1} parent=1 // pred_check
      _
    $region35: #{tpu_custom_call.1} parent=1 // pred_check_branch
      %110 = sbr.rel (0) target = $region37
    $region36: #{tpu_custom_call.1} parent=1 // pred_region
      %s112 = ssub.s32 16384, 16384
      %113 = vsyncadd [#allocation15], %s112
      %s114 = sshll.u32 [#allocation14], 4
      %s115 = int_to_ptr.vmem [resolvable:$true] %s114
      %120 = dma.hbm_to_vmem [thread:$0]  %s8, 16384, %s115, [#allocation15], 128, 128, 8
    $region37: #{tpu_custom_call.1} parent=1 // pred_fallthru
      _
    // Predicated region
    $region38: #{tpu_custom_call.1} parent=1 // pred_check
      _
    $region39: #{tpu_custom_call.1} parent=1 // pred_check_branch
      %122 = sbr.rel (0) target = $region41
    $region40: #{tpu_custom_call.1} parent=1 // pred_region
      _
    $region41: #{tpu_custom_call.1} parent=1 // pred_fallthru
      _
    // Predicated region
    $region42: #{tpu_custom_call.1} parent=1 // pred_check
      _
    $region43: #{tpu_custom_call.1} parent=1 // pred_check_branch
      %124 = sbr.rel (0) target = $region45
    $region44: #{tpu_custom_call.1} parent=1 // pred_region
      _
    $region45: #{tpu_custom_call.1} parent=1 // pred_fallthru
      _
    // Predicated region
    $region46: #{tpu_custom_call.1} parent=1 // pred_check
      _
    $region47: #{tpu_custom_call.1} parent=1 // pred_check_branch
      %126 = sbr.rel (0) target = $region49
    $region48: #{tpu_custom_call.1} parent=1 // pred_region
      _
    $region49: #{tpu_custom_call.1} parent=1 // pred_fallthru
      _
    // Predicated region
    $region50: #{tpu_custom_call.1} parent=1 // pred_check
      _
    $region51: #{tpu_custom_call.1} parent=1 // pred_check_branch
      %128 = sbr.rel (0) target = $region53
    $region52: #{tpu_custom_call.1} parent=1 // pred_region
      %129 = dma.done [#allocation3], 2048
    $region53: #{tpu_custom_call.1} parent=1 // pred_fallthru
      _
    // Predicated region
    $region54: #{tpu_custom_call.1} parent=1 // pred_check
      _
    $region55: #{tpu_custom_call.1} parent=1 // pred_check_branch
      %131 = sbr.rel (0) target = $region57
    $region56: #{tpu_custom_call.1} parent=1 // pred_region
      %132 = dma.done [#allocation6], 4096
    $region57: #{tpu_custom_call.1} parent=1 // pred_fallthru
      _
    // Predicated region
    $region58: #{tpu_custom_call.1} parent=1 // pred_check
      _
    $region59: #{tpu_custom_call.1} parent=1 // pred_check_branch
      %134 = sbr.rel (0) target = $region61
    $region60: #{tpu_custom_call.1} parent=1 // pred_region
      %135 = dma.done [#allocation6], 6144
    $region61: #{tpu_custom_call.1} parent=1 // pred_fallthru
      _
    // Predicated region
    $region62: #{tpu_custom_call.1} parent=1 // pred_check
      _
    $region63: #{tpu_custom_call.1} parent=1 // pred_check_branch
      %137 = sbr.rel (0) target = $region65
    $region64: #{tpu_custom_call.1} parent=1 // pred_region
      %138 = dma.done [#allocation9], 8192
    $region65: #{tpu_custom_call.1} parent=1 // pred_fallthru
      _
    // Predicated region
    $region66: #{tpu_custom_call.1} parent=1 // pred_check
      _
    $region67: #{tpu_custom_call.1} parent=1 // pred_check_branch
      %140 = sbr.rel (0) target = $region69
    $region68: #{tpu_custom_call.1} parent=1 // pred_region
      %141 = dma.done [#allocation9], 10240
    $region69: #{tpu_custom_call.1} parent=1 // pred_fallthru
      _
    // Predicated region
    $region70: #{tpu_custom_call.1} parent=1 // pred_check
      _
    $region71: #{tpu_custom_call.1} parent=1 // pred_check_branch
      %143 = sbr.rel (0) target = $region73
    $region72: #{tpu_custom_call.1} parent=1 // pred_region
      %144 = dma.done [#allocation12], 12288
    $region73: #{tpu_custom_call.1} parent=1 // pred_fallthru
      _
    // Predicated region
    $region74: #{tpu_custom_call.1} parent=1 // pred_check
      _
    $region75: #{tpu_custom_call.1} parent=1 // pred_check_branch
      %146 = sbr.rel (0) target = $region77
    $region76: #{tpu_custom_call.1} parent=1 // pred_region
      %147 = dma.done [#allocation12], 14336
    $region77: #{tpu_custom_call.1} parent=1 // pred_fallthru
      _
    // Predicated region
    $region78: #{tpu_custom_call.1} parent=1 // pred_check
      _
    $region79: #{tpu_custom_call.1} parent=1 // pred_check_branch
      %149 = sbr.rel (0) target = $region81
    $region80: #{tpu_custom_call.1} parent=1 // pred_region
      %150 = dma.done [#allocation15], 16384
    $region81: #{tpu_custom_call.1} parent=1 // pred_fallthru
      _
    %v151 = vld [vmem:[%s0 + $0x4] sm:$0xff]
    %v152 = vld [vmem:[%s0 + $0xc] sm:$0xff]
    %v153 = vld [vmem:[%s0 + $0x14] sm:$0x1]
    %v154 = vld [vmem:[#allocation2] sm:$0xff]
    %v155 = vld [vmem:[#allocation2 + $0x8] sm:$0xff]
    %v156 = vld [vmem:[#allocation2 + $0x10] sm:$0xff]
    %v157 = vld [vmem:[#allocation2 + $0x18] sm:$0xff]
    %v158 = vld [vmem:[#allocation2 + $0x20] sm:$0xff]
    %v159 = vld [vmem:[#allocation2 + $0x28] sm:$0xff]
    %v160 = vld [vmem:[#allocation2 + $0x30] sm:$0xff]
    %v161 = vld [vmem:[#allocation2 + $0x38] sm:$0xff]
    %v162 = vld [vmem:[#allocation2 + $0x40] sm:$0xff]
    %v163 = vld [vmem:[#allocation2 + $0x48] sm:$0xff]
    %v164 = vld [vmem:[#allocation2 + $0x50] sm:$0xff]
    %v165 = vld [vmem:[#allocation2 + $0x58] sm:$0xff]
    %v166 = vld [vmem:[#allocation2 + $0x60] sm:$0xff]
    %v167 = vld [vmem:[#allocation2 + $0x68] sm:$0xff]
    %v168 = vld [vmem:[#allocation2 + $0x70] sm:$0xff]
    %v169 = vld [vmem:[#allocation2 + $0x78] sm:$0xff]
    %v170 = vld [vmem:[%s9] sm:$0x1]
    %v172 = vlaneseq
    %v173 = vshrl.u32 %v172, 7
    %v174 = vsub.s32 0, %v173
    %v175 = vrot.slane %v170, %v174
    %177 = vmatprep.subr.mxu0 0.0
    %178 = vmatpush1.msra.mxu0 %v154
    %179 = vmatprep.subr.mxu0 0.0
    %180 = vmatpush1.msra.mxu0 %v155
    %181 = vmatprep.subr.mxu0 0.0
    %182 = vmatpush1.msra.mxu0 %v156
    %183 = vmatprep.subr.mxu0 0.0
    %184 = vmatpush1.msra.mxu0 %v157
    %185 = vmatprep.subr.mxu0 0.0
    %186 = vmatpush1.msra.mxu0 %v158
    %187 = vmatprep.subr.mxu0 0.0
    %188 = vmatpush1.msra.mxu0 %v159
    %189 = vmatprep.subr.mxu0 0.0
    %190 = vmatpush1.msra.mxu0 %v160
    %191 = vmatprep.subr.mxu0 0.0
    %192 = vmatpush1.msra.mxu0 %v161
    %193 = vmatprep.subr.mxu0 0.0
    %194 = vmatpush1.msra.mxu0 %v162
    %195 = vmatprep.subr.mxu0 0.0
    %196 = vmatpush1.msra.mxu0 %v163
    %197 = vmatprep.subr.mxu0 0.0
    %198 = vmatpush1.msra.mxu0 %v164
    %199 = vmatprep.subr.mxu0 0.0
    %200 = vmatpush1.msra.mxu0 %v165
    %201 = vmatprep.subr.mxu0 0.0
    %202 = vmatpush1.msra.mxu0 %v166
    %203 = vmatprep.subr.mxu0 0.0
    %204 = vmatpush1.msra.mxu0 %v167
    %205 = vmatprep.subr.mxu0 0.0
    %206 = vmatpush1.msra.mxu0 %v168
    %207 = vmatprep.subr.mxu0 0.0
    %208 = vmatpush1.msra.mxu0 %v169
    %209 = vmatprep.subr.mxu0 0.0
    %210 = vmatpush1.msra.mxu0 0.0
    %211 = vmatprep.subr.mxu0 0.0
    %212 = vmatpush1.msra.mxu0 0.0
    %213 = vmatprep.subr.mxu0 0.0
    %214 = vmatpush1.msra.mxu0 0.0
    %215 = vmatprep.subr.mxu0 0.0
    %216 = vmatpush1.msra.mxu0 0.0
    %217 = vmatprep.subr.mxu0 0.0
    %218 = vmatpush1.msra.mxu0 0.0
    %219 = vmatprep.subr.mxu0 0.0
    %220 = vmatpush1.msra.mxu0 0.0
    %221 = vmatprep.subr.mxu0 0.0
    %222 = vmatpush1.msra.mxu0 0.0
    %223 = vmatprep.subr.mxu0 0.0
    %224 = vmatpush1.msra.mxu0 0.0
    %225 = vmatprep.subr.mxu0 0.0
    %226 = vmatpush1.msra.mxu0 0.0
    %227 = vmatprep.subr.mxu0 0.0
    %228 = vmatpush1.msra.mxu0 0.0
    %229 = vmatprep.subr.mxu0 0.0
    %230 = vmatpush1.msra.mxu0 0.0
    %231 = vmatprep.subr.mxu0 0.0
    %232 = vmatpush1.msra.mxu0 0.0
    %233 = vmatprep.subr.mxu0 0.0
    %234 = vmatpush1.msra.mxu0 0.0
    %235 = vmatprep.subr.mxu0 0.0
    %236 = vmatpush1.msra.mxu0 0.0
    %237 = vmatprep.subr.mxu0 0.0
    %238 = vmatpush1.msra.mxu0 0.0
    %239 = vmatprep.subr.mxu0 0.0
    %240 = vmatpush1.msra.mxu0 0.0
    %241 = vmatprep.mubr.f32.mxu0 0.0
    %242 = vmatmul.mubr.f32.gmra.mrb[0].mxu0 %v151
    %v243 = vpop.f32.mrb[0].mxu0
    %v244 = vadd.f32 %v175, %v243
    %v245 = vpop.f32.mrb[0].mxu0
    %246 = vmatprep.mubr.f32.mxu0 0.0
    %247 = vmatmul.mubr.f32.gmra.mrb[0].mxu0 %v152
    %v248 = vpop.f32.mrb[0].mxu0
    %v249 = vadd.f32 %v175, %v248
    %v250 = vpop.f32.mrb[0].mxu0
    %251 = vmatprep.mubr.f32.mxu0 0.0
    %252 = vmatmul.mubr.f32.gmra.mrb[0].mxu0 %v153
    %v253 = vpop.f32.mrb[0].mxu0
    %v254 = vadd.f32 %v175, %v253
    %v255 = vpop.f32.mrb[0].mxu0
    %256 = vdwg.mxu0
    %v257 = vmax.f32 %v244, 0.0
    %v258 = vmax.f32 %v249, 0.0
    %v259 = vmax.f32 %v254, 0.0
    %v260 = vld [vmem:[%s10] sm:$0x1]
    %v262 = vlaneseq
    %v263 = vshrl.u32 %v262, 7
    %v264 = vsub.s32 0, %v263
    %v265 = vrot.slane %v260, %v264
    %v267 = vmul.f32 %v257, %v265
    %v268 = vmul.f32 %v258, %v265
    %v269 = vmul.f32 %v259, %v265
    %v270 = vld [vmem:[%s11] sm:$0x1]
    %v272 = vlaneseq
    %v273 = vshrl.u32 %v272, 7
    %v274 = vsub.s32 0, %v273
    %v275 = vrot.slane %v270, %v274
    %v277 = vadd.f32 %v267, %v275
    %v278 = vadd.f32 %v268, %v275
    %v279 = vadd.f32 %v269, %v275
    %v280 = vlaneseq
    %v281 = vshrl.u32 %v280, 7
    %v282 = vadd.s32 %v281, 8
    %vm283 = vcmp.eq.s32.totalorder %v281, 0
    %vm284 = vcmp.eq.s32.totalorder %v282, 0
    %v285 = vsel %vm283, -inf, %v277
    %v286 = vsel %vm284, -inf, %v278
    %vm289 = vcmask 1040384
    %v290 = vrot.slane %v285, 7
    %v291 = vrot.slane %v286, 7
    %v292 = vsel %vm289, %v290, %v291
    %v296 = vmax.f32 %v277, %v290
    %v297 = vmax.f32 %v278, %v292
    %v298 = vmax.f32 %v279, %v291
    %vm302 = vcmask 1046528
    %v303 = vrot.slane %v296, 1
    %v304 = vrot.slane %v297, 1
    %v305 = vsel %vm302, %v303, %v304
    %v306 = vrot.slane %v298, 1
    %v307 = vsel %vm302, %v304, %v306
    %310 = vst [vmem:[#allocation16] sm:$0xff] %v305
    %311 = vst [vmem:[#allocation16 + $0x40] sm:$0xff] %v307
    %v312 = vld [vmem:[%s0 + $0x3] sm:$0xff]
    %v313 = vld [vmem:[%s0 + $0xb] sm:$0xff]
    %v314 = vld [vmem:[%s0 + $0x13] sm:$0x1]
    %v315 = vld [vmem:[#allocation5] sm:$0xff]
    %v316 = vld [vmem:[#allocation5 + $0x8] sm:$0xff]
    %v317 = vld [vmem:[#allocation5 + $0x10] sm:$0xff]
    %v318 = vld [vmem:[#allocation5 + $0x18] sm:$0xff]
    %v319 = vld [vmem:[#allocation5 + $0x20] sm:$0xff]
    %v320 = vld [vmem:[#allocation5 + $0x28] sm:$0xff]
    %v321 = vld [vmem:[#allocation5 + $0x30] sm:$0xff]
    %v322 = vld [vmem:[#allocation5 + $0x38] sm:$0xff]
    %v323 = vld [vmem:[#allocation5 + $0x40] sm:$0xff]
    %v324 = vld [vmem:[#allocation5 + $0x48] sm:$0xff]
    %v325 = vld [vmem:[#allocation5 + $0x50] sm:$0xff]
    %v326 = vld [vmem:[#allocation5 + $0x58] sm:$0xff]
    %v327 = vld [vmem:[#allocation5 + $0x60] sm:$0xff]
    %v328 = vld [vmem:[#allocation5 + $0x68] sm:$0xff]
    %v329 = vld [vmem:[#allocation5 + $0x70] sm:$0xff]
    %v330 = vld [vmem:[#allocation5 + $0x78] sm:$0xff]
    %v331 = vld [vmem:[%s0 + $0x4] sm:$0xff]
    %v332 = vld [vmem:[%s0 + $0xc] sm:$0xff]
    %v333 = vld [vmem:[%s0 + $0x14] sm:$0x1]
    %s334 = scalar_lea.vmem [#allocation5], 128
    %v335 = vld [vmem:[%s334] sm:$0xff]
    %v336 = vld [vmem:[%s334 + $0x8] sm:$0xff]
    %v337 = vld [vmem:[%s334 + $0x10] sm:$0xff]
    %v338 = vld [vmem:[%s334 + $0x18] sm:$0xff]
    %v339 = vld [vmem:[%s334 + $0x20] sm:$0xff]
    %v340 = vld [vmem:[%s334 + $0x28] sm:$0xff]
    %v341 = vld [vmem:[%s334 + $0x30] sm:$0xff]
    %v342 = vld [vmem:[%s334 + $0x38] sm:$0xff]
    %v343 = vld [vmem:[%s334 + $0x40] sm:$0xff]
    %v344 = vld [vmem:[%s334 + $0x48] sm:$0xff]
    %v345 = vld [vmem:[%s334 + $0x50] sm:$0xff]
    %v346 = vld [vmem:[%s334 + $0x58] sm:$0xff]
    %v347 = vld [vmem:[%s334 + $0x60] sm:$0xff]
    %v348 = vld [vmem:[%s334 + $0x68] sm:$0xff]
    %v349 = vld [vmem:[%s334 + $0x70] sm:$0xff]
    %v350 = vld [vmem:[%s334 + $0x78] sm:$0xff]
    %351 = vmatprep.subr.mxu0 0.0
    %352 = vmatpush1.msra.mxu0 %v335
    %353 = vmatprep.subr.mxu0 0.0
    %354 = vmatpush1.msra.mxu0 %v336
    %355 = vmatprep.subr.mxu0 0.0
    %356 = vmatpush1.msra.mxu0 %v337
    %357 = vmatprep.subr.mxu0 0.0
    %358 = vmatpush1.msra.mxu0 %v338
    %359 = vmatprep.subr.mxu0 0.0
    %360 = vmatpush1.msra.mxu0 %v339
    %361 = vmatprep.subr.mxu0 0.0
    %362 = vmatpush1.msra.mxu0 %v340
    %363 = vmatprep.subr.mxu0 0.0
    %364 = vmatpush1.msra.mxu0 %v341
    %365 = vmatprep.subr.mxu0 0.0
    %366 = vmatpush1.msra.mxu0 %v342
    %367 = vmatprep.subr.mxu0 0.0
    %368 = vmatpush1.msra.mxu0 %v343
    %369 = vmatprep.subr.mxu0 0.0
    %370 = vmatpush1.msra.mxu0 %v344
    %371 = vmatprep.subr.mxu0 0.0
    %372 = vmatpush1.msra.mxu0 %v345
    %373 = vmatprep.subr.mxu0 0.0
    %374 = vmatpush1.msra.mxu0 %v346
    %375 = vmatprep.subr.mxu0 0.0
    %376 = vmatpush1.msra.mxu0 %v347
    %377 = vmatprep.subr.mxu0 0.0
    %378 = vmatpush1.msra.mxu0 %v348
    %379 = vmatprep.subr.mxu0 0.0
    %380 = vmatpush1.msra.mxu0 %v349
    %381 = vmatprep.subr.mxu0 0.0
    %382 = vmatpush1.msra.mxu0 %v350
    %383 = vmatprep.subr.mxu0 0.0
    %384 = vmatpush1.msra.mxu0 0.0
    %385 = vmatprep.subr.mxu0 0.0
    %386 = vmatpush1.msra.mxu0 0.0
    %387 = vmatprep.subr.mxu0 0.0
    %388 = vmatpush1.msra.mxu0 0.0
    %389 = vmatprep.subr.mxu0 0.0
    %390 = vmatpush1.msra.mxu0 0.0
    %391 = vmatprep.subr.mxu0 0.0
    %392 = vmatpush1.msra.mxu0 0.0
    %393 = vmatprep.subr.mxu0 0.0
    %394 = vmatpush1.msra.mxu0 0.0
    %395 = vmatprep.subr.mxu0 0.0
    %396 = vmatpush1.msra.mxu0 0.0
    %397 = vmatprep.subr.mxu0 0.0
    %398 = vmatpush1.msra.mxu0 0.0
    %399 = vmatprep.subr.mxu0 0.0
    %400 = vmatpush1.msra.mxu0 0.0
    %401 = vmatprep.subr.mxu0 0.0
    %402 = vmatpush1.msra.mxu0 0.0
    %403 = vmatprep.subr.mxu0 0.0
    %404 = vmatpush1.msra.mxu0 0.0
    %405 = vmatprep.subr.mxu0 0.0
    %406 = vmatpush1.msra.mxu0 0.0
    %407 = vmatprep.subr.mxu0 0.0
    %408 = vmatpush1.msra.mxu0 0.0
    %409 = vmatprep.subr.mxu0 0.0
    %410 = vmatpush1.msra.mxu0 0.0
    %411 = vmatprep.subr.mxu0 0.0
    %412 = vmatpush1.msra.mxu0 0.0
    %413 = vmatprep.subr.mxu0 0.0
    %414 = vmatpush1.msra.mxu0 0.0
    %415 = vmatprep.mubr.f32.mxu0 0.0
    %416 = vmatmul.mubr.f32.gmra.mrb[0].mxu0 %v331
    %v417 = vpop.f32.mrb[0].mxu0
    %v418 = vadd.f32 0.0, %v417
    %v419 = vpop.f32.mrb[0].mxu0
    %420 = vmatprep.mubr.f32.mxu0 0.0
    %421 = vmatmul.mubr.f32.gmra.mrb[0].mxu0 %v332
    %v422 = vpop.f32.mrb[0].mxu0
    %v423 = vadd.f32 0.0, %v422
    %v424 = vpop.f32.mrb[0].mxu0
    %425 = vmatprep.mubr.f32.mxu0 0.0
    %426 = vmatmul.mubr.f32.gmra.mrb[0].mxu0 %v333
    %v427 = vpop.f32.mrb[0].mxu0
    %v428 = vadd.f32 0.0, %v427
    %v429 = vpop.f32.mrb[0].mxu0
    %430 = vdwg.mxu0
    %431 = vmatprep.subr.mxu0 0.0
    %432 = vmatpush1.msra.mxu0 %v315
    %433 = vmatprep.subr.mxu0 0.0
    %434 = vmatpush1.msra.mxu0 %v316
    %435 = vmatprep.subr.mxu0 0.0
    %436 = vmatpush1.msra.mxu0 %v317
    %437 = vmatprep.subr.mxu0 0.0
    %438 = vmatpush1.msra.mxu0 %v318
    %439 = vmatprep.subr.mxu0 0.0
    %440 = vmatpush1.msra.mxu0 %v319
    %441 = vmatprep.subr.mxu0 0.0
    %442 = vmatpush1.msra.mxu0 %v320
    %443 = vmatprep.subr.mxu0 0.0
    %444 = vmatpush1.msra.mxu0 %v321
    %445 = vmatprep.subr.mxu0 0.0
    %446 = vmatpush1.msra.mxu0 %v322
    %447 = vmatprep.subr.mxu0 0.0
    %448 = vmatpush1.msra.mxu0 %v323
    %449 = vmatprep.subr.mxu0 0.0
    %450 = vmatpush1.msra.mxu0 %v324
    %451 = vmatprep.subr.mxu0 0.0
    %452 = vmatpush1.msra.mxu0 %v325
    %453 = vmatprep.subr.mxu0 0.0
    %454 = vmatpush1.msra.mxu0 %v326
    %455 = vmatprep.subr.mxu0 0.0
    %456 = vmatpush1.msra.mxu0 %v327
    %457 = vmatprep.subr.mxu0 0.0
    %458 = vmatpush1.msra.mxu0 %v328
    %459 = vmatprep.subr.mxu0 0.0
    %460 = vmatpush1.msra.mxu0 %v329
    %461 = vmatprep.subr.mxu0 0.0
    %462 = vmatpush1.msra.mxu0 %v330
    %463 = vmatprep.subr.mxu0 0.0
    %464 = vmatpush1.msra.mxu0 0.0
    %465 = vmatprep.subr.mxu0 0.0
    %466 = vmatpush1.msra.mxu0 0.0
    %467 = vmatprep.subr.mxu0 0.0
    %468 = vmatpush1.msra.mxu0 0.0
    %469 = vmatprep.subr.mxu0 0.0
    %470 = vmatpush1.msra.mxu0 0.0
    %471 = vmatprep.subr.mxu0 0.0
    %472 = vmatpush1.msra.mxu0 0.0
    %473 = vmatprep.subr.mxu0 0.0
    %474 = vmatpush1.msra.mxu0 0.0
    %475 = vmatprep.subr.mxu0 0.0
    %476 = vmatpush1.msra.mxu0 0.0
    %477 = vmatprep.subr.mxu0 0.0
    %478 = vmatpush1.msra.mxu0 0.0
    %479 = vmatprep.subr.mxu0 0.0
    %480 = vmatpush1.msra.mxu0 0.0
    %481 = vmatprep.subr.mxu0 0.0
    %482 = vmatpush1.msra.mxu0 0.0
    %483 = vmatprep.subr.mxu0 0.0
    %484 = vmatpush1.msra.mxu0 0.0
    %485 = vmatprep.subr.mxu0 0.0
    %486 = vmatpush1.msra.mxu0 0.0
    %487 = vmatprep.subr.mxu0 0.0
    %488 = vmatpush1.msra.mxu0 0.0
    %489 = vmatprep.subr.mxu0 0.0
    %490 = vmatpush1.msra.mxu0 0.0
    %491 = vmatprep.subr.mxu0 0.0
    %492 = vmatpush1.msra.mxu0 0.0
    %493 = vmatprep.subr.mxu0 0.0
    %494 = vmatpush1.msra.mxu0 0.0
    %495 = vmatprep.mubr.f32.mxu0 0.0
    %496 = vmatmul.mubr.f32.gmra.mrb[0].mxu0 %v312
    %v497 = vpop.f32.mrb[0].mxu0
    %v498 = vadd.f32 %v418, %v497
    %v499 = vpop.f32.mrb[0].mxu0
    %500 = vmatprep.mubr.f32.mxu0 0.0
    %501 = vmatmul.mubr.f32.gmra.mrb[0].mxu0 %v313
    %v502 = vpop.f32.mrb[0].mxu0
    %v503 = vadd.f32 %v423, %v502
    %v504 = vpop.f32.mrb[0].mxu0
    %505 = vmatprep.mubr.f32.mxu0 0.0
    %506 = vmatmul.mubr.f32.gmra.mrb[0].mxu0 %v314
    %v507 = vpop.f32.mrb[0].mxu0
    %v508 = vadd.f32 %v428, %v507
    %v509 = vpop.f32.mrb[0].mxu0
    %510 = vdwg.mxu0
    %s511 = scalar_lea.vmem %s9, 1
    %v512 = vld [vmem:[%s511] sm:$0x1]
    %v514 = vlaneseq
    %v515 = vshrl.u32 %v514, 7
    %v516 = vsub.s32 0, %v515
    %v517 = vrot.slane %v512, %v516
    %v519 = vadd.f32 %v498, %v517
    %v520 = vadd.f32 %v503, %v517
    %v521 = vadd.f32 %v508, %v517
    %v522 = vmax.f32 %v519, 0.0
    %v523 = vmax.f32 %v520, 0.0
    %v524 = vmax.f32 %v521, 0.0
    %s525 = scalar_lea.vmem %s10, 1
    %v526 = vld [vmem:[%s525] sm:$0x1]
    %v528 = vlaneseq
    %v529 = vshrl.u32 %v528, 7
    %v530 = vsub.s32 0, %v529
    %v531 = vrot.slane %v526, %v530
    %v533 = vmul.f32 %v522, %v531
    %v534 = vmul.f32 %v523, %v531
    %v535 = vmul.f32 %v524, %v531
    %s536 = scalar_lea.vmem %s11, 1
    %v537 = vld [vmem:[%s536] sm:$0x1]
    %v539 = vlaneseq
    %v540 = vshrl.u32 %v539, 7
    %v541 = vsub.s32 0, %v540
    %v542 = vrot.slane %v537, %v541
    %v544 = vadd.f32 %v533, %v542
    %v545 = vadd.f32 %v534, %v542
    %v546 = vadd.f32 %v535, %v542
    %v547 = vsel %vm283, -inf, %v544
    %v548 = vsel %vm284, -inf, %v545
    %v551 = vrot.slane %v547, 7
    %v552 = vrot.slane %v548, 7
    %v553 = vsel %vm289, %v551, %v552
    %v557 = vmax.f32 %v544, %v551
    %v558 = vmax.f32 %v545, %v553
    %v559 = vmax.f32 %v546, %v552
    %v563 = vrot.slane %v557, 1
    %v564 = vrot.slane %v558, 1
    %v565 = vsel %vm302, %v563, %v564
    %v566 = vrot.slane %v559, 1
    %v567 = vsel %vm302, %v564, %v566
    %570 = vst [vmem:[#allocation16 + $0x8] sm:$0xff] %v565
    %571 = vst [vmem:[#allocation16 + $0x48] sm:$0xff] %v567
    %v572 = vld [vmem:[%s0 + $0x3] sm:$0xff]
    %v573 = vld [vmem:[%s0 + $0xb] sm:$0xff]
    %v574 = vld [vmem:[%s0 + $0x13] sm:$0x1]
    %v575 = vld [vmem:[#allocation7] sm:$0xff]
    %v576 = vld [vmem:[#allocation7 + $0x8] sm:$0xff]
    %v577 = vld [vmem:[#allocation7 + $0x10] sm:$0xff]
    %v578 = vld [vmem:[#allocation7 + $0x18] sm:$0xff]
    %v579 = vld [vmem:[#allocation7 + $0x20] sm:$0xff]
    %v580 = vld [vmem:[#allocation7 + $0x28] sm:$0xff]
    %v581 = vld [vmem:[#allocation7 + $0x30] sm:$0xff]
    %v582 = vld [vmem:[#allocation7 + $0x38] sm:$0xff]
    %v583 = vld [vmem:[#allocation7 + $0x40] sm:$0xff]
    %v584 = vld [vmem:[#allocation7 + $0x48] sm:$0xff]
    %v585 = vld [vmem:[#allocation7 + $0x50] sm:$0xff]
    %v586 = vld [vmem:[#allocation7 + $0x58] sm:$0xff]
    %v587 = vld [vmem:[#allocation7 + $0x60] sm:$0xff]
    %v588 = vld [vmem:[#allocation7 + $0x68] sm:$0xff]
    %v589 = vld [vmem:[#allocation7 + $0x70] sm:$0xff]
    %v590 = vld [vmem:[#allocation7 + $0x78] sm:$0xff]
    %v591 = vld [vmem:[%s0 + $0x4] sm:$0xff]
    %v592 = vld [vmem:[%s0 + $0xc] sm:$0xff]
    %v593 = vld [vmem:[%s0 + $0x14] sm:$0x1]
    %s594 = scalar_lea.vmem [#allocation7], 128
    %v595 = vld [vmem:[%s594] sm:$0xff]
    %v596 = vld [vmem:[%s594 + $0x8] sm:$0xff]
    %v597 = vld [vmem:[%s594 + $0x10] sm:$0xff]
    %v598 = vld [vmem:[%s594 + $0x18] sm:$0xff]
    %v599 = vld [vmem:[%s594 + $0x20] sm:$0xff]
    %v600 = vld [vmem:[%s594 + $0x28] sm:$0xff]
    %v601 = vld [vmem:[%s594 + $0x30] sm:$0xff]
    %v602 = vld [vmem:[%s594 + $0x38] sm:$0xff]
    %v603 = vld [vmem:[%s594 + $0x40] sm:$0xff]
    %v604 = vld [vmem:[%s594 + $0x48] sm:$0xff]
    %v605 = vld [vmem:[%s594 + $0x50] sm:$0xff]
    %v606 = vld [vmem:[%s594 + $0x58] sm:$0xff]
    %v607 = vld [vmem:[%s594 + $0x60] sm:$0xff]
    %v608 = vld [vmem:[%s594 + $0x68] sm:$0xff]
    %v609 = vld [vmem:[%s594 + $0x70] sm:$0xff]
    %v610 = vld [vmem:[%s594 + $0x78] sm:$0xff]
    %611 = vmatprep.subr.mxu0 0.0
    %612 = vmatpush1.msra.mxu0 %v595
    %613 = vmatprep.subr.mxu0 0.0
    %614 = vmatpush1.msra.mxu0 %v596
    %615 = vmatprep.subr.mxu0 0.0
    %616 = vmatpush1.msra.mxu0 %v597
    %617 = vmatprep.subr.mxu0 0.0
    %618 = vmatpush1.msra.mxu0 %v598
    %619 = vmatprep.subr.mxu0 0.0
    %620 = vmatpush1.msra.mxu0 %v599
    %621 = vmatprep.subr.mxu0 0.0
    %622 = vmatpush1.msra.mxu0 %v600
    %623 = vmatprep.subr.mxu0 0.0
    %624 = vmatpush1.msra.mxu0 %v601
    %625 = vmatprep.subr.mxu0 0.0
    %626 = vmatpush1.msra.mxu0 %v602
    %627 = vmatprep.subr.mxu0 0.0
    %628 = vmatpush1.msra.mxu0 %v603
    %629 = vmatprep.subr.mxu0 0.0
    %630 = vmatpush1.msra.mxu0 %v604
    %631 = vmatprep.subr.mxu0 0.0
    %632 = vmatpush1.msra.mxu0 %v605
    %633 = vmatprep.subr.mxu0 0.0
    %634 = vmatpush1.msra.mxu0 %v606
    %635 = vmatprep.subr.mxu0 0.0
    %636 = vmatpush1.msra.mxu0 %v607
    %637 = vmatprep.subr.mxu0 0.0
    %638 = vmatpush1.msra.mxu0 %v608
    %639 = vmatprep.subr.mxu0 0.0
    %640 = vmatpush1.msra.mxu0 %v609
    %641 = vmatprep.subr.mxu0 0.0
    %642 = vmatpush1.msra.mxu0 %v610
    %643 = vmatprep.subr.mxu0 0.0
    %644 = vmatpush1.msra.mxu0 0.0
    %645 = vmatprep.subr.mxu0 0.0
    %646 = vmatpush1.msra.mxu0 0.0
    %647 = vmatprep.subr.mxu0 0.0
    %648 = vmatpush1.msra.mxu0 0.0
    %649 = vmatprep.subr.mxu0 0.0
    %650 = vmatpush1.msra.mxu0 0.0
    %651 = vmatprep.subr.mxu0 0.0
    %652 = vmatpush1.msra.mxu0 0.0
    %653 = vmatprep.subr.mxu0 0.0
    %654 = vmatpush1.msra.mxu0 0.0
    %655 = vmatprep.subr.mxu0 0.0
    %656 = vmatpush1.msra.mxu0 0.0
    %657 = vmatprep.subr.mxu0 0.0
    %658 = vmatpush1.msra.mxu0 0.0
    %659 = vmatprep.subr.mxu0 0.0
    %660 = vmatpush1.msra.mxu0 0.0
    %661 = vmatprep.subr.mxu0 0.0
    %662 = vmatpush1.msra.mxu0 0.0
    %663 = vmatprep.subr.mxu0 0.0
    %664 = vmatpush1.msra.mxu0 0.0
    %665 = vmatprep.subr.mxu0 0.0
    %666 = vmatpush1.msra.mxu0 0.0
    %667 = vmatprep.subr.mxu0 0.0
    %668 = vmatpush1.msra.mxu0 0.0
    %669 = vmatprep.subr.mxu0 0.0
    %670 = vmatpush1.msra.mxu0 0.0
    %671 = vmatprep.subr.mxu0 0.0
    %672 = vmatpush1.msra.mxu0 0.0
    %673 = vmatprep.subr.mxu0 0.0
    %674 = vmatpush1.msra.mxu0 0.0
    %675 = vmatprep.mubr.f32.mxu0 0.0
    %676 = vmatmul.mubr.f32.gmra.mrb[0].mxu0 %v591
    %v677 = vpop.f32.mrb[0].mxu0
    %v678 = vadd.f32 0.0, %v677
    %v679 = vpop.f32.mrb[0].mxu0
    %680 = vmatprep.mubr.f32.mxu0 0.0
    %681 = vmatmul.mubr.f32.gmra.mrb[0].mxu0 %v592
    %v682 = vpop.f32.mrb[0].mxu0
    %v683 = vadd.f32 0.0, %v682
    %v684 = vpop.f32.mrb[0].mxu0
    %685 = vmatprep.mubr.f32.mxu0 0.0
    %686 = vmatmul.mubr.f32.gmra.mrb[0].mxu0 %v593
    %v687 = vpop.f32.mrb[0].mxu0
    %v688 = vadd.f32 0.0, %v687
    %v689 = vpop.f32.mrb[0].mxu0
    %690 = vdwg.mxu0
    %691 = vmatprep.subr.mxu0 0.0
    %692 = vmatpush1.msra.mxu0 %v575
    %693 = vmatprep.subr.mxu0 0.0
    %694 = vmatpush1.msra.mxu0 %v576
    %695 = vmatprep.subr.mxu0 0.0
    %696 = vmatpush1.msra.mxu0 %v577
    %697 = vmatprep.subr.mxu0 0.0
    %698 = vmatpush1.msra.mxu0 %v578
    %699 = vmatprep.subr.mxu0 0.0
    %700 = vmatpush1.msra.mxu0 %v579
    %701 = vmatprep.subr.mxu0 0.0
    %702 = vmatpush1.msra.mxu0 %v580
    %703 = vmatprep.subr.mxu0 0.0
    %704 = vmatpush1.msra.mxu0 %v581
    %705 = vmatprep.subr.mxu0 0.0
    %706 = vmatpush1.msra.mxu0 %v582
    %707 = vmatprep.subr.mxu0 0.0
    %708 = vmatpush1.msra.mxu0 %v583
    %709 = vmatprep.subr.mxu0 0.0
    %710 = vmatpush1.msra.mxu0 %v584
    %711 = vmatprep.subr.mxu0 0.0
    %712 = vmatpush1.msra.mxu0 %v585
    %713 = vmatprep.subr.mxu0 0.0
    %714 = vmatpush1.msra.mxu0 %v586
    %715 = vmatprep.subr.mxu0 0.0
    %716 = vmatpush1.msra.mxu0 %v587
    %717 = vmatprep.subr.mxu0 0.0
    %718 = vmatpush1.msra.mxu0 %v588
    %719 = vmatprep.subr.mxu0 0.0
    %720 = vmatpush1.msra.mxu0 %v589
    %721 = vmatprep.subr.mxu0 0.0
    %722 = vmatpush1.msra.mxu0 %v590
    %723 = vmatprep.subr.mxu0 0.0
    %724 = vmatpush1.msra.mxu0 0.0
    %725 = vmatprep.subr.mxu0 0.0
    %726 = vmatpush1.msra.mxu0 0.0
    %727 = vmatprep.subr.mxu0 0.0
    %728 = vmatpush1.msra.mxu0 0.0
    %729 = vmatprep.subr.mxu0 0.0
    %730 = vmatpush1.msra.mxu0 0.0
    %731 = vmatprep.subr.mxu0 0.0
    %732 = vmatpush1.msra.mxu0 0.0
    %733 = vmatprep.subr.mxu0 0.0
    %734 = vmatpush1.msra.mxu0 0.0
    %735 = vmatprep.subr.mxu0 0.0
    %736 = vmatpush1.msra.mxu0 0.0
    %737 = vmatprep.subr.mxu0 0.0
    %738 = vmatpush1.msra.mxu0 0.0
    %739 = vmatprep.subr.mxu0 0.0
    %740 = vmatpush1.msra.mxu0 0.0
    %741 = vmatprep.subr.mxu0 0.0
    %742 = vmatpush1.msra.mxu0 0.0
    %743 = vmatprep.subr.mxu0 0.0
    %744 = vmatpush1.msra.mxu0 0.0
    %745 = vmatprep.subr.mxu0 0.0
    %746 = vmatpush1.msra.mxu0 0.0
    %747 = vmatprep.subr.mxu0 0.0
    %748 = vmatpush1.msra.mxu0 0.0
    %749 = vmatprep.subr.mxu0 0.0
    %750 = vmatpush1.msra.mxu0 0.0
    %751 = vmatprep.subr.mxu0 0.0
    %752 = vmatpush1.msra.mxu0 0.0
    %753 = vmatprep.subr.mxu0 0.0
    %754 = vmatpush1.msra.mxu0 0.0
    %755 = vmatprep.mubr.f32.mxu0 0.0
    %756 = vmatmul.mubr.f32.gmra.mrb[0].mxu0 %v572
    %v757 = vpop.f32.mrb[0].mxu0
    %v758 = vadd.f32 %v678, %v757
    %v759 = vpop.f32.mrb[0].mxu0
    %760 = vmatprep.mubr.f32.mxu0 0.0
    %761 = vmatmul.mubr.f32.gmra.mrb[0].mxu0 %v573
    %v762 = vpop.f32.mrb[0].mxu0
    %v763 = vadd.f32 %v683, %v762
    %v764 = vpop.f32.mrb[0].mxu0
    %765 = vmatprep.mubr.f32.mxu0 0.0
    %766 = vmatmul.mubr.f32.gmra.mrb[0].mxu0 %v574
    %v767 = vpop.f32.mrb[0].mxu0
    %v768 = vadd.f32 %v688, %v767
    %v769 = vpop.f32.mrb[0].mxu0
    %770 = vdwg.mxu0
    %v771 = vld [vmem:[%s0 + $0x5] sm:$0xff]
    %v772 = vld [vmem:[%s0 + $0xd] sm:$0xff]
    %v773 = vld [vmem:[%s0 + $0x15] sm:$0x1]
    %s774 = scalar_lea.vmem [#allocation7], 256
    %v775 = vld [vmem:[%s774] sm:$0xff]
    %v776 = vld [vmem:[%s774 + $0x8] sm:$0xff]
    %v777 = vld [vmem:[%s774 + $0x10] sm:$0xff]
    %v778 = vld [vmem:[%s774 + $0x18] sm:$0xff]
    %v779 = vld [vmem:[%s774 + $0x20] sm:$0xff]
    %v780 = vld [vmem:[%s774 + $0x28] sm:$0xff]
    %v781 = vld [vmem:[%s774 + $0x30] sm:$0xff]
    %v782 = vld [vmem:[%s774 + $0x38] sm:$0xff]
    %v783 = vld [vmem:[%s774 + $0x40] sm:$0xff]
    %v784 = vld [vmem:[%s774 + $0x48] sm:$0xff]
    %v785 = vld [vmem:[%s774 + $0x50] sm:$0xff]
    %v786 = vld [vmem:[%s774 + $0x58] sm:$0xff]
    %v787 = vld [vmem:[%s774 + $0x60] sm:$0xff]
    %v788 = vld [vmem:[%s774 + $0x68] sm:$0xff]
    %v789 = vld [vmem:[%s774 + $0x70] sm:$0xff]
    %v790 = vld [vmem:[%s774 + $0x78] sm:$0xff]
    %791 = vmatprep.subr.mxu0 0.0
    %792 = vmatpush1.msra.mxu0 %v775
    %793 = vmatprep.subr.mxu0 0.0
    %794 = vmatpush1.msra.mxu0 %v776
    %795 = vmatprep.subr.mxu0 0.0
    %796 = vmatpush1.msra.mxu0 %v777
    %797 = vmatprep.subr.mxu0 0.0
    %798 = vmatpush1.msra.mxu0 %v778
    %799 = vmatprep.subr.mxu0 0.0
    %800 = vmatpush1.msra.mxu0 %v779
    %801 = vmatprep.subr.mxu0 0.0
    %802 = vmatpush1.msra.mxu0 %v780
    %803 = vmatprep.subr.mxu0 0.0
    %804 = vmatpush1.msra.mxu0 %v781
    %805 = vmatprep.subr.mxu0 0.0
    %806 = vmatpush1.msra.mxu0 %v782
    %807 = vmatprep.subr.mxu0 0.0
    %808 = vmatpush1.msra.mxu0 %v783
    %809 = vmatprep.subr.mxu0 0.0
    %810 = vmatpush1.msra.mxu0 %v784
    %811 = vmatprep.subr.mxu0 0.0
    %812 = vmatpush1.msra.mxu0 %v785
    %813 = vmatprep.subr.mxu0 0.0
    %814 = vmatpush1.msra.mxu0 %v786
    %815 = vmatprep.subr.mxu0 0.0
    %816 = vmatpush1.msra.mxu0 %v787
    %817 = vmatprep.subr.mxu0 0.0
    %818 = vmatpush1.msra.mxu0 %v788
    %819 = vmatprep.subr.mxu0 0.0
    %820 = vmatpush1.msra.mxu0 %v789
    %821 = vmatprep.subr.mxu0 0.0
    %822 = vmatpush1.msra.mxu0 %v790
    %823 = vmatprep.subr.mxu0 0.0
    %824 = vmatpush1.msra.mxu0 0.0
    %825 = vmatprep.subr.mxu0 0.0
    %826 = vmatpush1.msra.mxu0 0.0
    %827 = vmatprep.subr.mxu0 0.0
    %828 = vmatpush1.msra.mxu0 0.0
    %829 = vmatprep.subr.mxu0 0.0
    %830 = vmatpush1.msra.mxu0 0.0
    %831 = vmatprep.subr.mxu0 0.0
    %832 = vmatpush1.msra.mxu0 0.0
    %833 = vmatprep.subr.mxu0 0.0
    %834 = vmatpush1.msra.mxu0 0.0
    %835 = vmatprep.subr.mxu0 0.0
    %836 = vmatpush1.msra.mxu0 0.0
    %837 = vmatprep.subr.mxu0 0.0
    %838 = vmatpush1.msra.mxu0 0.0
    %839 = vmatprep.subr.mxu0 0.0
    %840 = vmatpush1.msra.mxu0 0.0
    %841 = vmatprep.subr.mxu0 0.0
    %842 = vmatpush1.msra.mxu0 0.0
    %843 = vmatprep.subr.mxu0 0.0
    %844 = vmatpush1.msra.mxu0 0.0
    %845 = vmatprep.subr.mxu0 0.0
    %846 = vmatpush1.msra.mxu0 0.0
    %847 = vmatprep.subr.mxu0 0.0
    %848 = vmatpush1.msra.mxu0 0.0
    %849 = vmatprep.subr.mxu0 0.0
    %850 = vmatpush1.msra.mxu0 0.0
    %851 = vmatprep.subr.mxu0 0.0
    %852 = vmatpush1.msra.mxu0 0.0
    %853 = vmatprep.subr.mxu0 0.0
    %854 = vmatpush1.msra.mxu0 0.0
    %855 = vmatprep.mubr.f32.mxu0 0.0
    %856 = vmatmul.mubr.f32.gmra.mrb[0].mxu0 %v771
    %v857 = vpop.f32.mrb[0].mxu0
    %v858 = vadd.f32 0.0, %v857
    %v859 = vpop.f32.mrb[0].mxu0
    %860 = vmatprep.mubr.f32.mxu0 0.0
    %861 = vmatmul.mubr.f32.gmra.mrb[0].mxu0 %v772
    %v862 = vpop.f32.mrb[0].mxu0
    %v863 = vadd.f32 0.0, %v862
    %v864 = vpop.f32.mrb[0].mxu0
    %865 = vmatprep.mubr.f32.mxu0 0.0
    %866 = vmatmul.mubr.f32.gmra.mrb[0].mxu0 %v773
    %v867 = vpop.f32.mrb[0].mxu0
    %v868 = vadd.f32 0.0, %v867
    %v869 = vpop.f32.mrb[0].mxu0
    %870 = vdwg.mxu0
    %v871 = vadd.f32 %v758, %v858
    %v872 = vadd.f32 %v763, %v863
    %v873 = vadd.f32 %v768, %v868
    %s874 = scalar_lea.vmem %s9, 2
    %v875 = vld [vmem:[%s874] sm:$0x1]
    %v877 = vlaneseq
    %v878 = vshrl.u32 %v877, 7
    %v879 = vsub.s32 0, %v878
    %v880 = vrot.slane %v875, %v879
    %v882 = vadd.f32 %v871, %v880
    %v883 = vadd.f32 %v872, %v880
    %v884 = vadd.f32 %v873, %v880
    %v885 = vmax.f32 %v882, 0.0
    %v886 = vmax.f32 %v883, 0.0
    %v887 = vmax.f32 %v884, 0.0
    %s888 = scalar_lea.vmem %s10, 2
    %v889 = vld [vmem:[%s888] sm:$0x1]
    %v891 = vlaneseq
    %v892 = vshrl.u32 %v891, 7
    %v893 = vsub.s32 0, %v892
    %v894 = vrot.slane %v889, %v893
    %v896 = vmul.f32 %v885, %v894
    %v897 = vmul.f32 %v886, %v894
    %v898 = vmul.f32 %v887, %v894
    %s899 = scalar_lea.vmem %s11, 2
    %v900 = vld [vmem:[%s899] sm:$0x1]
    %v902 = vlaneseq
    %v903 = vshrl.u32 %v902, 7
    %v904 = vsub.s32 0, %v903
    %v905 = vrot.slane %v900, %v904
    %v907 = vadd.f32 %v896, %v905
    %v908 = vadd.f32 %v897, %v905
    %v909 = vadd.f32 %v898, %v905
    %v910 = vsel %vm283, -inf, %v907
    %v911 = vsel %vm284, -inf, %v908
    %v914 = vrot.slane %v910, 7
    %v915 = vrot.slane %v911, 7
    %v916 = vsel %vm289, %v914, %v915
    %v920 = vmax.f32 %v907, %v914
    %v921 = vmax.f32 %v908, %v916
    %v922 = vmax.f32 %v909, %v915
    %v926 = vrot.slane %v920, 1
    %v927 = vrot.slane %v921, 1
    %v928 = vsel %vm302, %v926, %v927
    %v929 = vrot.slane %v922, 1
    %v930 = vsel %vm302, %v927, %v929
    %933 = vst [vmem:[#allocation16 + $0x10] sm:$0xff] %v928
    %934 = vst [vmem:[#allocation16 + $0x50] sm:$0xff] %v930
    %v935 = vld [vmem:[%s0 + $0x2] sm:$0xff]
    %v936 = vld [vmem:[%s0 + $0xa] sm:$0xff]
    %v937 = vld [vmem:[%s0 + $0x12] sm:$0x1]
    %v938 = vld [vmem:[#allocation8] sm:$0xff]
    %v939 = vld [vmem:[#allocation8 + $0x8] sm:$0xff]
    %v940 = vld [vmem:[#allocation8 + $0x10] sm:$0xff]
    %v941 = vld [vmem:[#allocation8 + $0x18] sm:$0xff]
    %v942 = vld [vmem:[#allocation8 + $0x20] sm:$0xff]
    %v943 = vld [vmem:[#allocation8 + $0x28] sm:$0xff]
    %v944 = vld [vmem:[#allocation8 + $0x30] sm:$0xff]
    %v945 = vld [vmem:[#allocation8 + $0x38] sm:$0xff]
    %v946 = vld [vmem:[#allocation8 + $0x40] sm:$0xff]
    %v947 = vld [vmem:[#allocation8 + $0x48] sm:$0xff]
    %v948 = vld [vmem:[#allocation8 + $0x50] sm:$0xff]
    %v949 = vld [vmem:[#allocation8 + $0x58] sm:$0xff]
    %v950 = vld [vmem:[#allocation8 + $0x60] sm:$0xff]
    %v951 = vld [vmem:[#allocation8 + $0x68] sm:$0xff]
    %v952 = vld [vmem:[#allocation8 + $0x70] sm:$0xff]
    %v953 = vld [vmem:[#allocation8 + $0x78] sm:$0xff]
    %v954 = vld [vmem:[%s0 + $0x3] sm:$0xff]
    %v955 = vld [vmem:[%s0 + $0xb] sm:$0xff]
    %v956 = vld [vmem:[%s0 + $0x13] sm:$0x1]
    %s957 = scalar_lea.vmem [#allocation8], 128
    %v958 = vld [vmem:[%s957] sm:$0xff]
    %v959 = vld [vmem:[%s957 + $0x8] sm:$0xff]
    %v960 = vld [vmem:[%s957 + $0x10] sm:$0xff]
    %v961 = vld [vmem:[%s957 + $0x18] sm:$0xff]
    %v962 = vld [vmem:[%s957 + $0x20] sm:$0xff]
    %v963 = vld [vmem:[%s957 + $0x28] sm:$0xff]
    %v964 = vld [vmem:[%s957 + $0x30] sm:$0xff]
    %v965 = vld [vmem:[%s957 + $0x38] sm:$0xff]
    %v966 = vld [vmem:[%s957 + $0x40] sm:$0xff]
    %v967 = vld [vmem:[%s957 + $0x48] sm:$0xff]
    %v968 = vld [vmem:[%s957 + $0x50] sm:$0xff]
    %v969 = vld [vmem:[%s957 + $0x58] sm:$0xff]
    %v970 = vld [vmem:[%s957 + $0x60] sm:$0xff]
    %v971 = vld [vmem:[%s957 + $0x68] sm:$0xff]
    %v972 = vld [vmem:[%s957 + $0x70] sm:$0xff]
    %v973 = vld [vmem:[%s957 + $0x78] sm:$0xff]
    %974 = vmatprep.subr.mxu0 0.0
    %975 = vmatpush1.msra.mxu0 %v958
    %976 = vmatprep.subr.mxu0 0.0
    %977 = vmatpush1.msra.mxu0 %v959
    %978 = vmatprep.subr.mxu0 0.0
    %979 = vmatpush1.msra.mxu0 %v960
    %980 = vmatprep.subr.mxu0 0.0
    %981 = vmatpush1.msra.mxu0 %v961
    %982 = vmatprep.subr.mxu0 0.0
    %983 = vmatpush1.msra.mxu0 %v962
    %984 = vmatprep.subr.mxu0 0.0
    %985 = vmatpush1.msra.mxu0 %v963
    %986 = vmatprep.subr.mxu0 0.0
    %987 = vmatpush1.msra.mxu0 %v964
    %988 = vmatprep.subr.mxu0 0.0
    %989 = vmatpush1.msra.mxu0 %v965
    %990 = vmatprep.subr.mxu0 0.0
    %991 = vmatpush1.msra.mxu0 %v966
    %992 = vmatprep.subr.mxu0 0.0
    %993 = vmatpush1.msra.mxu0 %v967
    %994 = vmatprep.subr.mxu0 0.0
    %995 = vmatpush1.msra.mxu0 %v968
    %996 = vmatprep.subr.mxu0 0.0
    %997 = vmatpush1.msra.mxu0 %v969
    %998 = vmatprep.subr.mxu0 0.0
    %999 = vmatpush1.msra.mxu0 %v970
    %1000 = vmatprep.subr.mxu0 0.0
    %1001 = vmatpush1.msra.mxu0 %v971
    %1002 = vmatprep.subr.mxu0 0.0
    %1003 = vmatpush1.msra.mxu0 %v972
    %1004 = vmatprep.subr.mxu0 0.0
    %1005 = vmatpush1.msra.mxu0 %v973
    %1006 = vmatprep.subr.mxu0 0.0
    %1007 = vmatpush1.msra.mxu0 0.0
    %1008 = vmatprep.subr.mxu0 0.0
    %1009 = vmatpush1.msra.mxu0 0.0
    %1010 = vmatprep.subr.mxu0 0.0
    %1011 = vmatpush1.msra.mxu0 0.0
    %1012 = vmatprep.subr.mxu0 0.0
    %1013 = vmatpush1.msra.mxu0 0.0
    %1014 = vmatprep.subr.mxu0 0.0
    %1015 = vmatpush1.msra.mxu0 0.0
    %1016 = vmatprep.subr.mxu0 0.0
    %1017 = vmatpush1.msra.mxu0 0.0
    %1018 = vmatprep.subr.mxu0 0.0
    %1019 = vmatpush1.msra.mxu0 0.0
    %1020 = vmatprep.subr.mxu0 0.0
    %1021 = vmatpush1.msra.mxu0 0.0
    %1022 = vmatprep.subr.mxu0 0.0
    %1023 = vmatpush1.msra.mxu0 0.0
    %1024 = vmatprep.subr.mxu0 0.0
    %1025 = vmatpush1.msra.mxu0 0.0
    %1026 = vmatprep.subr.mxu0 0.0
    %1027 = vmatpush1.msra.mxu0 0.0
    %1028 = vmatprep.subr.mxu0 0.0
    %1029 = vmatpush1.msra.mxu0 0.0
    %1030 = vmatprep.subr.mxu0 0.0
    %1031 = vmatpush1.msra.mxu0 0.0
    %1032 = vmatprep.subr.mxu0 0.0
    %1033 = vmatpush1.msra.mxu0 0.0
    %1034 = vmatprep.subr.mxu0 0.0
    %1035 = vmatpush1.msra.mxu0 0.0
    %1036 = vmatprep.subr.mxu0 0.0
    %1037 = vmatpush1.msra.mxu0 0.0
    %1038 = vmatprep.mubr.f32.mxu0 0.0
    %1039 = vmatmul.mubr.f32.gmra.mrb[0].mxu0 %v954
    %v1040 = vpop.f32.mrb[0].mxu0
    %v1041 = vadd.f32 0.0, %v1040
    %v1042 = vpop.f32.mrb[0].mxu0
    %1043 = vmatprep.mubr.f32.mxu0 0.0
    %1044 = vmatmul.mubr.f32.gmra.mrb[0].mxu0 %v955
    %v1045 = vpop.f32.mrb[0].mxu0
    %v1046 = vadd.f32 0.0, %v1045
    %v1047 = vpop.f32.mrb[0].mxu0
    %1048 = vmatprep.mubr.f32.mxu0 0.0
    %1049 = vmatmul.mubr.f32.gmra.mrb[0].mxu0 %v956
    %v1050 = vpop.f32.mrb[0].mxu0
    %v1051 = vadd.f32 0.0, %v1050
    %v1052 = vpop.f32.mrb[0].mxu0
    %1053 = vdwg.mxu0
    %1054 = vmatprep.subr.mxu0 0.0
    %1055 = vmatpush1.msra.mxu0 %v938
    %1056 = vmatprep.subr.mxu0 0.0
    %1057 = vmatpush1.msra.mxu0 %v939
    %1058 = vmatprep.subr.mxu0 0.0
    %1059 = vmatpush1.msra.mxu0 %v940
    %1060 = vmatprep.subr.mxu0 0.0
    %1061 = vmatpush1.msra.mxu0 %v941
    %1062 = vmatprep.subr.mxu0 0.0
    %1063 = vmatpush1.msra.mxu0 %v942
    %1064 = vmatprep.subr.mxu0 0.0
    %1065 = vmatpush1.msra.mxu0 %v943
    %1066 = vmatprep.subr.mxu0 0.0
    %1067 = vmatpush1.msra.mxu0 %v944
    %1068 = vmatprep.subr.mxu0 0.0
    %1069 = vmatpush1.msra.mxu0 %v945
    %1070 = vmatprep.subr.mxu0 0.0
    %1071 = vmatpush1.msra.mxu0 %v946
    %1072 = vmatprep.subr.mxu0 0.0
    %1073 = vmatpush1.msra.mxu0 %v947
    %1074 = vmatprep.subr.mxu0 0.0
    %1075 = vmatpush1.msra.mxu0 %v948
    %1076 = vmatprep.subr.mxu0 0.0
    %1077 = vmatpush1.msra.mxu0 %v949
    %1078 = vmatprep.subr.mxu0 0.0
    %1079 = vmatpush1.msra.mxu0 %v950
    %1080 = vmatprep.subr.mxu0 0.0
    %1081 = vmatpush1.msra.mxu0 %v951
    %1082 = vmatprep.subr.mxu0 0.0
    %1083 = vmatpush1.msra.mxu0 %v952
    %1084 = vmatprep.subr.mxu0 0.0
    %1085 = vmatpush1.msra.mxu0 %v953
    %1086 = vmatprep.subr.mxu0 0.0
    %1087 = vmatpush1.msra.mxu0 0.0
    %1088 = vmatprep.subr.mxu0 0.0
    %1089 = vmatpush1.msra.mxu0 0.0
    %1090 = vmatprep.subr.mxu0 0.0
    %1091 = vmatpush1.msra.mxu0 0.0
    %1092 = vmatprep.subr.mxu0 0.0
    %1093 = vmatpush1.msra.mxu0 0.0
    %1094 = vmatprep.subr.mxu0 0.0
    %1095 = vmatpush1.msra.mxu0 0.0
    %1096 = vmatprep.subr.mxu0 0.0
    %1097 = vmatpush1.msra.mxu0 0.0
    %1098 = vmatprep.subr.mxu0 0.0
    %1099 = vmatpush1.msra.mxu0 0.0
    %1100 = vmatprep.subr.mxu0 0.0
    %1101 = vmatpush1.msra.mxu0 0.0
    %1102 = vmatprep.subr.mxu0 0.0
    %1103 = vmatpush1.msra.mxu0 0.0
    %1104 = vmatprep.subr.mxu0 0.0
    %1105 = vmatpush1.msra.mxu0 0.0
    %1106 = vmatprep.subr.mxu0 0.0
    %1107 = vmatpush1.msra.mxu0 0.0
    %1108 = vmatprep.subr.mxu0 0.0
    %1109 = vmatpush1.msra.mxu0 0.0
    %1110 = vmatprep.subr.mxu0 0.0
    %1111 = vmatpush1.msra.mxu0 0.0
    %1112 = vmatprep.subr.mxu0 0.0
    %1113 = vmatpush1.msra.mxu0 0.0
    %1114 = vmatprep.subr.mxu0 0.0
    %1115 = vmatpush1.msra.mxu0 0.0
    %1116 = vmatprep.subr.mxu0 0.0
    %1117 = vmatpush1.msra.mxu0 0.0
    %1118 = vmatprep.mubr.f32.mxu0 0.0
    %1119 = vmatmul.mubr.f32.gmra.mrb[0].mxu0 %v935
    %v1120 = vpop.f32.mrb[0].mxu0
    %v1121 = vadd.f32 %v1041, %v1120
    %v1122 = vpop.f32.mrb[0].mxu0
    %1123 = vmatprep.mubr.f32.mxu0 0.0
    %1124 = vmatmul.mubr.f32.gmra.mrb[0].mxu0 %v936
    %v1125 = vpop.f32.mrb[0].mxu0
    %v1126 = vadd.f32 %v1046, %v1125
    %v1127 = vpop.f32.mrb[0].mxu0
    %1128 = vmatprep.mubr.f32.mxu0 0.0
    %1129 = vmatmul.mubr.f32.gmra.mrb[0].mxu0 %v937
    %v1130 = vpop.f32.mrb[0].mxu0
    %v1131 = vadd.f32 %v1051, %v1130
    %v1132 = vpop.f32.mrb[0].mxu0
    %1133 = vdwg.mxu0
    %v1134 = vld [vmem:[%s0 + $0x4] sm:$0xff]
    %v1135 = vld [vmem:[%s0 + $0xc] sm:$0xff]
    %v1136 = vld [vmem:[%s0 + $0x14] sm:$0x1]
    %s1137 = scalar_lea.vmem [#allocation8], 256
    %v1138 = vld [vmem:[%s1137] sm:$0xff]
    %v1139 = vld [vmem:[%s1137 + $0x8] sm:$0xff]
    %v1140 = vld [vmem:[%s1137 + $0x10] sm:$0xff]
    %v1141 = vld [vmem:[%s1137 + $0x18] sm:$0xff]
    %v1142 = vld [vmem:[%s1137 + $0x20] sm:$0xff]
    %v1143 = vld [vmem:[%s1137 + $0x28] sm:$0xff]
    %v1144 = vld [vmem:[%s1137 + $0x30] sm:$0xff]
    %v1145 = vld [vmem:[%s1137 + $0x38] sm:$0xff]
    %v1146 = vld [vmem:[%s1137 + $0x40] sm:$0xff]
    %v1147 = vld [vmem:[%s1137 + $0x48] sm:$0xff]
    %v1148 = vld [vmem:[%s1137 + $0x50] sm:$0xff]
    %v1149 = vld [vmem:[%s1137 + $0x58] sm:$0xff]
    %v1150 = vld [vmem:[%s1137 + $0x60] sm:$0xff]
    %v1151 = vld [vmem:[%s1137 + $0x68] sm:$0xff]
    %v1152 = vld [vmem:[%s1137 + $0x70] sm:$0xff]
    %v1153 = vld [vmem:[%s1137 + $0x78] sm:$0xff]
    %1154 = vmatprep.subr.mxu0 0.0
    %1155 = vmatpush1.msra.mxu0 %v1138
    %1156 = vmatprep.subr.mxu0 0.0
    %1157 = vmatpush1.msra.mxu0 %v1139
    %1158 = vmatprep.subr.mxu0 0.0
    %1159 = vmatpush1.msra.mxu0 %v1140
    %1160 = vmatprep.subr.mxu0 0.0
    %1161 = vmatpush1.msra.mxu0 %v1141
    %1162 = vmatprep.subr.mxu0 0.0
    %1163 = vmatpush1.msra.mxu0 %v1142
    %1164 = vmatprep.subr.mxu0 0.0
    %1165 = vmatpush1.msra.mxu0 %v1143
    %1166 = vmatprep.subr.mxu0 0.0
    %1167 = vmatpush1.msra.mxu0 %v1144
    %1168 = vmatprep.subr.mxu0 0.0
    %1169 = vmatpush1.msra.mxu0 %v1145
    %1170 = vmatprep.subr.mxu0 0.0
    %1171 = vmatpush1.msra.mxu0 %v1146
    %1172 = vmatprep.subr.mxu0 0.0
    %1173 = vmatpush1.msra.mxu0 %v1147
    %1174 = vmatprep.subr.mxu0 0.0
    %1175 = vmatpush1.msra.mxu0 %v1148
    %1176 = vmatprep.subr.mxu0 0.0
    %1177 = vmatpush1.msra.mxu0 %v1149
    %1178 = vmatprep.subr.mxu0 0.0
    %1179 = vmatpush1.msra.mxu0 %v1150
    %1180 = vmatprep.subr.mxu0 0.0
    %1181 = vmatpush1.msra.mxu0 %v1151
    %1182 = vmatprep.subr.mxu0 0.0
    %1183 = vmatpush1.msra.mxu0 %v1152
    %1184 = vmatprep.subr.mxu0 0.0
    %1185 = vmatpush1.msra.mxu0 %v1153
    %1186 = vmatprep.subr.mxu0 0.0
    %1187 = vmatpush1.msra.mxu0 0.0
    %1188 = vmatprep.subr.mxu0 0.0
    %1189 = vmatpush1.msra.mxu0 0.0
    %1190 = vmatprep.subr.mxu0 0.0
    %1191 = vmatpush1.msra.mxu0 0.0
    %1192 = vmatprep.subr.mxu0 0.0
    %1193 = vmatpush1.msra.mxu0 0.0
    %1194 = vmatprep.subr.mxu0 0.0
    %1195 = vmatpush1.msra.mxu0 0.0
    %1196 = vmatprep.subr.mxu0 0.0
    %1197 = vmatpush1.msra.mxu0 0.0
    %1198 = vmatprep.subr.mxu0 0.0
    %1199 = vmatpush1.msra.mxu0 0.0
    %1200 = vmatprep.subr.mxu0 0.0
    %1201 = vmatpush1.msra.mxu0 0.0
    %1202 = vmatprep.subr.mxu0 0.0
    %1203 = vmatpush1.msra.mxu0 0.0
    %1204 = vmatprep.subr.mxu0 0.0
    %1205 = vmatpush1.msra.mxu0 0.0
    %1206 = vmatprep.subr.mxu0 0.0
    %1207 = vmatpush1.msra.mxu0 0.0
    %1208 = vmatprep.subr.mxu0 0.0
    %1209 = vmatpush1.msra.mxu0 0.0
    %1210 = vmatprep.subr.mxu0 0.0
    %1211 = vmatpush1.msra.mxu0 0.0
    %1212 = vmatprep.subr.mxu0 0.0
    %1213 = vmatpush1.msra.mxu0 0.0
    %1214 = vmatprep.subr.mxu0 0.0
    %1215 = vmatpush1.msra.mxu0 0.0
    %1216 = vmatprep.subr.mxu0 0.0
    %1217 = vmatpush1.msra.mxu0 0.0
    %1218 = vmatprep.mubr.f32.mxu0 0.0
    %1219 = vmatmul.mubr.f32.gmra.mrb[0].mxu0 %v1134
    %v1220 = vpop.f32.mrb[0].mxu0
    %v1221 = vadd.f32 0.0, %v1220
    %v1222 = vpop.f32.mrb[0].mxu0
    %1223 = vmatprep.mubr.f32.mxu0 0.0
    %1224 = vmatmul.mubr.f32.gmra.mrb[0].mxu0 %v1135
    %v1225 = vpop.f32.mrb[0].mxu0
    %v1226 = vadd.f32 0.0, %v1225
    %v1227 = vpop.f32.mrb[0].mxu0
    %1228 = vmatprep.mubr.f32.mxu0 0.0
    %1229 = vmatmul.mubr.f32.gmra.mrb[0].mxu0 %v1136
    %v1230 = vpop.f32.mrb[0].mxu0
    %v1231 = vadd.f32 0.0, %v1230
    %v1232 = vpop.f32.mrb[0].mxu0
    %1233 = vdwg.mxu0
    %v1234 = vadd.f32 %v1121, %v1221
    %v1235 = vadd.f32 %v1126, %v1226
    %v1236 = vadd.f32 %v1131, %v1231
    %v1237 = vld [vmem:[%s0 + $0x5] sm:$0xff]
    %v1238 = vld [vmem:[%s0 + $0xd] sm:$0xff]
    %v1239 = vld [vmem:[%s0 + $0x15] sm:$0x1]
    %s1240 = scalar_lea.vmem [#allocation8], 384
    %v1241 = vld [vmem:[%s1240] sm:$0xff]
    %v1242 = vld [vmem:[%s1240 + $0x8] sm:$0xff]
    %v1243 = vld [vmem:[%s1240 + $0x10] sm:$0xff]
    %v1244 = vld [vmem:[%s1240 + $0x18] sm:$0xff]
    %v1245 = vld [vmem:[%s1240 + $0x20] sm:$0xff]
    %v1246 = vld [vmem:[%s1240 + $0x28] sm:$0xff]
    %v1247 = vld [vmem:[%s1240 + $0x30] sm:$0xff]
    %v1248 = vld [vmem:[%s1240 + $0x38] sm:$0xff]
    %v1249 = vld [vmem:[%s1240 + $0x40] sm:$0xff]
    %v1250 = vld [vmem:[%s1240 + $0x48] sm:$0xff]
    %v1251 = vld [vmem:[%s1240 + $0x50] sm:$0xff]
    %v1252 = vld [vmem:[%s1240 + $0x58] sm:$0xff]
    %v1253 = vld [vmem:[%s1240 + $0x60] sm:$0xff]
    %v1254 = vld [vmem:[%s1240 + $0x68] sm:$0xff]
    %v1255 = vld [vmem:[%s1240 + $0x70] sm:$0xff]
    %v1256 = vld [vmem:[%s1240 + $0x78] sm:$0xff]
    %1257 = vmatprep.subr.mxu0 0.0
    %1258 = vmatpush1.msra.mxu0 %v1241
    %1259 = vmatprep.subr.mxu0 0.0
    %1260 = vmatpush1.msra.mxu0 %v1242
    %1261 = vmatprep.subr.mxu0 0.0
    %1262 = vmatpush1.msra.mxu0 %v1243
    %1263 = vmatprep.subr.mxu0 0.0
    %1264 = vmatpush1.msra.mxu0 %v1244
    %1265 = vmatprep.subr.mxu0 0.0
    %1266 = vmatpush1.msra.mxu0 %v1245
    %1267 = vmatprep.subr.mxu0 0.0
    %1268 = vmatpush1.msra.mxu0 %v1246
    %1269 = vmatprep.subr.mxu0 0.0
    %1270 = vmatpush1.msra.mxu0 %v1247
    %1271 = vmatprep.subr.mxu0 0.0
    %1272 = vmatpush1.msra.mxu0 %v1248
    %1273 = vmatprep.subr.mxu0 0.0
    %1274 = vmatpush1.msra.mxu0 %v1249
    %1275 = vmatprep.subr.mxu0 0.0
    %1276 = vmatpush1.msra.mxu0 %v1250
    %1277 = vmatprep.subr.mxu0 0.0
    %1278 = vmatpush1.msra.mxu0 %v1251
    %1279 = vmatprep.subr.mxu0 0.0
    %1280 = vmatpush1.msra.mxu0 %v1252
    %1281 = vmatprep.subr.mxu0 0.0
    %1282 = vmatpush1.msra.mxu0 %v1253
    %1283 = vmatprep.subr.mxu0 0.0
    %1284 = vmatpush1.msra.mxu0 %v1254
    %1285 = vmatprep.subr.mxu0 0.0
    %1286 = vmatpush1.msra.mxu0 %v1255
    %1287 = vmatprep.subr.mxu0 0.0
    %1288 = vmatpush1.msra.mxu0 %v1256
    %1289 = vmatprep.subr.mxu0 0.0
    %1290 = vmatpush1.msra.mxu0 0.0
    %1291 = vmatprep.subr.mxu0 0.0
    %1292 = vmatpush1.msra.mxu0 0.0
    %1293 = vmatprep.subr.mxu0 0.0
    %1294 = vmatpush1.msra.mxu0 0.0
    %1295 = vmatprep.subr.mxu0 0.0
    %1296 = vmatpush1.msra.mxu0 0.0
    %1297 = vmatprep.subr.mxu0 0.0
    %1298 = vmatpush1.msra.mxu0 0.0
    %1299 = vmatprep.subr.mxu0 0.0
    %1300 = vmatpush1.msra.mxu0 0.0
    %1301 = vmatprep.subr.mxu0 0.0
    %1302 = vmatpush1.msra.mxu0 0.0
    %1303 = vmatprep.subr.mxu0 0.0
    %1304 = vmatpush1.msra.mxu0 0.0
    %1305 = vmatprep.subr.mxu0 0.0
    %1306 = vmatpush1.msra.mxu0 0.0
    %1307 = vmatprep.subr.mxu0 0.0
    %1308 = vmatpush1.msra.mxu0 0.0
    %1309 = vmatprep.subr.mxu0 0.0
    %1310 = vmatpush1.msra.mxu0 0.0
    %1311 = vmatprep.subr.mxu0 0.0
    %1312 = vmatpush1.msra.mxu0 0.0
    %1313 = vmatprep.subr.mxu0 0.0
    %1314 = vmatpush1.msra.mxu0 0.0
    %1315 = vmatprep.subr.mxu0 0.0
    %1316 = vmatpush1.msra.mxu0 0.0
    %1317 = vmatprep.subr.mxu0 0.0
    %1318 = vmatpush1.msra.mxu0 0.0
    %1319 = vmatprep.subr.mxu0 0.0
    %1320 = vmatpush1.msra.mxu0 0.0
    %1321 = vmatprep.mubr.f32.mxu0 0.0
    %1322 = vmatmul.mubr.f32.gmra.mrb[0].mxu0 %v1237
    %v1323 = vpop.f32.mrb[0].mxu0
    %v1324 = vadd.f32 0.0, %v1323
    %v1325 = vpop.f32.mrb[0].mxu0
    %1326 = vmatprep.mubr.f32.mxu0 0.0
    %1327 = vmatmul.mubr.f32.gmra.mrb[0].mxu0 %v1238
    %v1328 = vpop.f32.mrb[0].mxu0
    %v1329 = vadd.f32 0.0, %v1328
    %v1330 = vpop.f32.mrb[0].mxu0
    %1331 = vmatprep.mubr.f32.mxu0 0.0
    %1332 = vmatmul.mubr.f32.gmra.mrb[0].mxu0 %v1239
    %v1333 = vpop.f32.mrb[0].mxu0
    %v1334 = vadd.f32 0.0, %v1333
    %v1335 = vpop.f32.mrb[0].mxu0
    %1336 = vdwg.mxu0
    %v1337 = vadd.f32 %v1234, %v1324
    %v1338 = vadd.f32 %v1235, %v1329
    %v1339 = vadd.f32 %v1236, %v1334
    %s1340 = scalar_lea.vmem %s9, 3
    %v1341 = vld [vmem:[%s1340] sm:$0x1]
    %v1343 = vlaneseq
    %v1344 = vshrl.u32 %v1343, 7
    %v1345 = vsub.s32 0, %v1344
    %v1346 = vrot.slane %v1341, %v1345
    %v1348 = vadd.f32 %v1337, %v1346
    %v1349 = vadd.f32 %v1338, %v1346
    %v1350 = vadd.f32 %v1339, %v1346
    %v1351 = vmax.f32 %v1348, 0.0
    %v1352 = vmax.f32 %v1349, 0.0
    %v1353 = vmax.f32 %v1350, 0.0
    %s1354 = scalar_lea.vmem %s10, 3
    %v1355 = vld [vmem:[%s1354] sm:$0x1]
    %v1357 = vlaneseq
    %v1358 = vshrl.u32 %v1357, 7
    %v1359 = vsub.s32 0, %v1358
    %v1360 = vrot.slane %v1355, %v1359
    %v1362 = vmul.f32 %v1351, %v1360
    %v1363 = vmul.f32 %v1352, %v1360
    %v1364 = vmul.f32 %v1353, %v1360
    %s1365 = scalar_lea.vmem %s11, 3
    %v1366 = vld [vmem:[%s1365] sm:$0x1]
    %v1368 = vlaneseq
    %v1369 = vshrl.u32 %v1368, 7
    %v1370 = vsub.s32 0, %v1369
    %v1371 = vrot.slane %v1366, %v1370
    %v1373 = vadd.f32 %v1362, %v1371
    %v1374 = vadd.f32 %v1363, %v1371
    %v1375 = vadd.f32 %v1364, %v1371
    %v1376 = vsel %vm283, -inf, %v1373
    %v1377 = vsel %vm284, -inf, %v1374
    %v1380 = vrot.slane %v1376, 7
    %v1381 = vrot.slane %v1377, 7
    %v1382 = vsel %vm289, %v1380, %v1381
    %v1386 = vmax.f32 %v1373, %v1380
    %v1387 = vmax.f32 %v1374, %v1382
    %v1388 = vmax.f32 %v1375, %v1381
    %v1392 = vrot.slane %v1386, 1
    %v1393 = vrot.slane %v1387, 1
    %v1394 = vsel %vm302, %v1392, %v1393
    %v1395 = vrot.slane %v1388, 1
    %v1396 = vsel %vm302, %v1393, %v1395
    %1399 = vst [vmem:[#allocation16 + $0x18] sm:$0xff] %v1394
    %1400 = vst [vmem:[#allocation16 + $0x58] sm:$0xff] %v1396
    %v1401 = vld [vmem:[%s0 + $0x2] sm:$0xff]
    %v1402 = vld [vmem:[%s0 + $0xa] sm:$0xff]
    %v1403 = vld [vmem:[%s0 + $0x12] sm:$0x1]
    %v1404 = vld [vmem:[#allocation10] sm:$0xff]
    %v1405 = vld [vmem:[#allocation10 + $0x8] sm:$0xff]
    %v1406 = vld [vmem:[#allocation10 + $0x10] sm:$0xff]
    %v1407 = vld [vmem:[#allocation10 + $0x18] sm:$0xff]
    %v1408 = vld [vmem:[#allocation10 + $0x20] sm:$0xff]
    %v1409 = vld [vmem:[#allocation10 + $0x28] sm:$0xff]
    %v1410 = vld [vmem:[#allocation10 + $0x30] sm:$0xff]
    %v1411 = vld [vmem:[#allocation10 + $0x38] sm:$0xff]
    %v1412 = vld [vmem:[#allocation10 + $0x40] sm:$0xff]
    %v1413 = vld [vmem:[#allocation10 + $0x48] sm:$0xff]
    %v1414 = vld [vmem:[#allocation10 + $0x50] sm:$0xff]
    %v1415 = vld [vmem:[#allocation10 + $0x58] sm:$0xff]
    %v1416 = vld [vmem:[#allocation10 + $0x60] sm:$0xff]
    %v1417 = vld [vmem:[#allocation10 + $0x68] sm:$0xff]
    %v1418 = vld [vmem:[#allocation10 + $0x70] sm:$0xff]
    %v1419 = vld [vmem:[#allocation10 + $0x78] sm:$0xff]
    %v1420 = vld [vmem:[%s0 + $0x3] sm:$0xff]
    %v1421 = vld [vmem:[%s0 + $0xb] sm:$0xff]
    %v1422 = vld [vmem:[%s0 + $0x13] sm:$0x1]
    %s1423 = scalar_lea.vmem [#allocation10], 128
    %v1424 = vld [vmem:[%s1423] sm:$0xff]
    %v1425 = vld [vmem:[%s1423 + $0x8] sm:$0xff]
    %v1426 = vld [vmem:[%s1423 + $0x10] sm:$0xff]
    %v1427 = vld [vmem:[%s1423 + $0x18] sm:$0xff]
    %v1428 = vld [vmem:[%s1423 + $0x20] sm:$0xff]
    %v1429 = vld [vmem:[%s1423 + $0x28] sm:$0xff]
    %v1430 = vld [vmem:[%s1423 + $0x30] sm:$0xff]
    %v1431 = vld [vmem:[%s1423 + $0x38] sm:$0xff]
    %v1432 = vld [vmem:[%s1423 + $0x40] sm:$0xff]
    %v1433 = vld [vmem:[%s1423 + $0x48] sm:$0xff]
    %v1434 = vld [vmem:[%s1423 + $0x50] sm:$0xff]
    %v1435 = vld [vmem:[%s1423 + $0x58] sm:$0xff]
    %v1436 = vld [vmem:[%s1423 + $0x60] sm:$0xff]
    %v1437 = vld [vmem:[%s1423 + $0x68] sm:$0xff]
    %v1438 = vld [vmem:[%s1423 + $0x70] sm:$0xff]
    %v1439 = vld [vmem:[%s1423 + $0x78] sm:$0xff]
    %1440 = vmatprep.subr.mxu0 0.0
    %1441 = vmatpush1.msra.mxu0 %v1424
    %1442 = vmatprep.subr.mxu0 0.0
    %1443 = vmatpush1.msra.mxu0 %v1425
    %1444 = vmatprep.subr.mxu0 0.0
    %1445 = vmatpush1.msra.mxu0 %v1426
    %1446 = vmatprep.subr.mxu0 0.0
    %1447 = vmatpush1.msra.mxu0 %v1427
    %1448 = vmatprep.subr.mxu0 0.0
    %1449 = vmatpush1.msra.mxu0 %v1428
    %1450 = vmatprep.subr.mxu0 0.0
    %1451 = vmatpush1.msra.mxu0 %v1429
    %1452 = vmatprep.subr.mxu0 0.0
    %1453 = vmatpush1.msra.mxu0 %v1430
    %1454 = vmatprep.subr.mxu0 0.0
    %1455 = vmatpush1.msra.mxu0 %v1431
    %1456 = vmatprep.subr.mxu0 0.0
    %1457 = vmatpush1.msra.mxu0 %v1432
    %1458 = vmatprep.subr.mxu0 0.0
    %1459 = vmatpush1.msra.mxu0 %v1433
    %1460 = vmatprep.subr.mxu0 0.0
    %1461 = vmatpush1.msra.mxu0 %v1434
    %1462 = vmatprep.subr.mxu0 0.0
    %1463 = vmatpush1.msra.mxu0 %v1435
    %1464 = vmatprep.subr.mxu0 0.0
    %1465 = vmatpush1.msra.mxu0 %v1436
    %1466 = vmatprep.subr.mxu0 0.0
    %1467 = vmatpush1.msra.mxu0 %v1437
    %1468 = vmatprep.subr.mxu0 0.0
    %1469 = vmatpush1.msra.mxu0 %v1438
    %1470 = vmatprep.subr.mxu0 0.0
    %1471 = vmatpush1.msra.mxu0 %v1439
    %1472 = vmatprep.subr.mxu0 0.0
    %1473 = vmatpush1.msra.mxu0 0.0
    %1474 = vmatprep.subr.mxu0 0.0
    %1475 = vmatpush1.msra.mxu0 0.0
    %1476 = vmatprep.subr.mxu0 0.0
    %1477 = vmatpush1.msra.mxu0 0.0
    %1478 = vmatprep.subr.mxu0 0.0
    %1479 = vmatpush1.msra.mxu0 0.0
    %1480 = vmatprep.subr.mxu0 0.0
    %1481 = vmatpush1.msra.mxu0 0.0
    %1482 = vmatprep.subr.mxu0 0.0
    %1483 = vmatpush1.msra.mxu0 0.0
    %1484 = vmatprep.subr.mxu0 0.0
    %1485 = vmatpush1.msra.mxu0 0.0
    %1486 = vmatprep.subr.mxu0 0.0
    %1487 = vmatpush1.msra.mxu0 0.0
    %1488 = vmatprep.subr.mxu0 0.0
    %1489 = vmatpush1.msra.mxu0 0.0
    %1490 = vmatprep.subr.mxu0 0.0
    %1491 = vmatpush1.msra.mxu0 0.0
    %1492 = vmatprep.subr.mxu0 0.0
    %1493 = vmatpush1.msra.mxu0 0.0
    %1494 = vmatprep.subr.mxu0 0.0
    %1495 = vmatpush1.msra.mxu0 0.0
    %1496 = vmatprep.subr.mxu0 0.0
    %1497 = vmatpush1.msra.mxu0 0.0
    %1498 = vmatprep.subr.mxu0 0.0
    %1499 = vmatpush1.msra.mxu0 0.0
    %1500 = vmatprep.subr.mxu0 0.0
    %1501 = vmatpush1.msra.mxu0 0.0
    %1502 = vmatprep.subr.mxu0 0.0
    %1503 = vmatpush1.msra.mxu0 0.0
    %1504 = vmatprep.mubr.f32.mxu0 0.0
    %1505 = vmatmul.mubr.f32.gmra.mrb[0].mxu0 %v1420
    %v1506 = vpop.f32.mrb[0].mxu0
    %v1507 = vadd.f32 0.0, %v1506
    %v1508 = vpop.f32.mrb[0].mxu0
    %1509 = vmatprep.mubr.f32.mxu0 0.0
    %1510 = vmatmul.mubr.f32.gmra.mrb[0].mxu0 %v1421
    %v1511 = vpop.f32.mrb[0].mxu0
    %v1512 = vadd.f32 0.0, %v1511
    %v1513 = vpop.f32.mrb[0].mxu0
    %1514 = vmatprep.mubr.f32.mxu0 0.0
    %1515 = vmatmul.mubr.f32.gmra.mrb[0].mxu0 %v1422
    %v1516 = vpop.f32.mrb[0].mxu0
    %v1517 = vadd.f32 0.0, %v1516
    %v1518 = vpop.f32.mrb[0].mxu0
    %1519 = vdwg.mxu0
    %1520 = vmatprep.subr.mxu0 0.0
    %1521 = vmatpush1.msra.mxu0 %v1404
    %1522 = vmatprep.subr.mxu0 0.0
    %1523 = vmatpush1.msra.mxu0 %v1405
    %1524 = vmatprep.subr.mxu0 0.0
    %1525 = vmatpush1.msra.mxu0 %v1406
    %1526 = vmatprep.subr.mxu0 0.0
    %1527 = vmatpush1.msra.mxu0 %v1407
    %1528 = vmatprep.subr.mxu0 0.0
    %1529 = vmatpush1.msra.mxu0 %v1408
    %1530 = vmatprep.subr.mxu0 0.0
    %1531 = vmatpush1.msra.mxu0 %v1409
    %1532 = vmatprep.subr.mxu0 0.0
    %1533 = vmatpush1.msra.mxu0 %v1410
    %1534 = vmatprep.subr.mxu0 0.0
    %1535 = vmatpush1.msra.mxu0 %v1411
    %1536 = vmatprep.subr.mxu0 0.0
    %1537 = vmatpush1.msra.mxu0 %v1412
    %1538 = vmatprep.subr.mxu0 0.0
    %1539 = vmatpush1.msra.mxu0 %v1413
    %1540 = vmatprep.subr.mxu0 0.0
    %1541 = vmatpush1.msra.mxu0 %v1414
    %1542 = vmatprep.subr.mxu0 0.0
    %1543 = vmatpush1.msra.mxu0 %v1415
    %1544 = vmatprep.subr.mxu0 0.0
    %1545 = vmatpush1.msra.mxu0 %v1416
    %1546 = vmatprep.subr.mxu0 0.0
    %1547 = vmatpush1.msra.mxu0 %v1417
    %1548 = vmatprep.subr.mxu0 0.0
    %1549 = vmatpush1.msra.mxu0 %v1418
    %1550 = vmatprep.subr.mxu0 0.0
    %1551 = vmatpush1.msra.mxu0 %v1419
    %1552 = vmatprep.subr.mxu0 0.0
    %1553 = vmatpush1.msra.mxu0 0.0
    %1554 = vmatprep.subr.mxu0 0.0
    %1555 = vmatpush1.msra.mxu0 0.0
    %1556 = vmatprep.subr.mxu0 0.0
    %1557 = vmatpush1.msra.mxu0 0.0
    %1558 = vmatprep.subr.mxu0 0.0
    %1559 = vmatpush1.msra.mxu0 0.0
    %1560 = vmatprep.subr.mxu0 0.0
    %1561 = vmatpush1.msra.mxu0 0.0
    %1562 = vmatprep.subr.mxu0 0.0
    %1563 = vmatpush1.msra.mxu0 0.0
    %1564 = vmatprep.subr.mxu0 0.0
    %1565 = vmatpush1.msra.mxu0 0.0
    %1566 = vmatprep.subr.mxu0 0.0
    %1567 = vmatpush1.msra.mxu0 0.0
    %1568 = vmatprep.subr.mxu0 0.0
    %1569 = vmatpush1.msra.mxu0 0.0
    %1570 = vmatprep.subr.mxu0 0.0
    %1571 = vmatpush1.msra.mxu0 0.0
    %1572 = vmatprep.subr.mxu0 0.0
    %1573 = vmatpush1.msra.mxu0 0.0
    %1574 = vmatprep.subr.mxu0 0.0
    %1575 = vmatpush1.msra.mxu0 0.0
    %1576 = vmatprep.subr.mxu0 0.0
    %1577 = vmatpush1.msra.mxu0 0.0
    %1578 = vmatprep.subr.mxu0 0.0
    %1579 = vmatpush1.msra.mxu0 0.0
    %1580 = vmatprep.subr.mxu0 0.0
    %1581 = vmatpush1.msra.mxu0 0.0
    %1582 = vmatprep.subr.mxu0 0.0
    %1583 = vmatpush1.msra.mxu0 0.0
    %1584 = vmatprep.mubr.f32.mxu0 0.0
    %1585 = vmatmul.mubr.f32.gmra.mrb[0].mxu0 %v1401
    %v1586 = vpop.f32.mrb[0].mxu0
    %v1587 = vadd.f32 %v1507, %v1586
    %v1588 = vpop.f32.mrb[0].mxu0
    %1589 = vmatprep.mubr.f32.mxu0 0.0
    %1590 = vmatmul.mubr.f32.gmra.mrb[0].mxu0 %v1402
    %v1591 = vpop.f32.mrb[0].mxu0
    %v1592 = vadd.f32 %v1512, %v1591
    %v1593 = vpop.f32.mrb[0].mxu0
    %1594 = vmatprep.mubr.f32.mxu0 0.0
    %1595 = vmatmul.mubr.f32.gmra.mrb[0].mxu0 %v1403
    %v1596 = vpop.f32.mrb[0].mxu0
    %v1597 = vadd.f32 %v1517, %v1596
    %v1598 = vpop.f32.mrb[0].mxu0
    %1599 = vdwg.mxu0
    %v1600 = vld [vmem:[%s0 + $0x4] sm:$0xff]
    %v1601 = vld [vmem:[%s0 + $0xc] sm:$0xff]
    %v1602 = vld [vmem:[%s0 + $0x14] sm:$0x1]
    %s1603 = scalar_lea.vmem [#allocation10], 256
    %v1604 = vld [vmem:[%s1603] sm:$0xff]
    %v1605 = vld [vmem:[%s1603 + $0x8] sm:$0xff]
    %v1606 = vld [vmem:[%s1603 + $0x10] sm:$0xff]
    %v1607 = vld [vmem:[%s1603 + $0x18] sm:$0xff]
    %v1608 = vld [vmem:[%s1603 + $0x20] sm:$0xff]
    %v1609 = vld [vmem:[%s1603 + $0x28] sm:$0xff]
    %v1610 = vld [vmem:[%s1603 + $0x30] sm:$0xff]
    %v1611 = vld [vmem:[%s1603 + $0x38] sm:$0xff]
    %v1612 = vld [vmem:[%s1603 + $0x40] sm:$0xff]
    %v1613 = vld [vmem:[%s1603 + $0x48] sm:$0xff]
    %v1614 = vld [vmem:[%s1603 + $0x50] sm:$0xff]
    %v1615 = vld [vmem:[%s1603 + $0x58] sm:$0xff]
    %v1616 = vld [vmem:[%s1603 + $0x60] sm:$0xff]
    %v1617 = vld [vmem:[%s1603 + $0x68] sm:$0xff]
    %v1618 = vld [vmem:[%s1603 + $0x70] sm:$0xff]
    %v1619 = vld [vmem:[%s1603 + $0x78] sm:$0xff]
    %1620 = vmatprep.subr.mxu0 0.0
    %1621 = vmatpush1.msra.mxu0 %v1604
    %1622 = vmatprep.subr.mxu0 0.0
    %1623 = vmatpush1.msra.mxu0 %v1605
    %1624 = vmatprep.subr.mxu0 0.0
    %1625 = vmatpush1.msra.mxu0 %v1606
    %1626 = vmatprep.subr.mxu0 0.0
    %1627 = vmatpush1.msra.mxu0 %v1607
    %1628 = vmatprep.subr.mxu0 0.0
    %1629 = vmatpush1.msra.mxu0 %v1608
    %1630 = vmatprep.subr.mxu0 0.0
    %1631 = vmatpush1.msra.mxu0 %v1609
    %1632 = vmatprep.subr.mxu0 0.0
    %1633 = vmatpush1.msra.mxu0 %v1610
    %1634 = vmatprep.subr.mxu0 0.0
    %1635 = vmatpush1.msra.mxu0 %v1611
    %1636 = vmatprep.subr.mxu0 0.0
    %1637 = vmatpush1.msra.mxu0 %v1612
    %1638 = vmatprep.subr.mxu0 0.0
    %1639 = vmatpush1.msra.mxu0 %v1613
    %1640 = vmatprep.subr.mxu0 0.0
    %1641 = vmatpush1.msra.mxu0 %v1614
    %1642 = vmatprep.subr.mxu0 0.0
    %1643 = vmatpush1.msra.mxu0 %v1615
    %1644 = vmatprep.subr.mxu0 0.0
    %1645 = vmatpush1.msra.mxu0 %v1616
    %1646 = vmatprep.subr.mxu0 0.0
    %1647 = vmatpush1.msra.mxu0 %v1617
    %1648 = vmatprep.subr.mxu0 0.0
    %1649 = vmatpush1.msra.mxu0 %v1618
    %1650 = vmatprep.subr.mxu0 0.0
    %1651 = vmatpush1.msra.mxu0 %v1619
    %1652 = vmatprep.subr.mxu0 0.0
    %1653 = vmatpush1.msra.mxu0 0.0
    %1654 = vmatprep.subr.mxu0 0.0
    %1655 = vmatpush1.msra.mxu0 0.0
    %1656 = vmatprep.subr.mxu0 0.0
    %1657 = vmatpush1.msra.mxu0 0.0
    %1658 = vmatprep.subr.mxu0 0.0
    %1659 = vmatpush1.msra.mxu0 0.0
    %1660 = vmatprep.subr.mxu0 0.0
    %1661 = vmatpush1.msra.mxu0 0.0
    %1662 = vmatprep.subr.mxu0 0.0
    %1663 = vmatpush1.msra.mxu0 0.0
    %1664 = vmatprep.subr.mxu0 0.0
    %1665 = vmatpush1.msra.mxu0 0.0
    %1666 = vmatprep.subr.mxu0 0.0
    %1667 = vmatpush1.msra.mxu0 0.0
    %1668 = vmatprep.subr.mxu0 0.0
    %1669 = vmatpush1.msra.mxu0 0.0
    %1670 = vmatprep.subr.mxu0 0.0
    %1671 = vmatpush1.msra.mxu0 0.0
    %1672 = vmatprep.subr.mxu0 0.0
    %1673 = vmatpush1.msra.mxu0 0.0
    %1674 = vmatprep.subr.mxu0 0.0
    %1675 = vmatpush1.msra.mxu0 0.0
    %1676 = vmatprep.subr.mxu0 0.0
    %1677 = vmatpush1.msra.mxu0 0.0
    %1678 = vmatprep.subr.mxu0 0.0
    %1679 = vmatpush1.msra.mxu0 0.0
    %1680 = vmatprep.subr.mxu0 0.0
    %1681 = vmatpush1.msra.mxu0 0.0
    %1682 = vmatprep.subr.mxu0 0.0
    %1683 = vmatpush1.msra.mxu0 0.0
    %1684 = vmatprep.mubr.f32.mxu0 0.0
    %1685 = vmatmul.mubr.f32.gmra.mrb[0].mxu0 %v1600
    %v1686 = vpop.f32.mrb[0].mxu0
    %v1687 = vadd.f32 0.0, %v1686
    %v1688 = vpop.f32.mrb[0].mxu0
    %1689 = vmatprep.mubr.f32.mxu0 0.0
    %1690 = vmatmul.mubr.f32.gmra.mrb[0].mxu0 %v1601
    %v1691 = vpop.f32.mrb[0].mxu0
    %v1692 = vadd.f32 0.0, %v1691
    %v1693 = vpop.f32.mrb[0].mxu0
    %1694 = vmatprep.mubr.f32.mxu0 0.0
    %1695 = vmatmul.mubr.f32.gmra.mrb[0].mxu0 %v1602
    %v1696 = vpop.f32.mrb[0].mxu0
    %v1697 = vadd.f32 0.0, %v1696
    %v1698 = vpop.f32.mrb[0].mxu0
    %1699 = vdwg.mxu0
    %v1700 = vadd.f32 %v1587, %v1687
    %v1701 = vadd.f32 %v1592, %v1692
    %v1702 = vadd.f32 %v1597, %v1697
    %v1703 = vld [vmem:[%s0 + $0x5] sm:$0xff]
    %v1704 = vld [vmem:[%s0 + $0xd] sm:$0xff]
    %v1705 = vld [vmem:[%s0 + $0x15] sm:$0x1]
    %s1706 = scalar_lea.vmem [#allocation10], 384
    %v1707 = vld [vmem:[%s1706] sm:$0xff]
    %v1708 = vld [vmem:[%s1706 + $0x8] sm:$0xff]
    %v1709 = vld [vmem:[%s1706 + $0x10] sm:$0xff]
    %v1710 = vld [vmem:[%s1706 + $0x18] sm:$0xff]
    %v1711 = vld [vmem:[%s1706 + $0x20] sm:$0xff]
    %v1712 = vld [vmem:[%s1706 + $0x28] sm:$0xff]
    %v1713 = vld [vmem:[%s1706 + $0x30] sm:$0xff]
    %v1714 = vld [vmem:[%s1706 + $0x38] sm:$0xff]
    %v1715 = vld [vmem:[%s1706 + $0x40] sm:$0xff]
    %v1716 = vld [vmem:[%s1706 + $0x48] sm:$0xff]
    %v1717 = vld [vmem:[%s1706 + $0x50] sm:$0xff]
    %v1718 = vld [vmem:[%s1706 + $0x58] sm:$0xff]
    %v1719 = vld [vmem:[%s1706 + $0x60] sm:$0xff]
    %v1720 = vld [vmem:[%s1706 + $0x68] sm:$0xff]
    %v1721 = vld [vmem:[%s1706 + $0x70] sm:$0xff]
    %v1722 = vld [vmem:[%s1706 + $0x78] sm:$0xff]
    %1723 = vmatprep.subr.mxu0 0.0
    %1724 = vmatpush1.msra.mxu0 %v1707
    %1725 = vmatprep.subr.mxu0 0.0
    %1726 = vmatpush1.msra.mxu0 %v1708
    %1727 = vmatprep.subr.mxu0 0.0
    %1728 = vmatpush1.msra.mxu0 %v1709
    %1729 = vmatprep.subr.mxu0 0.0
    %1730 = vmatpush1.msra.mxu0 %v1710
    %1731 = vmatprep.subr.mxu0 0.0
    %1732 = vmatpush1.msra.mxu0 %v1711
    %1733 = vmatprep.subr.mxu0 0.0
    %1734 = vmatpush1.msra.mxu0 %v1712
    %1735 = vmatprep.subr.mxu0 0.0
    %1736 = vmatpush1.msra.mxu0 %v1713
    %1737 = vmatprep.subr.mxu0 0.0
    %1738 = vmatpush1.msra.mxu0 %v1714
    %1739 = vmatprep.subr.mxu0 0.0
    %1740 = vmatpush1.msra.mxu0 %v1715
    %1741 = vmatprep.subr.mxu0 0.0
    %1742 = vmatpush1.msra.mxu0 %v1716
    %1743 = vmatprep.subr.mxu0 0.0
    %1744 = vmatpush1.msra.mxu0 %v1717
    %1745 = vmatprep.subr.mxu0 0.0
    %1746 = vmatpush1.msra.mxu0 %v1718
    %1747 = vmatprep.subr.mxu0 0.0
    %1748 = vmatpush1.msra.mxu0 %v1719
    %1749 = vmatprep.subr.mxu0 0.0
    %1750 = vmatpush1.msra.mxu0 %v1720
    %1751 = vmatprep.subr.mxu0 0.0
    %1752 = vmatpush1.msra.mxu0 %v1721
    %1753 = vmatprep.subr.mxu0 0.0
    %1754 = vmatpush1.msra.mxu0 %v1722
    %1755 = vmatprep.subr.mxu0 0.0
    %1756 = vmatpush1.msra.mxu0 0.0
    %1757 = vmatprep.subr.mxu0 0.0
    %1758 = vmatpush1.msra.mxu0 0.0
    %1759 = vmatprep.subr.mxu0 0.0
    %1760 = vmatpush1.msra.mxu0 0.0
    %1761 = vmatprep.subr.mxu0 0.0
    %1762 = vmatpush1.msra.mxu0 0.0
    %1763 = vmatprep.subr.mxu0 0.0
    %1764 = vmatpush1.msra.mxu0 0.0
    %1765 = vmatprep.subr.mxu0 0.0
    %1766 = vmatpush1.msra.mxu0 0.0
    %1767 = vmatprep.subr.mxu0 0.0
    %1768 = vmatpush1.msra.mxu0 0.0
    %1769 = vmatprep.subr.mxu0 0.0
    %1770 = vmatpush1.msra.mxu0 0.0
    %1771 = vmatprep.subr.mxu0 0.0
    %1772 = vmatpush1.msra.mxu0 0.0
    %1773 = vmatprep.subr.mxu0 0.0
    %1774 = vmatpush1.msra.mxu0 0.0
    %1775 = vmatprep.subr.mxu0 0.0
    %1776 = vmatpush1.msra.mxu0 0.0
    %1777 = vmatprep.subr.mxu0 0.0
    %1778 = vmatpush1.msra.mxu0 0.0
    %1779 = vmatprep.subr.mxu0 0.0
    %1780 = vmatpush1.msra.mxu0 0.0
    %1781 = vmatprep.subr.mxu0 0.0
    %1782 = vmatpush1.msra.mxu0 0.0
    %1783 = vmatprep.subr.mxu0 0.0
    %1784 = vmatpush1.msra.mxu0 0.0
    %1785 = vmatprep.subr.mxu0 0.0
    %1786 = vmatpush1.msra.mxu0 0.0
    %1787 = vmatprep.mubr.f32.mxu0 0.0
    %1788 = vmatmul.mubr.f32.gmra.mrb[0].mxu0 %v1703
    %v1789 = vpop.f32.mrb[0].mxu0
    %v1790 = vadd.f32 0.0, %v1789
    %v1791 = vpop.f32.mrb[0].mxu0
    %1792 = vmatprep.mubr.f32.mxu0 0.0
    %1793 = vmatmul.mubr.f32.gmra.mrb[0].mxu0 %v1704
    %v1794 = vpop.f32.mrb[0].mxu0
    %v1795 = vadd.f32 0.0, %v1794
    %v1796 = vpop.f32.mrb[0].mxu0
    %1797 = vmatprep.mubr.f32.mxu0 0.0
    %1798 = vmatmul.mubr.f32.gmra.mrb[0].mxu0 %v1705
    %v1799 = vpop.f32.mrb[0].mxu0
    %v1800 = vadd.f32 0.0, %v1799
    %v1801 = vpop.f32.mrb[0].mxu0
    %1802 = vdwg.mxu0
    %v1803 = vadd.f32 %v1700, %v1790
    %v1804 = vadd.f32 %v1701, %v1795
    %v1805 = vadd.f32 %v1702, %v1800
    %v1806 = vld [vmem:[%s0 + $0x6] sm:$0xff]
    %v1807 = vld [vmem:[%s0 + $0xe] sm:$0xff]
    %v1808 = vld [vmem:[%s0 + $0x16] sm:$0x1]
    %s1809 = scalar_lea.vmem [#allocation10], 512
    %v1810 = vld [vmem:[%s1809] sm:$0xff]
    %v1811 = vld [vmem:[%s1809 + $0x8] sm:$0xff]
    %v1812 = vld [vmem:[%s1809 + $0x10] sm:$0xff]
    %v1813 = vld [vmem:[%s1809 + $0x18] sm:$0xff]
    %v1814 = vld [vmem:[%s1809 + $0x20] sm:$0xff]
    %v1815 = vld [vmem:[%s1809 + $0x28] sm:$0xff]
    %v1816 = vld [vmem:[%s1809 + $0x30] sm:$0xff]
    %v1817 = vld [vmem:[%s1809 + $0x38] sm:$0xff]
    %v1818 = vld [vmem:[%s1809 + $0x40] sm:$0xff]
    %v1819 = vld [vmem:[%s1809 + $0x48] sm:$0xff]
    %v1820 = vld [vmem:[%s1809 + $0x50] sm:$0xff]
    %v1821 = vld [vmem:[%s1809 + $0x58] sm:$0xff]
    %v1822 = vld [vmem:[%s1809 + $0x60] sm:$0xff]
    %v1823 = vld [vmem:[%s1809 + $0x68] sm:$0xff]
    %v1824 = vld [vmem:[%s1809 + $0x70] sm:$0xff]
    %v1825 = vld [vmem:[%s1809 + $0x78] sm:$0xff]
    %1826 = vmatprep.subr.mxu0 0.0
    %1827 = vmatpush1.msra.mxu0 %v1810
    %1828 = vmatprep.subr.mxu0 0.0
    %1829 = vmatpush1.msra.mxu0 %v1811
    %1830 = vmatprep.subr.mxu0 0.0
    %1831 = vmatpush1.msra.mxu0 %v1812
    %1832 = vmatprep.subr.mxu0 0.0
    %1833 = vmatpush1.msra.mxu0 %v1813
    %1834 = vmatprep.subr.mxu0 0.0
    %1835 = vmatpush1.msra.mxu0 %v1814
    %1836 = vmatprep.subr.mxu0 0.0
    %1837 = vmatpush1.msra.mxu0 %v1815
    %1838 = vmatprep.subr.mxu0 0.0
    %1839 = vmatpush1.msra.mxu0 %v1816
    %1840 = vmatprep.subr.mxu0 0.0
    %1841 = vmatpush1.msra.mxu0 %v1817
    %1842 = vmatprep.subr.mxu0 0.0
    %1843 = vmatpush1.msra.mxu0 %v1818
    %1844 = vmatprep.subr.mxu0 0.0
    %1845 = vmatpush1.msra.mxu0 %v1819
    %1846 = vmatprep.subr.mxu0 0.0
    %1847 = vmatpush1.msra.mxu0 %v1820
    %1848 = vmatprep.subr.mxu0 0.0
    %1849 = vmatpush1.msra.mxu0 %v1821
    %1850 = vmatprep.subr.mxu0 0.0
    %1851 = vmatpush1.msra.mxu0 %v1822
    %1852 = vmatprep.subr.mxu0 0.0
    %1853 = vmatpush1.msra.mxu0 %v1823
    %1854 = vmatprep.subr.mxu0 0.0
    %1855 = vmatpush1.msra.mxu0 %v1824
    %1856 = vmatprep.subr.mxu0 0.0
    %1857 = vmatpush1.msra.mxu0 %v1825
    %1858 = vmatprep.subr.mxu0 0.0
    %1859 = vmatpush1.msra.mxu0 0.0
    %1860 = vmatprep.subr.mxu0 0.0
    %1861 = vmatpush1.msra.mxu0 0.0
    %1862 = vmatprep.subr.mxu0 0.0
    %1863 = vmatpush1.msra.mxu0 0.0
    %1864 = vmatprep.subr.mxu0 0.0
    %1865 = vmatpush1.msra.mxu0 0.0
    %1866 = vmatprep.subr.mxu0 0.0
    %1867 = vmatpush1.msra.mxu0 0.0
    %1868 = vmatprep.subr.mxu0 0.0
    %1869 = vmatpush1.msra.mxu0 0.0
    %1870 = vmatprep.subr.mxu0 0.0
    %1871 = vmatpush1.msra.mxu0 0.0
    %1872 = vmatprep.subr.mxu0 0.0
    %1873 = vmatpush1.msra.mxu0 0.0
    %1874 = vmatprep.subr.mxu0 0.0
    %1875 = vmatpush1.msra.mxu0 0.0
    %1876 = vmatprep.subr.mxu0 0.0
    %1877 = vmatpush1.msra.mxu0 0.0
    %1878 = vmatprep.subr.mxu0 0.0
    %1879 = vmatpush1.msra.mxu0 0.0
    %1880 = vmatprep.subr.mxu0 0.0
    %1881 = vmatpush1.msra.mxu0 0.0
    %1882 = vmatprep.subr.mxu0 0.0
    %1883 = vmatpush1.msra.mxu0 0.0
    %1884 = vmatprep.subr.mxu0 0.0
    %1885 = vmatpush1.msra.mxu0 0.0
    %1886 = vmatprep.subr.mxu0 0.0
    %1887 = vmatpush1.msra.mxu0 0.0
    %1888 = vmatprep.subr.mxu0 0.0
    %1889 = vmatpush1.msra.mxu0 0.0
    %1890 = vmatprep.mubr.f32.mxu0 0.0
    %1891 = vmatmul.mubr.f32.gmra.mrb[0].mxu0 %v1806
    %v1892 = vpop.f32.mrb[0].mxu0
    %v1893 = vadd.f32 0.0, %v1892
    %v1894 = vpop.f32.mrb[0].mxu0
    %1895 = vmatprep.mubr.f32.mxu0 0.0
    %1896 = vmatmul.mubr.f32.gmra.mrb[0].mxu0 %v1807
    %v1897 = vpop.f32.mrb[0].mxu0
    %v1898 = vadd.f32 0.0, %v1897
    %v1899 = vpop.f32.mrb[0].mxu0
    %1900 = vmatprep.mubr.f32.mxu0 0.0
    %1901 = vmatmul.mubr.f32.gmra.mrb[0].mxu0 %v1808
    %v1902 = vpop.f32.mrb[0].mxu0
    %v1903 = vadd.f32 0.0, %v1902
    %v1904 = vpop.f32.mrb[0].mxu0
    %1905 = vdwg.mxu0
    %v1906 = vadd.f32 %v1803, %v1893
    %v1907 = vadd.f32 %v1804, %v1898
    %v1908 = vadd.f32 %v1805, %v1903
    %s1909 = scalar_lea.vmem %s9, 4
    %v1910 = vld [vmem:[%s1909] sm:$0x1]
    %v1912 = vlaneseq
    %v1913 = vshrl.u32 %v1912, 7
    %v1914 = vsub.s32 0, %v1913
    %v1915 = vrot.slane %v1910, %v1914
    %v1917 = vadd.f32 %v1906, %v1915
    %v1918 = vadd.f32 %v1907, %v1915
    %v1919 = vadd.f32 %v1908, %v1915
    %v1920 = vmax.f32 %v1917, 0.0
    %v1921 = vmax.f32 %v1918, 0.0
    %v1922 = vmax.f32 %v1919, 0.0
    %s1923 = scalar_lea.vmem %s10, 4
    %v1924 = vld [vmem:[%s1923] sm:$0x1]
    %v1926 = vlaneseq
    %v1927 = vshrl.u32 %v1926, 7
    %v1928 = vsub.s32 0, %v1927
    %v1929 = vrot.slane %v1924, %v1928
    %v1931 = vmul.f32 %v1920, %v1929
    %v1932 = vmul.f32 %v1921, %v1929
    %v1933 = vmul.f32 %v1922, %v1929
    %s1934 = scalar_lea.vmem %s11, 4
    %v1935 = vld [vmem:[%s1934] sm:$0x1]
    %v1937 = vlaneseq
    %v1938 = vshrl.u32 %v1937, 7
    %v1939 = vsub.s32 0, %v1938
    %v1940 = vrot.slane %v1935, %v1939
    %v1942 = vadd.f32 %v1931, %v1940
    %v1943 = vadd.f32 %v1932, %v1940
    %v1944 = vadd.f32 %v1933, %v1940
    %v1945 = vsel %vm283, -inf, %v1942
    %v1946 = vsel %vm284, -inf, %v1943
    %v1949 = vrot.slane %v1945, 7
    %v1950 = vrot.slane %v1946, 7
    %v1951 = vsel %vm289, %v1949, %v1950
    %v1955 = vmax.f32 %v1942, %v1949
    %v1956 = vmax.f32 %v1943, %v1951
    %v1957 = vmax.f32 %v1944, %v1950
    %v1961 = vrot.slane %v1955, 1
    %v1962 = vrot.slane %v1956, 1
    %v1963 = vsel %vm302, %v1961, %v1962
    %v1964 = vrot.slane %v1957, 1
    %v1965 = vsel %vm302, %v1962, %v1964
    %1968 = vst [vmem:[#allocation16 + $0x20] sm:$0xff] %v1963
    %1969 = vst [vmem:[#allocation16 + $0x60] sm:$0xff] %v1965
    %v1970 = vld [vmem:[%s0 + $0x1] sm:$0xff]
    %v1971 = vld [vmem:[%s0 + $0x9] sm:$0xff]
    %v1972 = vld [vmem:[%s0 + $0x11] sm:$0x1]
    %v1973 = vld [vmem:[#allocation11] sm:$0xff]
    %v1974 = vld [vmem:[#allocation11 + $0x8] sm:$0xff]
    %v1975 = vld [vmem:[#allocation11 + $0x10] sm:$0xff]
    %v1976 = vld [vmem:[#allocation11 + $0x18] sm:$0xff]
    %v1977 = vld [vmem:[#allocation11 + $0x20] sm:$0xff]
    %v1978 = vld [vmem:[#allocation11 + $0x28] sm:$0xff]
    %v1979 = vld [vmem:[#allocation11 + $0x30] sm:$0xff]
    %v1980 = vld [vmem:[#allocation11 + $0x38] sm:$0xff]
    %v1981 = vld [vmem:[#allocation11 + $0x40] sm:$0xff]
    %v1982 = vld [vmem:[#allocation11 + $0x48] sm:$0xff]
    %v1983 = vld [vmem:[#allocation11 + $0x50] sm:$0xff]
    %v1984 = vld [vmem:[#allocation11 + $0x58] sm:$0xff]
    %v1985 = vld [vmem:[#allocation11 + $0x60] sm:$0xff]
    %v1986 = vld [vmem:[#allocation11 + $0x68] sm:$0xff]
    %v1987 = vld [vmem:[#allocation11 + $0x70] sm:$0xff]
    %v1988 = vld [vmem:[#allocation11 + $0x78] sm:$0xff]
    %v1989 = vld [vmem:[%s0 + $0x2] sm:$0xff]
    %v1990 = vld [vmem:[%s0 + $0xa] sm:$0xff]
    %v1991 = vld [vmem:[%s0 + $0x12] sm:$0x1]
    %s1992 = scalar_lea.vmem [#allocation11], 128
    %v1993 = vld [vmem:[%s1992] sm:$0xff]
    %v1994 = vld [vmem:[%s1992 + $0x8] sm:$0xff]
    %v1995 = vld [vmem:[%s1992 + $0x10] sm:$0xff]
    %v1996 = vld [vmem:[%s1992 + $0x18] sm:$0xff]
    %v1997 = vld [vmem:[%s1992 + $0x20] sm:$0xff]
    %v1998 = vld [vmem:[%s1992 + $0x28] sm:$0xff]
    %v1999 = vld [vmem:[%s1992 + $0x30] sm:$0xff]
    %v2000 = vld [vmem:[%s1992 + $0x38] sm:$0xff]
    %v2001 = vld [vmem:[%s1992 + $0x40] sm:$0xff]
    %v2002 = vld [vmem:[%s1992 + $0x48] sm:$0xff]
    %v2003 = vld [vmem:[%s1992 + $0x50] sm:$0xff]
    %v2004 = vld [vmem:[%s1992 + $0x58] sm:$0xff]
    %v2005 = vld [vmem:[%s1992 + $0x60] sm:$0xff]
    %v2006 = vld [vmem:[%s1992 + $0x68] sm:$0xff]
    %v2007 = vld [vmem:[%s1992 + $0x70] sm:$0xff]
    %v2008 = vld [vmem:[%s1992 + $0x78] sm:$0xff]
    %2009 = vmatprep.subr.mxu0 0.0
    %2010 = vmatpush1.msra.mxu0 %v1993
    %2011 = vmatprep.subr.mxu0 0.0
    %2012 = vmatpush1.msra.mxu0 %v1994
    %2013 = vmatprep.subr.mxu0 0.0
    %2014 = vmatpush1.msra.mxu0 %v1995
    %2015 = vmatprep.subr.mxu0 0.0
    %2016 = vmatpush1.msra.mxu0 %v1996
    %2017 = vmatprep.subr.mxu0 0.0
    %2018 = vmatpush1.msra.mxu0 %v1997
    %2019 = vmatprep.subr.mxu0 0.0
    %2020 = vmatpush1.msra.mxu0 %v1998
    %2021 = vmatprep.subr.mxu0 0.0
    %2022 = vmatpush1.msra.mxu0 %v1999
    %2023 = vmatprep.subr.mxu0 0.0
    %2024 = vmatpush1.msra.mxu0 %v2000
    %2025 = vmatprep.subr.mxu0 0.0
    %2026 = vmatpush1.msra.mxu0 %v2001
    %2027 = vmatprep.subr.mxu0 0.0
    %2028 = vmatpush1.msra.mxu0 %v2002
    %2029 = vmatprep.subr.mxu0 0.0
    %2030 = vmatpush1.msra.mxu0 %v2003
    %2031 = vmatprep.subr.mxu0 0.0
    %2032 = vmatpush1.msra.mxu0 %v2004
    %2033 = vmatprep.subr.mxu0 0.0
    %2034 = vmatpush1.msra.mxu0 %v2005
    %2035 = vmatprep.subr.mxu0 0.0
    %2036 = vmatpush1.msra.mxu0 %v2006
    %2037 = vmatprep.subr.mxu0 0.0
    %2038 = vmatpush1.msra.mxu0 %v2007
    %2039 = vmatprep.subr.mxu0 0.0
    %2040 = vmatpush1.msra.mxu0 %v2008
    %2041 = vmatprep.subr.mxu0 0.0
    %2042 = vmatpush1.msra.mxu0 0.0
    %2043 = vmatprep.subr.mxu0 0.0
    %2044 = vmatpush1.msra.mxu0 0.0
    %2045 = vmatprep.subr.mxu0 0.0
    %2046 = vmatpush1.msra.mxu0 0.0
    %2047 = vmatprep.subr.mxu0 0.0
    %2048 = vmatpush1.msra.mxu0 0.0
    %2049 = vmatprep.subr.mxu0 0.0
    %2050 = vmatpush1.msra.mxu0 0.0
    %2051 = vmatprep.subr.mxu0 0.0
    %2052 = vmatpush1.msra.mxu0 0.0
    %2053 = vmatprep.subr.mxu0 0.0
    %2054 = vmatpush1.msra.mxu0 0.0
    %2055 = vmatprep.subr.mxu0 0.0
    %2056 = vmatpush1.msra.mxu0 0.0
    %2057 = vmatprep.subr.mxu0 0.0
    %2058 = vmatpush1.msra.mxu0 0.0
    %2059 = vmatprep.subr.mxu0 0.0
    %2060 = vmatpush1.msra.mxu0 0.0
    %2061 = vmatprep.subr.mxu0 0.0
    %2062 = vmatpush1.msra.mxu0 0.0
    %2063 = vmatprep.subr.mxu0 0.0
    %2064 = vmatpush1.msra.mxu0 0.0
    %2065 = vmatprep.subr.mxu0 0.0
    %2066 = vmatpush1.msra.mxu0 0.0
    %2067 = vmatprep.subr.mxu0 0.0
    %2068 = vmatpush1.msra.mxu0 0.0
    %2069 = vmatprep.subr.mxu0 0.0
    %2070 = vmatpush1.msra.mxu0 0.0
    %2071 = vmatprep.subr.mxu0 0.0
    %2072 = vmatpush1.msra.mxu0 0.0
    %2073 = vmatprep.mubr.f32.mxu0 0.0
    %2074 = vmatmul.mubr.f32.gmra.mrb[0].mxu0 %v1989
    %v2075 = vpop.f32.mrb[0].mxu0
    %v2076 = vadd.f32 0.0, %v2075
    %v2077 = vpop.f32.mrb[0].mxu0
    %2078 = vmatprep.mubr.f32.mxu0 0.0
    %2079 = vmatmul.mubr.f32.gmra.mrb[0].mxu0 %v1990
    %v2080 = vpop.f32.mrb[0].mxu0
    %v2081 = vadd.f32 0.0, %v2080
    %v2082 = vpop.f32.mrb[0].mxu0
    %2083 = vmatprep.mubr.f32.mxu0 0.0
    %2084 = vmatmul.mubr.f32.gmra.mrb[0].mxu0 %v1991
    %v2085 = vpop.f32.mrb[0].mxu0
    %v2086 = vadd.f32 0.0, %v2085
    %v2087 = vpop.f32.mrb[0].mxu0
    %2088 = vdwg.mxu0
    %2089 = vmatprep.subr.mxu0 0.0
    %2090 = vmatpush1.msra.mxu0 %v1973
    %2091 = vmatprep.subr.mxu0 0.0
    %2092 = vmatpush1.msra.mxu0 %v1974
    %2093 = vmatprep.subr.mxu0 0.0
    %2094 = vmatpush1.msra.mxu0 %v1975
    %2095 = vmatprep.subr.mxu0 0.0
    %2096 = vmatpush1.msra.mxu0 %v1976
    %2097 = vmatprep.subr.mxu0 0.0
    %2098 = vmatpush1.msra.mxu0 %v1977
    %2099 = vmatprep.subr.mxu0 0.0
    %2100 = vmatpush1.msra.mxu0 %v1978
    %2101 = vmatprep.subr.mxu0 0.0
    %2102 = vmatpush1.msra.mxu0 %v1979
    %2103 = vmatprep.subr.mxu0 0.0
    %2104 = vmatpush1.msra.mxu0 %v1980
    %2105 = vmatprep.subr.mxu0 0.0
    %2106 = vmatpush1.msra.mxu0 %v1981
    %2107 = vmatprep.subr.mxu0 0.0
    %2108 = vmatpush1.msra.mxu0 %v1982
    %2109 = vmatprep.subr.mxu0 0.0
    %2110 = vmatpush1.msra.mxu0 %v1983
    %2111 = vmatprep.subr.mxu0 0.0
    %2112 = vmatpush1.msra.mxu0 %v1984
    %2113 = vmatprep.subr.mxu0 0.0
    %2114 = vmatpush1.msra.mxu0 %v1985
    %2115 = vmatprep.subr.mxu0 0.0
    %2116 = vmatpush1.msra.mxu0 %v1986
    %2117 = vmatprep.subr.mxu0 0.0
    %2118 = vmatpush1.msra.mxu0 %v1987
    %2119 = vmatprep.subr.mxu0 0.0
    %2120 = vmatpush1.msra.mxu0 %v1988
    %2121 = vmatprep.subr.mxu0 0.0
    %2122 = vmatpush1.msra.mxu0 0.0
    %2123 = vmatprep.subr.mxu0 0.0
    %2124 = vmatpush1.msra.mxu0 0.0
    %2125 = vmatprep.subr.mxu0 0.0
    %2126 = vmatpush1.msra.mxu0 0.0
    %2127 = vmatprep.subr.mxu0 0.0
    %2128 = vmatpush1.msra.mxu0 0.0
    %2129 = vmatprep.subr.mxu0 0.0
    %2130 = vmatpush1.msra.mxu0 0.0
    %2131 = vmatprep.subr.mxu0 0.0
    %2132 = vmatpush1.msra.mxu0 0.0
    %2133 = vmatprep.subr.mxu0 0.0
    %2134 = vmatpush1.msra.mxu0 0.0
    %2135 = vmatprep.subr.mxu0 0.0
    %2136 = vmatpush1.msra.mxu0 0.0
    %2137 = vmatprep.subr.mxu0 0.0
    %2138 = vmatpush1.msra.mxu0 0.0
    %2139 = vmatprep.subr.mxu0 0.0
    %2140 = vmatpush1.msra.mxu0 0.0
    %2141 = vmatprep.subr.mxu0 0.0
    %2142 = vmatpush1.msra.mxu0 0.0
    %2143 = vmatprep.subr.mxu0 0.0
    %2144 = vmatpush1.msra.mxu0 0.0
    %2145 = vmatprep.subr.mxu0 0.0
    %2146 = vmatpush1.msra.mxu0 0.0
    %2147 = vmatprep.subr.mxu0 0.0
    %2148 = vmatpush1.msra.mxu0 0.0
    %2149 = vmatprep.subr.mxu0 0.0
    %2150 = vmatpush1.msra.mxu0 0.0
    %2151 = vmatprep.subr.mxu0 0.0
    %2152 = vmatpush1.msra.mxu0 0.0
    %2153 = vmatprep.mubr.f32.mxu0 0.0
    %2154 = vmatmul.mubr.f32.gmra.mrb[0].mxu0 %v1970
    %v2155 = vpop.f32.mrb[0].mxu0
    %v2156 = vadd.f32 %v2076, %v2155
    %v2157 = vpop.f32.mrb[0].mxu0
    %2158 = vmatprep.mubr.f32.mxu0 0.0
    %2159 = vmatmul.mubr.f32.gmra.mrb[0].mxu0 %v1971
    %v2160 = vpop.f32.mrb[0].mxu0
    %v2161 = vadd.f32 %v2081, %v2160
    %v2162 = vpop.f32.mrb[0].mxu0
    %2163 = vmatprep.mubr.f32.mxu0 0.0
    %2164 = vmatmul.mubr.f32.gmra.mrb[0].mxu0 %v1972
    %v2165 = vpop.f32.mrb[0].mxu0
    %v2166 = vadd.f32 %v2086, %v2165
    %v2167 = vpop.f32.mrb[0].mxu0
    %2168 = vdwg.mxu0
    %v2169 = vld [vmem:[%s0 + $0x3] sm:$0xff]
    %v2170 = vld [vmem:[%s0 + $0xb] sm:$0xff]
    %v2171 = vld [vmem:[%s0 + $0x13] sm:$0x1]
    %s2172 = scalar_lea.vmem [#allocation11], 256
    %v2173 = vld [vmem:[%s2172] sm:$0xff]
    %v2174 = vld [vmem:[%s2172 + $0x8] sm:$0xff]
    %v2175 = vld [vmem:[%s2172 + $0x10] sm:$0xff]
    %v2176 = vld [vmem:[%s2172 + $0x18] sm:$0xff]
    %v2177 = vld [vmem:[%s2172 + $0x20] sm:$0xff]
    %v2178 = vld [vmem:[%s2172 + $0x28] sm:$0xff]
    %v2179 = vld [vmem:[%s2172 + $0x30] sm:$0xff]
    %v2180 = vld [vmem:[%s2172 + $0x38] sm:$0xff]
    %v2181 = vld [vmem:[%s2172 + $0x40] sm:$0xff]
    %v2182 = vld [vmem:[%s2172 + $0x48] sm:$0xff]
    %v2183 = vld [vmem:[%s2172 + $0x50] sm:$0xff]
    %v2184 = vld [vmem:[%s2172 + $0x58] sm:$0xff]
    %v2185 = vld [vmem:[%s2172 + $0x60] sm:$0xff]
    %v2186 = vld [vmem:[%s2172 + $0x68] sm:$0xff]
    %v2187 = vld [vmem:[%s2172 + $0x70] sm:$0xff]
    %v2188 = vld [vmem:[%s2172 + $0x78] sm:$0xff]
    %2189 = vmatprep.subr.mxu0 0.0
    %2190 = vmatpush1.msra.mxu0 %v2173
    %2191 = vmatprep.subr.mxu0 0.0
    %2192 = vmatpush1.msra.mxu0 %v2174
    %2193 = vmatprep.subr.mxu0 0.0
    %2194 = vmatpush1.msra.mxu0 %v2175
    %2195 = vmatprep.subr.mxu0 0.0
    %2196 = vmatpush1.msra.mxu0 %v2176
    %2197 = vmatprep.subr.mxu0 0.0
    %2198 = vmatpush1.msra.mxu0 %v2177
    %2199 = vmatprep.subr.mxu0 0.0
    %2200 = vmatpush1.msra.mxu0 %v2178
    %2201 = vmatprep.subr.mxu0 0.0
    %2202 = vmatpush1.msra.mxu0 %v2179
    %2203 = vmatprep.subr.mxu0 0.0
    %2204 = vmatpush1.msra.mxu0 %v2180
    %2205 = vmatprep.subr.mxu0 0.0
    %2206 = vmatpush1.msra.mxu0 %v2181
    %2207 = vmatprep.subr.mxu0 0.0
    %2208 = vmatpush1.msra.mxu0 %v2182
    %2209 = vmatprep.subr.mxu0 0.0
    %2210 = vmatpush1.msra.mxu0 %v2183
    %2211 = vmatprep.subr.mxu0 0.0
    %2212 = vmatpush1.msra.mxu0 %v2184
    %2213 = vmatprep.subr.mxu0 0.0
    %2214 = vmatpush1.msra.mxu0 %v2185
    %2215 = vmatprep.subr.mxu0 0.0
    %2216 = vmatpush1.msra.mxu0 %v2186
    %2217 = vmatprep.subr.mxu0 0.0
    %2218 = vmatpush1.msra.mxu0 %v2187
    %2219 = vmatprep.subr.mxu0 0.0
    %2220 = vmatpush1.msra.mxu0 %v2188
    %2221 = vmatprep.subr.mxu0 0.0
    %2222 = vmatpush1.msra.mxu0 0.0
    %2223 = vmatprep.subr.mxu0 0.0
    %2224 = vmatpush1.msra.mxu0 0.0
    %2225 = vmatprep.subr.mxu0 0.0
    %2226 = vmatpush1.msra.mxu0 0.0
    %2227 = vmatprep.subr.mxu0 0.0
    %2228 = vmatpush1.msra.mxu0 0.0
    %2229 = vmatprep.subr.mxu0 0.0
    %2230 = vmatpush1.msra.mxu0 0.0
    %2231 = vmatprep.subr.mxu0 0.0
    %2232 = vmatpush1.msra.mxu0 0.0
    %2233 = vmatprep.subr.mxu0 0.0
    %2234 = vmatpush1.msra.mxu0 0.0
    %2235 = vmatprep.subr.mxu0 0.0
    %2236 = vmatpush1.msra.mxu0 0.0
    %2237 = vmatprep.subr.mxu0 0.0
    %2238 = vmatpush1.msra.mxu0 0.0
    %2239 = vmatprep.subr.mxu0 0.0
    %2240 = vmatpush1.msra.mxu0 0.0
    %2241 = vmatprep.subr.mxu0 0.0
    %2242 = vmatpush1.msra.mxu0 0.0
    %2243 = vmatprep.subr.mxu0 0.0
    %2244 = vmatpush1.msra.mxu0 0.0
    %2245 = vmatprep.subr.mxu0 0.0
    %2246 = vmatpush1.msra.mxu0 0.0
    %2247 = vmatprep.subr.mxu0 0.0
    %2248 = vmatpush1.msra.mxu0 0.0
    %2249 = vmatprep.subr.mxu0 0.0
    %2250 = vmatpush1.msra.mxu0 0.0
    %2251 = vmatprep.subr.mxu0 0.0
    %2252 = vmatpush1.msra.mxu0 0.0
    %2253 = vmatprep.mubr.f32.mxu0 0.0
    %2254 = vmatmul.mubr.f32.gmra.mrb[0].mxu0 %v2169
    %v2255 = vpop.f32.mrb[0].mxu0
    %v2256 = vadd.f32 0.0, %v2255
    %v2257 = vpop.f32.mrb[0].mxu0
    %2258 = vmatprep.mubr.f32.mxu0 0.0
    %2259 = vmatmul.mubr.f32.gmra.mrb[0].mxu0 %v2170
    %v2260 = vpop.f32.mrb[0].mxu0
    %v2261 = vadd.f32 0.0, %v2260
    %v2262 = vpop.f32.mrb[0].mxu0
    %2263 = vmatprep.mubr.f32.mxu0 0.0
    %2264 = vmatmul.mubr.f32.gmra.mrb[0].mxu0 %v2171
    %v2265 = vpop.f32.mrb[0].mxu0
    %v2266 = vadd.f32 0.0, %v2265
    %v2267 = vpop.f32.mrb[0].mxu0
    %2268 = vdwg.mxu0
    %v2269 = vadd.f32 %v2156, %v2256
    %v2270 = vadd.f32 %v2161, %v2261
    %v2271 = vadd.f32 %v2166, %v2266
    %v2272 = vld [vmem:[%s0 + $0x4] sm:$0xff]
    %v2273 = vld [vmem:[%s0 + $0xc] sm:$0xff]
    %v2274 = vld [vmem:[%s0 + $0x14] sm:$0x1]
    %s2275 = scalar_lea.vmem [#allocation11], 384
    %v2276 = vld [vmem:[%s2275] sm:$0xff]
    %v2277 = vld [vmem:[%s2275 + $0x8] sm:$0xff]
    %v2278 = vld [vmem:[%s2275 + $0x10] sm:$0xff]
    %v2279 = vld [vmem:[%s2275 + $0x18] sm:$0xff]
    %v2280 = vld [vmem:[%s2275 + $0x20] sm:$0xff]
    %v2281 = vld [vmem:[%s2275 + $0x28] sm:$0xff]
    %v2282 = vld [vmem:[%s2275 + $0x30] sm:$0xff]
    %v2283 = vld [vmem:[%s2275 + $0x38] sm:$0xff]
    %v2284 = vld [vmem:[%s2275 + $0x40] sm:$0xff]
    %v2285 = vld [vmem:[%s2275 + $0x48] sm:$0xff]
    %v2286 = vld [vmem:[%s2275 + $0x50] sm:$0xff]
    %v2287 = vld [vmem:[%s2275 + $0x58] sm:$0xff]
    %v2288 = vld [vmem:[%s2275 + $0x60] sm:$0xff]
    %v2289 = vld [vmem:[%s2275 + $0x68] sm:$0xff]
    %v2290 = vld [vmem:[%s2275 + $0x70] sm:$0xff]
    %v2291 = vld [vmem:[%s2275 + $0x78] sm:$0xff]
    %2292 = vmatprep.subr.mxu0 0.0
    %2293 = vmatpush1.msra.mxu0 %v2276
    %2294 = vmatprep.subr.mxu0 0.0
    %2295 = vmatpush1.msra.mxu0 %v2277
    %2296 = vmatprep.subr.mxu0 0.0
    %2297 = vmatpush1.msra.mxu0 %v2278
    %2298 = vmatprep.subr.mxu0 0.0
    %2299 = vmatpush1.msra.mxu0 %v2279
    %2300 = vmatprep.subr.mxu0 0.0
    %2301 = vmatpush1.msra.mxu0 %v2280
    %2302 = vmatprep.subr.mxu0 0.0
    %2303 = vmatpush1.msra.mxu0 %v2281
    %2304 = vmatprep.subr.mxu0 0.0
    %2305 = vmatpush1.msra.mxu0 %v2282
    %2306 = vmatprep.subr.mxu0 0.0
    %2307 = vmatpush1.msra.mxu0 %v2283
    %2308 = vmatprep.subr.mxu0 0.0
    %2309 = vmatpush1.msra.mxu0 %v2284
    %2310 = vmatprep.subr.mxu0 0.0
    %2311 = vmatpush1.msra.mxu0 %v2285
    %2312 = vmatprep.subr.mxu0 0.0
    %2313 = vmatpush1.msra.mxu0 %v2286
    %2314 = vmatprep.subr.mxu0 0.0
    %2315 = vmatpush1.msra.mxu0 %v2287
    %2316 = vmatprep.subr.mxu0 0.0
    %2317 = vmatpush1.msra.mxu0 %v2288
    %2318 = vmatprep.subr.mxu0 0.0
    %2319 = vmatpush1.msra.mxu0 %v2289
    %2320 = vmatprep.subr.mxu0 0.0
    %2321 = vmatpush1.msra.mxu0 %v2290
    %2322 = vmatprep.subr.mxu0 0.0
    %2323 = vmatpush1.msra.mxu0 %v2291
    %2324 = vmatprep.subr.mxu0 0.0
    %2325 = vmatpush1.msra.mxu0 0.0
    %2326 = vmatprep.subr.mxu0 0.0
    %2327 = vmatpush1.msra.mxu0 0.0
    %2328 = vmatprep.subr.mxu0 0.0
    %2329 = vmatpush1.msra.mxu0 0.0
    %2330 = vmatprep.subr.mxu0 0.0
    %2331 = vmatpush1.msra.mxu0 0.0
    %2332 = vmatprep.subr.mxu0 0.0
    %2333 = vmatpush1.msra.mxu0 0.0
    %2334 = vmatprep.subr.mxu0 0.0
    %2335 = vmatpush1.msra.mxu0 0.0
    %2336 = vmatprep.subr.mxu0 0.0
    %2337 = vmatpush1.msra.mxu0 0.0
    %2338 = vmatprep.subr.mxu0 0.0
    %2339 = vmatpush1.msra.mxu0 0.0
    %2340 = vmatprep.subr.mxu0 0.0
    %2341 = vmatpush1.msra.mxu0 0.0
    %2342 = vmatprep.subr.mxu0 0.0
    %2343 = vmatpush1.msra.mxu0 0.0
    %2344 = vmatprep.subr.mxu0 0.0
    %2345 = vmatpush1.msra.mxu0 0.0
    %2346 = vmatprep.subr.mxu0 0.0
    %2347 = vmatpush1.msra.mxu0 0.0
    %2348 = vmatprep.subr.mxu0 0.0
    %2349 = vmatpush1.msra.mxu0 0.0
    %2350 = vmatprep.subr.mxu0 0.0
    %2351 = vmatpush1.msra.mxu0 0.0
    %2352 = vmatprep.subr.mxu0 0.0
    %2353 = vmatpush1.msra.mxu0 0.0
    %2354 = vmatprep.subr.mxu0 0.0
    %2355 = vmatpush1.msra.mxu0 0.0
    %2356 = vmatprep.mubr.f32.mxu0 0.0
    %2357 = vmatmul.mubr.f32.gmra.mrb[0].mxu0 %v2272
    %v2358 = vpop.f32.mrb[0].mxu0
    %v2359 = vadd.f32 0.0, %v2358
    %v2360 = vpop.f32.mrb[0].mxu0
    %2361 = vmatprep.mubr.f32.mxu0 0.0
    %2362 = vmatmul.mubr.f32.gmra.mrb[0].mxu0 %v2273
    %v2363 = vpop.f32.mrb[0].mxu0
    %v2364 = vadd.f32 0.0, %v2363
    %v2365 = vpop.f32.mrb[0].mxu0
    %2366 = vmatprep.mubr.f32.mxu0 0.0
    %2367 = vmatmul.mubr.f32.gmra.mrb[0].mxu0 %v2274
    %v2368 = vpop.f32.mrb[0].mxu0
    %v2369 = vadd.f32 0.0, %v2368
    %v2370 = vpop.f32.mrb[0].mxu0
    %2371 = vdwg.mxu0
    %v2372 = vadd.f32 %v2269, %v2359
    %v2373 = vadd.f32 %v2270, %v2364
    %v2374 = vadd.f32 %v2271, %v2369
    %v2375 = vld [vmem:[%s0 + $0x5] sm:$0xff]
    %v2376 = vld [vmem:[%s0 + $0xd] sm:$0xff]
    %v2377 = vld [vmem:[%s0 + $0x15] sm:$0x1]
    %s2378 = scalar_lea.vmem [#allocation11], 512
    %v2379 = vld [vmem:[%s2378] sm:$0xff]
    %v2380 = vld [vmem:[%s2378 + $0x8] sm:$0xff]
    %v2381 = vld [vmem:[%s2378 + $0x10] sm:$0xff]
    %v2382 = vld [vmem:[%s2378 + $0x18] sm:$0xff]
    %v2383 = vld [vmem:[%s2378 + $0x20] sm:$0xff]
    %v2384 = vld [vmem:[%s2378 + $0x28] sm:$0xff]
    %v2385 = vld [vmem:[%s2378 + $0x30] sm:$0xff]
    %v2386 = vld [vmem:[%s2378 + $0x38] sm:$0xff]
    %v2387 = vld [vmem:[%s2378 + $0x40] sm:$0xff]
    %v2388 = vld [vmem:[%s2378 + $0x48] sm:$0xff]
    %v2389 = vld [vmem:[%s2378 + $0x50] sm:$0xff]
    %v2390 = vld [vmem:[%s2378 + $0x58] sm:$0xff]
    %v2391 = vld [vmem:[%s2378 + $0x60] sm:$0xff]
    %v2392 = vld [vmem:[%s2378 + $0x68] sm:$0xff]
    %v2393 = vld [vmem:[%s2378 + $0x70] sm:$0xff]
    %v2394 = vld [vmem:[%s2378 + $0x78] sm:$0xff]
    %2395 = vmatprep.subr.mxu0 0.0
    %2396 = vmatpush1.msra.mxu0 %v2379
    %2397 = vmatprep.subr.mxu0 0.0
    %2398 = vmatpush1.msra.mxu0 %v2380
    %2399 = vmatprep.subr.mxu0 0.0
    %2400 = vmatpush1.msra.mxu0 %v2381
    %2401 = vmatprep.subr.mxu0 0.0
    %2402 = vmatpush1.msra.mxu0 %v2382
    %2403 = vmatprep.subr.mxu0 0.0
    %2404 = vmatpush1.msra.mxu0 %v2383
    %2405 = vmatprep.subr.mxu0 0.0
    %2406 = vmatpush1.msra.mxu0 %v2384
    %2407 = vmatprep.subr.mxu0 0.0
    %2408 = vmatpush1.msra.mxu0 %v2385
    %2409 = vmatprep.subr.mxu0 0.0
    %2410 = vmatpush1.msra.mxu0 %v2386
    %2411 = vmatprep.subr.mxu0 0.0
    %2412 = vmatpush1.msra.mxu0 %v2387
    %2413 = vmatprep.subr.mxu0 0.0
    %2414 = vmatpush1.msra.mxu0 %v2388
    %2415 = vmatprep.subr.mxu0 0.0
    %2416 = vmatpush1.msra.mxu0 %v2389
    %2417 = vmatprep.subr.mxu0 0.0
    %2418 = vmatpush1.msra.mxu0 %v2390
    %2419 = vmatprep.subr.mxu0 0.0
    %2420 = vmatpush1.msra.mxu0 %v2391
    %2421 = vmatprep.subr.mxu0 0.0
    %2422 = vmatpush1.msra.mxu0 %v2392
    %2423 = vmatprep.subr.mxu0 0.0
    %2424 = vmatpush1.msra.mxu0 %v2393
    %2425 = vmatprep.subr.mxu0 0.0
    %2426 = vmatpush1.msra.mxu0 %v2394
    %2427 = vmatprep.subr.mxu0 0.0
    %2428 = vmatpush1.msra.mxu0 0.0
    %2429 = vmatprep.subr.mxu0 0.0
    %2430 = vmatpush1.msra.mxu0 0.0
    %2431 = vmatprep.subr.mxu0 0.0
    %2432 = vmatpush1.msra.mxu0 0.0
    %2433 = vmatprep.subr.mxu0 0.0
    %2434 = vmatpush1.msra.mxu0 0.0
    %2435 = vmatprep.subr.mxu0 0.0
    %2436 = vmatpush1.msra.mxu0 0.0
    %2437 = vmatprep.subr.mxu0 0.0
    %2438 = vmatpush1.msra.mxu0 0.0
    %2439 = vmatprep.subr.mxu0 0.0
    %2440 = vmatpush1.msra.mxu0 0.0
    %2441 = vmatprep.subr.mxu0 0.0
    %2442 = vmatpush1.msra.mxu0 0.0
    %2443 = vmatprep.subr.mxu0 0.0
    %2444 = vmatpush1.msra.mxu0 0.0
    %2445 = vmatprep.subr.mxu0 0.0
    %2446 = vmatpush1.msra.mxu0 0.0
    %2447 = vmatprep.subr.mxu0 0.0
    %2448 = vmatpush1.msra.mxu0 0.0
    %2449 = vmatprep.subr.mxu0 0.0
    %2450 = vmatpush1.msra.mxu0 0.0
    %2451 = vmatprep.subr.mxu0 0.0
    %2452 = vmatpush1.msra.mxu0 0.0
    %2453 = vmatprep.subr.mxu0 0.0
    %2454 = vmatpush1.msra.mxu0 0.0
    %2455 = vmatprep.subr.mxu0 0.0
    %2456 = vmatpush1.msra.mxu0 0.0
    %2457 = vmatprep.subr.mxu0 0.0
    %2458 = vmatpush1.msra.mxu0 0.0
    %2459 = vmatprep.mubr.f32.mxu0 0.0
    %2460 = vmatmul.mubr.f32.gmra.mrb[0].mxu0 %v2375
    %v2461 = vpop.f32.mrb[0].mxu0
    %v2462 = vadd.f32 0.0, %v2461
    %v2463 = vpop.f32.mrb[0].mxu0
    %2464 = vmatprep.mubr.f32.mxu0 0.0
    %2465 = vmatmul.mubr.f32.gmra.mrb[0].mxu0 %v2376
    %v2466 = vpop.f32.mrb[0].mxu0
    %v2467 = vadd.f32 0.0, %v2466
    %v2468 = vpop.f32.mrb[0].mxu0
    %2469 = vmatprep.mubr.f32.mxu0 0.0
    %2470 = vmatmul.mubr.f32.gmra.mrb[0].mxu0 %v2377
    %v2471 = vpop.f32.mrb[0].mxu0
    %v2472 = vadd.f32 0.0, %v2471
    %v2473 = vpop.f32.mrb[0].mxu0
    %2474 = vdwg.mxu0
    %v2475 = vadd.f32 %v2372, %v2462
    %v2476 = vadd.f32 %v2373, %v2467
    %v2477 = vadd.f32 %v2374, %v2472
    %v2478 = vld [vmem:[%s0 + $0x6] sm:$0xff]
    %v2479 = vld [vmem:[%s0 + $0xe] sm:$0xff]
    %v2480 = vld [vmem:[%s0 + $0x16] sm:$0x1]
    %s2481 = scalar_lea.vmem [#allocation11], 640
    %v2482 = vld [vmem:[%s2481] sm:$0xff]
    %v2483 = vld [vmem:[%s2481 + $0x8] sm:$0xff]
    %v2484 = vld [vmem:[%s2481 + $0x10] sm:$0xff]
    %v2485 = vld [vmem:[%s2481 + $0x18] sm:$0xff]
    %v2486 = vld [vmem:[%s2481 + $0x20] sm:$0xff]
    %v2487 = vld [vmem:[%s2481 + $0x28] sm:$0xff]
    %v2488 = vld [vmem:[%s2481 + $0x30] sm:$0xff]
    %v2489 = vld [vmem:[%s2481 + $0x38] sm:$0xff]
    %v2490 = vld [vmem:[%s2481 + $0x40] sm:$0xff]
    %v2491 = vld [vmem:[%s2481 + $0x48] sm:$0xff]
    %v2492 = vld [vmem:[%s2481 + $0x50] sm:$0xff]
    %v2493 = vld [vmem:[%s2481 + $0x58] sm:$0xff]
    %v2494 = vld [vmem:[%s2481 + $0x60] sm:$0xff]
    %v2495 = vld [vmem:[%s2481 + $0x68] sm:$0xff]
    %v2496 = vld [vmem:[%s2481 + $0x70] sm:$0xff]
    %v2497 = vld [vmem:[%s2481 + $0x78] sm:$0xff]
    %2498 = vmatprep.subr.mxu0 0.0
    %2499 = vmatpush1.msra.mxu0 %v2482
    %2500 = vmatprep.subr.mxu0 0.0
    %2501 = vmatpush1.msra.mxu0 %v2483
    %2502 = vmatprep.subr.mxu0 0.0
    %2503 = vmatpush1.msra.mxu0 %v2484
    %2504 = vmatprep.subr.mxu0 0.0
    %2505 = vmatpush1.msra.mxu0 %v2485
    %2506 = vmatprep.subr.mxu0 0.0
    %2507 = vmatpush1.msra.mxu0 %v2486
    %2508 = vmatprep.subr.mxu0 0.0
    %2509 = vmatpush1.msra.mxu0 %v2487
    %2510 = vmatprep.subr.mxu0 0.0
    %2511 = vmatpush1.msra.mxu0 %v2488
    %2512 = vmatprep.subr.mxu0 0.0
    %2513 = vmatpush1.msra.mxu0 %v2489
    %2514 = vmatprep.subr.mxu0 0.0
    %2515 = vmatpush1.msra.mxu0 %v2490
    %2516 = vmatprep.subr.mxu0 0.0
    %2517 = vmatpush1.msra.mxu0 %v2491
    %2518 = vmatprep.subr.mxu0 0.0
    %2519 = vmatpush1.msra.mxu0 %v2492
    %2520 = vmatprep.subr.mxu0 0.0
    %2521 = vmatpush1.msra.mxu0 %v2493
    %2522 = vmatprep.subr.mxu0 0.0
    %2523 = vmatpush1.msra.mxu0 %v2494
    %2524 = vmatprep.subr.mxu0 0.0
    %2525 = vmatpush1.msra.mxu0 %v2495
    %2526 = vmatprep.subr.mxu0 0.0
    %2527 = vmatpush1.msra.mxu0 %v2496
    %2528 = vmatprep.subr.mxu0 0.0
    %2529 = vmatpush1.msra.mxu0 %v2497
    %2530 = vmatprep.subr.mxu0 0.0
    %2531 = vmatpush1.msra.mxu0 0.0
    %2532 = vmatprep.subr.mxu0 0.0
    %2533 = vmatpush1.msra.mxu0 0.0
    %2534 = vmatprep.subr.mxu0 0.0
    %2535 = vmatpush1.msra.mxu0 0.0
    %2536 = vmatprep.subr.mxu0 0.0
    %2537 = vmatpush1.msra.mxu0 0.0
    %2538 = vmatprep.subr.mxu0 0.0
    %2539 = vmatpush1.msra.mxu0 0.0
    %2540 = vmatprep.subr.mxu0 0.0
    %2541 = vmatpush1.msra.mxu0 0.0
    %2542 = vmatprep.subr.mxu0 0.0
    %2543 = vmatpush1.msra.mxu0 0.0
    %2544 = vmatprep.subr.mxu0 0.0
    %2545 = vmatpush1.msra.mxu0 0.0
    %2546 = vmatprep.subr.mxu0 0.0
    %2547 = vmatpush1.msra.mxu0 0.0
    %2548 = vmatprep.subr.mxu0 0.0
    %2549 = vmatpush1.msra.mxu0 0.0
    %2550 = vmatprep.subr.mxu0 0.0
    %2551 = vmatpush1.msra.mxu0 0.0
    %2552 = vmatprep.subr.mxu0 0.0
    %2553 = vmatpush1.msra.mxu0 0.0
    %2554 = vmatprep.subr.mxu0 0.0
    %2555 = vmatpush1.msra.mxu0 0.0
    %2556 = vmatprep.subr.mxu0 0.0
    %2557 = vmatpush1.msra.mxu0 0.0
    %2558 = vmatprep.subr.mxu0 0.0
    %2559 = vmatpush1.msra.mxu0 0.0
    %2560 = vmatprep.subr.mxu0 0.0
    %2561 = vmatpush1.msra.mxu0 0.0
    %2562 = vmatprep.mubr.f32.mxu0 0.0
    %2563 = vmatmul.mubr.f32.gmra.mrb[0].mxu0 %v2478
    %v2564 = vpop.f32.mrb[0].mxu0
    %v2565 = vadd.f32 0.0, %v2564
    %v2566 = vpop.f32.mrb[0].mxu0
    %2567 = vmatprep.mubr.f32.mxu0 0.0
    %2568 = vmatmul.mubr.f32.gmra.mrb[0].mxu0 %v2479
    %v2569 = vpop.f32.mrb[0].mxu0
    %v2570 = vadd.f32 0.0, %v2569
    %v2571 = vpop.f32.mrb[0].mxu0
    %2572 = vmatprep.mubr.f32.mxu0 0.0
    %2573 = vmatmul.mubr.f32.gmra.mrb[0].mxu0 %v2480
    %v2574 = vpop.f32.mrb[0].mxu0
    %v2575 = vadd.f32 0.0, %v2574
    %v2576 = vpop.f32.mrb[0].mxu0
    %2577 = vdwg.mxu0
    %v2578 = vadd.f32 %v2475, %v2565
    %v2579 = vadd.f32 %v2476, %v2570
    %v2580 = vadd.f32 %v2477, %v2575
    %s2581 = scalar_lea.vmem %s9, 5
    %v2582 = vld [vmem:[%s2581] sm:$0x1]
    %v2584 = vlaneseq
    %v2585 = vshrl.u32 %v2584, 7
    %v2586 = vsub.s32 0, %v2585
    %v2587 = vrot.slane %v2582, %v2586
    %v2589 = vadd.f32 %v2578, %v2587
    %v2590 = vadd.f32 %v2579, %v2587
    %v2591 = vadd.f32 %v2580, %v2587
    %v2592 = vmax.f32 %v2589, 0.0
    %v2593 = vmax.f32 %v2590, 0.0
    %v2594 = vmax.f32 %v2591, 0.0
    %s2595 = scalar_lea.vmem %s10, 5
    %v2596 = vld [vmem:[%s2595] sm:$0x1]
    %v2598 = vlaneseq
    %v2599 = vshrl.u32 %v2598, 7
    %v2600 = vsub.s32 0, %v2599
    %v2601 = vrot.slane %v2596, %v2600
    %v2603 = vmul.f32 %v2592, %v2601
    %v2604 = vmul.f32 %v2593, %v2601
    %v2605 = vmul.f32 %v2594, %v2601
    %s2606 = scalar_lea.vmem %s11, 5
    %v2607 = vld [vmem:[%s2606] sm:$0x1]
    %v2609 = vlaneseq
    %v2610 = vshrl.u32 %v2609, 7
    %v2611 = vsub.s32 0, %v2610
    %v2612 = vrot.slane %v2607, %v2611
    %v2614 = vadd.f32 %v2603, %v2612
    %v2615 = vadd.f32 %v2604, %v2612
    %v2616 = vadd.f32 %v2605, %v2612
    %v2617 = vsel %vm283, -inf, %v2614
    %v2618 = vsel %vm284, -inf, %v2615
    %v2621 = vrot.slane %v2617, 7
    %v2622 = vrot.slane %v2618, 7
    %v2623 = vsel %vm289, %v2621, %v2622
    %v2627 = vmax.f32 %v2614, %v2621
    %v2628 = vmax.f32 %v2615, %v2623
    %v2629 = vmax.f32 %v2616, %v2622
    %v2633 = vrot.slane %v2627, 1
    %v2634 = vrot.slane %v2628, 1
    %v2635 = vsel %vm302, %v2633, %v2634
    %v2636 = vrot.slane %v2629, 1
    %v2637 = vsel %vm302, %v2634, %v2636
    %2640 = vst [vmem:[#allocation16 + $0x28] sm:$0xff] %v2635
    %2641 = vst [vmem:[#allocation16 + $0x68] sm:$0xff] %v2637
    %v2642 = vld [vmem:[%s0 + $0x1] sm:$0xff]
    %v2643 = vld [vmem:[%s0 + $0x9] sm:$0xff]
    %v2644 = vld [vmem:[%s0 + $0x11] sm:$0x1]
    %v2645 = vld [vmem:[#allocation13] sm:$0xff]
    %v2646 = vld [vmem:[#allocation13 + $0x8] sm:$0xff]
    %v2647 = vld [vmem:[#allocation13 + $0x10] sm:$0xff]
    %v2648 = vld [vmem:[#allocation13 + $0x18] sm:$0xff]
    %v2649 = vld [vmem:[#allocation13 + $0x20] sm:$0xff]
    %v2650 = vld [vmem:[#allocation13 + $0x28] sm:$0xff]
    %v2651 = vld [vmem:[#allocation13 + $0x30] sm:$0xff]
    %v2652 = vld [vmem:[#allocation13 + $0x38] sm:$0xff]
    %v2653 = vld [vmem:[#allocation13 + $0x40] sm:$0xff]
    %v2654 = vld [vmem:[#allocation13 + $0x48] sm:$0xff]
    %v2655 = vld [vmem:[#allocation13 + $0x50] sm:$0xff]
    %v2656 = vld [vmem:[#allocation13 + $0x58] sm:$0xff]
    %v2657 = vld [vmem:[#allocation13 + $0x60] sm:$0xff]
    %v2658 = vld [vmem:[#allocation13 + $0x68] sm:$0xff]
    %v2659 = vld [vmem:[#allocation13 + $0x70] sm:$0xff]
    %v2660 = vld [vmem:[#allocation13 + $0x78] sm:$0xff]
    %v2661 = vld [vmem:[%s0 + $0x2] sm:$0xff]
    %v2662 = vld [vmem:[%s0 + $0xa] sm:$0xff]
    %v2663 = vld [vmem:[%s0 + $0x12] sm:$0x1]
    %s2664 = scalar_lea.vmem [#allocation13], 128
    %v2665 = vld [vmem:[%s2664] sm:$0xff]
    %v2666 = vld [vmem:[%s2664 + $0x8] sm:$0xff]
    %v2667 = vld [vmem:[%s2664 + $0x10] sm:$0xff]
    %v2668 = vld [vmem:[%s2664 + $0x18] sm:$0xff]
    %v2669 = vld [vmem:[%s2664 + $0x20] sm:$0xff]
    %v2670 = vld [vmem:[%s2664 + $0x28] sm:$0xff]
    %v2671 = vld [vmem:[%s2664 + $0x30] sm:$0xff]
    %v2672 = vld [vmem:[%s2664 + $0x38] sm:$0xff]
    %v2673 = vld [vmem:[%s2664 + $0x40] sm:$0xff]
    %v2674 = vld [vmem:[%s2664 + $0x48] sm:$0xff]
    %v2675 = vld [vmem:[%s2664 + $0x50] sm:$0xff]
    %v2676 = vld [vmem:[%s2664 + $0x58] sm:$0xff]
    %v2677 = vld [vmem:[%s2664 + $0x60] sm:$0xff]
    %v2678 = vld [vmem:[%s2664 + $0x68] sm:$0xff]
    %v2679 = vld [vmem:[%s2664 + $0x70] sm:$0xff]
    %v2680 = vld [vmem:[%s2664 + $0x78] sm:$0xff]
    %2681 = vmatprep.subr.mxu0 0.0
    %2682 = vmatpush1.msra.mxu0 %v2665
    %2683 = vmatprep.subr.mxu0 0.0
    %2684 = vmatpush1.msra.mxu0 %v2666
    %2685 = vmatprep.subr.mxu0 0.0
    %2686 = vmatpush1.msra.mxu0 %v2667
    %2687 = vmatprep.subr.mxu0 0.0
    %2688 = vmatpush1.msra.mxu0 %v2668
    %2689 = vmatprep.subr.mxu0 0.0
    %2690 = vmatpush1.msra.mxu0 %v2669
    %2691 = vmatprep.subr.mxu0 0.0
    %2692 = vmatpush1.msra.mxu0 %v2670
    %2693 = vmatprep.subr.mxu0 0.0
    %2694 = vmatpush1.msra.mxu0 %v2671
    %2695 = vmatprep.subr.mxu0 0.0
    %2696 = vmatpush1.msra.mxu0 %v2672
    %2697 = vmatprep.subr.mxu0 0.0
    %2698 = vmatpush1.msra.mxu0 %v2673
    %2699 = vmatprep.subr.mxu0 0.0
    %2700 = vmatpush1.msra.mxu0 %v2674
    %2701 = vmatprep.subr.mxu0 0.0
    %2702 = vmatpush1.msra.mxu0 %v2675
    %2703 = vmatprep.subr.mxu0 0.0
    %2704 = vmatpush1.msra.mxu0 %v2676
    %2705 = vmatprep.subr.mxu0 0.0
    %2706 = vmatpush1.msra.mxu0 %v2677
    %2707 = vmatprep.subr.mxu0 0.0
    %2708 = vmatpush1.msra.mxu0 %v2678
    %2709 = vmatprep.subr.mxu0 0.0
    %2710 = vmatpush1.msra.mxu0 %v2679
    %2711 = vmatprep.subr.mxu0 0.0
    %2712 = vmatpush1.msra.mxu0 %v2680
    %2713 = vmatprep.subr.mxu0 0.0
    %2714 = vmatpush1.msra.mxu0 0.0
    %2715 = vmatprep.subr.mxu0 0.0
    %2716 = vmatpush1.msra.mxu0 0.0
    %2717 = vmatprep.subr.mxu0 0.0
    %2718 = vmatpush1.msra.mxu0 0.0
    %2719 = vmatprep.subr.mxu0 0.0
    %2720 = vmatpush1.msra.mxu0 0.0
    %2721 = vmatprep.subr.mxu0 0.0
    %2722 = vmatpush1.msra.mxu0 0.0
    %2723 = vmatprep.subr.mxu0 0.0
    %2724 = vmatpush1.msra.mxu0 0.0
    %2725 = vmatprep.subr.mxu0 0.0
    %2726 = vmatpush1.msra.mxu0 0.0
    %2727 = vmatprep.subr.mxu0 0.0
    %2728 = vmatpush1.msra.mxu0 0.0
    %2729 = vmatprep.subr.mxu0 0.0
    %2730 = vmatpush1.msra.mxu0 0.0
    %2731 = vmatprep.subr.mxu0 0.0
    %2732 = vmatpush1.msra.mxu0 0.0
    %2733 = vmatprep.subr.mxu0 0.0
    %2734 = vmatpush1.msra.mxu0 0.0
    %2735 = vmatprep.subr.mxu0 0.0
    %2736 = vmatpush1.msra.mxu0 0.0
    %2737 = vmatprep.subr.mxu0 0.0
    %2738 = vmatpush1.msra.mxu0 0.0
    %2739 = vmatprep.subr.mxu0 0.0
    %2740 = vmatpush1.msra.mxu0 0.0
    %2741 = vmatprep.subr.mxu0 0.0
    %2742 = vmatpush1.msra.mxu0 0.0
    %2743 = vmatprep.subr.mxu0 0.0
    %2744 = vmatpush1.msra.mxu0 0.0
    %2745 = vmatprep.mubr.f32.mxu0 0.0
    %2746 = vmatmul.mubr.f32.gmra.mrb[0].mxu0 %v2661
    %v2747 = vpop.f32.mrb[0].mxu0
    %v2748 = vadd.f32 0.0, %v2747
    %v2749 = vpop.f32.mrb[0].mxu0
    %2750 = vmatprep.mubr.f32.mxu0 0.0
    %2751 = vmatmul.mubr.f32.gmra.mrb[0].mxu0 %v2662
    %v2752 = vpop.f32.mrb[0].mxu0
    %v2753 = vadd.f32 0.0, %v2752
    %v2754 = vpop.f32.mrb[0].mxu0
    %2755 = vmatprep.mubr.f32.mxu0 0.0
    %2756 = vmatmul.mubr.f32.gmra.mrb[0].mxu0 %v2663
    %v2757 = vpop.f32.mrb[0].mxu0
    %v2758 = vadd.f32 0.0, %v2757
    %v2759 = vpop.f32.mrb[0].mxu0
    %2760 = vdwg.mxu0
    %2761 = vmatprep.subr.mxu0 0.0
    %2762 = vmatpush1.msra.mxu0 %v2645
    %2763 = vmatprep.subr.mxu0 0.0
    %2764 = vmatpush1.msra.mxu0 %v2646
    %2765 = vmatprep.subr.mxu0 0.0
    %2766 = vmatpush1.msra.mxu0 %v2647
    %2767 = vmatprep.subr.mxu0 0.0
    %2768 = vmatpush1.msra.mxu0 %v2648
    %2769 = vmatprep.subr.mxu0 0.0
    %2770 = vmatpush1.msra.mxu0 %v2649
    %2771 = vmatprep.subr.mxu0 0.0
    %2772 = vmatpush1.msra.mxu0 %v2650
    %2773 = vmatprep.subr.mxu0 0.0
    %2774 = vmatpush1.msra.mxu0 %v2651
    %2775 = vmatprep.subr.mxu0 0.0
    %2776 = vmatpush1.msra.mxu0 %v2652
    %2777 = vmatprep.subr.mxu0 0.0
    %2778 = vmatpush1.msra.mxu0 %v2653
    %2779 = vmatprep.subr.mxu0 0.0
    %2780 = vmatpush1.msra.mxu0 %v2654
    %2781 = vmatprep.subr.mxu0 0.0
    %2782 = vmatpush1.msra.mxu0 %v2655
    %2783 = vmatprep.subr.mxu0 0.0
    %2784 = vmatpush1.msra.mxu0 %v2656
    %2785 = vmatprep.subr.mxu0 0.0
    %2786 = vmatpush1.msra.mxu0 %v2657
    %2787 = vmatprep.subr.mxu0 0.0
    %2788 = vmatpush1.msra.mxu0 %v2658
    %2789 = vmatprep.subr.mxu0 0.0
    %2790 = vmatpush1.msra.mxu0 %v2659
    %2791 = vmatprep.subr.mxu0 0.0
    %2792 = vmatpush1.msra.mxu0 %v2660
    %2793 = vmatprep.subr.mxu0 0.0
    %2794 = vmatpush1.msra.mxu0 0.0
    %2795 = vmatprep.subr.mxu0 0.0
    %2796 = vmatpush1.msra.mxu0 0.0
    %2797 = vmatprep.subr.mxu0 0.0
    %2798 = vmatpush1.msra.mxu0 0.0
    %2799 = vmatprep.subr.mxu0 0.0
    %2800 = vmatpush1.msra.mxu0 0.0
    %2801 = vmatprep.subr.mxu0 0.0
    %2802 = vmatpush1.msra.mxu0 0.0
    %2803 = vmatprep.subr.mxu0 0.0
    %2804 = vmatpush1.msra.mxu0 0.0
    %2805 = vmatprep.subr.mxu0 0.0
    %2806 = vmatpush1.msra.mxu0 0.0
    %2807 = vmatprep.subr.mxu0 0.0
    %2808 = vmatpush1.msra.mxu0 0.0
    %2809 = vmatprep.subr.mxu0 0.0
    %2810 = vmatpush1.msra.mxu0 0.0
    %2811 = vmatprep.subr.mxu0 0.0
    %2812 = vmatpush1.msra.mxu0 0.0
    %2813 = vmatprep.subr.mxu0 0.0
    %2814 = vmatpush1.msra.mxu0 0.0
    %2815 = vmatprep.subr.mxu0 0.0
    %2816 = vmatpush1.msra.mxu0 0.0
    %2817 = vmatprep.subr.mxu0 0.0
    %2818 = vmatpush1.msra.mxu0 0.0
    %2819 = vmatprep.subr.mxu0 0.0
    %2820 = vmatpush1.msra.mxu0 0.0
    %2821 = vmatprep.subr.mxu0 0.0
    %2822 = vmatpush1.msra.mxu0 0.0
    %2823 = vmatprep.subr.mxu0 0.0
    %2824 = vmatpush1.msra.mxu0 0.0
    %2825 = vmatprep.mubr.f32.mxu0 0.0
    %2826 = vmatmul.mubr.f32.gmra.mrb[0].mxu0 %v2642
    %v2827 = vpop.f32.mrb[0].mxu0
    %v2828 = vadd.f32 %v2748, %v2827
    %v2829 = vpop.f32.mrb[0].mxu0
    %2830 = vmatprep.mubr.f32.mxu0 0.0
    %2831 = vmatmul.mubr.f32.gmra.mrb[0].mxu0 %v2643
    %v2832 = vpop.f32.mrb[0].mxu0
    %v2833 = vadd.f32 %v2753, %v2832
    %v2834 = vpop.f32.mrb[0].mxu0
    %2835 = vmatprep.mubr.f32.mxu0 0.0
    %2836 = vmatmul.mubr.f32.gmra.mrb[0].mxu0 %v2644
    %v2837 = vpop.f32.mrb[0].mxu0
    %v2838 = vadd.f32 %v2758, %v2837
    %v2839 = vpop.f32.mrb[0].mxu0
    %2840 = vdwg.mxu0
    %v2841 = vld [vmem:[%s0 + $0x3] sm:$0xff]
    %v2842 = vld [vmem:[%s0 + $0xb] sm:$0xff]
    %v2843 = vld [vmem:[%s0 + $0x13] sm:$0x1]
    %s2844 = scalar_lea.vmem [#allocation13], 256
    %v2845 = vld [vmem:[%s2844] sm:$0xff]
    %v2846 = vld [vmem:[%s2844 + $0x8] sm:$0xff]
    %v2847 = vld [vmem:[%s2844 + $0x10] sm:$0xff]
    %v2848 = vld [vmem:[%s2844 + $0x18] sm:$0xff]
    %v2849 = vld [vmem:[%s2844 + $0x20] sm:$0xff]
    %v2850 = vld [vmem:[%s2844 + $0x28] sm:$0xff]
    %v2851 = vld [vmem:[%s2844 + $0x30] sm:$0xff]
    %v2852 = vld [vmem:[%s2844 + $0x38] sm:$0xff]
    %v2853 = vld [vmem:[%s2844 + $0x40] sm:$0xff]
    %v2854 = vld [vmem:[%s2844 + $0x48] sm:$0xff]
    %v2855 = vld [vmem:[%s2844 + $0x50] sm:$0xff]
    %v2856 = vld [vmem:[%s2844 + $0x58] sm:$0xff]
    %v2857 = vld [vmem:[%s2844 + $0x60] sm:$0xff]
    %v2858 = vld [vmem:[%s2844 + $0x68] sm:$0xff]
    %v2859 = vld [vmem:[%s2844 + $0x70] sm:$0xff]
    %v2860 = vld [vmem:[%s2844 + $0x78] sm:$0xff]
    %2861 = vmatprep.subr.mxu0 0.0
    %2862 = vmatpush1.msra.mxu0 %v2845
    %2863 = vmatprep.subr.mxu0 0.0
    %2864 = vmatpush1.msra.mxu0 %v2846
    %2865 = vmatprep.subr.mxu0 0.0
    %2866 = vmatpush1.msra.mxu0 %v2847
    %2867 = vmatprep.subr.mxu0 0.0
    %2868 = vmatpush1.msra.mxu0 %v2848
    %2869 = vmatprep.subr.mxu0 0.0
    %2870 = vmatpush1.msra.mxu0 %v2849
    %2871 = vmatprep.subr.mxu0 0.0
    %2872 = vmatpush1.msra.mxu0 %v2850
    %2873 = vmatprep.subr.mxu0 0.0
    %2874 = vmatpush1.msra.mxu0 %v2851
    %2875 = vmatprep.subr.mxu0 0.0
    %2876 = vmatpush1.msra.mxu0 %v2852
    %2877 = vmatprep.subr.mxu0 0.0
    %2878 = vmatpush1.msra.mxu0 %v2853
    %2879 = vmatprep.subr.mxu0 0.0
    %2880 = vmatpush1.msra.mxu0 %v2854
    %2881 = vmatprep.subr.mxu0 0.0
    %2882 = vmatpush1.msra.mxu0 %v2855
    %2883 = vmatprep.subr.mxu0 0.0
    %2884 = vmatpush1.msra.mxu0 %v2856
    %2885 = vmatprep.subr.mxu0 0.0
    %2886 = vmatpush1.msra.mxu0 %v2857
    %2887 = vmatprep.subr.mxu0 0.0
    %2888 = vmatpush1.msra.mxu0 %v2858
    %2889 = vmatprep.subr.mxu0 0.0
    %2890 = vmatpush1.msra.mxu0 %v2859
    %2891 = vmatprep.subr.mxu0 0.0
    %2892 = vmatpush1.msra.mxu0 %v2860
    %2893 = vmatprep.subr.mxu0 0.0
    %2894 = vmatpush1.msra.mxu0 0.0
    %2895 = vmatprep.subr.mxu0 0.0
    %2896 = vmatpush1.msra.mxu0 0.0
    %2897 = vmatprep.subr.mxu0 0.0
    %2898 = vmatpush1.msra.mxu0 0.0
    %2899 = vmatprep.subr.mxu0 0.0
    %2900 = vmatpush1.msra.mxu0 0.0
    %2901 = vmatprep.subr.mxu0 0.0
    %2902 = vmatpush1.msra.mxu0 0.0
    %2903 = vmatprep.subr.mxu0 0.0
    %2904 = vmatpush1.msra.mxu0 0.0
    %2905 = vmatprep.subr.mxu0 0.0
    %2906 = vmatpush1.msra.mxu0 0.0
    %2907 = vmatprep.subr.mxu0 0.0
    %2908 = vmatpush1.msra.mxu0 0.0
    %2909 = vmatprep.subr.mxu0 0.0
    %2910 = vmatpush1.msra.mxu0 0.0
    %2911 = vmatprep.subr.mxu0 0.0
    %2912 = vmatpush1.msra.mxu0 0.0
    %2913 = vmatprep.subr.mxu0 0.0
    %2914 = vmatpush1.msra.mxu0 0.0
    %2915 = vmatprep.subr.mxu0 0.0
    %2916 = vmatpush1.msra.mxu0 0.0
    %2917 = vmatprep.subr.mxu0 0.0
    %2918 = vmatpush1.msra.mxu0 0.0
    %2919 = vmatprep.subr.mxu0 0.0
    %2920 = vmatpush1.msra.mxu0 0.0
    %2921 = vmatprep.subr.mxu0 0.0
    %2922 = vmatpush1.msra.mxu0 0.0
    %2923 = vmatprep.subr.mxu0 0.0
    %2924 = vmatpush1.msra.mxu0 0.0
    %2925 = vmatprep.mubr.f32.mxu0 0.0
    %2926 = vmatmul.mubr.f32.gmra.mrb[0].mxu0 %v2841
    %v2927 = vpop.f32.mrb[0].mxu0
    %v2928 = vadd.f32 0.0, %v2927
    %v2929 = vpop.f32.mrb[0].mxu0
    %2930 = vmatprep.mubr.f32.mxu0 0.0
    %2931 = vmatmul.mubr.f32.gmra.mrb[0].mxu0 %v2842
    %v2932 = vpop.f32.mrb[0].mxu0
    %v2933 = vadd.f32 0.0, %v2932
    %v2934 = vpop.f32.mrb[0].mxu0
    %2935 = vmatprep.mubr.f32.mxu0 0.0
    %2936 = vmatmul.mubr.f32.gmra.mrb[0].mxu0 %v2843
    %v2937 = vpop.f32.mrb[0].mxu0
    %v2938 = vadd.f32 0.0, %v2937
    %v2939 = vpop.f32.mrb[0].mxu0
    %2940 = vdwg.mxu0
    %v2941 = vadd.f32 %v2828, %v2928
    %v2942 = vadd.f32 %v2833, %v2933
    %v2943 = vadd.f32 %v2838, %v2938
    %v2944 = vld [vmem:[%s0 + $0x4] sm:$0xff]
    %v2945 = vld [vmem:[%s0 + $0xc] sm:$0xff]
    %v2946 = vld [vmem:[%s0 + $0x14] sm:$0x1]
    %s2947 = scalar_lea.vmem [#allocation13], 384
    %v2948 = vld [vmem:[%s2947] sm:$0xff]
    %v2949 = vld [vmem:[%s2947 + $0x8] sm:$0xff]
    %v2950 = vld [vmem:[%s2947 + $0x10] sm:$0xff]
    %v2951 = vld [vmem:[%s2947 + $0x18] sm:$0xff]
    %v2952 = vld [vmem:[%s2947 + $0x20] sm:$0xff]
    %v2953 = vld [vmem:[%s2947 + $0x28] sm:$0xff]
    %v2954 = vld [vmem:[%s2947 + $0x30] sm:$0xff]
    %v2955 = vld [vmem:[%s2947 + $0x38] sm:$0xff]
    %v2956 = vld [vmem:[%s2947 + $0x40] sm:$0xff]
    %v2957 = vld [vmem:[%s2947 + $0x48] sm:$0xff]
    %v2958 = vld [vmem:[%s2947 + $0x50] sm:$0xff]
    %v2959 = vld [vmem:[%s2947 + $0x58] sm:$0xff]
    %v2960 = vld [vmem:[%s2947 + $0x60] sm:$0xff]
    %v2961 = vld [vmem:[%s2947 + $0x68] sm:$0xff]
    %v2962 = vld [vmem:[%s2947 + $0x70] sm:$0xff]
    %v2963 = vld [vmem:[%s2947 + $0x78] sm:$0xff]
    %2964 = vmatprep.subr.mxu0 0.0
    %2965 = vmatpush1.msra.mxu0 %v2948
    %2966 = vmatprep.subr.mxu0 0.0
    %2967 = vmatpush1.msra.mxu0 %v2949
    %2968 = vmatprep.subr.mxu0 0.0
    %2969 = vmatpush1.msra.mxu0 %v2950
    %2970 = vmatprep.subr.mxu0 0.0
    %2971 = vmatpush1.msra.mxu0 %v2951
    %2972 = vmatprep.subr.mxu0 0.0
    %2973 = vmatpush1.msra.mxu0 %v2952
    %2974 = vmatprep.subr.mxu0 0.0
    %2975 = vmatpush1.msra.mxu0 %v2953
    %2976 = vmatprep.subr.mxu0 0.0
    %2977 = vmatpush1.msra.mxu0 %v2954
    %2978 = vmatprep.subr.mxu0 0.0
    %2979 = vmatpush1.msra.mxu0 %v2955
    %2980 = vmatprep.subr.mxu0 0.0
    %2981 = vmatpush1.msra.mxu0 %v2956
    %2982 = vmatprep.subr.mxu0 0.0
    %2983 = vmatpush1.msra.mxu0 %v2957
    %2984 = vmatprep.subr.mxu0 0.0
    %2985 = vmatpush1.msra.mxu0 %v2958
    %2986 = vmatprep.subr.mxu0 0.0
    %2987 = vmatpush1.msra.mxu0 %v2959
    %2988 = vmatprep.subr.mxu0 0.0
    %2989 = vmatpush1.msra.mxu0 %v2960
    %2990 = vmatprep.subr.mxu0 0.0
    %2991 = vmatpush1.msra.mxu0 %v2961
    %2992 = vmatprep.subr.mxu0 0.0
    %2993 = vmatpush1.msra.mxu0 %v2962
    %2994 = vmatprep.subr.mxu0 0.0
    %2995 = vmatpush1.msra.mxu0 %v2963
    %2996 = vmatprep.subr.mxu0 0.0
    %2997 = vmatpush1.msra.mxu0 0.0
    %2998 = vmatprep.subr.mxu0 0.0
    %2999 = vmatpush1.msra.mxu0 0.0
    %3000 = vmatprep.subr.mxu0 0.0
    %3001 = vmatpush1.msra.mxu0 0.0
    %3002 = vmatprep.subr.mxu0 0.0
    %3003 = vmatpush1.msra.mxu0 0.0
    %3004 = vmatprep.subr.mxu0 0.0
    %3005 = vmatpush1.msra.mxu0 0.0
    %3006 = vmatprep.subr.mxu0 0.0
    %3007 = vmatpush1.msra.mxu0 0.0
    %3008 = vmatprep.subr.mxu0 0.0
    %3009 = vmatpush1.msra.mxu0 0.0
    %3010 = vmatprep.subr.mxu0 0.0
    %3011 = vmatpush1.msra.mxu0 0.0
    %3012 = vmatprep.subr.mxu0 0.0
    %3013 = vmatpush1.msra.mxu0 0.0
    %3014 = vmatprep.subr.mxu0 0.0
    %3015 = vmatpush1.msra.mxu0 0.0
    %3016 = vmatprep.subr.mxu0 0.0
    %3017 = vmatpush1.msra.mxu0 0.0
    %3018 = vmatprep.subr.mxu0 0.0
    %3019 = vmatpush1.msra.mxu0 0.0
    %3020 = vmatprep.subr.mxu0 0.0
    %3021 = vmatpush1.msra.mxu0 0.0
    %3022 = vmatprep.subr.mxu0 0.0
    %3023 = vmatpush1.msra.mxu0 0.0
    %3024 = vmatprep.subr.mxu0 0.0
    %3025 = vmatpush1.msra.mxu0 0.0
    %3026 = vmatprep.subr.mxu0 0.0
    %3027 = vmatpush1.msra.mxu0 0.0
    %3028 = vmatprep.mubr.f32.mxu0 0.0
    %3029 = vmatmul.mubr.f32.gmra.mrb[0].mxu0 %v2944
    %v3030 = vpop.f32.mrb[0].mxu0
    %v3031 = vadd.f32 0.0, %v3030
    %v3032 = vpop.f32.mrb[0].mxu0
    %3033 = vmatprep.mubr.f32.mxu0 0.0
    %3034 = vmatmul.mubr.f32.gmra.mrb[0].mxu0 %v2945
    %v3035 = vpop.f32.mrb[0].mxu0
    %v3036 = vadd.f32 0.0, %v3035
    %v3037 = vpop.f32.mrb[0].mxu0
    %3038 = vmatprep.mubr.f32.mxu0 0.0
    %3039 = vmatmul.mubr.f32.gmra.mrb[0].mxu0 %v2946
    %v3040 = vpop.f32.mrb[0].mxu0
    %v3041 = vadd.f32 0.0, %v3040
    %v3042 = vpop.f32.mrb[0].mxu0
    %3043 = vdwg.mxu0
    %v3044 = vadd.f32 %v2941, %v3031
    %v3045 = vadd.f32 %v2942, %v3036
    %v3046 = vadd.f32 %v2943, %v3041
    %v3047 = vld [vmem:[%s0 + $0x5] sm:$0xff]
    %v3048 = vld [vmem:[%s0 + $0xd] sm:$0xff]
    %v3049 = vld [vmem:[%s0 + $0x15] sm:$0x1]
    %s3050 = scalar_lea.vmem [#allocation13], 512
    %v3051 = vld [vmem:[%s3050] sm:$0xff]
    %v3052 = vld [vmem:[%s3050 + $0x8] sm:$0xff]
    %v3053 = vld [vmem:[%s3050 + $0x10] sm:$0xff]
    %v3054 = vld [vmem:[%s3050 + $0x18] sm:$0xff]
    %v3055 = vld [vmem:[%s3050 + $0x20] sm:$0xff]
    %v3056 = vld [vmem:[%s3050 + $0x28] sm:$0xff]
    %v3057 = vld [vmem:[%s3050 + $0x30] sm:$0xff]
    %v3058 = vld [vmem:[%s3050 + $0x38] sm:$0xff]
    %v3059 = vld [vmem:[%s3050 + $0x40] sm:$0xff]
    %v3060 = vld [vmem:[%s3050 + $0x48] sm:$0xff]
    %v3061 = vld [vmem:[%s3050 + $0x50] sm:$0xff]
    %v3062 = vld [vmem:[%s3050 + $0x58] sm:$0xff]
    %v3063 = vld [vmem:[%s3050 + $0x60] sm:$0xff]
    %v3064 = vld [vmem:[%s3050 + $0x68] sm:$0xff]
    %v3065 = vld [vmem:[%s3050 + $0x70] sm:$0xff]
    %v3066 = vld [vmem:[%s3050 + $0x78] sm:$0xff]
    %3067 = vmatprep.subr.mxu0 0.0
    %3068 = vmatpush1.msra.mxu0 %v3051
    %3069 = vmatprep.subr.mxu0 0.0
    %3070 = vmatpush1.msra.mxu0 %v3052
    %3071 = vmatprep.subr.mxu0 0.0
    %3072 = vmatpush1.msra.mxu0 %v3053
    %3073 = vmatprep.subr.mxu0 0.0
    %3074 = vmatpush1.msra.mxu0 %v3054
    %3075 = vmatprep.subr.mxu0 0.0
    %3076 = vmatpush1.msra.mxu0 %v3055
    %3077 = vmatprep.subr.mxu0 0.0
    %3078 = vmatpush1.msra.mxu0 %v3056
    %3079 = vmatprep.subr.mxu0 0.0
    %3080 = vmatpush1.msra.mxu0 %v3057
    %3081 = vmatprep.subr.mxu0 0.0
    %3082 = vmatpush1.msra.mxu0 %v3058
    %3083 = vmatprep.subr.mxu0 0.0
    %3084 = vmatpush1.msra.mxu0 %v3059
    %3085 = vmatprep.subr.mxu0 0.0
    %3086 = vmatpush1.msra.mxu0 %v3060
    %3087 = vmatprep.subr.mxu0 0.0
    %3088 = vmatpush1.msra.mxu0 %v3061
    %3089 = vmatprep.subr.mxu0 0.0
    %3090 = vmatpush1.msra.mxu0 %v3062
    %3091 = vmatprep.subr.mxu0 0.0
    %3092 = vmatpush1.msra.mxu0 %v3063
    %3093 = vmatprep.subr.mxu0 0.0
    %3094 = vmatpush1.msra.mxu0 %v3064
    %3095 = vmatprep.subr.mxu0 0.0
    %3096 = vmatpush1.msra.mxu0 %v3065
    %3097 = vmatprep.subr.mxu0 0.0
    %3098 = vmatpush1.msra.mxu0 %v3066
    %3099 = vmatprep.subr.mxu0 0.0
    %3100 = vmatpush1.msra.mxu0 0.0
    %3101 = vmatprep.subr.mxu0 0.0
    %3102 = vmatpush1.msra.mxu0 0.0
    %3103 = vmatprep.subr.mxu0 0.0
    %3104 = vmatpush1.msra.mxu0 0.0
    %3105 = vmatprep.subr.mxu0 0.0
    %3106 = vmatpush1.msra.mxu0 0.0
    %3107 = vmatprep.subr.mxu0 0.0
    %3108 = vmatpush1.msra.mxu0 0.0
    %3109 = vmatprep.subr.mxu0 0.0
    %3110 = vmatpush1.msra.mxu0 0.0
    %3111 = vmatprep.subr.mxu0 0.0
    %3112 = vmatpush1.msra.mxu0 0.0
    %3113 = vmatprep.subr.mxu0 0.0
    %3114 = vmatpush1.msra.mxu0 0.0
    %3115 = vmatprep.subr.mxu0 0.0
    %3116 = vmatpush1.msra.mxu0 0.0
    %3117 = vmatprep.subr.mxu0 0.0
    %3118 = vmatpush1.msra.mxu0 0.0
    %3119 = vmatprep.subr.mxu0 0.0
    %3120 = vmatpush1.msra.mxu0 0.0
    %3121 = vmatprep.subr.mxu0 0.0
    %3122 = vmatpush1.msra.mxu0 0.0
    %3123 = vmatprep.subr.mxu0 0.0
    %3124 = vmatpush1.msra.mxu0 0.0
    %3125 = vmatprep.subr.mxu0 0.0
    %3126 = vmatpush1.msra.mxu0 0.0
    %3127 = vmatprep.subr.mxu0 0.0
    %3128 = vmatpush1.msra.mxu0 0.0
    %3129 = vmatprep.subr.mxu0 0.0
    %3130 = vmatpush1.msra.mxu0 0.0
    %3131 = vmatprep.mubr.f32.mxu0 0.0
    %3132 = vmatmul.mubr.f32.gmra.mrb[0].mxu0 %v3047
    %v3133 = vpop.f32.mrb[0].mxu0
    %v3134 = vadd.f32 0.0, %v3133
    %v3135 = vpop.f32.mrb[0].mxu0
    %3136 = vmatprep.mubr.f32.mxu0 0.0
    %3137 = vmatmul.mubr.f32.gmra.mrb[0].mxu0 %v3048
    %v3138 = vpop.f32.mrb[0].mxu0
    %v3139 = vadd.f32 0.0, %v3138
    %v3140 = vpop.f32.mrb[0].mxu0
    %3141 = vmatprep.mubr.f32.mxu0 0.0
    %3142 = vmatmul.mubr.f32.gmra.mrb[0].mxu0 %v3049
    %v3143 = vpop.f32.mrb[0].mxu0
    %v3144 = vadd.f32 0.0, %v3143
    %v3145 = vpop.f32.mrb[0].mxu0
    %3146 = vdwg.mxu0
    %v3147 = vadd.f32 %v3044, %v3134
    %v3148 = vadd.f32 %v3045, %v3139
    %v3149 = vadd.f32 %v3046, %v3144
    %v3150 = vld [vmem:[%s0 + $0x6] sm:$0xff]
    %v3151 = vld [vmem:[%s0 + $0xe] sm:$0xff]
    %v3152 = vld [vmem:[%s0 + $0x16] sm:$0x1]
    %s3153 = scalar_lea.vmem [#allocation13], 640
    %v3154 = vld [vmem:[%s3153] sm:$0xff]
    %v3155 = vld [vmem:[%s3153 + $0x8] sm:$0xff]
    %v3156 = vld [vmem:[%s3153 + $0x10] sm:$0xff]
    %v3157 = vld [vmem:[%s3153 + $0x18] sm:$0xff]
    %v3158 = vld [vmem:[%s3153 + $0x20] sm:$0xff]
    %v3159 = vld [vmem:[%s3153 + $0x28] sm:$0xff]
    %v3160 = vld [vmem:[%s3153 + $0x30] sm:$0xff]
    %v3161 = vld [vmem:[%s3153 + $0x38] sm:$0xff]
    %v3162 = vld [vmem:[%s3153 + $0x40] sm:$0xff]
    %v3163 = vld [vmem:[%s3153 + $0x48] sm:$0xff]
    %v3164 = vld [vmem:[%s3153 + $0x50] sm:$0xff]
    %v3165 = vld [vmem:[%s3153 + $0x58] sm:$0xff]
    %v3166 = vld [vmem:[%s3153 + $0x60] sm:$0xff]
    %v3167 = vld [vmem:[%s3153 + $0x68] sm:$0xff]
    %v3168 = vld [vmem:[%s3153 + $0x70] sm:$0xff]
    %v3169 = vld [vmem:[%s3153 + $0x78] sm:$0xff]
    %3170 = vmatprep.subr.mxu0 0.0
    %3171 = vmatpush1.msra.mxu0 %v3154
    %3172 = vmatprep.subr.mxu0 0.0
    %3173 = vmatpush1.msra.mxu0 %v3155
    %3174 = vmatprep.subr.mxu0 0.0
    %3175 = vmatpush1.msra.mxu0 %v3156
    %3176 = vmatprep.subr.mxu0 0.0
    %3177 = vmatpush1.msra.mxu0 %v3157
    %3178 = vmatprep.subr.mxu0 0.0
    %3179 = vmatpush1.msra.mxu0 %v3158
    %3180 = vmatprep.subr.mxu0 0.0
    %3181 = vmatpush1.msra.mxu0 %v3159
    %3182 = vmatprep.subr.mxu0 0.0
    %3183 = vmatpush1.msra.mxu0 %v3160
    %3184 = vmatprep.subr.mxu0 0.0
    %3185 = vmatpush1.msra.mxu0 %v3161
    %3186 = vmatprep.subr.mxu0 0.0
    %3187 = vmatpush1.msra.mxu0 %v3162
    %3188 = vmatprep.subr.mxu0 0.0
    %3189 = vmatpush1.msra.mxu0 %v3163
    %3190 = vmatprep.subr.mxu0 0.0
    %3191 = vmatpush1.msra.mxu0 %v3164
    %3192 = vmatprep.subr.mxu0 0.0
    %3193 = vmatpush1.msra.mxu0 %v3165
    %3194 = vmatprep.subr.mxu0 0.0
    %3195 = vmatpush1.msra.mxu0 %v3166
    %3196 = vmatprep.subr.mxu0 0.0
    %3197 = vmatpush1.msra.mxu0 %v3167
    %3198 = vmatprep.subr.mxu0 0.0
    %3199 = vmatpush1.msra.mxu0 %v3168
    %3200 = vmatprep.subr.mxu0 0.0
    %3201 = vmatpush1.msra.mxu0 %v3169
    %3202 = vmatprep.subr.mxu0 0.0
    %3203 = vmatpush1.msra.mxu0 0.0
    %3204 = vmatprep.subr.mxu0 0.0
    %3205 = vmatpush1.msra.mxu0 0.0
    %3206 = vmatprep.subr.mxu0 0.0
    %3207 = vmatpush1.msra.mxu0 0.0
    %3208 = vmatprep.subr.mxu0 0.0
    %3209 = vmatpush1.msra.mxu0 0.0
    %3210 = vmatprep.subr.mxu0 0.0
    %3211 = vmatpush1.msra.mxu0 0.0
    %3212 = vmatprep.subr.mxu0 0.0
    %3213 = vmatpush1.msra.mxu0 0.0
    %3214 = vmatprep.subr.mxu0 0.0
    %3215 = vmatpush1.msra.mxu0 0.0
    %3216 = vmatprep.subr.mxu0 0.0
    %3217 = vmatpush1.msra.mxu0 0.0
    %3218 = vmatprep.subr.mxu0 0.0
    %3219 = vmatpush1.msra.mxu0 0.0
    %3220 = vmatprep.subr.mxu0 0.0
    %3221 = vmatpush1.msra.mxu0 0.0
    %3222 = vmatprep.subr.mxu0 0.0
    %3223 = vmatpush1.msra.mxu0 0.0
    %3224 = vmatprep.subr.mxu0 0.0
    %3225 = vmatpush1.msra.mxu0 0.0
    %3226 = vmatprep.subr.mxu0 0.0
    %3227 = vmatpush1.msra.mxu0 0.0
    %3228 = vmatprep.subr.mxu0 0.0
    %3229 = vmatpush1.msra.mxu0 0.0
    %3230 = vmatprep.subr.mxu0 0.0
    %3231 = vmatpush1.msra.mxu0 0.0
    %3232 = vmatprep.subr.mxu0 0.0
    %3233 = vmatpush1.msra.mxu0 0.0
    %3234 = vmatprep.mubr.f32.mxu0 0.0
    %3235 = vmatmul.mubr.f32.gmra.mrb[0].mxu0 %v3150
    %v3236 = vpop.f32.mrb[0].mxu0
    %v3237 = vadd.f32 0.0, %v3236
    %v3238 = vpop.f32.mrb[0].mxu0
    %3239 = vmatprep.mubr.f32.mxu0 0.0
    %3240 = vmatmul.mubr.f32.gmra.mrb[0].mxu0 %v3151
    %v3241 = vpop.f32.mrb[0].mxu0
    %v3242 = vadd.f32 0.0, %v3241
    %v3243 = vpop.f32.mrb[0].mxu0
    %3244 = vmatprep.mubr.f32.mxu0 0.0
    %3245 = vmatmul.mubr.f32.gmra.mrb[0].mxu0 %v3152
    %v3246 = vpop.f32.mrb[0].mxu0
    %v3247 = vadd.f32 0.0, %v3246
    %v3248 = vpop.f32.mrb[0].mxu0
    %3249 = vdwg.mxu0
    %v3250 = vadd.f32 %v3147, %v3237
    %v3251 = vadd.f32 %v3148, %v3242
    %v3252 = vadd.f32 %v3149, %v3247
    %v3253 = vld [vmem:[%s0 + $0x7] sm:$0xff]
    %v3254 = vld [vmem:[%s0 + $0xf] sm:$0xff]
    %v3255 = vld [vmem:[%s0 + $0x17] sm:$0x1]
    %s3256 = scalar_lea.vmem [#allocation13], 768
    %v3257 = vld [vmem:[%s3256] sm:$0xff]
    %v3258 = vld [vmem:[%s3256 + $0x8] sm:$0xff]
    %v3259 = vld [vmem:[%s3256 + $0x10] sm:$0xff]
    %v3260 = vld [vmem:[%s3256 + $0x18] sm:$0xff]
    %v3261 = vld [vmem:[%s3256 + $0x20] sm:$0xff]
    %v3262 = vld [vmem:[%s3256 + $0x28] sm:$0xff]
    %v3263 = vld [vmem:[%s3256 + $0x30] sm:$0xff]
    %v3264 = vld [vmem:[%s3256 + $0x38] sm:$0xff]
    %v3265 = vld [vmem:[%s3256 + $0x40] sm:$0xff]
    %v3266 = vld [vmem:[%s3256 + $0x48] sm:$0xff]
    %v3267 = vld [vmem:[%s3256 + $0x50] sm:$0xff]
    %v3268 = vld [vmem:[%s3256 + $0x58] sm:$0xff]
    %v3269 = vld [vmem:[%s3256 + $0x60] sm:$0xff]
    %v3270 = vld [vmem:[%s3256 + $0x68] sm:$0xff]
    %v3271 = vld [vmem:[%s3256 + $0x70] sm:$0xff]
    %v3272 = vld [vmem:[%s3256 + $0x78] sm:$0xff]
    %3273 = vmatprep.subr.mxu0 0.0
    %3274 = vmatpush1.msra.mxu0 %v3257
    %3275 = vmatprep.subr.mxu0 0.0
    %3276 = vmatpush1.msra.mxu0 %v3258
    %3277 = vmatprep.subr.mxu0 0.0
    %3278 = vmatpush1.msra.mxu0 %v3259
    %3279 = vmatprep.subr.mxu0 0.0
    %3280 = vmatpush1.msra.mxu0 %v3260
    %3281 = vmatprep.subr.mxu0 0.0
    %3282 = vmatpush1.msra.mxu0 %v3261
    %3283 = vmatprep.subr.mxu0 0.0
    %3284 = vmatpush1.msra.mxu0 %v3262
    %3285 = vmatprep.subr.mxu0 0.0
    %3286 = vmatpush1.msra.mxu0 %v3263
    %3287 = vmatprep.subr.mxu0 0.0
    %3288 = vmatpush1.msra.mxu0 %v3264
    %3289 = vmatprep.subr.mxu0 0.0
    %3290 = vmatpush1.msra.mxu0 %v3265
    %3291 = vmatprep.subr.mxu0 0.0
    %3292 = vmatpush1.msra.mxu0 %v3266
    %3293 = vmatprep.subr.mxu0 0.0
    %3294 = vmatpush1.msra.mxu0 %v3267
    %3295 = vmatprep.subr.mxu0 0.0
    %3296 = vmatpush1.msra.mxu0 %v3268
    %3297 = vmatprep.subr.mxu0 0.0
    %3298 = vmatpush1.msra.mxu0 %v3269
    %3299 = vmatprep.subr.mxu0 0.0
    %3300 = vmatpush1.msra.mxu0 %v3270
    %3301 = vmatprep.subr.mxu0 0.0
    %3302 = vmatpush1.msra.mxu0 %v3271
    %3303 = vmatprep.subr.mxu0 0.0
    %3304 = vmatpush1.msra.mxu0 %v3272
    %3305 = vmatprep.subr.mxu0 0.0
    %3306 = vmatpush1.msra.mxu0 0.0
    %3307 = vmatprep.subr.mxu0 0.0
    %3308 = vmatpush1.msra.mxu0 0.0
    %3309 = vmatprep.subr.mxu0 0.0
    %3310 = vmatpush1.msra.mxu0 0.0
    %3311 = vmatprep.subr.mxu0 0.0
    %3312 = vmatpush1.msra.mxu0 0.0
    %3313 = vmatprep.subr.mxu0 0.0
    %3314 = vmatpush1.msra.mxu0 0.0
    %3315 = vmatprep.subr.mxu0 0.0
    %3316 = vmatpush1.msra.mxu0 0.0
    %3317 = vmatprep.subr.mxu0 0.0
    %3318 = vmatpush1.msra.mxu0 0.0
    %3319 = vmatprep.subr.mxu0 0.0
    %3320 = vmatpush1.msra.mxu0 0.0
    %3321 = vmatprep.subr.mxu0 0.0
    %3322 = vmatpush1.msra.mxu0 0.0
    %3323 = vmatprep.subr.mxu0 0.0
    %3324 = vmatpush1.msra.mxu0 0.0
    %3325 = vmatprep.subr.mxu0 0.0
    %3326 = vmatpush1.msra.mxu0 0.0
    %3327 = vmatprep.subr.mxu0 0.0
    %3328 = vmatpush1.msra.mxu0 0.0
    %3329 = vmatprep.subr.mxu0 0.0
    %3330 = vmatpush1.msra.mxu0 0.0
    %3331 = vmatprep.subr.mxu0 0.0
    %3332 = vmatpush1.msra.mxu0 0.0
    %3333 = vmatprep.subr.mxu0 0.0
    %3334 = vmatpush1.msra.mxu0 0.0
    %3335 = vmatprep.subr.mxu0 0.0
    %3336 = vmatpush1.msra.mxu0 0.0
    %3337 = vmatprep.mubr.f32.mxu0 0.0
    %3338 = vmatmul.mubr.f32.gmra.mrb[0].mxu0 %v3253
    %v3339 = vpop.f32.mrb[0].mxu0
    %v3340 = vadd.f32 0.0, %v3339
    %v3341 = vpop.f32.mrb[0].mxu0
    %3342 = vmatprep.mubr.f32.mxu0 0.0
    %3343 = vmatmul.mubr.f32.gmra.mrb[0].mxu0 %v3254
    %v3344 = vpop.f32.mrb[0].mxu0
    %v3345 = vadd.f32 0.0, %v3344
    %v3346 = vpop.f32.mrb[0].mxu0
    %3347 = vmatprep.mubr.f32.mxu0 0.0
    %3348 = vmatmul.mubr.f32.gmra.mrb[0].mxu0 %v3255
    %v3349 = vpop.f32.mrb[0].mxu0
    %v3350 = vadd.f32 0.0, %v3349
    %v3351 = vpop.f32.mrb[0].mxu0
    %3352 = vdwg.mxu0
    %v3353 = vadd.f32 %v3250, %v3340
    %v3354 = vadd.f32 %v3251, %v3345
    %v3355 = vadd.f32 %v3252, %v3350
    %s3356 = scalar_lea.vmem %s9, 6
    %v3357 = vld [vmem:[%s3356] sm:$0x1]
    %v3359 = vlaneseq
    %v3360 = vshrl.u32 %v3359, 7
    %v3361 = vsub.s32 0, %v3360
    %v3362 = vrot.slane %v3357, %v3361
    %v3364 = vadd.f32 %v3353, %v3362
    %v3365 = vadd.f32 %v3354, %v3362
    %v3366 = vadd.f32 %v3355, %v3362
    %v3367 = vmax.f32 %v3364, 0.0
    %v3368 = vmax.f32 %v3365, 0.0
    %v3369 = vmax.f32 %v3366, 0.0
    %s3370 = scalar_lea.vmem %s10, 6
    %v3371 = vld [vmem:[%s3370] sm:$0x1]
    %v3373 = vlaneseq
    %v3374 = vshrl.u32 %v3373, 7
    %v3375 = vsub.s32 0, %v3374
    %v3376 = vrot.slane %v3371, %v3375
    %v3378 = vmul.f32 %v3367, %v3376
    %v3379 = vmul.f32 %v3368, %v3376
    %v3380 = vmul.f32 %v3369, %v3376
    %s3381 = scalar_lea.vmem %s11, 6
    %v3382 = vld [vmem:[%s3381] sm:$0x1]
    %v3384 = vlaneseq
    %v3385 = vshrl.u32 %v3384, 7
    %v3386 = vsub.s32 0, %v3385
    %v3387 = vrot.slane %v3382, %v3386
    %v3389 = vadd.f32 %v3378, %v3387
    %v3390 = vadd.f32 %v3379, %v3387
    %v3391 = vadd.f32 %v3380, %v3387
    %v3392 = vsel %vm283, -inf, %v3389
    %v3393 = vsel %vm284, -inf, %v3390
    %v3396 = vrot.slane %v3392, 7
    %v3397 = vrot.slane %v3393, 7
    %v3398 = vsel %vm289, %v3396, %v3397
    %v3402 = vmax.f32 %v3389, %v3396
    %v3403 = vmax.f32 %v3390, %v3398
    %v3404 = vmax.f32 %v3391, %v3397
    %v3408 = vrot.slane %v3402, 1
    %v3409 = vrot.slane %v3403, 1
    %v3410 = vsel %vm302, %v3408, %v3409
    %v3411 = vrot.slane %v3404, 1
    %v3412 = vsel %vm302, %v3409, %v3411
    %3415 = vst [vmem:[#allocation16 + $0x30] sm:$0xff] %v3410
    %3416 = vst [vmem:[#allocation16 + $0x70] sm:$0xff] %v3412
    %v3417 = vld [vmem:[%s0] sm:$0xff]
    %v3418 = vld [vmem:[%s0 + $0x8] sm:$0xff]
    %v3419 = vld [vmem:[%s0 + $0x10] sm:$0x1]
    %v3420 = vld [vmem:[#allocation14] sm:$0xff]
    %v3421 = vld [vmem:[#allocation14 + $0x8] sm:$0xff]
    %v3422 = vld [vmem:[#allocation14 + $0x10] sm:$0xff]
    %v3423 = vld [vmem:[#allocation14 + $0x18] sm:$0xff]
    %v3424 = vld [vmem:[#allocation14 + $0x20] sm:$0xff]
    %v3425 = vld [vmem:[#allocation14 + $0x28] sm:$0xff]
    %v3426 = vld [vmem:[#allocation14 + $0x30] sm:$0xff]
    %v3427 = vld [vmem:[#allocation14 + $0x38] sm:$0xff]
    %v3428 = vld [vmem:[#allocation14 + $0x40] sm:$0xff]
    %v3429 = vld [vmem:[#allocation14 + $0x48] sm:$0xff]
    %v3430 = vld [vmem:[#allocation14 + $0x50] sm:$0xff]
    %v3431 = vld [vmem:[#allocation14 + $0x58] sm:$0xff]
    %v3432 = vld [vmem:[#allocation14 + $0x60] sm:$0xff]
    %v3433 = vld [vmem:[#allocation14 + $0x68] sm:$0xff]
    %v3434 = vld [vmem:[#allocation14 + $0x70] sm:$0xff]
    %v3435 = vld [vmem:[#allocation14 + $0x78] sm:$0xff]
    %v3436 = vld [vmem:[%s0 + $0x1] sm:$0xff]
    %v3437 = vld [vmem:[%s0 + $0x9] sm:$0xff]
    %v3438 = vld [vmem:[%s0 + $0x11] sm:$0x1]
    %s3439 = scalar_lea.vmem [#allocation14], 128
    %v3440 = vld [vmem:[%s3439] sm:$0xff]
    %v3441 = vld [vmem:[%s3439 + $0x8] sm:$0xff]
    %v3442 = vld [vmem:[%s3439 + $0x10] sm:$0xff]
    %v3443 = vld [vmem:[%s3439 + $0x18] sm:$0xff]
    %v3444 = vld [vmem:[%s3439 + $0x20] sm:$0xff]
    %v3445 = vld [vmem:[%s3439 + $0x28] sm:$0xff]
    %v3446 = vld [vmem:[%s3439 + $0x30] sm:$0xff]
    %v3447 = vld [vmem:[%s3439 + $0x38] sm:$0xff]
    %v3448 = vld [vmem:[%s3439 + $0x40] sm:$0xff]
    %v3449 = vld [vmem:[%s3439 + $0x48] sm:$0xff]
    %v3450 = vld [vmem:[%s3439 + $0x50] sm:$0xff]
    %v3451 = vld [vmem:[%s3439 + $0x58] sm:$0xff]
    %v3452 = vld [vmem:[%s3439 + $0x60] sm:$0xff]
    %v3453 = vld [vmem:[%s3439 + $0x68] sm:$0xff]
    %v3454 = vld [vmem:[%s3439 + $0x70] sm:$0xff]
    %v3455 = vld [vmem:[%s3439 + $0x78] sm:$0xff]
    %3456 = vmatprep.subr.mxu0 0.0
    %3457 = vmatpush1.msra.mxu0 %v3440
    %3458 = vmatprep.subr.mxu0 0.0
    %3459 = vmatpush1.msra.mxu0 %v3441
    %3460 = vmatprep.subr.mxu0 0.0
    %3461 = vmatpush1.msra.mxu0 %v3442
    %3462 = vmatprep.subr.mxu0 0.0
    %3463 = vmatpush1.msra.mxu0 %v3443
    %3464 = vmatprep.subr.mxu0 0.0
    %3465 = vmatpush1.msra.mxu0 %v3444
    %3466 = vmatprep.subr.mxu0 0.0
    %3467 = vmatpush1.msra.mxu0 %v3445
    %3468 = vmatprep.subr.mxu0 0.0
    %3469 = vmatpush1.msra.mxu0 %v3446
    %3470 = vmatprep.subr.mxu0 0.0
    %3471 = vmatpush1.msra.mxu0 %v3447
    %3472 = vmatprep.subr.mxu0 0.0
    %3473 = vmatpush1.msra.mxu0 %v3448
    %3474 = vmatprep.subr.mxu0 0.0
    %3475 = vmatpush1.msra.mxu0 %v3449
    %3476 = vmatprep.subr.mxu0 0.0
    %3477 = vmatpush1.msra.mxu0 %v3450
    %3478 = vmatprep.subr.mxu0 0.0
    %3479 = vmatpush1.msra.mxu0 %v3451
    %3480 = vmatprep.subr.mxu0 0.0
    %3481 = vmatpush1.msra.mxu0 %v3452
    %3482 = vmatprep.subr.mxu0 0.0
    %3483 = vmatpush1.msra.mxu0 %v3453
    %3484 = vmatprep.subr.mxu0 0.0
    %3485 = vmatpush1.msra.mxu0 %v3454
    %3486 = vmatprep.subr.mxu0 0.0
    %3487 = vmatpush1.msra.mxu0 %v3455
    %3488 = vmatprep.subr.mxu0 0.0
    %3489 = vmatpush1.msra.mxu0 0.0
    %3490 = vmatprep.subr.mxu0 0.0
    %3491 = vmatpush1.msra.mxu0 0.0
    %3492 = vmatprep.subr.mxu0 0.0
    %3493 = vmatpush1.msra.mxu0 0.0
    %3494 = vmatprep.subr.mxu0 0.0
    %3495 = vmatpush1.msra.mxu0 0.0
    %3496 = vmatprep.subr.mxu0 0.0
    %3497 = vmatpush1.msra.mxu0 0.0
    %3498 = vmatprep.subr.mxu0 0.0
    %3499 = vmatpush1.msra.mxu0 0.0
    %3500 = vmatprep.subr.mxu0 0.0
    %3501 = vmatpush1.msra.mxu0 0.0
    %3502 = vmatprep.subr.mxu0 0.0
    %3503 = vmatpush1.msra.mxu0 0.0
    %3504 = vmatprep.subr.mxu0 0.0
    %3505 = vmatpush1.msra.mxu0 0.0
    %3506 = vmatprep.subr.mxu0 0.0
    %3507 = vmatpush1.msra.mxu0 0.0
    %3508 = vmatprep.subr.mxu0 0.0
    %3509 = vmatpush1.msra.mxu0 0.0
    %3510 = vmatprep.subr.mxu0 0.0
    %3511 = vmatpush1.msra.mxu0 0.0
    %3512 = vmatprep.subr.mxu0 0.0
    %3513 = vmatpush1.msra.mxu0 0.0
    %3514 = vmatprep.subr.mxu0 0.0
    %3515 = vmatpush1.msra.mxu0 0.0
    %3516 = vmatprep.subr.mxu0 0.0
    %3517 = vmatpush1.msra.mxu0 0.0
    %3518 = vmatprep.subr.mxu0 0.0
    %3519 = vmatpush1.msra.mxu0 0.0
    %3520 = vmatprep.mubr.f32.mxu0 0.0
    %3521 = vmatmul.mubr.f32.gmra.mrb[0].mxu0 %v3436
    %v3522 = vpop.f32.mrb[0].mxu0
    %v3523 = vadd.f32 0.0, %v3522
    %v3524 = vpop.f32.mrb[0].mxu0
    %3525 = vmatprep.mubr.f32.mxu0 0.0
    %3526 = vmatmul.mubr.f32.gmra.mrb[0].mxu0 %v3437
    %v3527 = vpop.f32.mrb[0].mxu0
    %v3528 = vadd.f32 0.0, %v3527
    %v3529 = vpop.f32.mrb[0].mxu0
    %3530 = vmatprep.mubr.f32.mxu0 0.0
    %3531 = vmatmul.mubr.f32.gmra.mrb[0].mxu0 %v3438
    %v3532 = vpop.f32.mrb[0].mxu0
    %v3533 = vadd.f32 0.0, %v3532
    %v3534 = vpop.f32.mrb[0].mxu0
    %3535 = vdwg.mxu0
    %3536 = vmatprep.subr.mxu0 0.0
    %3537 = vmatpush1.msra.mxu0 %v3420
    %3538 = vmatprep.subr.mxu0 0.0
    %3539 = vmatpush1.msra.mxu0 %v3421
    %3540 = vmatprep.subr.mxu0 0.0
    %3541 = vmatpush1.msra.mxu0 %v3422
    %3542 = vmatprep.subr.mxu0 0.0
    %3543 = vmatpush1.msra.mxu0 %v3423
    %3544 = vmatprep.subr.mxu0 0.0
    %3545 = vmatpush1.msra.mxu0 %v3424
    %3546 = vmatprep.subr.mxu0 0.0
    %3547 = vmatpush1.msra.mxu0 %v3425
    %3548 = vmatprep.subr.mxu0 0.0
    %3549 = vmatpush1.msra.mxu0 %v3426
    %3550 = vmatprep.subr.mxu0 0.0
    %3551 = vmatpush1.msra.mxu0 %v3427
    %3552 = vmatprep.subr.mxu0 0.0
    %3553 = vmatpush1.msra.mxu0 %v3428
    %3554 = vmatprep.subr.mxu0 0.0
    %3555 = vmatpush1.msra.mxu0 %v3429
    %3556 = vmatprep.subr.mxu0 0.0
    %3557 = vmatpush1.msra.mxu0 %v3430
    %3558 = vmatprep.subr.mxu0 0.0
    %3559 = vmatpush1.msra.mxu0 %v3431
    %3560 = vmatprep.subr.mxu0 0.0
    %3561 = vmatpush1.msra.mxu0 %v3432
    %3562 = vmatprep.subr.mxu0 0.0
    %3563 = vmatpush1.msra.mxu0 %v3433
    %3564 = vmatprep.subr.mxu0 0.0
    %3565 = vmatpush1.msra.mxu0 %v3434
    %3566 = vmatprep.subr.mxu0 0.0
    %3567 = vmatpush1.msra.mxu0 %v3435
    %3568 = vmatprep.subr.mxu0 0.0
    %3569 = vmatpush1.msra.mxu0 0.0
    %3570 = vmatprep.subr.mxu0 0.0
    %3571 = vmatpush1.msra.mxu0 0.0
    %3572 = vmatprep.subr.mxu0 0.0
    %3573 = vmatpush1.msra.mxu0 0.0
    %3574 = vmatprep.subr.mxu0 0.0
    %3575 = vmatpush1.msra.mxu0 0.0
    %3576 = vmatprep.subr.mxu0 0.0
    %3577 = vmatpush1.msra.mxu0 0.0
    %3578 = vmatprep.subr.mxu0 0.0
    %3579 = vmatpush1.msra.mxu0 0.0
    %3580 = vmatprep.subr.mxu0 0.0
    %3581 = vmatpush1.msra.mxu0 0.0
    %3582 = vmatprep.subr.mxu0 0.0
    %3583 = vmatpush1.msra.mxu0 0.0
    %3584 = vmatprep.subr.mxu0 0.0
    %3585 = vmatpush1.msra.mxu0 0.0
    %3586 = vmatprep.subr.mxu0 0.0
    %3587 = vmatpush1.msra.mxu0 0.0
    %3588 = vmatprep.subr.mxu0 0.0
    %3589 = vmatpush1.msra.mxu0 0.0
    %3590 = vmatprep.subr.mxu0 0.0
    %3591 = vmatpush1.msra.mxu0 0.0
    %3592 = vmatprep.subr.mxu0 0.0
    %3593 = vmatpush1.msra.mxu0 0.0
    %3594 = vmatprep.subr.mxu0 0.0
    %3595 = vmatpush1.msra.mxu0 0.0
    %3596 = vmatprep.subr.mxu0 0.0
    %3597 = vmatpush1.msra.mxu0 0.0
    %3598 = vmatprep.subr.mxu0 0.0
    %3599 = vmatpush1.msra.mxu0 0.0
    %3600 = vmatprep.mubr.f32.mxu0 0.0
    %3601 = vmatmul.mubr.f32.gmra.mrb[0].mxu0 %v3417
    %v3602 = vpop.f32.mrb[0].mxu0
    %v3603 = vadd.f32 %v3523, %v3602
    %v3604 = vpop.f32.mrb[0].mxu0
    %3605 = vmatprep.mubr.f32.mxu0 0.0
    %3606 = vmatmul.mubr.f32.gmra.mrb[0].mxu0 %v3418
    %v3607 = vpop.f32.mrb[0].mxu0
    %v3608 = vadd.f32 %v3528, %v3607
    %v3609 = vpop.f32.mrb[0].mxu0
    %3610 = vmatprep.mubr.f32.mxu0 0.0
    %3611 = vmatmul.mubr.f32.gmra.mrb[0].mxu0 %v3419
    %v3612 = vpop.f32.mrb[0].mxu0
    %v3613 = vadd.f32 %v3533, %v3612
    %v3614 = vpop.f32.mrb[0].mxu0
    %3615 = vdwg.mxu0
    %v3616 = vld [vmem:[%s0 + $0x2] sm:$0xff]
    %v3617 = vld [vmem:[%s0 + $0xa] sm:$0xff]
    %v3618 = vld [vmem:[%s0 + $0x12] sm:$0x1]
    %s3619 = scalar_lea.vmem [#allocation14], 256
    %v3620 = vld [vmem:[%s3619] sm:$0xff]
    %v3621 = vld [vmem:[%s3619 + $0x8] sm:$0xff]
    %v3622 = vld [vmem:[%s3619 + $0x10] sm:$0xff]
    %v3623 = vld [vmem:[%s3619 + $0x18] sm:$0xff]
    %v3624 = vld [vmem:[%s3619 + $0x20] sm:$0xff]
    %v3625 = vld [vmem:[%s3619 + $0x28] sm:$0xff]
    %v3626 = vld [vmem:[%s3619 + $0x30] sm:$0xff]
    %v3627 = vld [vmem:[%s3619 + $0x38] sm:$0xff]
    %v3628 = vld [vmem:[%s3619 + $0x40] sm:$0xff]
    %v3629 = vld [vmem:[%s3619 + $0x48] sm:$0xff]
    %v3630 = vld [vmem:[%s3619 + $0x50] sm:$0xff]
    %v3631 = vld [vmem:[%s3619 + $0x58] sm:$0xff]
    %v3632 = vld [vmem:[%s3619 + $0x60] sm:$0xff]
    %v3633 = vld [vmem:[%s3619 + $0x68] sm:$0xff]
    %v3634 = vld [vmem:[%s3619 + $0x70] sm:$0xff]
    %v3635 = vld [vmem:[%s3619 + $0x78] sm:$0xff]
    %3636 = vmatprep.subr.mxu0 0.0
    %3637 = vmatpush1.msra.mxu0 %v3620
    %3638 = vmatprep.subr.mxu0 0.0
    %3639 = vmatpush1.msra.mxu0 %v3621
    %3640 = vmatprep.subr.mxu0 0.0
    %3641 = vmatpush1.msra.mxu0 %v3622
    %3642 = vmatprep.subr.mxu0 0.0
    %3643 = vmatpush1.msra.mxu0 %v3623
    %3644 = vmatprep.subr.mxu0 0.0
    %3645 = vmatpush1.msra.mxu0 %v3624
    %3646 = vmatprep.subr.mxu0 0.0
    %3647 = vmatpush1.msra.mxu0 %v3625
    %3648 = vmatprep.subr.mxu0 0.0
    %3649 = vmatpush1.msra.mxu0 %v3626
    %3650 = vmatprep.subr.mxu0 0.0
    %3651 = vmatpush1.msra.mxu0 %v3627
    %3652 = vmatprep.subr.mxu0 0.0
    %3653 = vmatpush1.msra.mxu0 %v3628
    %3654 = vmatprep.subr.mxu0 0.0
    %3655 = vmatpush1.msra.mxu0 %v3629
    %3656 = vmatprep.subr.mxu0 0.0
    %3657 = vmatpush1.msra.mxu0 %v3630
    %3658 = vmatprep.subr.mxu0 0.0
    %3659 = vmatpush1.msra.mxu0 %v3631
    %3660 = vmatprep.subr.mxu0 0.0
    %3661 = vmatpush1.msra.mxu0 %v3632
    %3662 = vmatprep.subr.mxu0 0.0
    %3663 = vmatpush1.msra.mxu0 %v3633
    %3664 = vmatprep.subr.mxu0 0.0
    %3665 = vmatpush1.msra.mxu0 %v3634
    %3666 = vmatprep.subr.mxu0 0.0
    %3667 = vmatpush1.msra.mxu0 %v3635
    %3668 = vmatprep.subr.mxu0 0.0
    %3669 = vmatpush1.msra.mxu0 0.0
    %3670 = vmatprep.subr.mxu0 0.0
    %3671 = vmatpush1.msra.mxu0 0.0
    %3672 = vmatprep.subr.mxu0 0.0
    %3673 = vmatpush1.msra.mxu0 0.0
    %3674 = vmatprep.subr.mxu0 0.0
    %3675 = vmatpush1.msra.mxu0 0.0
    %3676 = vmatprep.subr.mxu0 0.0
    %3677 = vmatpush1.msra.mxu0 0.0
    %3678 = vmatprep.subr.mxu0 0.0
    %3679 = vmatpush1.msra.mxu0 0.0
    %3680 = vmatprep.subr.mxu0 0.0
    %3681 = vmatpush1.msra.mxu0 0.0
    %3682 = vmatprep.subr.mxu0 0.0
    %3683 = vmatpush1.msra.mxu0 0.0
    %3684 = vmatprep.subr.mxu0 0.0
    %3685 = vmatpush1.msra.mxu0 0.0
    %3686 = vmatprep.subr.mxu0 0.0
    %3687 = vmatpush1.msra.mxu0 0.0
    %3688 = vmatprep.subr.mxu0 0.0
    %3689 = vmatpush1.msra.mxu0 0.0
    %3690 = vmatprep.subr.mxu0 0.0
    %3691 = vmatpush1.msra.mxu0 0.0
    %3692 = vmatprep.subr.mxu0 0.0
    %3693 = vmatpush1.msra.mxu0 0.0
    %3694 = vmatprep.subr.mxu0 0.0
    %3695 = vmatpush1.msra.mxu0 0.0
    %3696 = vmatprep.subr.mxu0 0.0
    %3697 = vmatpush1.msra.mxu0 0.0
    %3698 = vmatprep.subr.mxu0 0.0
    %3699 = vmatpush1.msra.mxu0 0.0
    %3700 = vmatprep.mubr.f32.mxu0 0.0
    %3701 = vmatmul.mubr.f32.gmra.mrb[0].mxu0 %v3616
    %v3702 = vpop.f32.mrb[0].mxu0
    %v3703 = vadd.f32 0.0, %v3702
    %v3704 = vpop.f32.mrb[0].mxu0
    %3705 = vmatprep.mubr.f32.mxu0 0.0
    %3706 = vmatmul.mubr.f32.gmra.mrb[0].mxu0 %v3617
    %v3707 = vpop.f32.mrb[0].mxu0
    %v3708 = vadd.f32 0.0, %v3707
    %v3709 = vpop.f32.mrb[0].mxu0
    %3710 = vmatprep.mubr.f32.mxu0 0.0
    %3711 = vmatmul.mubr.f32.gmra.mrb[0].mxu0 %v3618
    %v3712 = vpop.f32.mrb[0].mxu0
    %v3713 = vadd.f32 0.0, %v3712
    %v3714 = vpop.f32.mrb[0].mxu0
    %3715 = vdwg.mxu0
    %v3716 = vadd.f32 %v3603, %v3703
    %v3717 = vadd.f32 %v3608, %v3708
    %v3718 = vadd.f32 %v3613, %v3713
    %v3719 = vld [vmem:[%s0 + $0x3] sm:$0xff]
    %v3720 = vld [vmem:[%s0 + $0xb] sm:$0xff]
    %v3721 = vld [vmem:[%s0 + $0x13] sm:$0x1]
    %s3722 = scalar_lea.vmem [#allocation14], 384
    %v3723 = vld [vmem:[%s3722] sm:$0xff]
    %v3724 = vld [vmem:[%s3722 + $0x8] sm:$0xff]
    %v3725 = vld [vmem:[%s3722 + $0x10] sm:$0xff]
    %v3726 = vld [vmem:[%s3722 + $0x18] sm:$0xff]
    %v3727 = vld [vmem:[%s3722 + $0x20] sm:$0xff]
    %v3728 = vld [vmem:[%s3722 + $0x28] sm:$0xff]
    %v3729 = vld [vmem:[%s3722 + $0x30] sm:$0xff]
    %v3730 = vld [vmem:[%s3722 + $0x38] sm:$0xff]
    %v3731 = vld [vmem:[%s3722 + $0x40] sm:$0xff]
    %v3732 = vld [vmem:[%s3722 + $0x48] sm:$0xff]
    %v3733 = vld [vmem:[%s3722 + $0x50] sm:$0xff]
    %v3734 = vld [vmem:[%s3722 + $0x58] sm:$0xff]
    %v3735 = vld [vmem:[%s3722 + $0x60] sm:$0xff]
    %v3736 = vld [vmem:[%s3722 + $0x68] sm:$0xff]
    %v3737 = vld [vmem:[%s3722 + $0x70] sm:$0xff]
    %v3738 = vld [vmem:[%s3722 + $0x78] sm:$0xff]
    %3739 = vmatprep.subr.mxu0 0.0
    %3740 = vmatpush1.msra.mxu0 %v3723
    %3741 = vmatprep.subr.mxu0 0.0
    %3742 = vmatpush1.msra.mxu0 %v3724
    %3743 = vmatprep.subr.mxu0 0.0
    %3744 = vmatpush1.msra.mxu0 %v3725
    %3745 = vmatprep.subr.mxu0 0.0
    %3746 = vmatpush1.msra.mxu0 %v3726
    %3747 = vmatprep.subr.mxu0 0.0
    %3748 = vmatpush1.msra.mxu0 %v3727
    %3749 = vmatprep.subr.mxu0 0.0
    %3750 = vmatpush1.msra.mxu0 %v3728
    %3751 = vmatprep.subr.mxu0 0.0
    %3752 = vmatpush1.msra.mxu0 %v3729
    %3753 = vmatprep.subr.mxu0 0.0
    %3754 = vmatpush1.msra.mxu0 %v3730
    %3755 = vmatprep.subr.mxu0 0.0
    %3756 = vmatpush1.msra.mxu0 %v3731
    %3757 = vmatprep.subr.mxu0 0.0
    %3758 = vmatpush1.msra.mxu0 %v3732
    %3759 = vmatprep.subr.mxu0 0.0
    %3760 = vmatpush1.msra.mxu0 %v3733
    %3761 = vmatprep.subr.mxu0 0.0
    %3762 = vmatpush1.msra.mxu0 %v3734
    %3763 = vmatprep.subr.mxu0 0.0
    %3764 = vmatpush1.msra.mxu0 %v3735
    %3765 = vmatprep.subr.mxu0 0.0
    %3766 = vmatpush1.msra.mxu0 %v3736
    %3767 = vmatprep.subr.mxu0 0.0
    %3768 = vmatpush1.msra.mxu0 %v3737
    %3769 = vmatprep.subr.mxu0 0.0
    %3770 = vmatpush1.msra.mxu0 %v3738
    %3771 = vmatprep.subr.mxu0 0.0
    %3772 = vmatpush1.msra.mxu0 0.0
    %3773 = vmatprep.subr.mxu0 0.0
    %3774 = vmatpush1.msra.mxu0 0.0
    %3775 = vmatprep.subr.mxu0 0.0
    %3776 = vmatpush1.msra.mxu0 0.0
    %3777 = vmatprep.subr.mxu0 0.0
    %3778 = vmatpush1.msra.mxu0 0.0
    %3779 = vmatprep.subr.mxu0 0.0
    %3780 = vmatpush1.msra.mxu0 0.0
    %3781 = vmatprep.subr.mxu0 0.0
    %3782 = vmatpush1.msra.mxu0 0.0
    %3783 = vmatprep.subr.mxu0 0.0
    %3784 = vmatpush1.msra.mxu0 0.0
    %3785 = vmatprep.subr.mxu0 0.0
    %3786 = vmatpush1.msra.mxu0 0.0
    %3787 = vmatprep.subr.mxu0 0.0
    %3788 = vmatpush1.msra.mxu0 0.0
    %3789 = vmatprep.subr.mxu0 0.0
    %3790 = vmatpush1.msra.mxu0 0.0
    %3791 = vmatprep.subr.mxu0 0.0
    %3792 = vmatpush1.msra.mxu0 0.0
    %3793 = vmatprep.subr.mxu0 0.0
    %3794 = vmatpush1.msra.mxu0 0.0
    %3795 = vmatprep.subr.mxu0 0.0
    %3796 = vmatpush1.msra.mxu0 0.0
    %3797 = vmatprep.subr.mxu0 0.0
    %3798 = vmatpush1.msra.mxu0 0.0
    %3799 = vmatprep.subr.mxu0 0.0
    %3800 = vmatpush1.msra.mxu0 0.0
    %3801 = vmatprep.subr.mxu0 0.0
    %3802 = vmatpush1.msra.mxu0 0.0
    %3803 = vmatprep.mubr.f32.mxu0 0.0
    %3804 = vmatmul.mubr.f32.gmra.mrb[0].mxu0 %v3719
    %v3805 = vpop.f32.mrb[0].mxu0
    %v3806 = vadd.f32 0.0, %v3805
    %v3807 = vpop.f32.mrb[0].mxu0
    %3808 = vmatprep.mubr.f32.mxu0 0.0
    %3809 = vmatmul.mubr.f32.gmra.mrb[0].mxu0 %v3720
    %v3810 = vpop.f32.mrb[0].mxu0
    %v3811 = vadd.f32 0.0, %v3810
    %v3812 = vpop.f32.mrb[0].mxu0
    %3813 = vmatprep.mubr.f32.mxu0 0.0
    %3814 = vmatmul.mubr.f32.gmra.mrb[0].mxu0 %v3721
    %v3815 = vpop.f32.mrb[0].mxu0
    %v3816 = vadd.f32 0.0, %v3815
    %v3817 = vpop.f32.mrb[0].mxu0
    %3818 = vdwg.mxu0
    %v3819 = vadd.f32 %v3716, %v3806
    %v3820 = vadd.f32 %v3717, %v3811
    %v3821 = vadd.f32 %v3718, %v3816
    %v3822 = vld [vmem:[%s0 + $0x4] sm:$0xff]
    %v3823 = vld [vmem:[%s0 + $0xc] sm:$0xff]
    %v3824 = vld [vmem:[%s0 + $0x14] sm:$0x1]
    %s3825 = scalar_lea.vmem [#allocation14], 512
    %v3826 = vld [vmem:[%s3825] sm:$0xff]
    %v3827 = vld [vmem:[%s3825 + $0x8] sm:$0xff]
    %v3828 = vld [vmem:[%s3825 + $0x10] sm:$0xff]
    %v3829 = vld [vmem:[%s3825 + $0x18] sm:$0xff]
    %v3830 = vld [vmem:[%s3825 + $0x20] sm:$0xff]
    %v3831 = vld [vmem:[%s3825 + $0x28] sm:$0xff]
    %v3832 = vld [vmem:[%s3825 + $0x30] sm:$0xff]
    %v3833 = vld [vmem:[%s3825 + $0x38] sm:$0xff]
    %v3834 = vld [vmem:[%s3825 + $0x40] sm:$0xff]
    %v3835 = vld [vmem:[%s3825 + $0x48] sm:$0xff]
    %v3836 = vld [vmem:[%s3825 + $0x50] sm:$0xff]
    %v3837 = vld [vmem:[%s3825 + $0x58] sm:$0xff]
    %v3838 = vld [vmem:[%s3825 + $0x60] sm:$0xff]
    %v3839 = vld [vmem:[%s3825 + $0x68] sm:$0xff]
    %v3840 = vld [vmem:[%s3825 + $0x70] sm:$0xff]
    %v3841 = vld [vmem:[%s3825 + $0x78] sm:$0xff]
    %3842 = vmatprep.subr.mxu0 0.0
    %3843 = vmatpush1.msra.mxu0 %v3826
    %3844 = vmatprep.subr.mxu0 0.0
    %3845 = vmatpush1.msra.mxu0 %v3827
    %3846 = vmatprep.subr.mxu0 0.0
    %3847 = vmatpush1.msra.mxu0 %v3828
    %3848 = vmatprep.subr.mxu0 0.0
    %3849 = vmatpush1.msra.mxu0 %v3829
    %3850 = vmatprep.subr.mxu0 0.0
    %3851 = vmatpush1.msra.mxu0 %v3830
    %3852 = vmatprep.subr.mxu0 0.0
    %3853 = vmatpush1.msra.mxu0 %v3831
    %3854 = vmatprep.subr.mxu0 0.0
    %3855 = vmatpush1.msra.mxu0 %v3832
    %3856 = vmatprep.subr.mxu0 0.0
    %3857 = vmatpush1.msra.mxu0 %v3833
    %3858 = vmatprep.subr.mxu0 0.0
    %3859 = vmatpush1.msra.mxu0 %v3834
    %3860 = vmatprep.subr.mxu0 0.0
    %3861 = vmatpush1.msra.mxu0 %v3835
    %3862 = vmatprep.subr.mxu0 0.0
    %3863 = vmatpush1.msra.mxu0 %v3836
    %3864 = vmatprep.subr.mxu0 0.0
    %3865 = vmatpush1.msra.mxu0 %v3837
    %3866 = vmatprep.subr.mxu0 0.0
    %3867 = vmatpush1.msra.mxu0 %v3838
    %3868 = vmatprep.subr.mxu0 0.0
    %3869 = vmatpush1.msra.mxu0 %v3839
    %3870 = vmatprep.subr.mxu0 0.0
    %3871 = vmatpush1.msra.mxu0 %v3840
    %3872 = vmatprep.subr.mxu0 0.0
    %3873 = vmatpush1.msra.mxu0 %v3841
    %3874 = vmatprep.subr.mxu0 0.0
    %3875 = vmatpush1.msra.mxu0 0.0
    %3876 = vmatprep.subr.mxu0 0.0
    %3877 = vmatpush1.msra.mxu0 0.0
    %3878 = vmatprep.subr.mxu0 0.0
    %3879 = vmatpush1.msra.mxu0 0.0
    %3880 = vmatprep.subr.mxu0 0.0
    %3881 = vmatpush1.msra.mxu0 0.0
    %3882 = vmatprep.subr.mxu0 0.0
    %3883 = vmatpush1.msra.mxu0 0.0
    %3884 = vmatprep.subr.mxu0 0.0
    %3885 = vmatpush1.msra.mxu0 0.0
    %3886 = vmatprep.subr.mxu0 0.0
    %3887 = vmatpush1.msra.mxu0 0.0
    %3888 = vmatprep.subr.mxu0 0.0
    %3889 = vmatpush1.msra.mxu0 0.0
    %3890 = vmatprep.subr.mxu0 0.0
    %3891 = vmatpush1.msra.mxu0 0.0
    %3892 = vmatprep.subr.mxu0 0.0
    %3893 = vmatpush1.msra.mxu0 0.0
    %3894 = vmatprep.subr.mxu0 0.0
    %3895 = vmatpush1.msra.mxu0 0.0
    %3896 = vmatprep.subr.mxu0 0.0
    %3897 = vmatpush1.msra.mxu0 0.0
    %3898 = vmatprep.subr.mxu0 0.0
    %3899 = vmatpush1.msra.mxu0 0.0
    %3900 = vmatprep.subr.mxu0 0.0
    %3901 = vmatpush1.msra.mxu0 0.0
    %3902 = vmatprep.subr.mxu0 0.0
    %3903 = vmatpush1.msra.mxu0 0.0
    %3904 = vmatprep.subr.mxu0 0.0
    %3905 = vmatpush1.msra.mxu0 0.0
    %3906 = vmatprep.mubr.f32.mxu0 0.0
    %3907 = vmatmul.mubr.f32.gmra.mrb[0].mxu0 %v3822
    %v3908 = vpop.f32.mrb[0].mxu0
    %v3909 = vadd.f32 0.0, %v3908
    %v3910 = vpop.f32.mrb[0].mxu0
    %3911 = vmatprep.mubr.f32.mxu0 0.0
    %3912 = vmatmul.mubr.f32.gmra.mrb[0].mxu0 %v3823
    %v3913 = vpop.f32.mrb[0].mxu0
    %v3914 = vadd.f32 0.0, %v3913
    %v3915 = vpop.f32.mrb[0].mxu0
    %3916 = vmatprep.mubr.f32.mxu0 0.0
    %3917 = vmatmul.mubr.f32.gmra.mrb[0].mxu0 %v3824
    %v3918 = vpop.f32.mrb[0].mxu0
    %v3919 = vadd.f32 0.0, %v3918
    %v3920 = vpop.f32.mrb[0].mxu0
    %3921 = vdwg.mxu0
    %v3922 = vadd.f32 %v3819, %v3909
    %v3923 = vadd.f32 %v3820, %v3914
    %v3924 = vadd.f32 %v3821, %v3919
    %v3925 = vld [vmem:[%s0 + $0x5] sm:$0xff]
    %v3926 = vld [vmem:[%s0 + $0xd] sm:$0xff]
    %v3927 = vld [vmem:[%s0 + $0x15] sm:$0x1]
    %s3928 = scalar_lea.vmem [#allocation14], 640
    %v3929 = vld [vmem:[%s3928] sm:$0xff]
    %v3930 = vld [vmem:[%s3928 + $0x8] sm:$0xff]
    %v3931 = vld [vmem:[%s3928 + $0x10] sm:$0xff]
    %v3932 = vld [vmem:[%s3928 + $0x18] sm:$0xff]
    %v3933 = vld [vmem:[%s3928 + $0x20] sm:$0xff]
    %v3934 = vld [vmem:[%s3928 + $0x28] sm:$0xff]
    %v3935 = vld [vmem:[%s3928 + $0x30] sm:$0xff]
    %v3936 = vld [vmem:[%s3928 + $0x38] sm:$0xff]
    %v3937 = vld [vmem:[%s3928 + $0x40] sm:$0xff]
    %v3938 = vld [vmem:[%s3928 + $0x48] sm:$0xff]
    %v3939 = vld [vmem:[%s3928 + $0x50] sm:$0xff]
    %v3940 = vld [vmem:[%s3928 + $0x58] sm:$0xff]
    %v3941 = vld [vmem:[%s3928 + $0x60] sm:$0xff]
    %v3942 = vld [vmem:[%s3928 + $0x68] sm:$0xff]
    %v3943 = vld [vmem:[%s3928 + $0x70] sm:$0xff]
    %v3944 = vld [vmem:[%s3928 + $0x78] sm:$0xff]
    %3945 = vmatprep.subr.mxu0 0.0
    %3946 = vmatpush1.msra.mxu0 %v3929
    %3947 = vmatprep.subr.mxu0 0.0
    %3948 = vmatpush1.msra.mxu0 %v3930
    %3949 = vmatprep.subr.mxu0 0.0
    %3950 = vmatpush1.msra.mxu0 %v3931
    %3951 = vmatprep.subr.mxu0 0.0
    %3952 = vmatpush1.msra.mxu0 %v3932
    %3953 = vmatprep.subr.mxu0 0.0
    %3954 = vmatpush1.msra.mxu0 %v3933
    %3955 = vmatprep.subr.mxu0 0.0
    %3956 = vmatpush1.msra.mxu0 %v3934
    %3957 = vmatprep.subr.mxu0 0.0
    %3958 = vmatpush1.msra.mxu0 %v3935
    %3959 = vmatprep.subr.mxu0 0.0
    %3960 = vmatpush1.msra.mxu0 %v3936
    %3961 = vmatprep.subr.mxu0 0.0
    %3962 = vmatpush1.msra.mxu0 %v3937
    %3963 = vmatprep.subr.mxu0 0.0
    %3964 = vmatpush1.msra.mxu0 %v3938
    %3965 = vmatprep.subr.mxu0 0.0
    %3966 = vmatpush1.msra.mxu0 %v3939
    %3967 = vmatprep.subr.mxu0 0.0
    %3968 = vmatpush1.msra.mxu0 %v3940
    %3969 = vmatprep.subr.mxu0 0.0
    %3970 = vmatpush1.msra.mxu0 %v3941
    %3971 = vmatprep.subr.mxu0 0.0
    %3972 = vmatpush1.msra.mxu0 %v3942
    %3973 = vmatprep.subr.mxu0 0.0
    %3974 = vmatpush1.msra.mxu0 %v3943
    %3975 = vmatprep.subr.mxu0 0.0
    %3976 = vmatpush1.msra.mxu0 %v3944
    %3977 = vmatprep.subr.mxu0 0.0
    %3978 = vmatpush1.msra.mxu0 0.0
    %3979 = vmatprep.subr.mxu0 0.0
    %3980 = vmatpush1.msra.mxu0 0.0
    %3981 = vmatprep.subr.mxu0 0.0
    %3982 = vmatpush1.msra.mxu0 0.0
    %3983 = vmatprep.subr.mxu0 0.0
    %3984 = vmatpush1.msra.mxu0 0.0
    %3985 = vmatprep.subr.mxu0 0.0
    %3986 = vmatpush1.msra.mxu0 0.0
    %3987 = vmatprep.subr.mxu0 0.0
    %3988 = vmatpush1.msra.mxu0 0.0
    %3989 = vmatprep.subr.mxu0 0.0
    %3990 = vmatpush1.msra.mxu0 0.0
    %3991 = vmatprep.subr.mxu0 0.0
    %3992 = vmatpush1.msra.mxu0 0.0
    %3993 = vmatprep.subr.mxu0 0.0
    %3994 = vmatpush1.msra.mxu0 0.0
    %3995 = vmatprep.subr.mxu0 0.0
    %3996 = vmatpush1.msra.mxu0 0.0
    %3997 = vmatprep.subr.mxu0 0.0
    %3998 = vmatpush1.msra.mxu0 0.0
    %3999 = vmatprep.subr.mxu0 0.0
    %4000 = vmatpush1.msra.mxu0 0.0
    %4001 = vmatprep.subr.mxu0 0.0
    %4002 = vmatpush1.msra.mxu0 0.0
    %4003 = vmatprep.subr.mxu0 0.0
    %4004 = vmatpush1.msra.mxu0 0.0
    %4005 = vmatprep.subr.mxu0 0.0
    %4006 = vmatpush1.msra.mxu0 0.0
    %4007 = vmatprep.subr.mxu0 0.0
    %4008 = vmatpush1.msra.mxu0 0.0
    %4009 = vmatprep.mubr.f32.mxu0 0.0
    %4010 = vmatmul.mubr.f32.gmra.mrb[0].mxu0 %v3925
    %v4011 = vpop.f32.mrb[0].mxu0
    %v4012 = vadd.f32 0.0, %v4011
    %v4013 = vpop.f32.mrb[0].mxu0
    %4014 = vmatprep.mubr.f32.mxu0 0.0
    %4015 = vmatmul.mubr.f32.gmra.mrb[0].mxu0 %v3926
    %v4016 = vpop.f32.mrb[0].mxu0
    %v4017 = vadd.f32 0.0, %v4016
    %v4018 = vpop.f32.mrb[0].mxu0
    %4019 = vmatprep.mubr.f32.mxu0 0.0
    %4020 = vmatmul.mubr.f32.gmra.mrb[0].mxu0 %v3927
    %v4021 = vpop.f32.mrb[0].mxu0
    %v4022 = vadd.f32 0.0, %v4021
    %v4023 = vpop.f32.mrb[0].mxu0
    %4024 = vdwg.mxu0
    %v4025 = vadd.f32 %v3922, %v4012
    %v4026 = vadd.f32 %v3923, %v4017
    %v4027 = vadd.f32 %v3924, %v4022
    %v4028 = vld [vmem:[%s0 + $0x6] sm:$0xff]
    %v4029 = vld [vmem:[%s0 + $0xe] sm:$0xff]
    %v4030 = vld [vmem:[%s0 + $0x16] sm:$0x1]
    %s4031 = scalar_lea.vmem [#allocation14], 768
    %v4032 = vld [vmem:[%s4031] sm:$0xff]
    %v4033 = vld [vmem:[%s4031 + $0x8] sm:$0xff]
    %v4034 = vld [vmem:[%s4031 + $0x10] sm:$0xff]
    %v4035 = vld [vmem:[%s4031 + $0x18] sm:$0xff]
    %v4036 = vld [vmem:[%s4031 + $0x20] sm:$0xff]
    %v4037 = vld [vmem:[%s4031 + $0x28] sm:$0xff]
    %v4038 = vld [vmem:[%s4031 + $0x30] sm:$0xff]
    %v4039 = vld [vmem:[%s4031 + $0x38] sm:$0xff]
    %v4040 = vld [vmem:[%s4031 + $0x40] sm:$0xff]
    %v4041 = vld [vmem:[%s4031 + $0x48] sm:$0xff]
    %v4042 = vld [vmem:[%s4031 + $0x50] sm:$0xff]
    %v4043 = vld [vmem:[%s4031 + $0x58] sm:$0xff]
    %v4044 = vld [vmem:[%s4031 + $0x60] sm:$0xff]
    %v4045 = vld [vmem:[%s4031 + $0x68] sm:$0xff]
    %v4046 = vld [vmem:[%s4031 + $0x70] sm:$0xff]
    %v4047 = vld [vmem:[%s4031 + $0x78] sm:$0xff]
    %4048 = vmatprep.subr.mxu0 0.0
    %4049 = vmatpush1.msra.mxu0 %v4032
    %4050 = vmatprep.subr.mxu0 0.0
    %4051 = vmatpush1.msra.mxu0 %v4033
    %4052 = vmatprep.subr.mxu0 0.0
    %4053 = vmatpush1.msra.mxu0 %v4034
    %4054 = vmatprep.subr.mxu0 0.0
    %4055 = vmatpush1.msra.mxu0 %v4035
    %4056 = vmatprep.subr.mxu0 0.0
    %4057 = vmatpush1.msra.mxu0 %v4036
    %4058 = vmatprep.subr.mxu0 0.0
    %4059 = vmatpush1.msra.mxu0 %v4037
    %4060 = vmatprep.subr.mxu0 0.0
    %4061 = vmatpush1.msra.mxu0 %v4038
    %4062 = vmatprep.subr.mxu0 0.0
    %4063 = vmatpush1.msra.mxu0 %v4039
    %4064 = vmatprep.subr.mxu0 0.0
    %4065 = vmatpush1.msra.mxu0 %v4040
    %4066 = vmatprep.subr.mxu0 0.0
    %4067 = vmatpush1.msra.mxu0 %v4041
    %4068 = vmatprep.subr.mxu0 0.0
    %4069 = vmatpush1.msra.mxu0 %v4042
    %4070 = vmatprep.subr.mxu0 0.0
    %4071 = vmatpush1.msra.mxu0 %v4043
    %4072 = vmatprep.subr.mxu0 0.0
    %4073 = vmatpush1.msra.mxu0 %v4044
    %4074 = vmatprep.subr.mxu0 0.0
    %4075 = vmatpush1.msra.mxu0 %v4045
    %4076 = vmatprep.subr.mxu0 0.0
    %4077 = vmatpush1.msra.mxu0 %v4046
    %4078 = vmatprep.subr.mxu0 0.0
    %4079 = vmatpush1.msra.mxu0 %v4047
    %4080 = vmatprep.subr.mxu0 0.0
    %4081 = vmatpush1.msra.mxu0 0.0
    %4082 = vmatprep.subr.mxu0 0.0
    %4083 = vmatpush1.msra.mxu0 0.0
    %4084 = vmatprep.subr.mxu0 0.0
    %4085 = vmatpush1.msra.mxu0 0.0
    %4086 = vmatprep.subr.mxu0 0.0
    %4087 = vmatpush1.msra.mxu0 0.0
    %4088 = vmatprep.subr.mxu0 0.0
    %4089 = vmatpush1.msra.mxu0 0.0
    %4090 = vmatprep.subr.mxu0 0.0
    %4091 = vmatpush1.msra.mxu0 0.0
    %4092 = vmatprep.subr.mxu0 0.0
    %4093 = vmatpush1.msra.mxu0 0.0
    %4094 = vmatprep.subr.mxu0 0.0
    %4095 = vmatpush1.msra.mxu0 0.0
    %4096 = vmatprep.subr.mxu0 0.0
    %4097 = vmatpush1.msra.mxu0 0.0
    %4098 = vmatprep.subr.mxu0 0.0
    %4099 = vmatpush1.msra.mxu0 0.0
    %4100 = vmatprep.subr.mxu0 0.0
    %4101 = vmatpush1.msra.mxu0 0.0
    %4102 = vmatprep.subr.mxu0 0.0
    %4103 = vmatpush1.msra.mxu0 0.0
    %4104 = vmatprep.subr.mxu0 0.0
    %4105 = vmatpush1.msra.mxu0 0.0
    %4106 = vmatprep.subr.mxu0 0.0
    %4107 = vmatpush1.msra.mxu0 0.0
    %4108 = vmatprep.subr.mxu0 0.0
    %4109 = vmatpush1.msra.mxu0 0.0
    %4110 = vmatprep.subr.mxu0 0.0
    %4111 = vmatpush1.msra.mxu0 0.0
    %4112 = vmatprep.mubr.f32.mxu0 0.0
    %4113 = vmatmul.mubr.f32.gmra.mrb[0].mxu0 %v4028
    %v4114 = vpop.f32.mrb[0].mxu0
    %v4115 = vadd.f32 0.0, %v4114
    %v4116 = vpop.f32.mrb[0].mxu0
    %4117 = vmatprep.mubr.f32.mxu0 0.0
    %4118 = vmatmul.mubr.f32.gmra.mrb[0].mxu0 %v4029
    %v4119 = vpop.f32.mrb[0].mxu0
    %v4120 = vadd.f32 0.0, %v4119
    %v4121 = vpop.f32.mrb[0].mxu0
    %4122 = vmatprep.mubr.f32.mxu0 0.0
    %4123 = vmatmul.mubr.f32.gmra.mrb[0].mxu0 %v4030
    %v4124 = vpop.f32.mrb[0].mxu0
    %v4125 = vadd.f32 0.0, %v4124
    %v4126 = vpop.f32.mrb[0].mxu0
    %4127 = vdwg.mxu0
    %v4128 = vadd.f32 %v4025, %v4115
    %v4129 = vadd.f32 %v4026, %v4120
    %v4130 = vadd.f32 %v4027, %v4125
    %v4131 = vld [vmem:[%s0 + $0x7] sm:$0xff]
    %v4132 = vld [vmem:[%s0 + $0xf] sm:$0xff]
    %v4133 = vld [vmem:[%s0 + $0x17] sm:$0x1]
    %s4134 = scalar_lea.vmem [#allocation14], 896
    %v4135 = vld [vmem:[%s4134] sm:$0xff]
    %v4136 = vld [vmem:[%s4134 + $0x8] sm:$0xff]
    %v4137 = vld [vmem:[%s4134 + $0x10] sm:$0xff]
    %v4138 = vld [vmem:[%s4134 + $0x18] sm:$0xff]
    %v4139 = vld [vmem:[%s4134 + $0x20] sm:$0xff]
    %v4140 = vld [vmem:[%s4134 + $0x28] sm:$0xff]
    %v4141 = vld [vmem:[%s4134 + $0x30] sm:$0xff]
    %v4142 = vld [vmem:[%s4134 + $0x38] sm:$0xff]
    %v4143 = vld [vmem:[%s4134 + $0x40] sm:$0xff]
    %v4144 = vld [vmem:[%s4134 + $0x48] sm:$0xff]
    %v4145 = vld [vmem:[%s4134 + $0x50] sm:$0xff]
    %v4146 = vld [vmem:[%s4134 + $0x58] sm:$0xff]
    %v4147 = vld [vmem:[%s4134 + $0x60] sm:$0xff]
    %v4148 = vld [vmem:[%s4134 + $0x68] sm:$0xff]
    %v4149 = vld [vmem:[%s4134 + $0x70] sm:$0xff]
    %v4150 = vld [vmem:[%s4134 + $0x78] sm:$0xff]
    %4151 = vmatprep.subr.mxu0 0.0
    %4152 = vmatpush1.msra.mxu0 %v4135
    %4153 = vmatprep.subr.mxu0 0.0
    %4154 = vmatpush1.msra.mxu0 %v4136
    %4155 = vmatprep.subr.mxu0 0.0
    %4156 = vmatpush1.msra.mxu0 %v4137
    %4157 = vmatprep.subr.mxu0 0.0
    %4158 = vmatpush1.msra.mxu0 %v4138
    %4159 = vmatprep.subr.mxu0 0.0
    %4160 = vmatpush1.msra.mxu0 %v4139
    %4161 = vmatprep.subr.mxu0 0.0
    %4162 = vmatpush1.msra.mxu0 %v4140
    %4163 = vmatprep.subr.mxu0 0.0
    %4164 = vmatpush1.msra.mxu0 %v4141
    %4165 = vmatprep.subr.mxu0 0.0
    %4166 = vmatpush1.msra.mxu0 %v4142
    %4167 = vmatprep.subr.mxu0 0.0
    %4168 = vmatpush1.msra.mxu0 %v4143
    %4169 = vmatprep.subr.mxu0 0.0
    %4170 = vmatpush1.msra.mxu0 %v4144
    %4171 = vmatprep.subr.mxu0 0.0
    %4172 = vmatpush1.msra.mxu0 %v4145
    %4173 = vmatprep.subr.mxu0 0.0
    %4174 = vmatpush1.msra.mxu0 %v4146
    %4175 = vmatprep.subr.mxu0 0.0
    %4176 = vmatpush1.msra.mxu0 %v4147
    %4177 = vmatprep.subr.mxu0 0.0
    %4178 = vmatpush1.msra.mxu0 %v4148
    %4179 = vmatprep.subr.mxu0 0.0
    %4180 = vmatpush1.msra.mxu0 %v4149
    %4181 = vmatprep.subr.mxu0 0.0
    %4182 = vmatpush1.msra.mxu0 %v4150
    %4183 = vmatprep.subr.mxu0 0.0
    %4184 = vmatpush1.msra.mxu0 0.0
    %4185 = vmatprep.subr.mxu0 0.0
    %4186 = vmatpush1.msra.mxu0 0.0
    %4187 = vmatprep.subr.mxu0 0.0
    %4188 = vmatpush1.msra.mxu0 0.0
    %4189 = vmatprep.subr.mxu0 0.0
    %4190 = vmatpush1.msra.mxu0 0.0
    %4191 = vmatprep.subr.mxu0 0.0
    %4192 = vmatpush1.msra.mxu0 0.0
    %4193 = vmatprep.subr.mxu0 0.0
    %4194 = vmatpush1.msra.mxu0 0.0
    %4195 = vmatprep.subr.mxu0 0.0
    %4196 = vmatpush1.msra.mxu0 0.0
    %4197 = vmatprep.subr.mxu0 0.0
    %4198 = vmatpush1.msra.mxu0 0.0
    %4199 = vmatprep.subr.mxu0 0.0
    %4200 = vmatpush1.msra.mxu0 0.0
    %4201 = vmatprep.subr.mxu0 0.0
    %4202 = vmatpush1.msra.mxu0 0.0
    %4203 = vmatprep.subr.mxu0 0.0
    %4204 = vmatpush1.msra.mxu0 0.0
    %4205 = vmatprep.subr.mxu0 0.0
    %4206 = vmatpush1.msra.mxu0 0.0
    %4207 = vmatprep.subr.mxu0 0.0
    %4208 = vmatpush1.msra.mxu0 0.0
    %4209 = vmatprep.subr.mxu0 0.0
    %4210 = vmatpush1.msra.mxu0 0.0
    %4211 = vmatprep.subr.mxu0 0.0
    %4212 = vmatpush1.msra.mxu0 0.0
    %4213 = vmatprep.subr.mxu0 0.0
    %4214 = vmatpush1.msra.mxu0 0.0
    %4215 = vmatprep.mubr.f32.mxu0 0.0
    %4216 = vmatmul.mubr.f32.gmra.mrb[0].mxu0 %v4131
    %v4217 = vpop.f32.mrb[0].mxu0
    %v4218 = vadd.f32 0.0, %v4217
    %v4219 = vpop.f32.mrb[0].mxu0
    %4220 = vmatprep.mubr.f32.mxu0 0.0
    %4221 = vmatmul.mubr.f32.gmra.mrb[0].mxu0 %v4132
    %v4222 = vpop.f32.mrb[0].mxu0
    %v4223 = vadd.f32 0.0, %v4222
    %v4224 = vpop.f32.mrb[0].mxu0
    %4225 = vmatprep.mubr.f32.mxu0 0.0
    %4226 = vmatmul.mubr.f32.gmra.mrb[0].mxu0 %v4133
    %v4227 = vpop.f32.mrb[0].mxu0
    %v4228 = vadd.f32 0.0, %v4227
    %v4229 = vpop.f32.mrb[0].mxu0
    %4230 = vdwg.mxu0
    %v4231 = vadd.f32 %v4128, %v4218
    %v4232 = vadd.f32 %v4129, %v4223
    %v4233 = vadd.f32 %v4130, %v4228
    %s4234 = scalar_lea.vmem %s9, 7
    %v4235 = vld [vmem:[%s4234] sm:$0x1]
    %v4237 = vlaneseq
    %v4238 = vshrl.u32 %v4237, 7
    %v4239 = vsub.s32 0, %v4238
    %v4240 = vrot.slane %v4235, %v4239
    %v4242 = vadd.f32 %v4231, %v4240
    %v4243 = vadd.f32 %v4232, %v4240
    %v4244 = vadd.f32 %v4233, %v4240
    %v4245 = vmax.f32 %v4242, 0.0
    %v4246 = vmax.f32 %v4243, 0.0
    %v4247 = vmax.f32 %v4244, 0.0
    %s4248 = scalar_lea.vmem %s10, 7
    %v4249 = vld [vmem:[%s4248] sm:$0x1]
    %v4251 = vlaneseq
    %v4252 = vshrl.u32 %v4251, 7
    %v4253 = vsub.s32 0, %v4252
    %v4254 = vrot.slane %v4249, %v4253
    %v4256 = vmul.f32 %v4245, %v4254
    %v4257 = vmul.f32 %v4246, %v4254
    %v4258 = vmul.f32 %v4247, %v4254
    %s4259 = scalar_lea.vmem %s11, 7
    %v4260 = vld [vmem:[%s4259] sm:$0x1]
    %v4262 = vlaneseq
    %v4263 = vshrl.u32 %v4262, 7
    %v4264 = vsub.s32 0, %v4263
    %v4265 = vrot.slane %v4260, %v4264
    %v4267 = vadd.f32 %v4256, %v4265
    %v4268 = vadd.f32 %v4257, %v4265
    %v4269 = vadd.f32 %v4258, %v4265
    %v4270 = vsel %vm283, -inf, %v4267
    %v4271 = vsel %vm284, -inf, %v4268
    %v4274 = vrot.slane %v4270, 7
    %v4275 = vrot.slane %v4271, 7
    %v4276 = vsel %vm289, %v4274, %v4275
    %v4280 = vmax.f32 %v4267, %v4274
    %v4281 = vmax.f32 %v4268, %v4276
    %v4282 = vmax.f32 %v4269, %v4275
    %v4286 = vrot.slane %v4280, 1
    %v4287 = vrot.slane %v4281, 1
    %v4288 = vsel %vm302, %v4286, %v4287
    %v4289 = vrot.slane %v4282, 1
    %v4290 = vsel %vm302, %v4287, %v4289
    %4293 = vst [vmem:[#allocation16 + $0x38] sm:$0xff] %v4288
    %4294 = vst [vmem:[#allocation16 + $0x78] sm:$0xff] %v4290
    %s4295 = scalar_lea.vmem %s0, 32
    %v4296 = vld [vmem:[%s4295 + $0x4] sm:$0xff]
    %v4297 = vld [vmem:[%s4295 + $0xc] sm:$0xff]
    %v4298 = vld [vmem:[%s4295 + $0x14] sm:$0x1]
    %v4299 = vld [vmem:[#allocation2] sm:$0xff]
    %v4300 = vld [vmem:[#allocation2 + $0x8] sm:$0xff]
    %v4301 = vld [vmem:[#allocation2 + $0x10] sm:$0xff]
    %v4302 = vld [vmem:[#allocation2 + $0x18] sm:$0xff]
    %v4303 = vld [vmem:[#allocation2 + $0x20] sm:$0xff]
    %v4304 = vld [vmem:[#allocation2 + $0x28] sm:$0xff]
    %v4305 = vld [vmem:[#allocation2 + $0x30] sm:$0xff]
    %v4306 = vld [vmem:[#allocation2 + $0x38] sm:$0xff]
    %v4307 = vld [vmem:[#allocation2 + $0x40] sm:$0xff]
    %v4308 = vld [vmem:[#allocation2 + $0x48] sm:$0xff]
    %v4309 = vld [vmem:[#allocation2 + $0x50] sm:$0xff]
    %v4310 = vld [vmem:[#allocation2 + $0x58] sm:$0xff]
    %v4311 = vld [vmem:[#allocation2 + $0x60] sm:$0xff]
    %v4312 = vld [vmem:[#allocation2 + $0x68] sm:$0xff]
    %v4313 = vld [vmem:[#allocation2 + $0x70] sm:$0xff]
    %v4314 = vld [vmem:[#allocation2 + $0x78] sm:$0xff]
    %v4315 = vld [vmem:[%s9] sm:$0x1]
    %v4317 = vlaneseq
    %v4318 = vshrl.u32 %v4317, 7
    %v4319 = vsub.s32 0, %v4318
    %v4320 = vrot.slane %v4315, %v4319
    %4322 = vmatprep.subr.mxu0 0.0
    %4323 = vmatpush1.msra.mxu0 %v4299
    %4324 = vmatprep.subr.mxu0 0.0
    %4325 = vmatpush1.msra.mxu0 %v4300
    %4326 = vmatprep.subr.mxu0 0.0
    %4327 = vmatpush1.msra.mxu0 %v4301
    %4328 = vmatprep.subr.mxu0 0.0
    %4329 = vmatpush1.msra.mxu0 %v4302
    %4330 = vmatprep.subr.mxu0 0.0
    %4331 = vmatpush1.msra.mxu0 %v4303
    %4332 = vmatprep.subr.mxu0 0.0
    %4333 = vmatpush1.msra.mxu0 %v4304
    %4334 = vmatprep.subr.mxu0 0.0
    %4335 = vmatpush1.msra.mxu0 %v4305
    %4336 = vmatprep.subr.mxu0 0.0
    %4337 = vmatpush1.msra.mxu0 %v4306
    %4338 = vmatprep.subr.mxu0 0.0
    %4339 = vmatpush1.msra.mxu0 %v4307
    %4340 = vmatprep.subr.mxu0 0.0
    %4341 = vmatpush1.msra.mxu0 %v4308
    %4342 = vmatprep.subr.mxu0 0.0
    %4343 = vmatpush1.msra.mxu0 %v4309
    %4344 = vmatprep.subr.mxu0 0.0
    %4345 = vmatpush1.msra.mxu0 %v4310
    %4346 = vmatprep.subr.mxu0 0.0
    %4347 = vmatpush1.msra.mxu0 %v4311
    %4348 = vmatprep.subr.mxu0 0.0
    %4349 = vmatpush1.msra.mxu0 %v4312
    %4350 = vmatprep.subr.mxu0 0.0
    %4351 = vmatpush1.msra.mxu0 %v4313
    %4352 = vmatprep.subr.mxu0 0.0
    %4353 = vmatpush1.msra.mxu0 %v4314
    %4354 = vmatprep.subr.mxu0 0.0
    %4355 = vmatpush1.msra.mxu0 0.0
    %4356 = vmatprep.subr.mxu0 0.0
    %4357 = vmatpush1.msra.mxu0 0.0
    %4358 = vmatprep.subr.mxu0 0.0
    %4359 = vmatpush1.msra.mxu0 0.0
    %4360 = vmatprep.subr.mxu0 0.0
    %4361 = vmatpush1.msra.mxu0 0.0
    %4362 = vmatprep.subr.mxu0 0.0
    %4363 = vmatpush1.msra.mxu0 0.0
    %4364 = vmatprep.subr.mxu0 0.0
    %4365 = vmatpush1.msra.mxu0 0.0
    %4366 = vmatprep.subr.mxu0 0.0
    %4367 = vmatpush1.msra.mxu0 0.0
    %4368 = vmatprep.subr.mxu0 0.0
    %4369 = vmatpush1.msra.mxu0 0.0
    %4370 = vmatprep.subr.mxu0 0.0
    %4371 = vmatpush1.msra.mxu0 0.0
    %4372 = vmatprep.subr.mxu0 0.0
    %4373 = vmatpush1.msra.mxu0 0.0
    %4374 = vmatprep.subr.mxu0 0.0
    %4375 = vmatpush1.msra.mxu0 0.0
    %4376 = vmatprep.subr.mxu0 0.0
    %4377 = vmatpush1.msra.mxu0 0.0
    %4378 = vmatprep.subr.mxu0 0.0
    %4379 = vmatpush1.msra.mxu0 0.0
    %4380 = vmatprep.subr.mxu0 0.0
    %4381 = vmatpush1.msra.mxu0 0.0
    %4382 = vmatprep.subr.mxu0 0.0
    %4383 = vmatpush1.msra.mxu0 0.0
    %4384 = vmatprep.subr.mxu0 0.0
    %4385 = vmatpush1.msra.mxu0 0.0
    %4386 = vmatprep.mubr.f32.mxu0 0.0
    %4387 = vmatmul.mubr.f32.gmra.mrb[0].mxu0 %v4296
    %v4388 = vpop.f32.mrb[0].mxu0
    %v4389 = vadd.f32 %v4320, %v4388
    %v4390 = vpop.f32.mrb[0].mxu0
    %4391 = vmatprep.mubr.f32.mxu0 0.0
    %4392 = vmatmul.mubr.f32.gmra.mrb[0].mxu0 %v4297
    %v4393 = vpop.f32.mrb[0].mxu0
    %v4394 = vadd.f32 %v4320, %v4393
    %v4395 = vpop.f32.mrb[0].mxu0
    %4396 = vmatprep.mubr.f32.mxu0 0.0
    %4397 = vmatmul.mubr.f32.gmra.mrb[0].mxu0 %v4298
    %v4398 = vpop.f32.mrb[0].mxu0
    %v4399 = vadd.f32 %v4320, %v4398
    %v4400 = vpop.f32.mrb[0].mxu0
    %4401 = vdwg.mxu0
    %v4402 = vmax.f32 %v4389, 0.0
    %v4403 = vmax.f32 %v4394, 0.0
    %v4404 = vmax.f32 %v4399, 0.0
    %v4405 = vld [vmem:[%s10] sm:$0x1]
    %v4407 = vlaneseq
    %v4408 = vshrl.u32 %v4407, 7
    %v4409 = vsub.s32 0, %v4408
    %v4410 = vrot.slane %v4405, %v4409
    %v4412 = vmul.f32 %v4402, %v4410
    %v4413 = vmul.f32 %v4403, %v4410
    %v4414 = vmul.f32 %v4404, %v4410
    %v4415 = vld [vmem:[%s11] sm:$0x1]
    %v4417 = vlaneseq
    %v4418 = vshrl.u32 %v4417, 7
    %v4419 = vsub.s32 0, %v4418
    %v4420 = vrot.slane %v4415, %v4419
    %v4422 = vadd.f32 %v4412, %v4420
    %v4423 = vadd.f32 %v4413, %v4420
    %v4424 = vadd.f32 %v4414, %v4420
    %v4425 = vsel %vm283, -inf, %v4422
    %v4426 = vsel %vm284, -inf, %v4423
    %v4429 = vrot.slane %v4425, 7
    %v4430 = vrot.slane %v4426, 7
    %v4431 = vsel %vm289, %v4429, %v4430
    %v4435 = vmax.f32 %v4422, %v4429
    %v4436 = vmax.f32 %v4423, %v4431
    %v4437 = vmax.f32 %v4424, %v4430
    %v4441 = vrot.slane %v4435, 1
    %v4442 = vrot.slane %v4436, 1
    %v4443 = vsel %vm302, %v4441, %v4442
    %v4444 = vrot.slane %v4437, 1
    %v4445 = vsel %vm302, %v4442, %v4444
    %s4448 = scalar_lea.vmem [#allocation16], 128
    %4449 = vst [vmem:[%s4448] sm:$0xff] %v4443
    %4450 = vst [vmem:[%s4448 + $0x40] sm:$0xff] %v4445
    %v4451 = vld [vmem:[%s4295 + $0x3] sm:$0xff]
    %v4452 = vld [vmem:[%s4295 + $0xb] sm:$0xff]
    %v4453 = vld [vmem:[%s4295 + $0x13] sm:$0x1]
    %v4454 = vld [vmem:[#allocation5] sm:$0xff]
    %v4455 = vld [vmem:[#allocation5 + $0x8] sm:$0xff]
    %v4456 = vld [vmem:[#allocation5 + $0x10] sm:$0xff]
    %v4457 = vld [vmem:[#allocation5 + $0x18] sm:$0xff]
    %v4458 = vld [vmem:[#allocation5 + $0x20] sm:$0xff]
    %v4459 = vld [vmem:[#allocation5 + $0x28] sm:$0xff]
    %v4460 = vld [vmem:[#allocation5 + $0x30] sm:$0xff]
    %v4461 = vld [vmem:[#allocation5 + $0x38] sm:$0xff]
    %v4462 = vld [vmem:[#allocation5 + $0x40] sm:$0xff]
    %v4463 = vld [vmem:[#allocation5 + $0x48] sm:$0xff]
    %v4464 = vld [vmem:[#allocation5 + $0x50] sm:$0xff]
    %v4465 = vld [vmem:[#allocation5 + $0x58] sm:$0xff]
    %v4466 = vld [vmem:[#allocation5 + $0x60] sm:$0xff]
    %v4467 = vld [vmem:[#allocation5 + $0x68] sm:$0xff]
    %v4468 = vld [vmem:[#allocation5 + $0x70] sm:$0xff]
    %v4469 = vld [vmem:[#allocation5 + $0x78] sm:$0xff]
    %v4470 = vld [vmem:[%s4295 + $0x4] sm:$0xff]
    %v4471 = vld [vmem:[%s4295 + $0xc] sm:$0xff]
    %v4472 = vld [vmem:[%s4295 + $0x14] sm:$0x1]
    %v4473 = vld [vmem:[%s334] sm:$0xff]
    %v4474 = vld [vmem:[%s334 + $0x8] sm:$0xff]
    %v4475 = vld [vmem:[%s334 + $0x10] sm:$0xff]
    %v4476 = vld [vmem:[%s334 + $0x18] sm:$0xff]
    %v4477 = vld [vmem:[%s334 + $0x20] sm:$0xff]
    %v4478 = vld [vmem:[%s334 + $0x28] sm:$0xff]
    %v4479 = vld [vmem:[%s334 + $0x30] sm:$0xff]
    %v4480 = vld [vmem:[%s334 + $0x38] sm:$0xff]
    %v4481 = vld [vmem:[%s334 + $0x40] sm:$0xff]
    %v4482 = vld [vmem:[%s334 + $0x48] sm:$0xff]
    %v4483 = vld [vmem:[%s334 + $0x50] sm:$0xff]
    %v4484 = vld [vmem:[%s334 + $0x58] sm:$0xff]
    %v4485 = vld [vmem:[%s334 + $0x60] sm:$0xff]
    %v4486 = vld [vmem:[%s334 + $0x68] sm:$0xff]
    %v4487 = vld [vmem:[%s334 + $0x70] sm:$0xff]
    %v4488 = vld [vmem:[%s334 + $0x78] sm:$0xff]
    %4489 = vmatprep.subr.mxu0 0.0
    %4490 = vmatpush1.msra.mxu0 %v4473
    %4491 = vmatprep.subr.mxu0 0.0
    %4492 = vmatpush1.msra.mxu0 %v4474
    %4493 = vmatprep.subr.mxu0 0.0
    %4494 = vmatpush1.msra.mxu0 %v4475
    %4495 = vmatprep.subr.mxu0 0.0
    %4496 = vmatpush1.msra.mxu0 %v4476
    %4497 = vmatprep.subr.mxu0 0.0
    %4498 = vmatpush1.msra.mxu0 %v4477
    %4499 = vmatprep.subr.mxu0 0.0
    %4500 = vmatpush1.msra.mxu0 %v4478
    %4501 = vmatprep.subr.mxu0 0.0
    %4502 = vmatpush1.msra.mxu0 %v4479
    %4503 = vmatprep.subr.mxu0 0.0
    %4504 = vmatpush1.msra.mxu0 %v4480
    %4505 = vmatprep.subr.mxu0 0.0
    %4506 = vmatpush1.msra.mxu0 %v4481
    %4507 = vmatprep.subr.mxu0 0.0
    %4508 = vmatpush1.msra.mxu0 %v4482
    %4509 = vmatprep.subr.mxu0 0.0
    %4510 = vmatpush1.msra.mxu0 %v4483
    %4511 = vmatprep.subr.mxu0 0.0
    %4512 = vmatpush1.msra.mxu0 %v4484
    %4513 = vmatprep.subr.mxu0 0.0
    %4514 = vmatpush1.msra.mxu0 %v4485
    %4515 = vmatprep.subr.mxu0 0.0
    %4516 = vmatpush1.msra.mxu0 %v4486
    %4517 = vmatprep.subr.mxu0 0.0
    %4518 = vmatpush1.msra.mxu0 %v4487
    %4519 = vmatprep.subr.mxu0 0.0
    %4520 = vmatpush1.msra.mxu0 %v4488
    %4521 = vmatprep.subr.mxu0 0.0
    %4522 = vmatpush1.msra.mxu0 0.0
    %4523 = vmatprep.subr.mxu0 0.0
    %4524 = vmatpush1.msra.mxu0 0.0
    %4525 = vmatprep.subr.mxu0 0.0
    %4526 = vmatpush1.msra.mxu0 0.0
    %4527 = vmatprep.subr.mxu0 0.0
    %4528 = vmatpush1.msra.mxu0 0.0
    %4529 = vmatprep.subr.mxu0 0.0
    %4530 = vmatpush1.msra.mxu0 0.0
    %4531 = vmatprep.subr.mxu0 0.0
    %4532 = vmatpush1.msra.mxu0 0.0
    %4533 = vmatprep.subr.mxu0 0.0
    %4534 = vmatpush1.msra.mxu0 0.0
    %4535 = vmatprep.subr.mxu0 0.0
    %4536 = vmatpush1.msra.mxu0 0.0
    %4537 = vmatprep.subr.mxu0 0.0
    %4538 = vmatpush1.msra.mxu0 0.0
    %4539 = vmatprep.subr.mxu0 0.0
    %4540 = vmatpush1.msra.mxu0 0.0
    %4541 = vmatprep.subr.mxu0 0.0
    %4542 = vmatpush1.msra.mxu0 0.0
    %4543 = vmatprep.subr.mxu0 0.0
    %4544 = vmatpush1.msra.mxu0 0.0
    %4545 = vmatprep.subr.mxu0 0.0
    %4546 = vmatpush1.msra.mxu0 0.0
    %4547 = vmatprep.subr.mxu0 0.0
    %4548 = vmatpush1.msra.mxu0 0.0
    %4549 = vmatprep.subr.mxu0 0.0
    %4550 = vmatpush1.msra.mxu0 0.0
    %4551 = vmatprep.subr.mxu0 0.0
    %4552 = vmatpush1.msra.mxu0 0.0
    %4553 = vmatprep.mubr.f32.mxu0 0.0
    %4554 = vmatmul.mubr.f32.gmra.mrb[0].mxu0 %v4470
    %v4555 = vpop.f32.mrb[0].mxu0
    %v4556 = vadd.f32 0.0, %v4555
    %v4557 = vpop.f32.mrb[0].mxu0
    %4558 = vmatprep.mubr.f32.mxu0 0.0
    %4559 = vmatmul.mubr.f32.gmra.mrb[0].mxu0 %v4471
    %v4560 = vpop.f32.mrb[0].mxu0
    %v4561 = vadd.f32 0.0, %v4560
    %v4562 = vpop.f32.mrb[0].mxu0
    %4563 = vmatprep.mubr.f32.mxu0 0.0
    %4564 = vmatmul.mubr.f32.gmra.mrb[0].mxu0 %v4472
    %v4565 = vpop.f32.mrb[0].mxu0
    %v4566 = vadd.f32 0.0, %v4565
    %v4567 = vpop.f32.mrb[0].mxu0
    %4568 = vdwg.mxu0
    %4569 = vmatprep.subr.mxu0 0.0
    %4570 = vmatpush1.msra.mxu0 %v4454
    %4571 = vmatprep.subr.mxu0 0.0
    %4572 = vmatpush1.msra.mxu0 %v4455
    %4573 = vmatprep.subr.mxu0 0.0
    %4574 = vmatpush1.msra.mxu0 %v4456
    %4575 = vmatprep.subr.mxu0 0.0
    %4576 = vmatpush1.msra.mxu0 %v4457
    %4577 = vmatprep.subr.mxu0 0.0
    %4578 = vmatpush1.msra.mxu0 %v4458
    %4579 = vmatprep.subr.mxu0 0.0
    %4580 = vmatpush1.msra.mxu0 %v4459
    %4581 = vmatprep.subr.mxu0 0.0
    %4582 = vmatpush1.msra.mxu0 %v4460
    %4583 = vmatprep.subr.mxu0 0.0
    %4584 = vmatpush1.msra.mxu0 %v4461
    %4585 = vmatprep.subr.mxu0 0.0
    %4586 = vmatpush1.msra.mxu0 %v4462
    %4587 = vmatprep.subr.mxu0 0.0
    %4588 = vmatpush1.msra.mxu0 %v4463
    %4589 = vmatprep.subr.mxu0 0.0
    %4590 = vmatpush1.msra.mxu0 %v4464
    %4591 = vmatprep.subr.mxu0 0.0
    %4592 = vmatpush1.msra.mxu0 %v4465
    %4593 = vmatprep.subr.mxu0 0.0
    %4594 = vmatpush1.msra.mxu0 %v4466
    %4595 = vmatprep.subr.mxu0 0.0
    %4596 = vmatpush1.msra.mxu0 %v4467
    %4597 = vmatprep.subr.mxu0 0.0
    %4598 = vmatpush1.msra.mxu0 %v4468
    %4599 = vmatprep.subr.mxu0 0.0
    %4600 = vmatpush1.msra.mxu0 %v4469
    %4601 = vmatprep.subr.mxu0 0.0
    %4602 = vmatpush1.msra.mxu0 0.0
    %4603 = vmatprep.subr.mxu0 0.0
    %4604 = vmatpush1.msra.mxu0 0.0
    %4605 = vmatprep.subr.mxu0 0.0
    %4606 = vmatpush1.msra.mxu0 0.0
    %4607 = vmatprep.subr.mxu0 0.0
    %4608 = vmatpush1.msra.mxu0 0.0
    %4609 = vmatprep.subr.mxu0 0.0
    %4610 = vmatpush1.msra.mxu0 0.0
    %4611 = vmatprep.subr.mxu0 0.0
    %4612 = vmatpush1.msra.mxu0 0.0
    %4613 = vmatprep.subr.mxu0 0.0
    %4614 = vmatpush1.msra.mxu0 0.0
    %4615 = vmatprep.subr.mxu0 0.0
    %4616 = vmatpush1.msra.mxu0 0.0
    %4617 = vmatprep.subr.mxu0 0.0
    %4618 = vmatpush1.msra.mxu0 0.0
    %4619 = vmatprep.subr.mxu0 0.0
    %4620 = vmatpush1.msra.mxu0 0.0
    %4621 = vmatprep.subr.mxu0 0.0
    %4622 = vmatpush1.msra.mxu0 0.0
    %4623 = vmatprep.subr.mxu0 0.0
    %4624 = vmatpush1.msra.mxu0 0.0
    %4625 = vmatprep.subr.mxu0 0.0
    %4626 = vmatpush1.msra.mxu0 0.0
    %4627 = vmatprep.subr.mxu0 0.0
    %4628 = vmatpush1.msra.mxu0 0.0
    %4629 = vmatprep.subr.mxu0 0.0
    %4630 = vmatpush1.msra.mxu0 0.0
    %4631 = vmatprep.subr.mxu0 0.0
    %4632 = vmatpush1.msra.mxu0 0.0
    %4633 = vmatprep.mubr.f32.mxu0 0.0
    %4634 = vmatmul.mubr.f32.gmra.mrb[0].mxu0 %v4451
    %v4635 = vpop.f32.mrb[0].mxu0
    %v4636 = vadd.f32 %v4556, %v4635
    %v4637 = vpop.f32.mrb[0].mxu0
    %4638 = vmatprep.mubr.f32.mxu0 0.0
    %4639 = vmatmul.mubr.f32.gmra.mrb[0].mxu0 %v4452
    %v4640 = vpop.f32.mrb[0].mxu0
    %v4641 = vadd.f32 %v4561, %v4640
    %v4642 = vpop.f32.mrb[0].mxu0
    %4643 = vmatprep.mubr.f32.mxu0 0.0
    %4644 = vmatmul.mubr.f32.gmra.mrb[0].mxu0 %v4453
    %v4645 = vpop.f32.mrb[0].mxu0
    %v4646 = vadd.f32 %v4566, %v4645
    %v4647 = vpop.f32.mrb[0].mxu0
    %4648 = vdwg.mxu0
    %v4649 = vld [vmem:[%s511] sm:$0x1]
    %v4651 = vlaneseq
    %v4652 = vshrl.u32 %v4651, 7
    %v4653 = vsub.s32 0, %v4652
    %v4654 = vrot.slane %v4649, %v4653
    %v4656 = vadd.f32 %v4636, %v4654
    %v4657 = vadd.f32 %v4641, %v4654
    %v4658 = vadd.f32 %v4646, %v4654
    %v4659 = vmax.f32 %v4656, 0.0
    %v4660 = vmax.f32 %v4657, 0.0
    %v4661 = vmax.f32 %v4658, 0.0
    %v4662 = vld [vmem:[%s525] sm:$0x1]
    %v4664 = vlaneseq
    %v4665 = vshrl.u32 %v4664, 7
    %v4666 = vsub.s32 0, %v4665
    %v4667 = vrot.slane %v4662, %v4666
    %v4669 = vmul.f32 %v4659, %v4667
    %v4670 = vmul.f32 %v4660, %v4667
    %v4671 = vmul.f32 %v4661, %v4667
    %v4672 = vld [vmem:[%s536] sm:$0x1]
    %v4674 = vlaneseq
    %v4675 = vshrl.u32 %v4674, 7
    %v4676 = vsub.s32 0, %v4675
    %v4677 = vrot.slane %v4672, %v4676
    %v4679 = vadd.f32 %v4669, %v4677
    %v4680 = vadd.f32 %v4670, %v4677
    %v4681 = vadd.f32 %v4671, %v4677
    %v4682 = vsel %vm283, -inf, %v4679
    %v4683 = vsel %vm284, -inf, %v4680
    %v4686 = vrot.slane %v4682, 7
    %v4687 = vrot.slane %v4683, 7
    %v4688 = vsel %vm289, %v4686, %v4687
    %v4692 = vmax.f32 %v4679, %v4686
    %v4693 = vmax.f32 %v4680, %v4688
    %v4694 = vmax.f32 %v4681, %v4687
    %v4698 = vrot.slane %v4692, 1
    %v4699 = vrot.slane %v4693, 1
    %v4700 = vsel %vm302, %v4698, %v4699
    %v4701 = vrot.slane %v4694, 1
    %v4702 = vsel %vm302, %v4699, %v4701
    %4705 = vst [vmem:[%s4448 + $0x8] sm:$0xff] %v4700
    %4706 = vst [vmem:[%s4448 + $0x48] sm:$0xff] %v4702
    %v4707 = vld [vmem:[%s4295 + $0x3] sm:$0xff]
    %v4708 = vld [vmem:[%s4295 + $0xb] sm:$0xff]
    %v4709 = vld [vmem:[%s4295 + $0x13] sm:$0x1]
    %v4710 = vld [vmem:[#allocation7] sm:$0xff]
    %v4711 = vld [vmem:[#allocation7 + $0x8] sm:$0xff]
    %v4712 = vld [vmem:[#allocation7 + $0x10] sm:$0xff]
    %v4713 = vld [vmem:[#allocation7 + $0x18] sm:$0xff]
    %v4714 = vld [vmem:[#allocation7 + $0x20] sm:$0xff]
    %v4715 = vld [vmem:[#allocation7 + $0x28] sm:$0xff]
    %v4716 = vld [vmem:[#allocation7 + $0x30] sm:$0xff]
    %v4717 = vld [vmem:[#allocation7 + $0x38] sm:$0xff]
    %v4718 = vld [vmem:[#allocation7 + $0x40] sm:$0xff]
    %v4719 = vld [vmem:[#allocation7 + $0x48] sm:$0xff]
    %v4720 = vld [vmem:[#allocation7 + $0x50] sm:$0xff]
    %v4721 = vld [vmem:[#allocation7 + $0x58] sm:$0xff]
    %v4722 = vld [vmem:[#allocation7 + $0x60] sm:$0xff]
    %v4723 = vld [vmem:[#allocation7 + $0x68] sm:$0xff]
    %v4724 = vld [vmem:[#allocation7 + $0x70] sm:$0xff]
    %v4725 = vld [vmem:[#allocation7 + $0x78] sm:$0xff]
    %v4726 = vld [vmem:[%s4295 + $0x4] sm:$0xff]
    %v4727 = vld [vmem:[%s4295 + $0xc] sm:$0xff]
    %v4728 = vld [vmem:[%s4295 + $0x14] sm:$0x1]
    %v4729 = vld [vmem:[%s594] sm:$0xff]
    %v4730 = vld [vmem:[%s594 + $0x8] sm:$0xff]
    %v4731 = vld [vmem:[%s594 + $0x10] sm:$0xff]
    %v4732 = vld [vmem:[%s594 + $0x18] sm:$0xff]
    %v4733 = vld [vmem:[%s594 + $0x20] sm:$0xff]
    %v4734 = vld [vmem:[%s594 + $0x28] sm:$0xff]
    %v4735 = vld [vmem:[%s594 + $0x30] sm:$0xff]
    %v4736 = vld [vmem:[%s594 + $0x38] sm:$0xff]
    %v4737 = vld [vmem:[%s594 + $0x40] sm:$0xff]
    %v4738 = vld [vmem:[%s594 + $0x48] sm:$0xff]
    %v4739 = vld [vmem:[%s594 + $0x50] sm:$0xff]
    %v4740 = vld [vmem:[%s594 + $0x58] sm:$0xff]
    %v4741 = vld [vmem:[%s594 + $0x60] sm:$0xff]
    %v4742 = vld [vmem:[%s594 + $0x68] sm:$0xff]
    %v4743 = vld [vmem:[%s594 + $0x70] sm:$0xff]
    %v4744 = vld [vmem:[%s594 + $0x78] sm:$0xff]
    %4745 = vmatprep.subr.mxu0 0.0
    %4746 = vmatpush1.msra.mxu0 %v4729
    %4747 = vmatprep.subr.mxu0 0.0
    %4748 = vmatpush1.msra.mxu0 %v4730
    %4749 = vmatprep.subr.mxu0 0.0
    %4750 = vmatpush1.msra.mxu0 %v4731
    %4751 = vmatprep.subr.mxu0 0.0
    %4752 = vmatpush1.msra.mxu0 %v4732
    %4753 = vmatprep.subr.mxu0 0.0
    %4754 = vmatpush1.msra.mxu0 %v4733
    %4755 = vmatprep.subr.mxu0 0.0
    %4756 = vmatpush1.msra.mxu0 %v4734
    %4757 = vmatprep.subr.mxu0 0.0
    %4758 = vmatpush1.msra.mxu0 %v4735
    %4759 = vmatprep.subr.mxu0 0.0
    %4760 = vmatpush1.msra.mxu0 %v4736
    %4761 = vmatprep.subr.mxu0 0.0
    %4762 = vmatpush1.msra.mxu0 %v4737
    %4763 = vmatprep.subr.mxu0 0.0
    %4764 = vmatpush1.msra.mxu0 %v4738
    %4765 = vmatprep.subr.mxu0 0.0
    %4766 = vmatpush1.msra.mxu0 %v4739
    %4767 = vmatprep.subr.mxu0 0.0
    %4768 = vmatpush1.msra.mxu0 %v4740
    %4769 = vmatprep.subr.mxu0 0.0
    %4770 = vmatpush1.msra.mxu0 %v4741
    %4771 = vmatprep.subr.mxu0 0.0
    %4772 = vmatpush1.msra.mxu0 %v4742
    %4773 = vmatprep.subr.mxu0 0.0
    %4774 = vmatpush1.msra.mxu0 %v4743
    %4775 = vmatprep.subr.mxu0 0.0
    %4776 = vmatpush1.msra.mxu0 %v4744
    %4777 = vmatprep.subr.mxu0 0.0
    %4778 = vmatpush1.msra.mxu0 0.0
    %4779 = vmatprep.subr.mxu0 0.0
    %4780 = vmatpush1.msra.mxu0 0.0
    %4781 = vmatprep.subr.mxu0 0.0
    %4782 = vmatpush1.msra.mxu0 0.0
    %4783 = vmatprep.subr.mxu0 0.0
    %4784 = vmatpush1.msra.mxu0 0.0
    %4785 = vmatprep.subr.mxu0 0.0
    %4786 = vmatpush1.msra.mxu0 0.0
    %4787 = vmatprep.subr.mxu0 0.0
    %4788 = vmatpush1.msra.mxu0 0.0
    %4789 = vmatprep.subr.mxu0 0.0
    %4790 = vmatpush1.msra.mxu0 0.0
    %4791 = vmatprep.subr.mxu0 0.0
    %4792 = vmatpush1.msra.mxu0 0.0
    %4793 = vmatprep.subr.mxu0 0.0
    %4794 = vmatpush1.msra.mxu0 0.0
    %4795 = vmatprep.subr.mxu0 0.0
    %4796 = vmatpush1.msra.mxu0 0.0
    %4797 = vmatprep.subr.mxu0 0.0
    %4798 = vmatpush1.msra.mxu0 0.0
    %4799 = vmatprep.subr.mxu0 0.0
    %4800 = vmatpush1.msra.mxu0 0.0
    %4801 = vmatprep.subr.mxu0 0.0
    %4802 = vmatpush1.msra.mxu0 0.0
    %4803 = vmatprep.subr.mxu0 0.0
    %4804 = vmatpush1.msra.mxu0 0.0
    %4805 = vmatprep.subr.mxu0 0.0
    %4806 = vmatpush1.msra.mxu0 0.0
    %4807 = vmatprep.subr.mxu0 0.0
    %4808 = vmatpush1.msra.mxu0 0.0
    %4809 = vmatprep.mubr.f32.mxu0 0.0
    %4810 = vmatmul.mubr.f32.gmra.mrb[0].mxu0 %v4726
    %v4811 = vpop.f32.mrb[0].mxu0
    %v4812 = vadd.f32 0.0, %v4811
    %v4813 = vpop.f32.mrb[0].mxu0
    %4814 = vmatprep.mubr.f32.mxu0 0.0
    %4815 = vmatmul.mubr.f32.gmra.mrb[0].mxu0 %v4727
    %v4816 = vpop.f32.mrb[0].mxu0
    %v4817 = vadd.f32 0.0, %v4816
    %v4818 = vpop.f32.mrb[0].mxu0
    %4819 = vmatprep.mubr.f32.mxu0 0.0
    %4820 = vmatmul.mubr.f32.gmra.mrb[0].mxu0 %v4728
    %v4821 = vpop.f32.mrb[0].mxu0
    %v4822 = vadd.f32 0.0, %v4821
    %v4823 = vpop.f32.mrb[0].mxu0
    %4824 = vdwg.mxu0
    %4825 = vmatprep.subr.mxu0 0.0
    %4826 = vmatpush1.msra.mxu0 %v4710
    %4827 = vmatprep.subr.mxu0 0.0
    %4828 = vmatpush1.msra.mxu0 %v4711
    %4829 = vmatprep.subr.mxu0 0.0
    %4830 = vmatpush1.msra.mxu0 %v4712
    %4831 = vmatprep.subr.mxu0 0.0
    %4832 = vmatpush1.msra.mxu0 %v4713
    %4833 = vmatprep.subr.mxu0 0.0
    %4834 = vmatpush1.msra.mxu0 %v4714
    %4835 = vmatprep.subr.mxu0 0.0
    %4836 = vmatpush1.msra.mxu0 %v4715
    %4837 = vmatprep.subr.mxu0 0.0
    %4838 = vmatpush1.msra.mxu0 %v4716
    %4839 = vmatprep.subr.mxu0 0.0
    %4840 = vmatpush1.msra.mxu0 %v4717
    %4841 = vmatprep.subr.mxu0 0.0
    %4842 = vmatpush1.msra.mxu0 %v4718
    %4843 = vmatprep.subr.mxu0 0.0
    %4844 = vmatpush1.msra.mxu0 %v4719
    %4845 = vmatprep.subr.mxu0 0.0
    %4846 = vmatpush1.msra.mxu0 %v4720
    %4847 = vmatprep.subr.mxu0 0.0
    %4848 = vmatpush1.msra.mxu0 %v4721
    %4849 = vmatprep.subr.mxu0 0.0
    %4850 = vmatpush1.msra.mxu0 %v4722
    %4851 = vmatprep.subr.mxu0 0.0
    %4852 = vmatpush1.msra.mxu0 %v4723
    %4853 = vmatprep.subr.mxu0 0.0
    %4854 = vmatpush1.msra.mxu0 %v4724
    %4855 = vmatprep.subr.mxu0 0.0
    %4856 = vmatpush1.msra.mxu0 %v4725
    %4857 = vmatprep.subr.mxu0 0.0
    %4858 = vmatpush1.msra.mxu0 0.0
    %4859 = vmatprep.subr.mxu0 0.0
    %4860 = vmatpush1.msra.mxu0 0.0
    %4861 = vmatprep.subr.mxu0 0.0
    %4862 = vmatpush1.msra.mxu0 0.0
    %4863 = vmatprep.subr.mxu0 0.0
    %4864 = vmatpush1.msra.mxu0 0.0
    %4865 = vmatprep.subr.mxu0 0.0
    %4866 = vmatpush1.msra.mxu0 0.0
    %4867 = vmatprep.subr.mxu0 0.0
    %4868 = vmatpush1.msra.mxu0 0.0
    %4869 = vmatprep.subr.mxu0 0.0
    %4870 = vmatpush1.msra.mxu0 0.0
    %4871 = vmatprep.subr.mxu0 0.0
    %4872 = vmatpush1.msra.mxu0 0.0
    %4873 = vmatprep.subr.mxu0 0.0
    %4874 = vmatpush1.msra.mxu0 0.0
    %4875 = vmatprep.subr.mxu0 0.0
    %4876 = vmatpush1.msra.mxu0 0.0
    %4877 = vmatprep.subr.mxu0 0.0
    %4878 = vmatpush1.msra.mxu0 0.0
    %4879 = vmatprep.subr.mxu0 0.0
    %4880 = vmatpush1.msra.mxu0 0.0
    %4881 = vmatprep.subr.mxu0 0.0
    %4882 = vmatpush1.msra.mxu0 0.0
    %4883 = vmatprep.subr.mxu0 0.0
    %4884 = vmatpush1.msra.mxu0 0.0
    %4885 = vmatprep.subr.mxu0 0.0
    %4886 = vmatpush1.msra.mxu0 0.0
    %4887 = vmatprep.subr.mxu0 0.0
    %4888 = vmatpush1.msra.mxu0 0.0
    %4889 = vmatprep.mubr.f32.mxu0 0.0
    %4890 = vmatmul.mubr.f32.gmra.mrb[0].mxu0 %v4707
    %v4891 = vpop.f32.mrb[0].mxu0
    %v4892 = vadd.f32 %v4812, %v4891
    %v4893 = vpop.f32.mrb[0].mxu0
    %4894 = vmatprep.mubr.f32.mxu0 0.0
    %4895 = vmatmul.mubr.f32.gmra.mrb[0].mxu0 %v4708
    %v4896 = vpop.f32.mrb[0].mxu0
    %v4897 = vadd.f32 %v4817, %v4896
    %v4898 = vpop.f32.mrb[0].mxu0
    %4899 = vmatprep.mubr.f32.mxu0 0.0
    %4900 = vmatmul.mubr.f32.gmra.mrb[0].mxu0 %v4709
    %v4901 = vpop.f32.mrb[0].mxu0
    %v4902 = vadd.f32 %v4822, %v4901
    %v4903 = vpop.f32.mrb[0].mxu0
    %4904 = vdwg.mxu0
    %v4905 = vld [vmem:[%s4295 + $0x5] sm:$0xff]
    %v4906 = vld [vmem:[%s4295 + $0xd] sm:$0xff]
    %v4907 = vld [vmem:[%s4295 + $0x15] sm:$0x1]
    %v4908 = vld [vmem:[%s774] sm:$0xff]
    %v4909 = vld [vmem:[%s774 + $0x8] sm:$0xff]
    %v4910 = vld [vmem:[%s774 + $0x10] sm:$0xff]
    %v4911 = vld [vmem:[%s774 + $0x18] sm:$0xff]
    %v4912 = vld [vmem:[%s774 + $0x20] sm:$0xff]
    %v4913 = vld [vmem:[%s774 + $0x28] sm:$0xff]
    %v4914 = vld [vmem:[%s774 + $0x30] sm:$0xff]
    %v4915 = vld [vmem:[%s774 + $0x38] sm:$0xff]
    %v4916 = vld [vmem:[%s774 + $0x40] sm:$0xff]
    %v4917 = vld [vmem:[%s774 + $0x48] sm:$0xff]
    %v4918 = vld [vmem:[%s774 + $0x50] sm:$0xff]
    %v4919 = vld [vmem:[%s774 + $0x58] sm:$0xff]
    %v4920 = vld [vmem:[%s774 + $0x60] sm:$0xff]
    %v4921 = vld [vmem:[%s774 + $0x68] sm:$0xff]
    %v4922 = vld [vmem:[%s774 + $0x70] sm:$0xff]
    %v4923 = vld [vmem:[%s774 + $0x78] sm:$0xff]
    %4924 = vmatprep.subr.mxu0 0.0
    %4925 = vmatpush1.msra.mxu0 %v4908
    %4926 = vmatprep.subr.mxu0 0.0
    %4927 = vmatpush1.msra.mxu0 %v4909
    %4928 = vmatprep.subr.mxu0 0.0
    %4929 = vmatpush1.msra.mxu0 %v4910
    %4930 = vmatprep.subr.mxu0 0.0
    %4931 = vmatpush1.msra.mxu0 %v4911
    %4932 = vmatprep.subr.mxu0 0.0
    %4933 = vmatpush1.msra.mxu0 %v4912
    %4934 = vmatprep.subr.mxu0 0.0
    %4935 = vmatpush1.msra.mxu0 %v4913
    %4936 = vmatprep.subr.mxu0 0.0
    %4937 = vmatpush1.msra.mxu0 %v4914
    %4938 = vmatprep.subr.mxu0 0.0
    %4939 = vmatpush1.msra.mxu0 %v4915
    %4940 = vmatprep.subr.mxu0 0.0
    %4941 = vmatpush1.msra.mxu0 %v4916
    %4942 = vmatprep.subr.mxu0 0.0
    %4943 = vmatpush1.msra.mxu0 %v4917
    %4944 = vmatprep.subr.mxu0 0.0
    %4945 = vmatpush1.msra.mxu0 %v4918
    %4946 = vmatprep.subr.mxu0 0.0
    %4947 = vmatpush1.msra.mxu0 %v4919
    %4948 = vmatprep.subr.mxu0 0.0
    %4949 = vmatpush1.msra.mxu0 %v4920
    %4950 = vmatprep.subr.mxu0 0.0
    %4951 = vmatpush1.msra.mxu0 %v4921
    %4952 = vmatprep.subr.mxu0 0.0
    %4953 = vmatpush1.msra.mxu0 %v4922
    %4954 = vmatprep.subr.mxu0 0.0
    %4955 = vmatpush1.msra.mxu0 %v4923
    %4956 = vmatprep.subr.mxu0 0.0
    %4957 = vmatpush1.msra.mxu0 0.0
    %4958 = vmatprep.subr.mxu0 0.0
    %4959 = vmatpush1.msra.mxu0 0.0
    %4960 = vmatprep.subr.mxu0 0.0
    %4961 = vmatpush1.msra.mxu0 0.0
    %4962 = vmatprep.subr.mxu0 0.0
    %4963 = vmatpush1.msra.mxu0 0.0
    %4964 = vmatprep.subr.mxu0 0.0
    %4965 = vmatpush1.msra.mxu0 0.0
    %4966 = vmatprep.subr.mxu0 0.0
    %4967 = vmatpush1.msra.mxu0 0.0
    %4968 = vmatprep.subr.mxu0 0.0
    %4969 = vmatpush1.msra.mxu0 0.0
    %4970 = vmatprep.subr.mxu0 0.0
    %4971 = vmatpush1.msra.mxu0 0.0
    %4972 = vmatprep.subr.mxu0 0.0
    %4973 = vmatpush1.msra.mxu0 0.0
    %4974 = vmatprep.subr.mxu0 0.0
    %4975 = vmatpush1.msra.mxu0 0.0
    %4976 = vmatprep.subr.mxu0 0.0
    %4977 = vmatpush1.msra.mxu0 0.0
    %4978 = vmatprep.subr.mxu0 0.0
    %4979 = vmatpush1.msra.mxu0 0.0
    %4980 = vmatprep.subr.mxu0 0.0
    %4981 = vmatpush1.msra.mxu0 0.0
    %4982 = vmatprep.subr.mxu0 0.0
    %4983 = vmatpush1.msra.mxu0 0.0
    %4984 = vmatprep.subr.mxu0 0.0
    %4985 = vmatpush1.msra.mxu0 0.0
    %4986 = vmatprep.subr.mxu0 0.0
    %4987 = vmatpush1.msra.mxu0 0.0
    %4988 = vmatprep.mubr.f32.mxu0 0.0
    %4989 = vmatmul.mubr.f32.gmra.mrb[0].mxu0 %v4905
    %v4990 = vpop.f32.mrb[0].mxu0
    %v4991 = vadd.f32 0.0, %v4990
    %v4992 = vpop.f32.mrb[0].mxu0
    %4993 = vmatprep.mubr.f32.mxu0 0.0
    %4994 = vmatmul.mubr.f32.gmra.mrb[0].mxu0 %v4906
    %v4995 = vpop.f32.mrb[0].mxu0
    %v4996 = vadd.f32 0.0, %v4995
    %v4997 = vpop.f32.mrb[0].mxu0
    %4998 = vmatprep.mubr.f32.mxu0 0.0
    %4999 = vmatmul.mubr.f32.gmra.mrb[0].mxu0 %v4907
    %v5000 = vpop.f32.mrb[0].mxu0
    %v5001 = vadd.f32 0.0, %v5000
    %v5002 = vpop.f32.mrb[0].mxu0
    %5003 = vdwg.mxu0
    %v5004 = vadd.f32 %v4892, %v4991
    %v5005 = vadd.f32 %v4897, %v4996
    %v5006 = vadd.f32 %v4902, %v5001
    %v5007 = vld [vmem:[%s874] sm:$0x1]
    %v5009 = vlaneseq
    %v5010 = vshrl.u32 %v5009, 7
    %v5011 = vsub.s32 0, %v5010
    %v5012 = vrot.slane %v5007, %v5011
    %v5014 = vadd.f32 %v5004, %v5012
    %v5015 = vadd.f32 %v5005, %v5012
    %v5016 = vadd.f32 %v5006, %v5012
    %v5017 = vmax.f32 %v5014, 0.0
    %v5018 = vmax.f32 %v5015, 0.0
    %v5019 = vmax.f32 %v5016, 0.0
    %v5020 = vld [vmem:[%s888] sm:$0x1]
    %v5022 = vlaneseq
    %v5023 = vshrl.u32 %v5022, 7
    %v5024 = vsub.s32 0, %v5023
    %v5025 = vrot.slane %v5020, %v5024
    %v5027 = vmul.f32 %v5017, %v5025
    %v5028 = vmul.f32 %v5018, %v5025
    %v5029 = vmul.f32 %v5019, %v5025
    %v5030 = vld [vmem:[%s899] sm:$0x1]
    %v5032 = vlaneseq
    %v5033 = vshrl.u32 %v5032, 7
    %v5034 = vsub.s32 0, %v5033
    %v5035 = vrot.slane %v5030, %v5034
    %v5037 = vadd.f32 %v5027, %v5035
    %v5038 = vadd.f32 %v5028, %v5035
    %v5039 = vadd.f32 %v5029, %v5035
    %v5040 = vsel %vm283, -inf, %v5037
    %v5041 = vsel %vm284, -inf, %v5038
    %v5044 = vrot.slane %v5040, 7
    %v5045 = vrot.slane %v5041, 7
    %v5046 = vsel %vm289, %v5044, %v5045
    %v5050 = vmax.f32 %v5037, %v5044
    %v5051 = vmax.f32 %v5038, %v5046
    %v5052 = vmax.f32 %v5039, %v5045
    %v5056 = vrot.slane %v5050, 1
    %v5057 = vrot.slane %v5051, 1
    %v5058 = vsel %vm302, %v5056, %v5057
    %v5059 = vrot.slane %v5052, 1
    %v5060 = vsel %vm302, %v5057, %v5059
    %5063 = vst [vmem:[%s4448 + $0x10] sm:$0xff] %v5058
    %5064 = vst [vmem:[%s4448 + $0x50] sm:$0xff] %v5060
    %v5065 = vld [vmem:[%s4295 + $0x2] sm:$0xff]
    %v5066 = vld [vmem:[%s4295 + $0xa] sm:$0xff]
    %v5067 = vld [vmem:[%s4295 + $0x12] sm:$0x1]
    %v5068 = vld [vmem:[#allocation8] sm:$0xff]
    %v5069 = vld [vmem:[#allocation8 + $0x8] sm:$0xff]
    %v5070 = vld [vmem:[#allocation8 + $0x10] sm:$0xff]
    %v5071 = vld [vmem:[#allocation8 + $0x18] sm:$0xff]
    %v5072 = vld [vmem:[#allocation8 + $0x20] sm:$0xff]
    %v5073 = vld [vmem:[#allocation8 + $0x28] sm:$0xff]
    %v5074 = vld [vmem:[#allocation8 + $0x30] sm:$0xff]
    %v5075 = vld [vmem:[#allocation8 + $0x38] sm:$0xff]
    %v5076 = vld [vmem:[#allocation8 + $0x40] sm:$0xff]
    %v5077 = vld [vmem:[#allocation8 + $0x48] sm:$0xff]
    %v5078 = vld [vmem:[#allocation8 + $0x50] sm:$0xff]
    %v5079 = vld [vmem:[#allocation8 + $0x58] sm:$0xff]
    %v5080 = vld [vmem:[#allocation8 + $0x60] sm:$0xff]
    %v5081 = vld [vmem:[#allocation8 + $0x68] sm:$0xff]
    %v5082 = vld [vmem:[#allocation8 + $0x70] sm:$0xff]
    %v5083 = vld [vmem:[#allocation8 + $0x78] sm:$0xff]
    %v5084 = vld [vmem:[%s4295 + $0x3] sm:$0xff]
    %v5085 = vld [vmem:[%s4295 + $0xb] sm:$0xff]
    %v5086 = vld [vmem:[%s4295 + $0x13] sm:$0x1]
    %v5087 = vld [vmem:[%s957] sm:$0xff]
    %v5088 = vld [vmem:[%s957 + $0x8] sm:$0xff]
    %v5089 = vld [vmem:[%s957 + $0x10] sm:$0xff]
    %v5090 = vld [vmem:[%s957 + $0x18] sm:$0xff]
    %v5091 = vld [vmem:[%s957 + $0x20] sm:$0xff]
    %v5092 = vld [vmem:[%s957 + $0x28] sm:$0xff]
    %v5093 = vld [vmem:[%s957 + $0x30] sm:$0xff]
    %v5094 = vld [vmem:[%s957 + $0x38] sm:$0xff]
    %v5095 = vld [vmem:[%s957 + $0x40] sm:$0xff]
    %v5096 = vld [vmem:[%s957 + $0x48] sm:$0xff]
    %v5097 = vld [vmem:[%s957 + $0x50] sm:$0xff]
    %v5098 = vld [vmem:[%s957 + $0x58] sm:$0xff]
    %v5099 = vld [vmem:[%s957 + $0x60] sm:$0xff]
    %v5100 = vld [vmem:[%s957 + $0x68] sm:$0xff]
    %v5101 = vld [vmem:[%s957 + $0x70] sm:$0xff]
    %v5102 = vld [vmem:[%s957 + $0x78] sm:$0xff]
    %5103 = vmatprep.subr.mxu0 0.0
    %5104 = vmatpush1.msra.mxu0 %v5087
    %5105 = vmatprep.subr.mxu0 0.0
    %5106 = vmatpush1.msra.mxu0 %v5088
    %5107 = vmatprep.subr.mxu0 0.0
    %5108 = vmatpush1.msra.mxu0 %v5089
    %5109 = vmatprep.subr.mxu0 0.0
    %5110 = vmatpush1.msra.mxu0 %v5090
    %5111 = vmatprep.subr.mxu0 0.0
    %5112 = vmatpush1.msra.mxu0 %v5091
    %5113 = vmatprep.subr.mxu0 0.0
    %5114 = vmatpush1.msra.mxu0 %v5092
    %5115 = vmatprep.subr.mxu0 0.0
    %5116 = vmatpush1.msra.mxu0 %v5093
    %5117 = vmatprep.subr.mxu0 0.0
    %5118 = vmatpush1.msra.mxu0 %v5094
    %5119 = vmatprep.subr.mxu0 0.0
    %5120 = vmatpush1.msra.mxu0 %v5095
    %5121 = vmatprep.subr.mxu0 0.0
    %5122 = vmatpush1.msra.mxu0 %v5096
    %5123 = vmatprep.subr.mxu0 0.0
    %5124 = vmatpush1.msra.mxu0 %v5097
    %5125 = vmatprep.subr.mxu0 0.0
    %5126 = vmatpush1.msra.mxu0 %v5098
    %5127 = vmatprep.subr.mxu0 0.0
    %5128 = vmatpush1.msra.mxu0 %v5099
    %5129 = vmatprep.subr.mxu0 0.0
    %5130 = vmatpush1.msra.mxu0 %v5100
    %5131 = vmatprep.subr.mxu0 0.0
    %5132 = vmatpush1.msra.mxu0 %v5101
    %5133 = vmatprep.subr.mxu0 0.0
    %5134 = vmatpush1.msra.mxu0 %v5102
    %5135 = vmatprep.subr.mxu0 0.0
    %5136 = vmatpush1.msra.mxu0 0.0
    %5137 = vmatprep.subr.mxu0 0.0
    %5138 = vmatpush1.msra.mxu0 0.0
    %5139 = vmatprep.subr.mxu0 0.0
    %5140 = vmatpush1.msra.mxu0 0.0
    %5141 = vmatprep.subr.mxu0 0.0
    %5142 = vmatpush1.msra.mxu0 0.0
    %5143 = vmatprep.subr.mxu0 0.0
    %5144 = vmatpush1.msra.mxu0 0.0
    %5145 = vmatprep.subr.mxu0 0.0
    %5146 = vmatpush1.msra.mxu0 0.0
    %5147 = vmatprep.subr.mxu0 0.0
    %5148 = vmatpush1.msra.mxu0 0.0
    %5149 = vmatprep.subr.mxu0 0.0
    %5150 = vmatpush1.msra.mxu0 0.0
    %5151 = vmatprep.subr.mxu0 0.0
    %5152 = vmatpush1.msra.mxu0 0.0
    %5153 = vmatprep.subr.mxu0 0.0
    %5154 = vmatpush1.msra.mxu0 0.0
    %5155 = vmatprep.subr.mxu0 0.0
    %5156 = vmatpush1.msra.mxu0 0.0
    %5157 = vmatprep.subr.mxu0 0.0
    %5158 = vmatpush1.msra.mxu0 0.0
    %5159 = vmatprep.subr.mxu0 0.0
    %5160 = vmatpush1.msra.mxu0 0.0
    %5161 = vmatprep.subr.mxu0 0.0
    %5162 = vmatpush1.msra.mxu0 0.0
    %5163 = vmatprep.subr.mxu0 0.0
    %5164 = vmatpush1.msra.mxu0 0.0
    %5165 = vmatprep.subr.mxu0 0.0
    %5166 = vmatpush1.msra.mxu0 0.0
    %5167 = vmatprep.mubr.f32.mxu0 0.0
    %5168 = vmatmul.mubr.f32.gmra.mrb[0].mxu0 %v5084
    %v5169 = vpop.f32.mrb[0].mxu0
    %v5170 = vadd.f32 0.0, %v5169
    %v5171 = vpop.f32.mrb[0].mxu0
    %5172 = vmatprep.mubr.f32.mxu0 0.0
    %5173 = vmatmul.mubr.f32.gmra.mrb[0].mxu0 %v5085
    %v5174 = vpop.f32.mrb[0].mxu0
    %v5175 = vadd.f32 0.0, %v5174
    %v5176 = vpop.f32.mrb[0].mxu0
    %5177 = vmatprep.mubr.f32.mxu0 0.0
    %5178 = vmatmul.mubr.f32.gmra.mrb[0].mxu0 %v5086
    %v5179 = vpop.f32.mrb[0].mxu0
    %v5180 = vadd.f32 0.0, %v5179
    %v5181 = vpop.f32.mrb[0].mxu0
    %5182 = vdwg.mxu0
    %5183 = vmatprep.subr.mxu0 0.0
    %5184 = vmatpush1.msra.mxu0 %v5068
    %5185 = vmatprep.subr.mxu0 0.0
    %5186 = vmatpush1.msra.mxu0 %v5069
    %5187 = vmatprep.subr.mxu0 0.0
    %5188 = vmatpush1.msra.mxu0 %v5070
    %5189 = vmatprep.subr.mxu0 0.0
    %5190 = vmatpush1.msra.mxu0 %v5071
    %5191 = vmatprep.subr.mxu0 0.0
    %5192 = vmatpush1.msra.mxu0 %v5072
    %5193 = vmatprep.subr.mxu0 0.0
    %5194 = vmatpush1.msra.mxu0 %v5073
    %5195 = vmatprep.subr.mxu0 0.0
    %5196 = vmatpush1.msra.mxu0 %v5074
    %5197 = vmatprep.subr.mxu0 0.0
    %5198 = vmatpush1.msra.mxu0 %v5075
    %5199 = vmatprep.subr.mxu0 0.0
    %5200 = vmatpush1.msra.mxu0 %v5076
    %5201 = vmatprep.subr.mxu0 0.0
    %5202 = vmatpush1.msra.mxu0 %v5077
    %5203 = vmatprep.subr.mxu0 0.0
    %5204 = vmatpush1.msra.mxu0 %v5078
    %5205 = vmatprep.subr.mxu0 0.0
    %5206 = vmatpush1.msra.mxu0 %v5079
    %5207 = vmatprep.subr.mxu0 0.0
    %5208 = vmatpush1.msra.mxu0 %v5080
    %5209 = vmatprep.subr.mxu0 0.0
    %5210 = vmatpush1.msra.mxu0 %v5081
    %5211 = vmatprep.subr.mxu0 0.0
    %5212 = vmatpush1.msra.mxu0 %v5082
    %5213 = vmatprep.subr.mxu0 0.0
    %5214 = vmatpush1.msra.mxu0 %v5083
    %5215 = vmatprep.subr.mxu0 0.0
    %5216 = vmatpush1.msra.mxu0 0.0
    %5217 = vmatprep.subr.mxu0 0.0
    %5218 = vmatpush1.msra.mxu0 0.0
    %5219 = vmatprep.subr.mxu0 0.0
    %5220 = vmatpush1.msra.mxu0 0.0
    %5221 = vmatprep.subr.mxu0 0.0
    %5222 = vmatpush1.msra.mxu0 0.0
    %5223 = vmatprep.subr.mxu0 0.0
    %5224 = vmatpush1.msra.mxu0 0.0
    %5225 = vmatprep.subr.mxu0 0.0
    %5226 = vmatpush1.msra.mxu0 0.0
    %5227 = vmatprep.subr.mxu0 0.0
    %5228 = vmatpush1.msra.mxu0 0.0
    %5229 = vmatprep.subr.mxu0 0.0
    %5230 = vmatpush1.msra.mxu0 0.0
    %5231 = vmatprep.subr.mxu0 0.0
    %5232 = vmatpush1.msra.mxu0 0.0
    %5233 = vmatprep.subr.mxu0 0.0
    %5234 = vmatpush1.msra.mxu0 0.0
    %5235 = vmatprep.subr.mxu0 0.0
    %5236 = vmatpush1.msra.mxu0 0.0
    %5237 = vmatprep.subr.mxu0 0.0
    %5238 = vmatpush1.msra.mxu0 0.0
    %5239 = vmatprep.subr.mxu0 0.0
    %5240 = vmatpush1.msra.mxu0 0.0
    %5241 = vmatprep.subr.mxu0 0.0
    %5242 = vmatpush1.msra.mxu0 0.0
    %5243 = vmatprep.subr.mxu0 0.0
    %5244 = vmatpush1.msra.mxu0 0.0
    %5245 = vmatprep.subr.mxu0 0.0
    %5246 = vmatpush1.msra.mxu0 0.0
    %5247 = vmatprep.mubr.f32.mxu0 0.0
    %5248 = vmatmul.mubr.f32.gmra.mrb[0].mxu0 %v5065
    %v5249 = vpop.f32.mrb[0].mxu0
    %v5250 = vadd.f32 %v5170, %v5249
    %v5251 = vpop.f32.mrb[0].mxu0
    %5252 = vmatprep.mubr.f32.mxu0 0.0
    %5253 = vmatmul.mubr.f32.gmra.mrb[0].mxu0 %v5066
    %v5254 = vpop.f32.mrb[0].mxu0
    %v5255 = vadd.f32 %v5175, %v5254
    %v5256 = vpop.f32.mrb[0].mxu0
    %5257 = vmatprep.mubr.f32.mxu0 0.0
    %5258 = vmatmul.mubr.f32.gmra.mrb[0].mxu0 %v5067
    %v5259 = vpop.f32.mrb[0].mxu0
    %v5260 = vadd.f32 %v5180, %v5259
    %v5261 = vpop.f32.mrb[0].mxu0
    %5262 = vdwg.mxu0
    %v5263 = vld [vmem:[%s4295 + $0x4] sm:$0xff]
    %v5264 = vld [vmem:[%s4295 + $0xc] sm:$0xff]
    %v5265 = vld [vmem:[%s4295 + $0x14] sm:$0x1]
    %v5266 = vld [vmem:[%s1137] sm:$0xff]
    %v5267 = vld [vmem:[%s1137 + $0x8] sm:$0xff]
    %v5268 = vld [vmem:[%s1137 + $0x10] sm:$0xff]
    %v5269 = vld [vmem:[%s1137 + $0x18] sm:$0xff]
    %v5270 = vld [vmem:[%s1137 + $0x20] sm:$0xff]
    %v5271 = vld [vmem:[%s1137 + $0x28] sm:$0xff]
    %v5272 = vld [vmem:[%s1137 + $0x30] sm:$0xff]
    %v5273 = vld [vmem:[%s1137 + $0x38] sm:$0xff]
    %v5274 = vld [vmem:[%s1137 + $0x40] sm:$0xff]
    %v5275 = vld [vmem:[%s1137 + $0x48] sm:$0xff]
    %v5276 = vld [vmem:[%s1137 + $0x50] sm:$0xff]
    %v5277 = vld [vmem:[%s1137 + $0x58] sm:$0xff]
    %v5278 = vld [vmem:[%s1137 + $0x60] sm:$0xff]
    %v5279 = vld [vmem:[%s1137 + $0x68] sm:$0xff]
    %v5280 = vld [vmem:[%s1137 + $0x70] sm:$0xff]
    %v5281 = vld [vmem:[%s1137 + $0x78] sm:$0xff]
    %5282 = vmatprep.subr.mxu0 0.0
    %5283 = vmatpush1.msra.mxu0 %v5266
    %5284 = vmatprep.subr.mxu0 0.0
    %5285 = vmatpush1.msra.mxu0 %v5267
    %5286 = vmatprep.subr.mxu0 0.0
    %5287 = vmatpush1.msra.mxu0 %v5268
    %5288 = vmatprep.subr.mxu0 0.0
    %5289 = vmatpush1.msra.mxu0 %v5269
    %5290 = vmatprep.subr.mxu0 0.0
    %5291 = vmatpush1.msra.mxu0 %v5270
    %5292 = vmatprep.subr.mxu0 0.0
    %5293 = vmatpush1.msra.mxu0 %v5271
    %5294 = vmatprep.subr.mxu0 0.0
    %5295 = vmatpush1.msra.mxu0 %v5272
    %5296 = vmatprep.subr.mxu0 0.0
    %5297 = vmatpush1.msra.mxu0 %v5273
    %5298 = vmatprep.subr.mxu0 0.0
    %5299 = vmatpush1.msra.mxu0 %v5274
    %5300 = vmatprep.subr.mxu0 0.0
    %5301 = vmatpush1.msra.mxu0 %v5275
    %5302 = vmatprep.subr.mxu0 0.0
    %5303 = vmatpush1.msra.mxu0 %v5276
    %5304 = vmatprep.subr.mxu0 0.0
    %5305 = vmatpush1.msra.mxu0 %v5277
    %5306 = vmatprep.subr.mxu0 0.0
    %5307 = vmatpush1.msra.mxu0 %v5278
    %5308 = vmatprep.subr.mxu0 0.0
    %5309 = vmatpush1.msra.mxu0 %v5279
    %5310 = vmatprep.subr.mxu0 0.0
    %5311 = vmatpush1.msra.mxu0 %v5280
    %5312 = vmatprep.subr.mxu0 0.0
    %5313 = vmatpush1.msra.mxu0 %v5281
    %5314 = vmatprep.subr.mxu0 0.0
    %5315 = vmatpush1.msra.mxu0 0.0
    %5316 = vmatprep.subr.mxu0 0.0
    %5317 = vmatpush1.msra.mxu0 0.0
    %5318 = vmatprep.subr.mxu0 0.0
    %5319 = vmatpush1.msra.mxu0 0.0
    %5320 = vmatprep.subr.mxu0 0.0
    %5321 = vmatpush1.msra.mxu0 0.0
    %5322 = vmatprep.subr.mxu0 0.0
    %5323 = vmatpush1.msra.mxu0 0.0
    %5324 = vmatprep.subr.mxu0 0.0
    %5325 = vmatpush1.msra.mxu0 0.0
    %5326 = vmatprep.subr.mxu0 0.0
    %5327 = vmatpush1.msra.mxu0 0.0
    %5328 = vmatprep.subr.mxu0 0.0
    %5329 = vmatpush1.msra.mxu0 0.0
    %5330 = vmatprep.subr.mxu0 0.0
    %5331 = vmatpush1.msra.mxu0 0.0
    %5332 = vmatprep.subr.mxu0 0.0
    %5333 = vmatpush1.msra.mxu0 0.0
    %5334 = vmatprep.subr.mxu0 0.0
    %5335 = vmatpush1.msra.mxu0 0.0
    %5336 = vmatprep.subr.mxu0 0.0
    %5337 = vmatpush1.msra.mxu0 0.0
    %5338 = vmatprep.subr.mxu0 0.0
    %5339 = vmatpush1.msra.mxu0 0.0
    %5340 = vmatprep.subr.mxu0 0.0
    %5341 = vmatpush1.msra.mxu0 0.0
    %5342 = vmatprep.subr.mxu0 0.0
    %5343 = vmatpush1.msra.mxu0 0.0
    %5344 = vmatprep.subr.mxu0 0.0
    %5345 = vmatpush1.msra.mxu0 0.0
    %5346 = vmatprep.mubr.f32.mxu0 0.0
    %5347 = vmatmul.mubr.f32.gmra.mrb[0].mxu0 %v5263
    %v5348 = vpop.f32.mrb[0].mxu0
    %v5349 = vadd.f32 0.0, %v5348
    %v5350 = vpop.f32.mrb[0].mxu0
    %5351 = vmatprep.mubr.f32.mxu0 0.0
    %5352 = vmatmul.mubr.f32.gmra.mrb[0].mxu0 %v5264
    %v5353 = vpop.f32.mrb[0].mxu0
    %v5354 = vadd.f32 0.0, %v5353
    %v5355 = vpop.f32.mrb[0].mxu0
    %5356 = vmatprep.mubr.f32.mxu0 0.0
    %5357 = vmatmul.mubr.f32.gmra.mrb[0].mxu0 %v5265
    %v5358 = vpop.f32.mrb[0].mxu0
    %v5359 = vadd.f32 0.0, %v5358
    %v5360 = vpop.f32.mrb[0].mxu0
    %5361 = vdwg.mxu0
    %v5362 = vadd.f32 %v5250, %v5349
    %v5363 = vadd.f32 %v5255, %v5354
    %v5364 = vadd.f32 %v5260, %v5359
    %v5365 = vld [vmem:[%s4295 + $0x5] sm:$0xff]
    %v5366 = vld [vmem:[%s4295 + $0xd] sm:$0xff]
    %v5367 = vld [vmem:[%s4295 + $0x15] sm:$0x1]
    %v5368 = vld [vmem:[%s1240] sm:$0xff]
    %v5369 = vld [vmem:[%s1240 + $0x8] sm:$0xff]
    %v5370 = vld [vmem:[%s1240 + $0x10] sm:$0xff]
    %v5371 = vld [vmem:[%s1240 + $0x18] sm:$0xff]
    %v5372 = vld [vmem:[%s1240 + $0x20] sm:$0xff]
    %v5373 = vld [vmem:[%s1240 + $0x28] sm:$0xff]
    %v5374 = vld [vmem:[%s1240 + $0x30] sm:$0xff]
    %v5375 = vld [vmem:[%s1240 + $0x38] sm:$0xff]
    %v5376 = vld [vmem:[%s1240 + $0x40] sm:$0xff]
    %v5377 = vld [vmem:[%s1240 + $0x48] sm:$0xff]
    %v5378 = vld [vmem:[%s1240 + $0x50] sm:$0xff]
    %v5379 = vld [vmem:[%s1240 + $0x58] sm:$0xff]
    %v5380 = vld [vmem:[%s1240 + $0x60] sm:$0xff]
    %v5381 = vld [vmem:[%s1240 + $0x68] sm:$0xff]
    %v5382 = vld [vmem:[%s1240 + $0x70] sm:$0xff]
    %v5383 = vld [vmem:[%s1240 + $0x78] sm:$0xff]
    %5384 = vmatprep.subr.mxu0 0.0
    %5385 = vmatpush1.msra.mxu0 %v5368
    %5386 = vmatprep.subr.mxu0 0.0
    %5387 = vmatpush1.msra.mxu0 %v5369
    %5388 = vmatprep.subr.mxu0 0.0
    %5389 = vmatpush1.msra.mxu0 %v5370
    %5390 = vmatprep.subr.mxu0 0.0
    %5391 = vmatpush1.msra.mxu0 %v5371
    %5392 = vmatprep.subr.mxu0 0.0
    %5393 = vmatpush1.msra.mxu0 %v5372
    %5394 = vmatprep.subr.mxu0 0.0
    %5395 = vmatpush1.msra.mxu0 %v5373
    %5396 = vmatprep.subr.mxu0 0.0
    %5397 = vmatpush1.msra.mxu0 %v5374
    %5398 = vmatprep.subr.mxu0 0.0
    %5399 = vmatpush1.msra.mxu0 %v5375
    %5400 = vmatprep.subr.mxu0 0.0
    %5401 = vmatpush1.msra.mxu0 %v5376
    %5402 = vmatprep.subr.mxu0 0.0
    %5403 = vmatpush1.msra.mxu0 %v5377
    %5404 = vmatprep.subr.mxu0 0.0
    %5405 = vmatpush1.msra.mxu0 %v5378
    %5406 = vmatprep.subr.mxu0 0.0
    %5407 = vmatpush1.msra.mxu0 %v5379
    %5408 = vmatprep.subr.mxu0 0.0
    %5409 = vmatpush1.msra.mxu0 %v5380
    %5410 = vmatprep.subr.mxu0 0.0
    %5411 = vmatpush1.msra.mxu0 %v5381
    %5412 = vmatprep.subr.mxu0 0.0
    %5413 = vmatpush1.msra.mxu0 %v5382
    %5414 = vmatprep.subr.mxu0 0.0
    %5415 = vmatpush1.msra.mxu0 %v5383
    %5416 = vmatprep.subr.mxu0 0.0
    %5417 = vmatpush1.msra.mxu0 0.0
    %5418 = vmatprep.subr.mxu0 0.0
    %5419 = vmatpush1.msra.mxu0 0.0
    %5420 = vmatprep.subr.mxu0 0.0
    %5421 = vmatpush1.msra.mxu0 0.0
    %5422 = vmatprep.subr.mxu0 0.0
    %5423 = vmatpush1.msra.mxu0 0.0
    %5424 = vmatprep.subr.mxu0 0.0
    %5425 = vmatpush1.msra.mxu0 0.0
    %5426 = vmatprep.subr.mxu0 0.0
    %5427 = vmatpush1.msra.mxu0 0.0
    %5428 = vmatprep.subr.mxu0 0.0
    %5429 = vmatpush1.msra.mxu0 0.0
    %5430 = vmatprep.subr.mxu0 0.0
    %5431 = vmatpush1.msra.mxu0 0.0
    %5432 = vmatprep.subr.mxu0 0.0
    %5433 = vmatpush1.msra.mxu0 0.0
    %5434 = vmatprep.subr.mxu0 0.0
    %5435 = vmatpush1.msra.mxu0 0.0
    %5436 = vmatprep.subr.mxu0 0.0
    %5437 = vmatpush1.msra.mxu0 0.0
    %5438 = vmatprep.subr.mxu0 0.0
    %5439 = vmatpush1.msra.mxu0 0.0
    %5440 = vmatprep.subr.mxu0 0.0
    %5441 = vmatpush1.msra.mxu0 0.0
    %5442 = vmatprep.subr.mxu0 0.0
    %5443 = vmatpush1.msra.mxu0 0.0
    %5444 = vmatprep.subr.mxu0 0.0
    %5445 = vmatpush1.msra.mxu0 0.0
    %5446 = vmatprep.subr.mxu0 0.0
    %5447 = vmatpush1.msra.mxu0 0.0
    %5448 = vmatprep.mubr.f32.mxu0 0.0
    %5449 = vmatmul.mubr.f32.gmra.mrb[0].mxu0 %v5365
    %v5450 = vpop.f32.mrb[0].mxu0
    %v5451 = vadd.f32 0.0, %v5450
    %v5452 = vpop.f32.mrb[0].mxu0
    %5453 = vmatprep.mubr.f32.mxu0 0.0
    %5454 = vmatmul.mubr.f32.gmra.mrb[0].mxu0 %v5366
    %v5455 = vpop.f32.mrb[0].mxu0
    %v5456 = vadd.f32 0.0, %v5455
    %v5457 = vpop.f32.mrb[0].mxu0
    %5458 = vmatprep.mubr.f32.mxu0 0.0
    %5459 = vmatmul.mubr.f32.gmra.mrb[0].mxu0 %v5367
    %v5460 = vpop.f32.mrb[0].mxu0
    %v5461 = vadd.f32 0.0, %v5460
    %v5462 = vpop.f32.mrb[0].mxu0
    %5463 = vdwg.mxu0
    %v5464 = vadd.f32 %v5362, %v5451
    %v5465 = vadd.f32 %v5363, %v5456
    %v5466 = vadd.f32 %v5364, %v5461
    %v5467 = vld [vmem:[%s1340] sm:$0x1]
    %v5469 = vlaneseq
    %v5470 = vshrl.u32 %v5469, 7
    %v5471 = vsub.s32 0, %v5470
    %v5472 = vrot.slane %v5467, %v5471
    %v5474 = vadd.f32 %v5464, %v5472
    %v5475 = vadd.f32 %v5465, %v5472
    %v5476 = vadd.f32 %v5466, %v5472
    %v5477 = vmax.f32 %v5474, 0.0
    %v5478 = vmax.f32 %v5475, 0.0
    %v5479 = vmax.f32 %v5476, 0.0
    %v5480 = vld [vmem:[%s1354] sm:$0x1]
    %v5482 = vlaneseq
    %v5483 = vshrl.u32 %v5482, 7
    %v5484 = vsub.s32 0, %v5483
    %v5485 = vrot.slane %v5480, %v5484
    %v5487 = vmul.f32 %v5477, %v5485
    %v5488 = vmul.f32 %v5478, %v5485
    %v5489 = vmul.f32 %v5479, %v5485
    %v5490 = vld [vmem:[%s1365] sm:$0x1]
    %v5492 = vlaneseq
    %v5493 = vshrl.u32 %v5492, 7
    %v5494 = vsub.s32 0, %v5493
    %v5495 = vrot.slane %v5490, %v5494
    %v5497 = vadd.f32 %v5487, %v5495
    %v5498 = vadd.f32 %v5488, %v5495
    %v5499 = vadd.f32 %v5489, %v5495
    %v5500 = vsel %vm283, -inf, %v5497
    %v5501 = vsel %vm284, -inf, %v5498
    %v5504 = vrot.slane %v5500, 7
    %v5505 = vrot.slane %v5501, 7
    %v5506 = vsel %vm289, %v5504, %v5505
    %v5510 = vmax.f32 %v5497, %v5504
    %v5511 = vmax.f32 %v5498, %v5506
    %v5512 = vmax.f32 %v5499, %v5505
    %v5516 = vrot.slane %v5510, 1
    %v5517 = vrot.slane %v5511, 1
    %v5518 = vsel %vm302, %v5516, %v5517
    %v5519 = vrot.slane %v5512, 1
    %v5520 = vsel %vm302, %v5517, %v5519
    %5523 = vst [vmem:[%s4448 + $0x18] sm:$0xff] %v5518
    %5524 = vst [vmem:[%s4448 + $0x58] sm:$0xff] %v5520
    %v5525 = vld [vmem:[%s4295 + $0x2] sm:$0xff]
    %v5526 = vld [vmem:[%s4295 + $0xa] sm:$0xff]
    %v5527 = vld [vmem:[%s4295 + $0x12] sm:$0x1]
    %v5528 = vld [vmem:[#allocation10] sm:$0xff]
    %v5529 = vld [vmem:[#allocation10 + $0x8] sm:$0xff]
    %v5530 = vld [vmem:[#allocation10 + $0x10] sm:$0xff]
    %v5531 = vld [vmem:[#allocation10 + $0x18] sm:$0xff]
    %v5532 = vld [vmem:[#allocation10 + $0x20] sm:$0xff]
    %v5533 = vld [vmem:[#allocation10 + $0x28] sm:$0xff]
    %v5534 = vld [vmem:[#allocation10 + $0x30] sm:$0xff]
    %v5535 = vld [vmem:[#allocation10 + $0x38] sm:$0xff]
    %v5536 = vld [vmem:[#allocation10 + $0x40] sm:$0xff]
    %v5537 = vld [vmem:[#allocation10 + $0x48] sm:$0xff]
    %v5538 = vld [vmem:[#allocation10 + $0x50] sm:$0xff]
    %v5539 = vld [vmem:[#allocation10 + $0x58] sm:$0xff]
    %v5540 = vld [vmem:[#allocation10 + $0x60] sm:$0xff]
    %v5541 = vld [vmem:[#allocation10 + $0x68] sm:$0xff]
    %v5542 = vld [vmem:[#allocation10 + $0x70] sm:$0xff]
    %v5543 = vld [vmem:[#allocation10 + $0x78] sm:$0xff]
    %v5544 = vld [vmem:[%s4295 + $0x3] sm:$0xff]
    %v5545 = vld [vmem:[%s4295 + $0xb] sm:$0xff]
    %v5546 = vld [vmem:[%s4295 + $0x13] sm:$0x1]
    %v5547 = vld [vmem:[%s1423] sm:$0xff]
    %v5548 = vld [vmem:[%s1423 + $0x8] sm:$0xff]
    %v5549 = vld [vmem:[%s1423 + $0x10] sm:$0xff]
    %v5550 = vld [vmem:[%s1423 + $0x18] sm:$0xff]
    %v5551 = vld [vmem:[%s1423 + $0x20] sm:$0xff]
    %v5552 = vld [vmem:[%s1423 + $0x28] sm:$0xff]
    %v5553 = vld [vmem:[%s1423 + $0x30] sm:$0xff]
    %v5554 = vld [vmem:[%s1423 + $0x38] sm:$0xff]
    %v5555 = vld [vmem:[%s1423 + $0x40] sm:$0xff]
    %v5556 = vld [vmem:[%s1423 + $0x48] sm:$0xff]
    %v5557 = vld [vmem:[%s1423 + $0x50] sm:$0xff]
    %v5558 = vld [vmem:[%s1423 + $0x58] sm:$0xff]
    %v5559 = vld [vmem:[%s1423 + $0x60] sm:$0xff]
    %v5560 = vld [vmem:[%s1423 + $0x68] sm:$0xff]
    %v5561 = vld [vmem:[%s1423 + $0x70] sm:$0xff]
    %v5562 = vld [vmem:[%s1423 + $0x78] sm:$0xff]
    %5563 = vmatprep.subr.mxu0 0.0
    %5564 = vmatpush1.msra.mxu0 %v5547
    %5565 = vmatprep.subr.mxu0 0.0
    %5566 = vmatpush1.msra.mxu0 %v5548
    %5567 = vmatprep.subr.mxu0 0.0
    %5568 = vmatpush1.msra.mxu0 %v5549
    %5569 = vmatprep.subr.mxu0 0.0
    %5570 = vmatpush1.msra.mxu0 %v5550
    %5571 = vmatprep.subr.mxu0 0.0
    %5572 = vmatpush1.msra.mxu0 %v5551
    %5573 = vmatprep.subr.mxu0 0.0
    %5574 = vmatpush1.msra.mxu0 %v5552
    %5575 = vmatprep.subr.mxu0 0.0
    %5576 = vmatpush1.msra.mxu0 %v5553
    %5577 = vmatprep.subr.mxu0 0.0
    %5578 = vmatpush1.msra.mxu0 %v5554
    %5579 = vmatprep.subr.mxu0 0.0
    %5580 = vmatpush1.msra.mxu0 %v5555
    %5581 = vmatprep.subr.mxu0 0.0
    %5582 = vmatpush1.msra.mxu0 %v5556
    %5583 = vmatprep.subr.mxu0 0.0
    %5584 = vmatpush1.msra.mxu0 %v5557
    %5585 = vmatprep.subr.mxu0 0.0
    %5586 = vmatpush1.msra.mxu0 %v5558
    %5587 = vmatprep.subr.mxu0 0.0
    %5588 = vmatpush1.msra.mxu0 %v5559
    %5589 = vmatprep.subr.mxu0 0.0
    %5590 = vmatpush1.msra.mxu0 %v5560
    %5591 = vmatprep.subr.mxu0 0.0
    %5592 = vmatpush1.msra.mxu0 %v5561
    %5593 = vmatprep.subr.mxu0 0.0
    %5594 = vmatpush1.msra.mxu0 %v5562
    %5595 = vmatprep.subr.mxu0 0.0
    %5596 = vmatpush1.msra.mxu0 0.0
    %5597 = vmatprep.subr.mxu0 0.0
    %5598 = vmatpush1.msra.mxu0 0.0
    %5599 = vmatprep.subr.mxu0 0.0
    %5600 = vmatpush1.msra.mxu0 0.0
    %5601 = vmatprep.subr.mxu0 0.0
    %5602 = vmatpush1.msra.mxu0 0.0
    %5603 = vmatprep.subr.mxu0 0.0
    %5604 = vmatpush1.msra.mxu0 0.0
    %5605 = vmatprep.subr.mxu0 0.0
    %5606 = vmatpush1.msra.mxu0 0.0
    %5607 = vmatprep.subr.mxu0 0.0
    %5608 = vmatpush1.msra.mxu0 0.0
    %5609 = vmatprep.subr.mxu0 0.0
    %5610 = vmatpush1.msra.mxu0 0.0
    %5611 = vmatprep.subr.mxu0 0.0
    %5612 = vmatpush1.msra.mxu0 0.0
    %5613 = vmatprep.subr.mxu0 0.0
    %5614 = vmatpush1.msra.mxu0 0.0
    %5615 = vmatprep.subr.mxu0 0.0
    %5616 = vmatpush1.msra.mxu0 0.0
    %5617 = vmatprep.subr.mxu0 0.0
    %5618 = vmatpush1.msra.mxu0 0.0
    %5619 = vmatprep.subr.mxu0 0.0
    %5620 = vmatpush1.msra.mxu0 0.0
    %5621 = vmatprep.subr.mxu0 0.0
    %5622 = vmatpush1.msra.mxu0 0.0
    %5623 = vmatprep.subr.mxu0 0.0
    %5624 = vmatpush1.msra.mxu0 0.0
    %5625 = vmatprep.subr.mxu0 0.0
    %5626 = vmatpush1.msra.mxu0 0.0
    %5627 = vmatprep.mubr.f32.mxu0 0.0
    %5628 = vmatmul.mubr.f32.gmra.mrb[0].mxu0 %v5544
    %v5629 = vpop.f32.mrb[0].mxu0
    %v5630 = vadd.f32 0.0, %v5629
    %v5631 = vpop.f32.mrb[0].mxu0
    %5632 = vmatprep.mubr.f32.mxu0 0.0
    %5633 = vmatmul.mubr.f32.gmra.mrb[0].mxu0 %v5545
    %v5634 = vpop.f32.mrb[0].mxu0
    %v5635 = vadd.f32 0.0, %v5634
    %v5636 = vpop.f32.mrb[0].mxu0
    %5637 = vmatprep.mubr.f32.mxu0 0.0
    %5638 = vmatmul.mubr.f32.gmra.mrb[0].mxu0 %v5546
    %v5639 = vpop.f32.mrb[0].mxu0
    %v5640 = vadd.f32 0.0, %v5639
    %v5641 = vpop.f32.mrb[0].mxu0
    %5642 = vdwg.mxu0
    %5643 = vmatprep.subr.mxu0 0.0
    %5644 = vmatpush1.msra.mxu0 %v5528
    %5645 = vmatprep.subr.mxu0 0.0
    %5646 = vmatpush1.msra.mxu0 %v5529
    %5647 = vmatprep.subr.mxu0 0.0
    %5648 = vmatpush1.msra.mxu0 %v5530
    %5649 = vmatprep.subr.mxu0 0.0
    %5650 = vmatpush1.msra.mxu0 %v5531
    %5651 = vmatprep.subr.mxu0 0.0
    %5652 = vmatpush1.msra.mxu0 %v5532
    %5653 = vmatprep.subr.mxu0 0.0
    %5654 = vmatpush1.msra.mxu0 %v5533
    %5655 = vmatprep.subr.mxu0 0.0
    %5656 = vmatpush1.msra.mxu0 %v5534
    %5657 = vmatprep.subr.mxu0 0.0
    %5658 = vmatpush1.msra.mxu0 %v5535
    %5659 = vmatprep.subr.mxu0 0.0
    %5660 = vmatpush1.msra.mxu0 %v5536
    %5661 = vmatprep.subr.mxu0 0.0
    %5662 = vmatpush1.msra.mxu0 %v5537
    %5663 = vmatprep.subr.mxu0 0.0
    %5664 = vmatpush1.msra.mxu0 %v5538
    %5665 = vmatprep.subr.mxu0 0.0
    %5666 = vmatpush1.msra.mxu0 %v5539
    %5667 = vmatprep.subr.mxu0 0.0
    %5668 = vmatpush1.msra.mxu0 %v5540
    %5669 = vmatprep.subr.mxu0 0.0
    %5670 = vmatpush1.msra.mxu0 %v5541
    %5671 = vmatprep.subr.mxu0 0.0
    %5672 = vmatpush1.msra.mxu0 %v5542
    %5673 = vmatprep.subr.mxu0 0.0
    %5674 = vmatpush1.msra.mxu0 %v5543
    %5675 = vmatprep.subr.mxu0 0.0
    %5676 = vmatpush1.msra.mxu0 0.0
    %5677 = vmatprep.subr.mxu0 0.0
    %5678 = vmatpush1.msra.mxu0 0.0
    %5679 = vmatprep.subr.mxu0 0.0
    %5680 = vmatpush1.msra.mxu0 0.0
    %5681 = vmatprep.subr.mxu0 0.0
    %5682 = vmatpush1.msra.mxu0 0.0
    %5683 = vmatprep.subr.mxu0 0.0
    %5684 = vmatpush1.msra.mxu0 0.0
    %5685 = vmatprep.subr.mxu0 0.0
    %5686 = vmatpush1.msra.mxu0 0.0
    %5687 = vmatprep.subr.mxu0 0.0
    %5688 = vmatpush1.msra.mxu0 0.0
    %5689 = vmatprep.subr.mxu0 0.0
    %5690 = vmatpush1.msra.mxu0 0.0
    %5691 = vmatprep.subr.mxu0 0.0
    %5692 = vmatpush1.msra.mxu0 0.0
    %5693 = vmatprep.subr.mxu0 0.0
    %5694 = vmatpush1.msra.mxu0 0.0
    %5695 = vmatprep.subr.mxu0 0.0
    %5696 = vmatpush1.msra.mxu0 0.0
    %5697 = vmatprep.subr.mxu0 0.0
    %5698 = vmatpush1.msra.mxu0 0.0
    %5699 = vmatprep.subr.mxu0 0.0
    %5700 = vmatpush1.msra.mxu0 0.0
    %5701 = vmatprep.subr.mxu0 0.0
    %5702 = vmatpush1.msra.mxu0 0.0
    %5703 = vmatprep.subr.mxu0 0.0
    %5704 = vmatpush1.msra.mxu0 0.0
    %5705 = vmatprep.subr.mxu0 0.0
    %5706 = vmatpush1.msra.mxu0 0.0
    %5707 = vmatprep.mubr.f32.mxu0 0.0
    %5708 = vmatmul.mubr.f32.gmra.mrb[0].mxu0 %v5525
    %v5709 = vpop.f32.mrb[0].mxu0
    %v5710 = vadd.f32 %v5630, %v5709
    %v5711 = vpop.f32.mrb[0].mxu0
    %5712 = vmatprep.mubr.f32.mxu0 0.0
    %5713 = vmatmul.mubr.f32.gmra.mrb[0].mxu0 %v5526
    %v5714 = vpop.f32.mrb[0].mxu0
    %v5715 = vadd.f32 %v5635, %v5714
    %v5716 = vpop.f32.mrb[0].mxu0
    %5717 = vmatprep.mubr.f32.mxu0 0.0
    %5718 = vmatmul.mubr.f32.gmra.mrb[0].mxu0 %v5527
    %v5719 = vpop.f32.mrb[0].mxu0
    %v5720 = vadd.f32 %v5640, %v5719
    %v5721 = vpop.f32.mrb[0].mxu0
    %5722 = vdwg.mxu0
    %v5723 = vld [vmem:[%s4295 + $0x4] sm:$0xff]
    %v5724 = vld [vmem:[%s4295 + $0xc] sm:$0xff]
    %v5725 = vld [vmem:[%s4295 + $0x14] sm:$0x1]
    %v5726 = vld [vmem:[%s1603] sm:$0xff]
    %v5727 = vld [vmem:[%s1603 + $0x8] sm:$0xff]
    %v5728 = vld [vmem:[%s1603 + $0x10] sm:$0xff]
    %v5729 = vld [vmem:[%s1603 + $0x18] sm:$0xff]
    %v5730 = vld [vmem:[%s1603 + $0x20] sm:$0xff]
    %v5731 = vld [vmem:[%s1603 + $0x28] sm:$0xff]
    %v5732 = vld [vmem:[%s1603 + $0x30] sm:$0xff]
    %v5733 = vld [vmem:[%s1603 + $0x38] sm:$0xff]
    %v5734 = vld [vmem:[%s1603 + $0x40] sm:$0xff]
    %v5735 = vld [vmem:[%s1603 + $0x48] sm:$0xff]
    %v5736 = vld [vmem:[%s1603 + $0x50] sm:$0xff]
    %v5737 = vld [vmem:[%s1603 + $0x58] sm:$0xff]
    %v5738 = vld [vmem:[%s1603 + $0x60] sm:$0xff]
    %v5739 = vld [vmem:[%s1603 + $0x68] sm:$0xff]
    %v5740 = vld [vmem:[%s1603 + $0x70] sm:$0xff]
    %v5741 = vld [vmem:[%s1603 + $0x78] sm:$0xff]
    %5742 = vmatprep.subr.mxu0 0.0
    %5743 = vmatpush1.msra.mxu0 %v5726
    %5744 = vmatprep.subr.mxu0 0.0
    %5745 = vmatpush1.msra.mxu0 %v5727
    %5746 = vmatprep.subr.mxu0 0.0
    %5747 = vmatpush1.msra.mxu0 %v5728
    %5748 = vmatprep.subr.mxu0 0.0
    %5749 = vmatpush1.msra.mxu0 %v5729
    %5750 = vmatprep.subr.mxu0 0.0
    %5751 = vmatpush1.msra.mxu0 %v5730
    %5752 = vmatprep.subr.mxu0 0.0
    %5753 = vmatpush1.msra.mxu0 %v5731
    %5754 = vmatprep.subr.mxu0 0.0
    %5755 = vmatpush1.msra.mxu0 %v5732
    %5756 = vmatprep.subr.mxu0 0.0
    %5757 = vmatpush1.msra.mxu0 %v5733
    %5758 = vmatprep.subr.mxu0 0.0
    %5759 = vmatpush1.msra.mxu0 %v5734
    %5760 = vmatprep.subr.mxu0 0.0
    %5761 = vmatpush1.msra.mxu0 %v5735
    %5762 = vmatprep.subr.mxu0 0.0
    %5763 = vmatpush1.msra.mxu0 %v5736
    %5764 = vmatprep.subr.mxu0 0.0
    %5765 = vmatpush1.msra.mxu0 %v5737
    %5766 = vmatprep.subr.mxu0 0.0
    %5767 = vmatpush1.msra.mxu0 %v5738
    %5768 = vmatprep.subr.mxu0 0.0
    %5769 = vmatpush1.msra.mxu0 %v5739
    %5770 = vmatprep.subr.mxu0 0.0
    %5771 = vmatpush1.msra.mxu0 %v5740
    %5772 = vmatprep.subr.mxu0 0.0
    %5773 = vmatpush1.msra.mxu0 %v5741
    %5774 = vmatprep.subr.mxu0 0.0
    %5775 = vmatpush1.msra.mxu0 0.0
    %5776 = vmatprep.subr.mxu0 0.0
    %5777 = vmatpush1.msra.mxu0 0.0
    %5778 = vmatprep.subr.mxu0 0.0
    %5779 = vmatpush1.msra.mxu0 0.0
    %5780 = vmatprep.subr.mxu0 0.0
    %5781 = vmatpush1.msra.mxu0 0.0
    %5782 = vmatprep.subr.mxu0 0.0
    %5783 = vmatpush1.msra.mxu0 0.0
    %5784 = vmatprep.subr.mxu0 0.0
    %5785 = vmatpush1.msra.mxu0 0.0
    %5786 = vmatprep.subr.mxu0 0.0
    %5787 = vmatpush1.msra.mxu0 0.0
    %5788 = vmatprep.subr.mxu0 0.0
    %5789 = vmatpush1.msra.mxu0 0.0
    %5790 = vmatprep.subr.mxu0 0.0
    %5791 = vmatpush1.msra.mxu0 0.0
    %5792 = vmatprep.subr.mxu0 0.0
    %5793 = vmatpush1.msra.mxu0 0.0
    %5794 = vmatprep.subr.mxu0 0.0
    %5795 = vmatpush1.msra.mxu0 0.0
    %5796 = vmatprep.subr.mxu0 0.0
    %5797 = vmatpush1.msra.mxu0 0.0
    %5798 = vmatprep.subr.mxu0 0.0
    %5799 = vmatpush1.msra.mxu0 0.0
    %5800 = vmatprep.subr.mxu0 0.0
    %5801 = vmatpush1.msra.mxu0 0.0
    %5802 = vmatprep.subr.mxu0 0.0
    %5803 = vmatpush1.msra.mxu0 0.0
    %5804 = vmatprep.subr.mxu0 0.0
    %5805 = vmatpush1.msra.mxu0 0.0
    %5806 = vmatprep.mubr.f32.mxu0 0.0
    %5807 = vmatmul.mubr.f32.gmra.mrb[0].mxu0 %v5723
    %v5808 = vpop.f32.mrb[0].mxu0
    %v5809 = vadd.f32 0.0, %v5808
    %v5810 = vpop.f32.mrb[0].mxu0
    %5811 = vmatprep.mubr.f32.mxu0 0.0
    %5812 = vmatmul.mubr.f32.gmra.mrb[0].mxu0 %v5724
    %v5813 = vpop.f32.mrb[0].mxu0
    %v5814 = vadd.f32 0.0, %v5813
    %v5815 = vpop.f32.mrb[0].mxu0
    %5816 = vmatprep.mubr.f32.mxu0 0.0
    %5817 = vmatmul.mubr.f32.gmra.mrb[0].mxu0 %v5725
    %v5818 = vpop.f32.mrb[0].mxu0
    %v5819 = vadd.f32 0.0, %v5818
    %v5820 = vpop.f32.mrb[0].mxu0
    %5821 = vdwg.mxu0
    %v5822 = vadd.f32 %v5710, %v5809
    %v5823 = vadd.f32 %v5715, %v5814
    %v5824 = vadd.f32 %v5720, %v5819
    %v5825 = vld [vmem:[%s4295 + $0x5] sm:$0xff]
    %v5826 = vld [vmem:[%s4295 + $0xd] sm:$0xff]
    %v5827 = vld [vmem:[%s4295 + $0x15] sm:$0x1]
    %v5828 = vld [vmem:[%s1706] sm:$0xff]
    %v5829 = vld [vmem:[%s1706 + $0x8] sm:$0xff]
    %v5830 = vld [vmem:[%s1706 + $0x10] sm:$0xff]
    %v5831 = vld [vmem:[%s1706 + $0x18] sm:$0xff]
    %v5832 = vld [vmem:[%s1706 + $0x20] sm:$0xff]
    %v5833 = vld [vmem:[%s1706 + $0x28] sm:$0xff]
    %v5834 = vld [vmem:[%s1706 + $0x30] sm:$0xff]
    %v5835 = vld [vmem:[%s1706 + $0x38] sm:$0xff]
    %v5836 = vld [vmem:[%s1706 + $0x40] sm:$0xff]
    %v5837 = vld [vmem:[%s1706 + $0x48] sm:$0xff]
    %v5838 = vld [vmem:[%s1706 + $0x50] sm:$0xff]
    %v5839 = vld [vmem:[%s1706 + $0x58] sm:$0xff]
    %v5840 = vld [vmem:[%s1706 + $0x60] sm:$0xff]
    %v5841 = vld [vmem:[%s1706 + $0x68] sm:$0xff]
    %v5842 = vld [vmem:[%s1706 + $0x70] sm:$0xff]
    %v5843 = vld [vmem:[%s1706 + $0x78] sm:$0xff]
    %5844 = vmatprep.subr.mxu0 0.0
    %5845 = vmatpush1.msra.mxu0 %v5828
    %5846 = vmatprep.subr.mxu0 0.0
    %5847 = vmatpush1.msra.mxu0 %v5829
    %5848 = vmatprep.subr.mxu0 0.0
    %5849 = vmatpush1.msra.mxu0 %v5830
    %5850 = vmatprep.subr.mxu0 0.0
    %5851 = vmatpush1.msra.mxu0 %v5831
    %5852 = vmatprep.subr.mxu0 0.0
    %5853 = vmatpush1.msra.mxu0 %v5832
    %5854 = vmatprep.subr.mxu0 0.0
    %5855 = vmatpush1.msra.mxu0 %v5833
    %5856 = vmatprep.subr.mxu0 0.0
    %5857 = vmatpush1.msra.mxu0 %v5834
    %5858 = vmatprep.subr.mxu0 0.0
    %5859 = vmatpush1.msra.mxu0 %v5835
    %5860 = vmatprep.subr.mxu0 0.0
    %5861 = vmatpush1.msra.mxu0 %v5836
    %5862 = vmatprep.subr.mxu0 0.0
    %5863 = vmatpush1.msra.mxu0 %v5837
    %5864 = vmatprep.subr.mxu0 0.0
    %5865 = vmatpush1.msra.mxu0 %v5838
    %5866 = vmatprep.subr.mxu0 0.0
    %5867 = vmatpush1.msra.mxu0 %v5839
    %5868 = vmatprep.subr.mxu0 0.0
    %5869 = vmatpush1.msra.mxu0 %v5840
    %5870 = vmatprep.subr.mxu0 0.0
    %5871 = vmatpush1.msra.mxu0 %v5841
    %5872 = vmatprep.subr.mxu0 0.0
    %5873 = vmatpush1.msra.mxu0 %v5842
    %5874 = vmatprep.subr.mxu0 0.0
    %5875 = vmatpush1.msra.mxu0 %v5843
    %5876 = vmatprep.subr.mxu0 0.0
    %5877 = vmatpush1.msra.mxu0 0.0
    %5878 = vmatprep.subr.mxu0 0.0
    %5879 = vmatpush1.msra.mxu0 0.0
    %5880 = vmatprep.subr.mxu0 0.0
    %5881 = vmatpush1.msra.mxu0 0.0
    %5882 = vmatprep.subr.mxu0 0.0
    %5883 = vmatpush1.msra.mxu0 0.0
    %5884 = vmatprep.subr.mxu0 0.0
    %5885 = vmatpush1.msra.mxu0 0.0
    %5886 = vmatprep.subr.mxu0 0.0
    %5887 = vmatpush1.msra.mxu0 0.0
    %5888 = vmatprep.subr.mxu0 0.0
    %5889 = vmatpush1.msra.mxu0 0.0
    %5890 = vmatprep.subr.mxu0 0.0
    %5891 = vmatpush1.msra.mxu0 0.0
    %5892 = vmatprep.subr.mxu0 0.0
    %5893 = vmatpush1.msra.mxu0 0.0
    %5894 = vmatprep.subr.mxu0 0.0
    %5895 = vmatpush1.msra.mxu0 0.0
    %5896 = vmatprep.subr.mxu0 0.0
    %5897 = vmatpush1.msra.mxu0 0.0
    %5898 = vmatprep.subr.mxu0 0.0
    %5899 = vmatpush1.msra.mxu0 0.0
    %5900 = vmatprep.subr.mxu0 0.0
    %5901 = vmatpush1.msra.mxu0 0.0
    %5902 = vmatprep.subr.mxu0 0.0
    %5903 = vmatpush1.msra.mxu0 0.0
    %5904 = vmatprep.subr.mxu0 0.0
    %5905 = vmatpush1.msra.mxu0 0.0
    %5906 = vmatprep.subr.mxu0 0.0
    %5907 = vmatpush1.msra.mxu0 0.0
    %5908 = vmatprep.mubr.f32.mxu0 0.0
    %5909 = vmatmul.mubr.f32.gmra.mrb[0].mxu0 %v5825
    %v5910 = vpop.f32.mrb[0].mxu0
    %v5911 = vadd.f32 0.0, %v5910
    %v5912 = vpop.f32.mrb[0].mxu0
    %5913 = vmatprep.mubr.f32.mxu0 0.0
    %5914 = vmatmul.mubr.f32.gmra.mrb[0].mxu0 %v5826
    %v5915 = vpop.f32.mrb[0].mxu0
    %v5916 = vadd.f32 0.0, %v5915
    %v5917 = vpop.f32.mrb[0].mxu0
    %5918 = vmatprep.mubr.f32.mxu0 0.0
    %5919 = vmatmul.mubr.f32.gmra.mrb[0].mxu0 %v5827
    %v5920 = vpop.f32.mrb[0].mxu0
    %v5921 = vadd.f32 0.0, %v5920
    %v5922 = vpop.f32.mrb[0].mxu0
    %5923 = vdwg.mxu0
    %v5924 = vadd.f32 %v5822, %v5911
    %v5925 = vadd.f32 %v5823, %v5916
    %v5926 = vadd.f32 %v5824, %v5921
    %v5927 = vld [vmem:[%s4295 + $0x6] sm:$0xff]
    %v5928 = vld [vmem:[%s4295 + $0xe] sm:$0xff]
    %v5929 = vld [vmem:[%s4295 + $0x16] sm:$0x1]
    %v5930 = vld [vmem:[%s1809] sm:$0xff]
    %v5931 = vld [vmem:[%s1809 + $0x8] sm:$0xff]
    %v5932 = vld [vmem:[%s1809 + $0x10] sm:$0xff]
    %v5933 = vld [vmem:[%s1809 + $0x18] sm:$0xff]
    %v5934 = vld [vmem:[%s1809 + $0x20] sm:$0xff]
    %v5935 = vld [vmem:[%s1809 + $0x28] sm:$0xff]
    %v5936 = vld [vmem:[%s1809 + $0x30] sm:$0xff]
    %v5937 = vld [vmem:[%s1809 + $0x38] sm:$0xff]
    %v5938 = vld [vmem:[%s1809 + $0x40] sm:$0xff]
    %v5939 = vld [vmem:[%s1809 + $0x48] sm:$0xff]
    %v5940 = vld [vmem:[%s1809 + $0x50] sm:$0xff]
    %v5941 = vld [vmem:[%s1809 + $0x58] sm:$0xff]
    %v5942 = vld [vmem:[%s1809 + $0x60] sm:$0xff]
    %v5943 = vld [vmem:[%s1809 + $0x68] sm:$0xff]
    %v5944 = vld [vmem:[%s1809 + $0x70] sm:$0xff]
    %v5945 = vld [vmem:[%s1809 + $0x78] sm:$0xff]
    %5946 = vmatprep.subr.mxu0 0.0
    %5947 = vmatpush1.msra.mxu0 %v5930
    %5948 = vmatprep.subr.mxu0 0.0
    %5949 = vmatpush1.msra.mxu0 %v5931
    %5950 = vmatprep.subr.mxu0 0.0
    %5951 = vmatpush1.msra.mxu0 %v5932
    %5952 = vmatprep.subr.mxu0 0.0
    %5953 = vmatpush1.msra.mxu0 %v5933
    %5954 = vmatprep.subr.mxu0 0.0
    %5955 = vmatpush1.msra.mxu0 %v5934
    %5956 = vmatprep.subr.mxu0 0.0
    %5957 = vmatpush1.msra.mxu0 %v5935
    %5958 = vmatprep.subr.mxu0 0.0
    %5959 = vmatpush1.msra.mxu0 %v5936
    %5960 = vmatprep.subr.mxu0 0.0
    %5961 = vmatpush1.msra.mxu0 %v5937
    %5962 = vmatprep.subr.mxu0 0.0
    %5963 = vmatpush1.msra.mxu0 %v5938
    %5964 = vmatprep.subr.mxu0 0.0
    %5965 = vmatpush1.msra.mxu0 %v5939
    %5966 = vmatprep.subr.mxu0 0.0
    %5967 = vmatpush1.msra.mxu0 %v5940
    %5968 = vmatprep.subr.mxu0 0.0
    %5969 = vmatpush1.msra.mxu0 %v5941
    %5970 = vmatprep.subr.mxu0 0.0
    %5971 = vmatpush1.msra.mxu0 %v5942
    %5972 = vmatprep.subr.mxu0 0.0
    %5973 = vmatpush1.msra.mxu0 %v5943
    %5974 = vmatprep.subr.mxu0 0.0
    %5975 = vmatpush1.msra.mxu0 %v5944
    %5976 = vmatprep.subr.mxu0 0.0
    %5977 = vmatpush1.msra.mxu0 %v5945
    %5978 = vmatprep.subr.mxu0 0.0
    %5979 = vmatpush1.msra.mxu0 0.0
    %5980 = vmatprep.subr.mxu0 0.0
    %5981 = vmatpush1.msra.mxu0 0.0
    %5982 = vmatprep.subr.mxu0 0.0
    %5983 = vmatpush1.msra.mxu0 0.0
    %5984 = vmatprep.subr.mxu0 0.0
    %5985 = vmatpush1.msra.mxu0 0.0
    %5986 = vmatprep.subr.mxu0 0.0
    %5987 = vmatpush1.msra.mxu0 0.0
    %5988 = vmatprep.subr.mxu0 0.0
    %5989 = vmatpush1.msra.mxu0 0.0
    %5990 = vmatprep.subr.mxu0 0.0
    %5991 = vmatpush1.msra.mxu0 0.0
    %5992 = vmatprep.subr.mxu0 0.0
    %5993 = vmatpush1.msra.mxu0 0.0
    %5994 = vmatprep.subr.mxu0 0.0
    %5995 = vmatpush1.msra.mxu0 0.0
    %5996 = vmatprep.subr.mxu0 0.0
    %5997 = vmatpush1.msra.mxu0 0.0
    %5998 = vmatprep.subr.mxu0 0.0
    %5999 = vmatpush1.msra.mxu0 0.0
    %6000 = vmatprep.subr.mxu0 0.0
    %6001 = vmatpush1.msra.mxu0 0.0
    %6002 = vmatprep.subr.mxu0 0.0
    %6003 = vmatpush1.msra.mxu0 0.0
    %6004 = vmatprep.subr.mxu0 0.0
    %6005 = vmatpush1.msra.mxu0 0.0
    %6006 = vmatprep.subr.mxu0 0.0
    %6007 = vmatpush1.msra.mxu0 0.0
    %6008 = vmatprep.subr.mxu0 0.0
    %6009 = vmatpush1.msra.mxu0 0.0
    %6010 = vmatprep.mubr.f32.mxu0 0.0
    %6011 = vmatmul.mubr.f32.gmra.mrb[0].mxu0 %v5927
    %v6012 = vpop.f32.mrb[0].mxu0
    %v6013 = vadd.f32 0.0, %v6012
    %v6014 = vpop.f32.mrb[0].mxu0
    %6015 = vmatprep.mubr.f32.mxu0 0.0
    %6016 = vmatmul.mubr.f32.gmra.mrb[0].mxu0 %v5928
    %v6017 = vpop.f32.mrb[0].mxu0
    %v6018 = vadd.f32 0.0, %v6017
    %v6019 = vpop.f32.mrb[0].mxu0
    %6020 = vmatprep.mubr.f32.mxu0 0.0
    %6021 = vmatmul.mubr.f32.gmra.mrb[0].mxu0 %v5929
    %v6022 = vpop.f32.mrb[0].mxu0
    %v6023 = vadd.f32 0.0, %v6022
    %v6024 = vpop.f32.mrb[0].mxu0
    %6025 = vdwg.mxu0
    %v6026 = vadd.f32 %v5924, %v6013
    %v6027 = vadd.f32 %v5925, %v6018
    %v6028 = vadd.f32 %v5926, %v6023
    %v6029 = vld [vmem:[%s1909] sm:$0x1]
    %v6031 = vlaneseq
    %v6032 = vshrl.u32 %v6031, 7
    %v6033 = vsub.s32 0, %v6032
    %v6034 = vrot.slane %v6029, %v6033
    %v6036 = vadd.f32 %v6026, %v6034
    %v6037 = vadd.f32 %v6027, %v6034
    %v6038 = vadd.f32 %v6028, %v6034
    %v6039 = vmax.f32 %v6036, 0.0
    %v6040 = vmax.f32 %v6037, 0.0
    %v6041 = vmax.f32 %v6038, 0.0
    %v6042 = vld [vmem:[%s1923] sm:$0x1]
    %v6044 = vlaneseq
    %v6045 = vshrl.u32 %v6044, 7
    %v6046 = vsub.s32 0, %v6045
    %v6047 = vrot.slane %v6042, %v6046
    %v6049 = vmul.f32 %v6039, %v6047
    %v6050 = vmul.f32 %v6040, %v6047
    %v6051 = vmul.f32 %v6041, %v6047
    %v6052 = vld [vmem:[%s1934] sm:$0x1]
    %v6054 = vlaneseq
    %v6055 = vshrl.u32 %v6054, 7
    %v6056 = vsub.s32 0, %v6055
    %v6057 = vrot.slane %v6052, %v6056
    %v6059 = vadd.f32 %v6049, %v6057
    %v6060 = vadd.f32 %v6050, %v6057
    %v6061 = vadd.f32 %v6051, %v6057
    %v6062 = vsel %vm283, -inf, %v6059
    %v6063 = vsel %vm284, -inf, %v6060
    %v6066 = vrot.slane %v6062, 7
    %v6067 = vrot.slane %v6063, 7
    %v6068 = vsel %vm289, %v6066, %v6067
    %v6072 = vmax.f32 %v6059, %v6066
    %v6073 = vmax.f32 %v6060, %v6068
    %v6074 = vmax.f32 %v6061, %v6067
    %v6078 = vrot.slane %v6072, 1
    %v6079 = vrot.slane %v6073, 1
    %v6080 = vsel %vm302, %v6078, %v6079
    %v6081 = vrot.slane %v6074, 1
    %v6082 = vsel %vm302, %v6079, %v6081
    %6085 = vst [vmem:[%s4448 + $0x20] sm:$0xff] %v6080
    %6086 = vst [vmem:[%s4448 + $0x60] sm:$0xff] %v6082
    %v6087 = vld [vmem:[%s4295 + $0x1] sm:$0xff]
    %v6088 = vld [vmem:[%s4295 + $0x9] sm:$0xff]
    %v6089 = vld [vmem:[%s4295 + $0x11] sm:$0x1]
    %v6090 = vld [vmem:[#allocation11] sm:$0xff]
    %v6091 = vld [vmem:[#allocation11 + $0x8] sm:$0xff]
    %v6092 = vld [vmem:[#allocation11 + $0x10] sm:$0xff]
    %v6093 = vld [vmem:[#allocation11 + $0x18] sm:$0xff]
    %v6094 = vld [vmem:[#allocation11 + $0x20] sm:$0xff]
    %v6095 = vld [vmem:[#allocation11 + $0x28] sm:$0xff]
    %v6096 = vld [vmem:[#allocation11 + $0x30] sm:$0xff]
    %v6097 = vld [vmem:[#allocation11 + $0x38] sm:$0xff]
    %v6098 = vld [vmem:[#allocation11 + $0x40] sm:$0xff]
    %v6099 = vld [vmem:[#allocation11 + $0x48] sm:$0xff]
    %v6100 = vld [vmem:[#allocation11 + $0x50] sm:$0xff]
    %v6101 = vld [vmem:[#allocation11 + $0x58] sm:$0xff]
    %v6102 = vld [vmem:[#allocation11 + $0x60] sm:$0xff]
    %v6103 = vld [vmem:[#allocation11 + $0x68] sm:$0xff]
    %v6104 = vld [vmem:[#allocation11 + $0x70] sm:$0xff]
    %v6105 = vld [vmem:[#allocation11 + $0x78] sm:$0xff]
    %v6106 = vld [vmem:[%s4295 + $0x2] sm:$0xff]
    %v6107 = vld [vmem:[%s4295 + $0xa] sm:$0xff]
    %v6108 = vld [vmem:[%s4295 + $0x12] sm:$0x1]
    %v6109 = vld [vmem:[%s1992] sm:$0xff]
    %v6110 = vld [vmem:[%s1992 + $0x8] sm:$0xff]
    %v6111 = vld [vmem:[%s1992 + $0x10] sm:$0xff]
    %v6112 = vld [vmem:[%s1992 + $0x18] sm:$0xff]
    %v6113 = vld [vmem:[%s1992 + $0x20] sm:$0xff]
    %v6114 = vld [vmem:[%s1992 + $0x28] sm:$0xff]
    %v6115 = vld [vmem:[%s1992 + $0x30] sm:$0xff]
    %v6116 = vld [vmem:[%s1992 + $0x38] sm:$0xff]
    %v6117 = vld [vmem:[%s1992 + $0x40] sm:$0xff]
    %v6118 = vld [vmem:[%s1992 + $0x48] sm:$0xff]
    %v6119 = vld [vmem:[%s1992 + $0x50] sm:$0xff]
    %v6120 = vld [vmem:[%s1992 + $0x58] sm:$0xff]
    %v6121 = vld [vmem:[%s1992 + $0x60] sm:$0xff]
    %v6122 = vld [vmem:[%s1992 + $0x68] sm:$0xff]
    %v6123 = vld [vmem:[%s1992 + $0x70] sm:$0xff]
    %v6124 = vld [vmem:[%s1992 + $0x78] sm:$0xff]
    %6125 = vmatprep.subr.mxu0 0.0
    %6126 = vmatpush1.msra.mxu0 %v6109
    %6127 = vmatprep.subr.mxu0 0.0
    %6128 = vmatpush1.msra.mxu0 %v6110
    %6129 = vmatprep.subr.mxu0 0.0
    %6130 = vmatpush1.msra.mxu0 %v6111
    %6131 = vmatprep.subr.mxu0 0.0
    %6132 = vmatpush1.msra.mxu0 %v6112
    %6133 = vmatprep.subr.mxu0 0.0
    %6134 = vmatpush1.msra.mxu0 %v6113
    %6135 = vmatprep.subr.mxu0 0.0
    %6136 = vmatpush1.msra.mxu0 %v6114
    %6137 = vmatprep.subr.mxu0 0.0
    %6138 = vmatpush1.msra.mxu0 %v6115
    %6139 = vmatprep.subr.mxu0 0.0
    %6140 = vmatpush1.msra.mxu0 %v6116
    %6141 = vmatprep.subr.mxu0 0.0
    %6142 = vmatpush1.msra.mxu0 %v6117
    %6143 = vmatprep.subr.mxu0 0.0
    %6144 = vmatpush1.msra.mxu0 %v6118
    %6145 = vmatprep.subr.mxu0 0.0
    %6146 = vmatpush1.msra.mxu0 %v6119
    %6147 = vmatprep.subr.mxu0 0.0
    %6148 = vmatpush1.msra.mxu0 %v6120
    %6149 = vmatprep.subr.mxu0 0.0
    %6150 = vmatpush1.msra.mxu0 %v6121
    %6151 = vmatprep.subr.mxu0 0.0
    %6152 = vmatpush1.msra.mxu0 %v6122
    %6153 = vmatprep.subr.mxu0 0.0
    %6154 = vmatpush1.msra.mxu0 %v6123
    %6155 = vmatprep.subr.mxu0 0.0
    %6156 = vmatpush1.msra.mxu0 %v6124
    %6157 = vmatprep.subr.mxu0 0.0
    %6158 = vmatpush1.msra.mxu0 0.0
    %6159 = vmatprep.subr.mxu0 0.0
    %6160 = vmatpush1.msra.mxu0 0.0
    %6161 = vmatprep.subr.mxu0 0.0
    %6162 = vmatpush1.msra.mxu0 0.0
    %6163 = vmatprep.subr.mxu0 0.0
    %6164 = vmatpush1.msra.mxu0 0.0
    %6165 = vmatprep.subr.mxu0 0.0
    %6166 = vmatpush1.msra.mxu0 0.0
    %6167 = vmatprep.subr.mxu0 0.0
    %6168 = vmatpush1.msra.mxu0 0.0
    %6169 = vmatprep.subr.mxu0 0.0
    %6170 = vmatpush1.msra.mxu0 0.0
    %6171 = vmatprep.subr.mxu0 0.0
    %6172 = vmatpush1.msra.mxu0 0.0
    %6173 = vmatprep.subr.mxu0 0.0
    %6174 = vmatpush1.msra.mxu0 0.0
    %6175 = vmatprep.subr.mxu0 0.0
    %6176 = vmatpush1.msra.mxu0 0.0
    %6177 = vmatprep.subr.mxu0 0.0
    %6178 = vmatpush1.msra.mxu0 0.0
    %6179 = vmatprep.subr.mxu0 0.0
    %6180 = vmatpush1.msra.mxu0 0.0
    %6181 = vmatprep.subr.mxu0 0.0
    %6182 = vmatpush1.msra.mxu0 0.0
    %6183 = vmatprep.subr.mxu0 0.0
    %6184 = vmatpush1.msra.mxu0 0.0
    %6185 = vmatprep.subr.mxu0 0.0
    %6186 = vmatpush1.msra.mxu0 0.0
    %6187 = vmatprep.subr.mxu0 0.0
    %6188 = vmatpush1.msra.mxu0 0.0
    %6189 = vmatprep.mubr.f32.mxu0 0.0
    %6190 = vmatmul.mubr.f32.gmra.mrb[0].mxu0 %v6106
    %v6191 = vpop.f32.mrb[0].mxu0
    %v6192 = vadd.f32 0.0, %v6191
    %v6193 = vpop.f32.mrb[0].mxu0
    %6194 = vmatprep.mubr.f32.mxu0 0.0
    %6195 = vmatmul.mubr.f32.gmra.mrb[0].mxu0 %v6107
    %v6196 = vpop.f32.mrb[0].mxu0
    %v6197 = vadd.f32 0.0, %v6196
    %v6198 = vpop.f32.mrb[0].mxu0
    %6199 = vmatprep.mubr.f32.mxu0 0.0
    %6200 = vmatmul.mubr.f32.gmra.mrb[0].mxu0 %v6108
    %v6201 = vpop.f32.mrb[0].mxu0
    %v6202 = vadd.f32 0.0, %v6201
    %v6203 = vpop.f32.mrb[0].mxu0
    %6204 = vdwg.mxu0
    %6205 = vmatprep.subr.mxu0 0.0
    %6206 = vmatpush1.msra.mxu0 %v6090
    %6207 = vmatprep.subr.mxu0 0.0
    %6208 = vmatpush1.msra.mxu0 %v6091
    %6209 = vmatprep.subr.mxu0 0.0
    %6210 = vmatpush1.msra.mxu0 %v6092
    %6211 = vmatprep.subr.mxu0 0.0
    %6212 = vmatpush1.msra.mxu0 %v6093
    %6213 = vmatprep.subr.mxu0 0.0
    %6214 = vmatpush1.msra.mxu0 %v6094
    %6215 = vmatprep.subr.mxu0 0.0
    %6216 = vmatpush1.msra.mxu0 %v6095
    %6217 = vmatprep.subr.mxu0 0.0
    %6218 = vmatpush1.msra.mxu0 %v6096
    %6219 = vmatprep.subr.mxu0 0.0
    %6220 = vmatpush1.msra.mxu0 %v6097
    %6221 = vmatprep.subr.mxu0 0.0
    %6222 = vmatpush1.msra.mxu0 %v6098
    %6223 = vmatprep.subr.mxu0 0.0
    %6224 = vmatpush1.msra.mxu0 %v6099
    %6225 = vmatprep.subr.mxu0 0.0
    %6226 = vmatpush1.msra.mxu0 %v6100
    %6227 = vmatprep.subr.mxu0 0.0
    %6228 = vmatpush1.msra.mxu0 %v6101
    %6229 = vmatprep.subr.mxu0 0.0
    %6230 = vmatpush1.msra.mxu0 %v6102
    %6231 = vmatprep.subr.mxu0 0.0
    %6232 = vmatpush1.msra.mxu0 %v6103
    %6233 = vmatprep.subr.mxu0 0.0
    %6234 = vmatpush1.msra.mxu0 %v6104
    %6235 = vmatprep.subr.mxu0 0.0
    %6236 = vmatpush1.msra.mxu0 %v6105
    %6237 = vmatprep.subr.mxu0 0.0
    %6238 = vmatpush1.msra.mxu0 0.0
    %6239 = vmatprep.subr.mxu0 0.0
    %6240 = vmatpush1.msra.mxu0 0.0
    %6241 = vmatprep.subr.mxu0 0.0
    %6242 = vmatpush1.msra.mxu0 0.0
    %6243 = vmatprep.subr.mxu0 0.0
    %6244 = vmatpush1.msra.mxu0 0.0
    %6245 = vmatprep.subr.mxu0 0.0
    %6246 = vmatpush1.msra.mxu0 0.0
    %6247 = vmatprep.subr.mxu0 0.0
    %6248 = vmatpush1.msra.mxu0 0.0
    %6249 = vmatprep.subr.mxu0 0.0
    %6250 = vmatpush1.msra.mxu0 0.0
    %6251 = vmatprep.subr.mxu0 0.0
    %6252 = vmatpush1.msra.mxu0 0.0
    %6253 = vmatprep.subr.mxu0 0.0
    %6254 = vmatpush1.msra.mxu0 0.0
    %6255 = vmatprep.subr.mxu0 0.0
    %6256 = vmatpush1.msra.mxu0 0.0
    %6257 = vmatprep.subr.mxu0 0.0
    %6258 = vmatpush1.msra.mxu0 0.0
    %6259 = vmatprep.subr.mxu0 0.0
    %6260 = vmatpush1.msra.mxu0 0.0
    %6261 = vmatprep.subr.mxu0 0.0
    %6262 = vmatpush1.msra.mxu0 0.0
    %6263 = vmatprep.subr.mxu0 0.0
    %6264 = vmatpush1.msra.mxu0 0.0
    %6265 = vmatprep.subr.mxu0 0.0
    %6266 = vmatpush1.msra.mxu0 0.0
    %6267 = vmatprep.subr.mxu0 0.0
    %6268 = vmatpush1.msra.mxu0 0.0
    %6269 = vmatprep.mubr.f32.mxu0 0.0
    %6270 = vmatmul.mubr.f32.gmra.mrb[0].mxu0 %v6087
    %v6271 = vpop.f32.mrb[0].mxu0
    %v6272 = vadd.f32 %v6192, %v6271
    %v6273 = vpop.f32.mrb[0].mxu0
    %6274 = vmatprep.mubr.f32.mxu0 0.0
    %6275 = vmatmul.mubr.f32.gmra.mrb[0].mxu0 %v6088
    %v6276 = vpop.f32.mrb[0].mxu0
    %v6277 = vadd.f32 %v6197, %v6276
    %v6278 = vpop.f32.mrb[0].mxu0
    %6279 = vmatprep.mubr.f32.mxu0 0.0
    %6280 = vmatmul.mubr.f32.gmra.mrb[0].mxu0 %v6089
    %v6281 = vpop.f32.mrb[0].mxu0
    %v6282 = vadd.f32 %v6202, %v6281
    %v6283 = vpop.f32.mrb[0].mxu0
    %6284 = vdwg.mxu0
    %v6285 = vld [vmem:[%s4295 + $0x3] sm:$0xff]
    %v6286 = vld [vmem:[%s4295 + $0xb] sm:$0xff]
    %v6287 = vld [vmem:[%s4295 + $0x13] sm:$0x1]
    %v6288 = vld [vmem:[%s2172] sm:$0xff]
    %v6289 = vld [vmem:[%s2172 + $0x8] sm:$0xff]
    %v6290 = vld [vmem:[%s2172 + $0x10] sm:$0xff]
    %v6291 = vld [vmem:[%s2172 + $0x18] sm:$0xff]
    %v6292 = vld [vmem:[%s2172 + $0x20] sm:$0xff]
    %v6293 = vld [vmem:[%s2172 + $0x28] sm:$0xff]
    %v6294 = vld [vmem:[%s2172 + $0x30] sm:$0xff]
    %v6295 = vld [vmem:[%s2172 + $0x38] sm:$0xff]
    %v6296 = vld [vmem:[%s2172 + $0x40] sm:$0xff]
    %v6297 = vld [vmem:[%s2172 + $0x48] sm:$0xff]
    %v6298 = vld [vmem:[%s2172 + $0x50] sm:$0xff]
    %v6299 = vld [vmem:[%s2172 + $0x58] sm:$0xff]
    %v6300 = vld [vmem:[%s2172 + $0x60] sm:$0xff]
    %v6301 = vld [vmem:[%s2172 + $0x68] sm:$0xff]
    %v6302 = vld [vmem:[%s2172 + $0x70] sm:$0xff]
    %v6303 = vld [vmem:[%s2172 + $0x78] sm:$0xff]
    %6304 = vmatprep.subr.mxu0 0.0
    %6305 = vmatpush1.msra.mxu0 %v6288
    %6306 = vmatprep.subr.mxu0 0.0
    %6307 = vmatpush1.msra.mxu0 %v6289
    %6308 = vmatprep.subr.mxu0 0.0
    %6309 = vmatpush1.msra.mxu0 %v6290
    %6310 = vmatprep.subr.mxu0 0.0
    %6311 = vmatpush1.msra.mxu0 %v6291
    %6312 = vmatprep.subr.mxu0 0.0
    %6313 = vmatpush1.msra.mxu0 %v6292
    %6314 = vmatprep.subr.mxu0 0.0
    %6315 = vmatpush1.msra.mxu0 %v6293
    %6316 = vmatprep.subr.mxu0 0.0
    %6317 = vmatpush1.msra.mxu0 %v6294
    %6318 = vmatprep.subr.mxu0 0.0
    %6319 = vmatpush1.msra.mxu0 %v6295
    %6320 = vmatprep.subr.mxu0 0.0
    %6321 = vmatpush1.msra.mxu0 %v6296
    %6322 = vmatprep.subr.mxu0 0.0
    %6323 = vmatpush1.msra.mxu0 %v6297
    %6324 = vmatprep.subr.mxu0 0.0
    %6325 = vmatpush1.msra.mxu0 %v6298
    %6326 = vmatprep.subr.mxu0 0.0
    %6327 = vmatpush1.msra.mxu0 %v6299
    %6328 = vmatprep.subr.mxu0 0.0
    %6329 = vmatpush1.msra.mxu0 %v6300
    %6330 = vmatprep.subr.mxu0 0.0
    %6331 = vmatpush1.msra.mxu0 %v6301
    %6332 = vmatprep.subr.mxu0 0.0
    %6333 = vmatpush1.msra.mxu0 %v6302
    %6334 = vmatprep.subr.mxu0 0.0
    %6335 = vmatpush1.msra.mxu0 %v6303
    %6336 = vmatprep.subr.mxu0 0.0
    %6337 = vmatpush1.msra.mxu0 0.0
    %6338 = vmatprep.subr.mxu0 0.0
    %6339 = vmatpush1.msra.mxu0 0.0
    %6340 = vmatprep.subr.mxu0 0.0
    %6341 = vmatpush1.msra.mxu0 0.0
    %6342 = vmatprep.subr.mxu0 0.0
    %6343 = vmatpush1.msra.mxu0 0.0
    %6344 = vmatprep.subr.mxu0 0.0
    %6345 = vmatpush1.msra.mxu0 0.0
    %6346 = vmatprep.subr.mxu0 0.0
    %6347 = vmatpush1.msra.mxu0 0.0
    %6348 = vmatprep.subr.mxu0 0.0
    %6349 = vmatpush1.msra.mxu0 0.0
    %6350 = vmatprep.subr.mxu0 0.0
    %6351 = vmatpush1.msra.mxu0 0.0
    %6352 = vmatprep.subr.mxu0 0.0
    %6353 = vmatpush1.msra.mxu0 0.0
    %6354 = vmatprep.subr.mxu0 0.0
    %6355 = vmatpush1.msra.mxu0 0.0
    %6356 = vmatprep.subr.mxu0 0.0
    %6357 = vmatpush1.msra.mxu0 0.0
    %6358 = vmatprep.subr.mxu0 0.0
    %6359 = vmatpush1.msra.mxu0 0.0
    %6360 = vmatprep.subr.mxu0 0.0
    %6361 = vmatpush1.msra.mxu0 0.0
    %6362 = vmatprep.subr.mxu0 0.0
    %6363 = vmatpush1.msra.mxu0 0.0
    %6364 = vmatprep.subr.mxu0 0.0
    %6365 = vmatpush1.msra.mxu0 0.0
    %6366 = vmatprep.subr.mxu0 0.0
    %6367 = vmatpush1.msra.mxu0 0.0
    %6368 = vmatprep.mubr.f32.mxu0 0.0
    %6369 = vmatmul.mubr.f32.gmra.mrb[0].mxu0 %v6285
    %v6370 = vpop.f32.mrb[0].mxu0
    %v6371 = vadd.f32 0.0, %v6370
    %v6372 = vpop.f32.mrb[0].mxu0
    %6373 = vmatprep.mubr.f32.mxu0 0.0
    %6374 = vmatmul.mubr.f32.gmra.mrb[0].mxu0 %v6286
    %v6375 = vpop.f32.mrb[0].mxu0
    %v6376 = vadd.f32 0.0, %v6375
    %v6377 = vpop.f32.mrb[0].mxu0
    %6378 = vmatprep.mubr.f32.mxu0 0.0
    %6379 = vmatmul.mubr.f32.gmra.mrb[0].mxu0 %v6287
    %v6380 = vpop.f32.mrb[0].mxu0
    %v6381 = vadd.f32 0.0, %v6380
    %v6382 = vpop.f32.mrb[0].mxu0
    %6383 = vdwg.mxu0
    %v6384 = vadd.f32 %v6272, %v6371
    %v6385 = vadd.f32 %v6277, %v6376
    %v6386 = vadd.f32 %v6282, %v6381
    %v6387 = vld [vmem:[%s4295 + $0x4] sm:$0xff]
    %v6388 = vld [vmem:[%s4295 + $0xc] sm:$0xff]
    %v6389 = vld [vmem:[%s4295 + $0x14] sm:$0x1]
    %v6390 = vld [vmem:[%s2275] sm:$0xff]
    %v6391 = vld [vmem:[%s2275 + $0x8] sm:$0xff]
    %v6392 = vld [vmem:[%s2275 + $0x10] sm:$0xff]
    %v6393 = vld [vmem:[%s2275 + $0x18] sm:$0xff]
    %v6394 = vld [vmem:[%s2275 + $0x20] sm:$0xff]
    %v6395 = vld [vmem:[%s2275 + $0x28] sm:$0xff]
    %v6396 = vld [vmem:[%s2275 + $0x30] sm:$0xff]
    %v6397 = vld [vmem:[%s2275 + $0x38] sm:$0xff]
    %v6398 = vld [vmem:[%s2275 + $0x40] sm:$0xff]
    %v6399 = vld [vmem:[%s2275 + $0x48] sm:$0xff]
    %v6400 = vld [vmem:[%s2275 + $0x50] sm:$0xff]
    %v6401 = vld [vmem:[%s2275 + $0x58] sm:$0xff]
    %v6402 = vld [vmem:[%s2275 + $0x60] sm:$0xff]
    %v6403 = vld [vmem:[%s2275 + $0x68] sm:$0xff]
    %v6404 = vld [vmem:[%s2275 + $0x70] sm:$0xff]
    %v6405 = vld [vmem:[%s2275 + $0x78] sm:$0xff]
    %6406 = vmatprep.subr.mxu0 0.0
    %6407 = vmatpush1.msra.mxu0 %v6390
    %6408 = vmatprep.subr.mxu0 0.0
    %6409 = vmatpush1.msra.mxu0 %v6391
    %6410 = vmatprep.subr.mxu0 0.0
    %6411 = vmatpush1.msra.mxu0 %v6392
    %6412 = vmatprep.subr.mxu0 0.0
    %6413 = vmatpush1.msra.mxu0 %v6393
    %6414 = vmatprep.subr.mxu0 0.0
    %6415 = vmatpush1.msra.mxu0 %v6394
    %6416 = vmatprep.subr.mxu0 0.0
    %6417 = vmatpush1.msra.mxu0 %v6395
    %6418 = vmatprep.subr.mxu0 0.0
    %6419 = vmatpush1.msra.mxu0 %v6396
    %6420 = vmatprep.subr.mxu0 0.0
    %6421 = vmatpush1.msra.mxu0 %v6397
    %6422 = vmatprep.subr.mxu0 0.0
    %6423 = vmatpush1.msra.mxu0 %v6398
    %6424 = vmatprep.subr.mxu0 0.0
    %6425 = vmatpush1.msra.mxu0 %v6399
    %6426 = vmatprep.subr.mxu0 0.0
    %6427 = vmatpush1.msra.mxu0 %v6400
    %6428 = vmatprep.subr.mxu0 0.0
    %6429 = vmatpush1.msra.mxu0 %v6401
    %6430 = vmatprep.subr.mxu0 0.0
    %6431 = vmatpush1.msra.mxu0 %v6402
    %6432 = vmatprep.subr.mxu0 0.0
    %6433 = vmatpush1.msra.mxu0 %v6403
    %6434 = vmatprep.subr.mxu0 0.0
    %6435 = vmatpush1.msra.mxu0 %v6404
    %6436 = vmatprep.subr.mxu0 0.0
    %6437 = vmatpush1.msra.mxu0 %v6405
    %6438 = vmatprep.subr.mxu0 0.0
    %6439 = vmatpush1.msra.mxu0 0.0
    %6440 = vmatprep.subr.mxu0 0.0
    %6441 = vmatpush1.msra.mxu0 0.0
    %6442 = vmatprep.subr.mxu0 0.0
    %6443 = vmatpush1.msra.mxu0 0.0
    %6444 = vmatprep.subr.mxu0 0.0
    %6445 = vmatpush1.msra.mxu0 0.0
    %6446 = vmatprep.subr.mxu0 0.0
    %6447 = vmatpush1.msra.mxu0 0.0
    %6448 = vmatprep.subr.mxu0 0.0
    %6449 = vmatpush1.msra.mxu0 0.0
    %6450 = vmatprep.subr.mxu0 0.0
    %6451 = vmatpush1.msra.mxu0 0.0
    %6452 = vmatprep.subr.mxu0 0.0
    %6453 = vmatpush1.msra.mxu0 0.0
    %6454 = vmatprep.subr.mxu0 0.0
    %6455 = vmatpush1.msra.mxu0 0.0
    %6456 = vmatprep.subr.mxu0 0.0
    %6457 = vmatpush1.msra.mxu0 0.0
    %6458 = vmatprep.subr.mxu0 0.0
    %6459 = vmatpush1.msra.mxu0 0.0
    %6460 = vmatprep.subr.mxu0 0.0
    %6461 = vmatpush1.msra.mxu0 0.0
    %6462 = vmatprep.subr.mxu0 0.0
    %6463 = vmatpush1.msra.mxu0 0.0
    %6464 = vmatprep.subr.mxu0 0.0
    %6465 = vmatpush1.msra.mxu0 0.0
    %6466 = vmatprep.subr.mxu0 0.0
    %6467 = vmatpush1.msra.mxu0 0.0
    %6468 = vmatprep.subr.mxu0 0.0
    %6469 = vmatpush1.msra.mxu0 0.0
    %6470 = vmatprep.mubr.f32.mxu0 0.0
    %6471 = vmatmul.mubr.f32.gmra.mrb[0].mxu0 %v6387
    %v6472 = vpop.f32.mrb[0].mxu0
    %v6473 = vadd.f32 0.0, %v6472
    %v6474 = vpop.f32.mrb[0].mxu0
    %6475 = vmatprep.mubr.f32.mxu0 0.0
    %6476 = vmatmul.mubr.f32.gmra.mrb[0].mxu0 %v6388
    %v6477 = vpop.f32.mrb[0].mxu0
    %v6478 = vadd.f32 0.0, %v6477
    %v6479 = vpop.f32.mrb[0].mxu0
    %6480 = vmatprep.mubr.f32.mxu0 0.0
    %6481 = vmatmul.mubr.f32.gmra.mrb[0].mxu0 %v6389
    %v6482 = vpop.f32.mrb[0].mxu0
    %v6483 = vadd.f32 0.0, %v6482
    %v6484 = vpop.f32.mrb[0].mxu0
    %6485 = vdwg.mxu0
    %v6486 = vadd.f32 %v6384, %v6473
    %v6487 = vadd.f32 %v6385, %v6478
    %v6488 = vadd.f32 %v6386, %v6483
    %v6489 = vld [vmem:[%s4295 + $0x5] sm:$0xff]
    %v6490 = vld [vmem:[%s4295 + $0xd] sm:$0xff]
    %v6491 = vld [vmem:[%s4295 + $0x15] sm:$0x1]
    %v6492 = vld [vmem:[%s2378] sm:$0xff]
    %v6493 = vld [vmem:[%s2378 + $0x8] sm:$0xff]
    %v6494 = vld [vmem:[%s2378 + $0x10] sm:$0xff]
    %v6495 = vld [vmem:[%s2378 + $0x18] sm:$0xff]
    %v6496 = vld [vmem:[%s2378 + $0x20] sm:$0xff]
    %v6497 = vld [vmem:[%s2378 + $0x28] sm:$0xff]
    %v6498 = vld [vmem:[%s2378 + $0x30] sm:$0xff]
    %v6499 = vld [vmem:[%s2378 + $0x38] sm:$0xff]
    %v6500 = vld [vmem:[%s2378 + $0x40] sm:$0xff]
    %v6501 = vld [vmem:[%s2378 + $0x48] sm:$0xff]
    %v6502 = vld [vmem:[%s2378 + $0x50] sm:$0xff]
    %v6503 = vld [vmem:[%s2378 + $0x58] sm:$0xff]
    %v6504 = vld [vmem:[%s2378 + $0x60] sm:$0xff]
    %v6505 = vld [vmem:[%s2378 + $0x68] sm:$0xff]
    %v6506 = vld [vmem:[%s2378 + $0x70] sm:$0xff]
    %v6507 = vld [vmem:[%s2378 + $0x78] sm:$0xff]
    %6508 = vmatprep.subr.mxu0 0.0
    %6509 = vmatpush1.msra.mxu0 %v6492
    %6510 = vmatprep.subr.mxu0 0.0
    %6511 = vmatpush1.msra.mxu0 %v6493
    %6512 = vmatprep.subr.mxu0 0.0
    %6513 = vmatpush1.msra.mxu0 %v6494
    %6514 = vmatprep.subr.mxu0 0.0
    %6515 = vmatpush1.msra.mxu0 %v6495
    %6516 = vmatprep.subr.mxu0 0.0
    %6517 = vmatpush1.msra.mxu0 %v6496
    %6518 = vmatprep.subr.mxu0 0.0
    %6519 = vmatpush1.msra.mxu0 %v6497
    %6520 = vmatprep.subr.mxu0 0.0
    %6521 = vmatpush1.msra.mxu0 %v6498
    %6522 = vmatprep.subr.mxu0 0.0
    %6523 = vmatpush1.msra.mxu0 %v6499
    %6524 = vmatprep.subr.mxu0 0.0
    %6525 = vmatpush1.msra.mxu0 %v6500
    %6526 = vmatprep.subr.mxu0 0.0
    %6527 = vmatpush1.msra.mxu0 %v6501
    %6528 = vmatprep.subr.mxu0 0.0
    %6529 = vmatpush1.msra.mxu0 %v6502
    %6530 = vmatprep.subr.mxu0 0.0
    %6531 = vmatpush1.msra.mxu0 %v6503
    %6532 = vmatprep.subr.mxu0 0.0
    %6533 = vmatpush1.msra.mxu0 %v6504
    %6534 = vmatprep.subr.mxu0 0.0
    %6535 = vmatpush1.msra.mxu0 %v6505
    %6536 = vmatprep.subr.mxu0 0.0
    %6537 = vmatpush1.msra.mxu0 %v6506
    %6538 = vmatprep.subr.mxu0 0.0
    %6539 = vmatpush1.msra.mxu0 %v6507
    %6540 = vmatprep.subr.mxu0 0.0
    %6541 = vmatpush1.msra.mxu0 0.0
    %6542 = vmatprep.subr.mxu0 0.0
    %6543 = vmatpush1.msra.mxu0 0.0
    %6544 = vmatprep.subr.mxu0 0.0
    %6545 = vmatpush1.msra.mxu0 0.0
    %6546 = vmatprep.subr.mxu0 0.0
    %6547 = vmatpush1.msra.mxu0 0.0
    %6548 = vmatprep.subr.mxu0 0.0
    %6549 = vmatpush1.msra.mxu0 0.0
    %6550 = vmatprep.subr.mxu0 0.0
    %6551 = vmatpush1.msra.mxu0 0.0
    %6552 = vmatprep.subr.mxu0 0.0
    %6553 = vmatpush1.msra.mxu0 0.0
    %6554 = vmatprep.subr.mxu0 0.0
    %6555 = vmatpush1.msra.mxu0 0.0
    %6556 = vmatprep.subr.mxu0 0.0
    %6557 = vmatpush1.msra.mxu0 0.0
    %6558 = vmatprep.subr.mxu0 0.0
    %6559 = vmatpush1.msra.mxu0 0.0
    %6560 = vmatprep.subr.mxu0 0.0
    %6561 = vmatpush1.msra.mxu0 0.0
    %6562 = vmatprep.subr.mxu0 0.0
    %6563 = vmatpush1.msra.mxu0 0.0
    %6564 = vmatprep.subr.mxu0 0.0
    %6565 = vmatpush1.msra.mxu0 0.0
    %6566 = vmatprep.subr.mxu0 0.0
    %6567 = vmatpush1.msra.mxu0 0.0
    %6568 = vmatprep.subr.mxu0 0.0
    %6569 = vmatpush1.msra.mxu0 0.0
    %6570 = vmatprep.subr.mxu0 0.0
    %6571 = vmatpush1.msra.mxu0 0.0
    %6572 = vmatprep.mubr.f32.mxu0 0.0
    %6573 = vmatmul.mubr.f32.gmra.mrb[0].mxu0 %v6489
    %v6574 = vpop.f32.mrb[0].mxu0
    %v6575 = vadd.f32 0.0, %v6574
    %v6576 = vpop.f32.mrb[0].mxu0
    %6577 = vmatprep.mubr.f32.mxu0 0.0
    %6578 = vmatmul.mubr.f32.gmra.mrb[0].mxu0 %v6490
    %v6579 = vpop.f32.mrb[0].mxu0
    %v6580 = vadd.f32 0.0, %v6579
    %v6581 = vpop.f32.mrb[0].mxu0
    %6582 = vmatprep.mubr.f32.mxu0 0.0
    %6583 = vmatmul.mubr.f32.gmra.mrb[0].mxu0 %v6491
    %v6584 = vpop.f32.mrb[0].mxu0
    %v6585 = vadd.f32 0.0, %v6584
    %v6586 = vpop.f32.mrb[0].mxu0
    %6587 = vdwg.mxu0
    %v6588 = vadd.f32 %v6486, %v6575
    %v6589 = vadd.f32 %v6487, %v6580
    %v6590 = vadd.f32 %v6488, %v6585
    %v6591 = vld [vmem:[%s4295 + $0x6] sm:$0xff]
    %v6592 = vld [vmem:[%s4295 + $0xe] sm:$0xff]
    %v6593 = vld [vmem:[%s4295 + $0x16] sm:$0x1]
    %v6594 = vld [vmem:[%s2481] sm:$0xff]
    %v6595 = vld [vmem:[%s2481 + $0x8] sm:$0xff]
    %v6596 = vld [vmem:[%s2481 + $0x10] sm:$0xff]
    %v6597 = vld [vmem:[%s2481 + $0x18] sm:$0xff]
    %v6598 = vld [vmem:[%s2481 + $0x20] sm:$0xff]
    %v6599 = vld [vmem:[%s2481 + $0x28] sm:$0xff]
    %v6600 = vld [vmem:[%s2481 + $0x30] sm:$0xff]
    %v6601 = vld [vmem:[%s2481 + $0x38] sm:$0xff]
    %v6602 = vld [vmem:[%s2481 + $0x40] sm:$0xff]
    %v6603 = vld [vmem:[%s2481 + $0x48] sm:$0xff]
    %v6604 = vld [vmem:[%s2481 + $0x50] sm:$0xff]
    %v6605 = vld [vmem:[%s2481 + $0x58] sm:$0xff]
    %v6606 = vld [vmem:[%s2481 + $0x60] sm:$0xff]
    %v6607 = vld [vmem:[%s2481 + $0x68] sm:$0xff]
    %v6608 = vld [vmem:[%s2481 + $0x70] sm:$0xff]
    %v6609 = vld [vmem:[%s2481 + $0x78] sm:$0xff]
    %6610 = vmatprep.subr.mxu0 0.0
    %6611 = vmatpush1.msra.mxu0 %v6594
    %6612 = vmatprep.subr.mxu0 0.0
    %6613 = vmatpush1.msra.mxu0 %v6595
    %6614 = vmatprep.subr.mxu0 0.0
    %6615 = vmatpush1.msra.mxu0 %v6596
    %6616 = vmatprep.subr.mxu0 0.0
    %6617 = vmatpush1.msra.mxu0 %v6597
    %6618 = vmatprep.subr.mxu0 0.0
    %6619 = vmatpush1.msra.mxu0 %v6598
    %6620 = vmatprep.subr.mxu0 0.0
    %6621 = vmatpush1.msra.mxu0 %v6599
    %6622 = vmatprep.subr.mxu0 0.0
    %6623 = vmatpush1.msra.mxu0 %v6600
    %6624 = vmatprep.subr.mxu0 0.0
    %6625 = vmatpush1.msra.mxu0 %v6601
    %6626 = vmatprep.subr.mxu0 0.0
    %6627 = vmatpush1.msra.mxu0 %v6602
    %6628 = vmatprep.subr.mxu0 0.0
    %6629 = vmatpush1.msra.mxu0 %v6603
    %6630 = vmatprep.subr.mxu0 0.0
    %6631 = vmatpush1.msra.mxu0 %v6604
    %6632 = vmatprep.subr.mxu0 0.0
    %6633 = vmatpush1.msra.mxu0 %v6605
    %6634 = vmatprep.subr.mxu0 0.0
    %6635 = vmatpush1.msra.mxu0 %v6606
    %6636 = vmatprep.subr.mxu0 0.0
    %6637 = vmatpush1.msra.mxu0 %v6607
    %6638 = vmatprep.subr.mxu0 0.0
    %6639 = vmatpush1.msra.mxu0 %v6608
    %6640 = vmatprep.subr.mxu0 0.0
    %6641 = vmatpush1.msra.mxu0 %v6609
    %6642 = vmatprep.subr.mxu0 0.0
    %6643 = vmatpush1.msra.mxu0 0.0
    %6644 = vmatprep.subr.mxu0 0.0
    %6645 = vmatpush1.msra.mxu0 0.0
    %6646 = vmatprep.subr.mxu0 0.0
    %6647 = vmatpush1.msra.mxu0 0.0
    %6648 = vmatprep.subr.mxu0 0.0
    %6649 = vmatpush1.msra.mxu0 0.0
    %6650 = vmatprep.subr.mxu0 0.0
    %6651 = vmatpush1.msra.mxu0 0.0
    %6652 = vmatprep.subr.mxu0 0.0
    %6653 = vmatpush1.msra.mxu0 0.0
    %6654 = vmatprep.subr.mxu0 0.0
    %6655 = vmatpush1.msra.mxu0 0.0
    %6656 = vmatprep.subr.mxu0 0.0
    %6657 = vmatpush1.msra.mxu0 0.0
    %6658 = vmatprep.subr.mxu0 0.0
    %6659 = vmatpush1.msra.mxu0 0.0
    %6660 = vmatprep.subr.mxu0 0.0
    %6661 = vmatpush1.msra.mxu0 0.0
    %6662 = vmatprep.subr.mxu0 0.0
    %6663 = vmatpush1.msra.mxu0 0.0
    %6664 = vmatprep.subr.mxu0 0.0
    %6665 = vmatpush1.msra.mxu0 0.0
    %6666 = vmatprep.subr.mxu0 0.0
    %6667 = vmatpush1.msra.mxu0 0.0
    %6668 = vmatprep.subr.mxu0 0.0
    %6669 = vmatpush1.msra.mxu0 0.0
    %6670 = vmatprep.subr.mxu0 0.0
    %6671 = vmatpush1.msra.mxu0 0.0
    %6672 = vmatprep.subr.mxu0 0.0
    %6673 = vmatpush1.msra.mxu0 0.0
    %6674 = vmatprep.mubr.f32.mxu0 0.0
    %6675 = vmatmul.mubr.f32.gmra.mrb[0].mxu0 %v6591
    %v6676 = vpop.f32.mrb[0].mxu0
    %v6677 = vadd.f32 0.0, %v6676
    %v6678 = vpop.f32.mrb[0].mxu0
    %6679 = vmatprep.mubr.f32.mxu0 0.0
    %6680 = vmatmul.mubr.f32.gmra.mrb[0].mxu0 %v6592
    %v6681 = vpop.f32.mrb[0].mxu0
    %v6682 = vadd.f32 0.0, %v6681
    %v6683 = vpop.f32.mrb[0].mxu0
    %6684 = vmatprep.mubr.f32.mxu0 0.0
    %6685 = vmatmul.mubr.f32.gmra.mrb[0].mxu0 %v6593
    %v6686 = vpop.f32.mrb[0].mxu0
    %v6687 = vadd.f32 0.0, %v6686
    %v6688 = vpop.f32.mrb[0].mxu0
    %6689 = vdwg.mxu0
    %v6690 = vadd.f32 %v6588, %v6677
    %v6691 = vadd.f32 %v6589, %v6682
    %v6692 = vadd.f32 %v6590, %v6687
    %v6693 = vld [vmem:[%s2581] sm:$0x1]
    %v6695 = vlaneseq
    %v6696 = vshrl.u32 %v6695, 7
    %v6697 = vsub.s32 0, %v6696
    %v6698 = vrot.slane %v6693, %v6697
    %v6700 = vadd.f32 %v6690, %v6698
    %v6701 = vadd.f32 %v6691, %v6698
    %v6702 = vadd.f32 %v6692, %v6698
    %v6703 = vmax.f32 %v6700, 0.0
    %v6704 = vmax.f32 %v6701, 0.0
    %v6705 = vmax.f32 %v6702, 0.0
    %v6706 = vld [vmem:[%s2595] sm:$0x1]
    %v6708 = vlaneseq
    %v6709 = vshrl.u32 %v6708, 7
    %v6710 = vsub.s32 0, %v6709
    %v6711 = vrot.slane %v6706, %v6710
    %v6713 = vmul.f32 %v6703, %v6711
    %v6714 = vmul.f32 %v6704, %v6711
    %v6715 = vmul.f32 %v6705, %v6711
    %v6716 = vld [vmem:[%s2606] sm:$0x1]
    %v6718 = vlaneseq
    %v6719 = vshrl.u32 %v6718, 7
    %v6720 = vsub.s32 0, %v6719
    %v6721 = vrot.slane %v6716, %v6720
    %v6723 = vadd.f32 %v6713, %v6721
    %v6724 = vadd.f32 %v6714, %v6721
    %v6725 = vadd.f32 %v6715, %v6721
    %v6726 = vsel %vm283, -inf, %v6723
    %v6727 = vsel %vm284, -inf, %v6724
    %v6730 = vrot.slane %v6726, 7
    %v6731 = vrot.slane %v6727, 7
    %v6732 = vsel %vm289, %v6730, %v6731
    %v6736 = vmax.f32 %v6723, %v6730
    %v6737 = vmax.f32 %v6724, %v6732
    %v6738 = vmax.f32 %v6725, %v6731
    %v6742 = vrot.slane %v6736, 1
    %v6743 = vrot.slane %v6737, 1
    %v6744 = vsel %vm302, %v6742, %v6743
    %v6745 = vrot.slane %v6738, 1
    %v6746 = vsel %vm302, %v6743, %v6745
    %6749 = vst [vmem:[%s4448 + $0x28] sm:$0xff] %v6744
    %6750 = vst [vmem:[%s4448 + $0x68] sm:$0xff] %v6746
    %v6751 = vld [vmem:[%s4295 + $0x1] sm:$0xff]
    %v6752 = vld [vmem:[%s4295 + $0x9] sm:$0xff]
    %v6753 = vld [vmem:[%s4295 + $0x11] sm:$0x1]
    %v6754 = vld [vmem:[#allocation13] sm:$0xff]
    %v6755 = vld [vmem:[#allocation13 + $0x8] sm:$0xff]
    %v6756 = vld [vmem:[#allocation13 + $0x10] sm:$0xff]
    %v6757 = vld [vmem:[#allocation13 + $0x18] sm:$0xff]
    %v6758 = vld [vmem:[#allocation13 + $0x20] sm:$0xff]
    %v6759 = vld [vmem:[#allocation13 + $0x28] sm:$0xff]
    %v6760 = vld [vmem:[#allocation13 + $0x30] sm:$0xff]
    %v6761 = vld [vmem:[#allocation13 + $0x38] sm:$0xff]
    %v6762 = vld [vmem:[#allocation13 + $0x40] sm:$0xff]
    %v6763 = vld [vmem:[#allocation13 + $0x48] sm:$0xff]
    %v6764 = vld [vmem:[#allocation13 + $0x50] sm:$0xff]
    %v6765 = vld [vmem:[#allocation13 + $0x58] sm:$0xff]
    %v6766 = vld [vmem:[#allocation13 + $0x60] sm:$0xff]
    %v6767 = vld [vmem:[#allocation13 + $0x68] sm:$0xff]
    %v6768 = vld [vmem:[#allocation13 + $0x70] sm:$0xff]
    %v6769 = vld [vmem:[#allocation13 + $0x78] sm:$0xff]
    %v6770 = vld [vmem:[%s4295 + $0x2] sm:$0xff]
    %v6771 = vld [vmem:[%s4295 + $0xa] sm:$0xff]
    %v6772 = vld [vmem:[%s4295 + $0x12] sm:$0x1]
    %v6773 = vld [vmem:[%s2664] sm:$0xff]
    %v6774 = vld [vmem:[%s2664 + $0x8] sm:$0xff]
    %v6775 = vld [vmem:[%s2664 + $0x10] sm:$0xff]
    %v6776 = vld [vmem:[%s2664 + $0x18] sm:$0xff]
    %v6777 = vld [vmem:[%s2664 + $0x20] sm:$0xff]
    %v6778 = vld [vmem:[%s2664 + $0x28] sm:$0xff]
    %v6779 = vld [vmem:[%s2664 + $0x30] sm:$0xff]
    %v6780 = vld [vmem:[%s2664 + $0x38] sm:$0xff]
    %v6781 = vld [vmem:[%s2664 + $0x40] sm:$0xff]
    %v6782 = vld [vmem:[%s2664 + $0x48] sm:$0xff]
    %v6783 = vld [vmem:[%s2664 + $0x50] sm:$0xff]
    %v6784 = vld [vmem:[%s2664 + $0x58] sm:$0xff]
    %v6785 = vld [vmem:[%s2664 + $0x60] sm:$0xff]
    %v6786 = vld [vmem:[%s2664 + $0x68] sm:$0xff]
    %v6787 = vld [vmem:[%s2664 + $0x70] sm:$0xff]
    %v6788 = vld [vmem:[%s2664 + $0x78] sm:$0xff]
    %6789 = vmatprep.subr.mxu0 0.0
    %6790 = vmatpush1.msra.mxu0 %v6773
    %6791 = vmatprep.subr.mxu0 0.0
    %6792 = vmatpush1.msra.mxu0 %v6774
    %6793 = vmatprep.subr.mxu0 0.0
    %6794 = vmatpush1.msra.mxu0 %v6775
    %6795 = vmatprep.subr.mxu0 0.0
    %6796 = vmatpush1.msra.mxu0 %v6776
    %6797 = vmatprep.subr.mxu0 0.0
    %6798 = vmatpush1.msra.mxu0 %v6777
    %6799 = vmatprep.subr.mxu0 0.0
    %6800 = vmatpush1.msra.mxu0 %v6778
    %6801 = vmatprep.subr.mxu0 0.0
    %6802 = vmatpush1.msra.mxu0 %v6779
    %6803 = vmatprep.subr.mxu0 0.0
    %6804 = vmatpush1.msra.mxu0 %v6780
    %6805 = vmatprep.subr.mxu0 0.0
    %6806 = vmatpush1.msra.mxu0 %v6781
    %6807 = vmatprep.subr.mxu0 0.0
    %6808 = vmatpush1.msra.mxu0 %v6782
    %6809 = vmatprep.subr.mxu0 0.0
    %6810 = vmatpush1.msra.mxu0 %v6783
    %6811 = vmatprep.subr.mxu0 0.0
    %6812 = vmatpush1.msra.mxu0 %v6784
    %6813 = vmatprep.subr.mxu0 0.0
    %6814 = vmatpush1.msra.mxu0 %v6785
    %6815 = vmatprep.subr.mxu0 0.0
    %6816 = vmatpush1.msra.mxu0 %v6786
    %6817 = vmatprep.subr.mxu0 0.0
    %6818 = vmatpush1.msra.mxu0 %v6787
    %6819 = vmatprep.subr.mxu0 0.0
    %6820 = vmatpush1.msra.mxu0 %v6788
    %6821 = vmatprep.subr.mxu0 0.0
    %6822 = vmatpush1.msra.mxu0 0.0
    %6823 = vmatprep.subr.mxu0 0.0
    %6824 = vmatpush1.msra.mxu0 0.0
    %6825 = vmatprep.subr.mxu0 0.0
    %6826 = vmatpush1.msra.mxu0 0.0
    %6827 = vmatprep.subr.mxu0 0.0
    %6828 = vmatpush1.msra.mxu0 0.0
    %6829 = vmatprep.subr.mxu0 0.0
    %6830 = vmatpush1.msra.mxu0 0.0
    %6831 = vmatprep.subr.mxu0 0.0
    %6832 = vmatpush1.msra.mxu0 0.0
    %6833 = vmatprep.subr.mxu0 0.0
    %6834 = vmatpush1.msra.mxu0 0.0
    %6835 = vmatprep.subr.mxu0 0.0
    %6836 = vmatpush1.msra.mxu0 0.0
    %6837 = vmatprep.subr.mxu0 0.0
    %6838 = vmatpush1.msra.mxu0 0.0
    %6839 = vmatprep.subr.mxu0 0.0
    %6840 = vmatpush1.msra.mxu0 0.0
    %6841 = vmatprep.subr.mxu0 0.0
    %6842 = vmatpush1.msra.mxu0 0.0
    %6843 = vmatprep.subr.mxu0 0.0
    %6844 = vmatpush1.msra.mxu0 0.0
    %6845 = vmatprep.subr.mxu0 0.0
    %6846 = vmatpush1.msra.mxu0 0.0
    %6847 = vmatprep.subr.mxu0 0.0
    %6848 = vmatpush1.msra.mxu0 0.0
    %6849 = vmatprep.subr.mxu0 0.0
    %6850 = vmatpush1.msra.mxu0 0.0
    %6851 = vmatprep.subr.mxu0 0.0
    %6852 = vmatpush1.msra.mxu0 0.0
    %6853 = vmatprep.mubr.f32.mxu0 0.0
    %6854 = vmatmul.mubr.f32.gmra.mrb[0].mxu0 %v6770
    %v6855 = vpop.f32.mrb[0].mxu0
    %v6856 = vadd.f32 0.0, %v6855
    %v6857 = vpop.f32.mrb[0].mxu0
    %6858 = vmatprep.mubr.f32.mxu0 0.0
    %6859 = vmatmul.mubr.f32.gmra.mrb[0].mxu0 %v6771
    %v6860 = vpop.f32.mrb[0].mxu0
    %v6861 = vadd.f32 0.0, %v6860
    %v6862 = vpop.f32.mrb[0].mxu0
    %6863 = vmatprep.mubr.f32.mxu0 0.0
    %6864 = vmatmul.mubr.f32.gmra.mrb[0].mxu0 %v6772
    %v6865 = vpop.f32.mrb[0].mxu0
    %v6866 = vadd.f32 0.0, %v6865
    %v6867 = vpop.f32.mrb[0].mxu0
    %6868 = vdwg.mxu0
    %6869 = vmatprep.subr.mxu0 0.0
    %6870 = vmatpush1.msra.mxu0 %v6754
    %6871 = vmatprep.subr.mxu0 0.0
    %6872 = vmatpush1.msra.mxu0 %v6755
    %6873 = vmatprep.subr.mxu0 0.0
    %6874 = vmatpush1.msra.mxu0 %v6756
    %6875 = vmatprep.subr.mxu0 0.0
    %6876 = vmatpush1.msra.mxu0 %v6757
    %6877 = vmatprep.subr.mxu0 0.0
    %6878 = vmatpush1.msra.mxu0 %v6758
    %6879 = vmatprep.subr.mxu0 0.0
    %6880 = vmatpush1.msra.mxu0 %v6759
    %6881 = vmatprep.subr.mxu0 0.0
    %6882 = vmatpush1.msra.mxu0 %v6760
    %6883 = vmatprep.subr.mxu0 0.0
    %6884 = vmatpush1.msra.mxu0 %v6761
    %6885 = vmatprep.subr.mxu0 0.0
    %6886 = vmatpush1.msra.mxu0 %v6762
    %6887 = vmatprep.subr.mxu0 0.0
    %6888 = vmatpush1.msra.mxu0 %v6763
    %6889 = vmatprep.subr.mxu0 0.0
    %6890 = vmatpush1.msra.mxu0 %v6764
    %6891 = vmatprep.subr.mxu0 0.0
    %6892 = vmatpush1.msra.mxu0 %v6765
    %6893 = vmatprep.subr.mxu0 0.0
    %6894 = vmatpush1.msra.mxu0 %v6766
    %6895 = vmatprep.subr.mxu0 0.0
    %6896 = vmatpush1.msra.mxu0 %v6767
    %6897 = vmatprep.subr.mxu0 0.0
    %6898 = vmatpush1.msra.mxu0 %v6768
    %6899 = vmatprep.subr.mxu0 0.0
    %6900 = vmatpush1.msra.mxu0 %v6769
    %6901 = vmatprep.subr.mxu0 0.0
    %6902 = vmatpush1.msra.mxu0 0.0
    %6903 = vmatprep.subr.mxu0 0.0
    %6904 = vmatpush1.msra.mxu0 0.0
    %6905 = vmatprep.subr.mxu0 0.0
    %6906 = vmatpush1.msra.mxu0 0.0
    %6907 = vmatprep.subr.mxu0 0.0
    %6908 = vmatpush1.msra.mxu0 0.0
    %6909 = vmatprep.subr.mxu0 0.0
    %6910 = vmatpush1.msra.mxu0 0.0
    %6911 = vmatprep.subr.mxu0 0.0
    %6912 = vmatpush1.msra.mxu0 0.0
    %6913 = vmatprep.subr.mxu0 0.0
    %6914 = vmatpush1.msra.mxu0 0.0
    %6915 = vmatprep.subr.mxu0 0.0
    %6916 = vmatpush1.msra.mxu0 0.0
    %6917 = vmatprep.subr.mxu0 0.0
    %6918 = vmatpush1.msra.mxu0 0.0
    %6919 = vmatprep.subr.mxu0 0.0
    %6920 = vmatpush1.msra.mxu0 0.0
    %6921 = vmatprep.subr.mxu0 0.0
    %6922 = vmatpush1.msra.mxu0 0.0
    %6923 = vmatprep.subr.mxu0 0.0
    %6924 = vmatpush1.msra.mxu0 0.0
    %6925 = vmatprep.subr.mxu0 0.0
    %6926 = vmatpush1.msra.mxu0 0.0
    %6927 = vmatprep.subr.mxu0 0.0
    %6928 = vmatpush1.msra.mxu0 0.0
    %6929 = vmatprep.subr.mxu0 0.0
    %6930 = vmatpush1.msra.mxu0 0.0
    %6931 = vmatprep.subr.mxu0 0.0
    %6932 = vmatpush1.msra.mxu0 0.0
    %6933 = vmatprep.mubr.f32.mxu0 0.0
    %6934 = vmatmul.mubr.f32.gmra.mrb[0].mxu0 %v6751
    %v6935 = vpop.f32.mrb[0].mxu0
    %v6936 = vadd.f32 %v6856, %v6935
    %v6937 = vpop.f32.mrb[0].mxu0
    %6938 = vmatprep.mubr.f32.mxu0 0.0
    %6939 = vmatmul.mubr.f32.gmra.mrb[0].mxu0 %v6752
    %v6940 = vpop.f32.mrb[0].mxu0
    %v6941 = vadd.f32 %v6861, %v6940
    %v6942 = vpop.f32.mrb[0].mxu0
    %6943 = vmatprep.mubr.f32.mxu0 0.0
    %6944 = vmatmul.mubr.f32.gmra.mrb[0].mxu0 %v6753
    %v6945 = vpop.f32.mrb[0].mxu0
    %v6946 = vadd.f32 %v6866, %v6945
    %v6947 = vpop.f32.mrb[0].mxu0
    %6948 = vdwg.mxu0
    %v6949 = vld [vmem:[%s4295 + $0x3] sm:$0xff]
    %v6950 = vld [vmem:[%s4295 + $0xb] sm:$0xff]
    %v6951 = vld [vmem:[%s4295 + $0x13] sm:$0x1]
    %v6952 = vld [vmem:[%s2844] sm:$0xff]
    %v6953 = vld [vmem:[%s2844 + $0x8] sm:$0xff]
    %v6954 = vld [vmem:[%s2844 + $0x10] sm:$0xff]
    %v6955 = vld [vmem:[%s2844 + $0x18] sm:$0xff]
    %v6956 = vld [vmem:[%s2844 + $0x20] sm:$0xff]
    %v6957 = vld [vmem:[%s2844 + $0x28] sm:$0xff]
    %v6958 = vld [vmem:[%s2844 + $0x30] sm:$0xff]
    %v6959 = vld [vmem:[%s2844 + $0x38] sm:$0xff]
    %v6960 = vld [vmem:[%s2844 + $0x40] sm:$0xff]
    %v6961 = vld [vmem:[%s2844 + $0x48] sm:$0xff]
    %v6962 = vld [vmem:[%s2844 + $0x50] sm:$0xff]
    %v6963 = vld [vmem:[%s2844 + $0x58] sm:$0xff]
    %v6964 = vld [vmem:[%s2844 + $0x60] sm:$0xff]
    %v6965 = vld [vmem:[%s2844 + $0x68] sm:$0xff]
    %v6966 = vld [vmem:[%s2844 + $0x70] sm:$0xff]
    %v6967 = vld [vmem:[%s2844 + $0x78] sm:$0xff]
    %6968 = vmatprep.subr.mxu0 0.0
    %6969 = vmatpush1.msra.mxu0 %v6952
    %6970 = vmatprep.subr.mxu0 0.0
    %6971 = vmatpush1.msra.mxu0 %v6953
    %6972 = vmatprep.subr.mxu0 0.0
    %6973 = vmatpush1.msra.mxu0 %v6954
    %6974 = vmatprep.subr.mxu0 0.0
    %6975 = vmatpush1.msra.mxu0 %v6955
    %6976 = vmatprep.subr.mxu0 0.0
    %6977 = vmatpush1.msra.mxu0 %v6956
    %6978 = vmatprep.subr.mxu0 0.0
    %6979 = vmatpush1.msra.mxu0 %v6957
    %6980 = vmatprep.subr.mxu0 0.0
    %6981 = vmatpush1.msra.mxu0 %v6958
    %6982 = vmatprep.subr.mxu0 0.0
    %6983 = vmatpush1.msra.mxu0 %v6959
    %6984 = vmatprep.subr.mxu0 0.0
    %6985 = vmatpush1.msra.mxu0 %v6960
    %6986 = vmatprep.subr.mxu0 0.0
    %6987 = vmatpush1.msra.mxu0 %v6961
    %6988 = vmatprep.subr.mxu0 0.0
    %6989 = vmatpush1.msra.mxu0 %v6962
    %6990 = vmatprep.subr.mxu0 0.0
    %6991 = vmatpush1.msra.mxu0 %v6963
    %6992 = vmatprep.subr.mxu0 0.0
    %6993 = vmatpush1.msra.mxu0 %v6964
    %6994 = vmatprep.subr.mxu0 0.0
    %6995 = vmatpush1.msra.mxu0 %v6965
    %6996 = vmatprep.subr.mxu0 0.0
    %6997 = vmatpush1.msra.mxu0 %v6966
    %6998 = vmatprep.subr.mxu0 0.0
    %6999 = vmatpush1.msra.mxu0 %v6967
    %7000 = vmatprep.subr.mxu0 0.0
    %7001 = vmatpush1.msra.mxu0 0.0
    %7002 = vmatprep.subr.mxu0 0.0
    %7003 = vmatpush1.msra.mxu0 0.0
    %7004 = vmatprep.subr.mxu0 0.0
    %7005 = vmatpush1.msra.mxu0 0.0
    %7006 = vmatprep.subr.mxu0 0.0
    %7007 = vmatpush1.msra.mxu0 0.0
    %7008 = vmatprep.subr.mxu0 0.0
    %7009 = vmatpush1.msra.mxu0 0.0
    %7010 = vmatprep.subr.mxu0 0.0
    %7011 = vmatpush1.msra.mxu0 0.0
    %7012 = vmatprep.subr.mxu0 0.0
    %7013 = vmatpush1.msra.mxu0 0.0
    %7014 = vmatprep.subr.mxu0 0.0
    %7015 = vmatpush1.msra.mxu0 0.0
    %7016 = vmatprep.subr.mxu0 0.0
    %7017 = vmatpush1.msra.mxu0 0.0
    %7018 = vmatprep.subr.mxu0 0.0
    %7019 = vmatpush1.msra.mxu0 0.0
    %7020 = vmatprep.subr.mxu0 0.0
    %7021 = vmatpush1.msra.mxu0 0.0
    %7022 = vmatprep.subr.mxu0 0.0
    %7023 = vmatpush1.msra.mxu0 0.0
    %7024 = vmatprep.subr.mxu0 0.0
    %7025 = vmatpush1.msra.mxu0 0.0
    %7026 = vmatprep.subr.mxu0 0.0
    %7027 = vmatpush1.msra.mxu0 0.0
    %7028 = vmatprep.subr.mxu0 0.0
    %7029 = vmatpush1.msra.mxu0 0.0
    %7030 = vmatprep.subr.mxu0 0.0
    %7031 = vmatpush1.msra.mxu0 0.0
    %7032 = vmatprep.mubr.f32.mxu0 0.0
    %7033 = vmatmul.mubr.f32.gmra.mrb[0].mxu0 %v6949
    %v7034 = vpop.f32.mrb[0].mxu0
    %v7035 = vadd.f32 0.0, %v7034
    %v7036 = vpop.f32.mrb[0].mxu0
    %7037 = vmatprep.mubr.f32.mxu0 0.0
    %7038 = vmatmul.mubr.f32.gmra.mrb[0].mxu0 %v6950
    %v7039 = vpop.f32.mrb[0].mxu0
    %v7040 = vadd.f32 0.0, %v7039
    %v7041 = vpop.f32.mrb[0].mxu0
    %7042 = vmatprep.mubr.f32.mxu0 0.0
    %7043 = vmatmul.mubr.f32.gmra.mrb[0].mxu0 %v6951
    %v7044 = vpop.f32.mrb[0].mxu0
    %v7045 = vadd.f32 0.0, %v7044
    %v7046 = vpop.f32.mrb[0].mxu0
    %7047 = vdwg.mxu0
    %v7048 = vadd.f32 %v6936, %v7035
    %v7049 = vadd.f32 %v6941, %v7040
    %v7050 = vadd.f32 %v6946, %v7045
    %v7051 = vld [vmem:[%s4295 + $0x4] sm:$0xff]
    %v7052 = vld [vmem:[%s4295 + $0xc] sm:$0xff]
    %v7053 = vld [vmem:[%s4295 + $0x14] sm:$0x1]
    %v7054 = vld [vmem:[%s2947] sm:$0xff]
    %v7055 = vld [vmem:[%s2947 + $0x8] sm:$0xff]
    %v7056 = vld [vmem:[%s2947 + $0x10] sm:$0xff]
    %v7057 = vld [vmem:[%s2947 + $0x18] sm:$0xff]
    %v7058 = vld [vmem:[%s2947 + $0x20] sm:$0xff]
    %v7059 = vld [vmem:[%s2947 + $0x28] sm:$0xff]
    %v7060 = vld [vmem:[%s2947 + $0x30] sm:$0xff]
    %v7061 = vld [vmem:[%s2947 + $0x38] sm:$0xff]
    %v7062 = vld [vmem:[%s2947 + $0x40] sm:$0xff]
    %v7063 = vld [vmem:[%s2947 + $0x48] sm:$0xff]
    %v7064 = vld [vmem:[%s2947 + $0x50] sm:$0xff]
    %v7065 = vld [vmem:[%s2947 + $0x58] sm:$0xff]
    %v7066 = vld [vmem:[%s2947 + $0x60] sm:$0xff]
    %v7067 = vld [vmem:[%s2947 + $0x68] sm:$0xff]
    %v7068 = vld [vmem:[%s2947 + $0x70] sm:$0xff]
    %v7069 = vld [vmem:[%s2947 + $0x78] sm:$0xff]
    %7070 = vmatprep.subr.mxu0 0.0
    %7071 = vmatpush1.msra.mxu0 %v7054
    %7072 = vmatprep.subr.mxu0 0.0
    %7073 = vmatpush1.msra.mxu0 %v7055
    %7074 = vmatprep.subr.mxu0 0.0
    %7075 = vmatpush1.msra.mxu0 %v7056
    %7076 = vmatprep.subr.mxu0 0.0
    %7077 = vmatpush1.msra.mxu0 %v7057
    %7078 = vmatprep.subr.mxu0 0.0
    %7079 = vmatpush1.msra.mxu0 %v7058
    %7080 = vmatprep.subr.mxu0 0.0
    %7081 = vmatpush1.msra.mxu0 %v7059
    %7082 = vmatprep.subr.mxu0 0.0
    %7083 = vmatpush1.msra.mxu0 %v7060
    %7084 = vmatprep.subr.mxu0 0.0
    %7085 = vmatpush1.msra.mxu0 %v7061
    %7086 = vmatprep.subr.mxu0 0.0
    %7087 = vmatpush1.msra.mxu0 %v7062
    %7088 = vmatprep.subr.mxu0 0.0
    %7089 = vmatpush1.msra.mxu0 %v7063
    %7090 = vmatprep.subr.mxu0 0.0
    %7091 = vmatpush1.msra.mxu0 %v7064
    %7092 = vmatprep.subr.mxu0 0.0
    %7093 = vmatpush1.msra.mxu0 %v7065
    %7094 = vmatprep.subr.mxu0 0.0
    %7095 = vmatpush1.msra.mxu0 %v7066
    %7096 = vmatprep.subr.mxu0 0.0
    %7097 = vmatpush1.msra.mxu0 %v7067
    %7098 = vmatprep.subr.mxu0 0.0
    %7099 = vmatpush1.msra.mxu0 %v7068
    %7100 = vmatprep.subr.mxu0 0.0
    %7101 = vmatpush1.msra.mxu0 %v7069
    %7102 = vmatprep.subr.mxu0 0.0
    %7103 = vmatpush1.msra.mxu0 0.0
    %7104 = vmatprep.subr.mxu0 0.0
    %7105 = vmatpush1.msra.mxu0 0.0
    %7106 = vmatprep.subr.mxu0 0.0
    %7107 = vmatpush1.msra.mxu0 0.0
    %7108 = vmatprep.subr.mxu0 0.0
    %7109 = vmatpush1.msra.mxu0 0.0
    %7110 = vmatprep.subr.mxu0 0.0
    %7111 = vmatpush1.msra.mxu0 0.0
    %7112 = vmatprep.subr.mxu0 0.0
    %7113 = vmatpush1.msra.mxu0 0.0
    %7114 = vmatprep.subr.mxu0 0.0
    %7115 = vmatpush1.msra.mxu0 0.0
    %7116 = vmatprep.subr.mxu0 0.0
    %7117 = vmatpush1.msra.mxu0 0.0
    %7118 = vmatprep.subr.mxu0 0.0
    %7119 = vmatpush1.msra.mxu0 0.0
    %7120 = vmatprep.subr.mxu0 0.0
    %7121 = vmatpush1.msra.mxu0 0.0
    %7122 = vmatprep.subr.mxu0 0.0
    %7123 = vmatpush1.msra.mxu0 0.0
    %7124 = vmatprep.subr.mxu0 0.0
    %7125 = vmatpush1.msra.mxu0 0.0
    %7126 = vmatprep.subr.mxu0 0.0
    %7127 = vmatpush1.msra.mxu0 0.0
    %7128 = vmatprep.subr.mxu0 0.0
    %7129 = vmatpush1.msra.mxu0 0.0
    %7130 = vmatprep.subr.mxu0 0.0
    %7131 = vmatpush1.msra.mxu0 0.0
    %7132 = vmatprep.subr.mxu0 0.0
    %7133 = vmatpush1.msra.mxu0 0.0
    %7134 = vmatprep.mubr.f32.mxu0 0.0
    %7135 = vmatmul.mubr.f32.gmra.mrb[0].mxu0 %v7051
    %v7136 = vpop.f32.mrb[0].mxu0
    %v7137 = vadd.f32 0.0, %v7136
    %v7138 = vpop.f32.mrb[0].mxu0
    %7139 = vmatprep.mubr.f32.mxu0 0.0
    %7140 = vmatmul.mubr.f32.gmra.mrb[0].mxu0 %v7052
    %v7141 = vpop.f32.mrb[0].mxu0
    %v7142 = vadd.f32 0.0, %v7141
    %v7143 = vpop.f32.mrb[0].mxu0
    %7144 = vmatprep.mubr.f32.mxu0 0.0
    %7145 = vmatmul.mubr.f32.gmra.mrb[0].mxu0 %v7053
    %v7146 = vpop.f32.mrb[0].mxu0
    %v7147 = vadd.f32 0.0, %v7146
    %v7148 = vpop.f32.mrb[0].mxu0
    %7149 = vdwg.mxu0
    %v7150 = vadd.f32 %v7048, %v7137
    %v7151 = vadd.f32 %v7049, %v7142
    %v7152 = vadd.f32 %v7050, %v7147
    %v7153 = vld [vmem:[%s4295 + $0x5] sm:$0xff]
    %v7154 = vld [vmem:[%s4295 + $0xd] sm:$0xff]
    %v7155 = vld [vmem:[%s4295 + $0x15] sm:$0x1]
    %v7156 = vld [vmem:[%s3050] sm:$0xff]
    %v7157 = vld [vmem:[%s3050 + $0x8] sm:$0xff]
    %v7158 = vld [vmem:[%s3050 + $0x10] sm:$0xff]
    %v7159 = vld [vmem:[%s3050 + $0x18] sm:$0xff]
    %v7160 = vld [vmem:[%s3050 + $0x20] sm:$0xff]
    %v7161 = vld [vmem:[%s3050 + $0x28] sm:$0xff]
    %v7162 = vld [vmem:[%s3050 + $0x30] sm:$0xff]
    %v7163 = vld [vmem:[%s3050 + $0x38] sm:$0xff]
    %v7164 = vld [vmem:[%s3050 + $0x40] sm:$0xff]
    %v7165 = vld [vmem:[%s3050 + $0x48] sm:$0xff]
    %v7166 = vld [vmem:[%s3050 + $0x50] sm:$0xff]
    %v7167 = vld [vmem:[%s3050 + $0x58] sm:$0xff]
    %v7168 = vld [vmem:[%s3050 + $0x60] sm:$0xff]
    %v7169 = vld [vmem:[%s3050 + $0x68] sm:$0xff]
    %v7170 = vld [vmem:[%s3050 + $0x70] sm:$0xff]
    %v7171 = vld [vmem:[%s3050 + $0x78] sm:$0xff]
    %7172 = vmatprep.subr.mxu0 0.0
    %7173 = vmatpush1.msra.mxu0 %v7156
    %7174 = vmatprep.subr.mxu0 0.0
    %7175 = vmatpush1.msra.mxu0 %v7157
    %7176 = vmatprep.subr.mxu0 0.0
    %7177 = vmatpush1.msra.mxu0 %v7158
    %7178 = vmatprep.subr.mxu0 0.0
    %7179 = vmatpush1.msra.mxu0 %v7159
    %7180 = vmatprep.subr.mxu0 0.0
    %7181 = vmatpush1.msra.mxu0 %v7160
    %7182 = vmatprep.subr.mxu0 0.0
    %7183 = vmatpush1.msra.mxu0 %v7161
    %7184 = vmatprep.subr.mxu0 0.0
    %7185 = vmatpush1.msra.mxu0 %v7162
    %7186 = vmatprep.subr.mxu0 0.0
    %7187 = vmatpush1.msra.mxu0 %v7163
    %7188 = vmatprep.subr.mxu0 0.0
    %7189 = vmatpush1.msra.mxu0 %v7164
    %7190 = vmatprep.subr.mxu0 0.0
    %7191 = vmatpush1.msra.mxu0 %v7165
    %7192 = vmatprep.subr.mxu0 0.0
    %7193 = vmatpush1.msra.mxu0 %v7166
    %7194 = vmatprep.subr.mxu0 0.0
    %7195 = vmatpush1.msra.mxu0 %v7167
    %7196 = vmatprep.subr.mxu0 0.0
    %7197 = vmatpush1.msra.mxu0 %v7168
    %7198 = vmatprep.subr.mxu0 0.0
    %7199 = vmatpush1.msra.mxu0 %v7169
    %7200 = vmatprep.subr.mxu0 0.0
    %7201 = vmatpush1.msra.mxu0 %v7170
    %7202 = vmatprep.subr.mxu0 0.0
    %7203 = vmatpush1.msra.mxu0 %v7171
    %7204 = vmatprep.subr.mxu0 0.0
    %7205 = vmatpush1.msra.mxu0 0.0
    %7206 = vmatprep.subr.mxu0 0.0
    %7207 = vmatpush1.msra.mxu0 0.0
    %7208 = vmatprep.subr.mxu0 0.0
    %7209 = vmatpush1.msra.mxu0 0.0
    %7210 = vmatprep.subr.mxu0 0.0
    %7211 = vmatpush1.msra.mxu0 0.0
    %7212 = vmatprep.subr.mxu0 0.0
    %7213 = vmatpush1.msra.mxu0 0.0
    %7214 = vmatprep.subr.mxu0 0.0
    %7215 = vmatpush1.msra.mxu0 0.0
    %7216 = vmatprep.subr.mxu0 0.0
    %7217 = vmatpush1.msra.mxu0 0.0
    %7218 = vmatprep.subr.mxu0 0.0
    %7219 = vmatpush1.msra.mxu0 0.0
    %7220 = vmatprep.subr.mxu0 0.0
    %7221 = vmatpush1.msra.mxu0 0.0
    %7222 = vmatprep.subr.mxu0 0.0
    %7223 = vmatpush1.msra.mxu0 0.0
    %7224 = vmatprep.subr.mxu0 0.0
    %7225 = vmatpush1.msra.mxu0 0.0
    %7226 = vmatprep.subr.mxu0 0.0
    %7227 = vmatpush1.msra.mxu0 0.0
    %7228 = vmatprep.subr.mxu0 0.0
    %7229 = vmatpush1.msra.mxu0 0.0
    %7230 = vmatprep.subr.mxu0 0.0
    %7231 = vmatpush1.msra.mxu0 0.0
    %7232 = vmatprep.subr.mxu0 0.0
    %7233 = vmatpush1.msra.mxu0 0.0
    %7234 = vmatprep.subr.mxu0 0.0
    %7235 = vmatpush1.msra.mxu0 0.0
    %7236 = vmatprep.mubr.f32.mxu0 0.0
    %7237 = vmatmul.mubr.f32.gmra.mrb[0].mxu0 %v7153
    %v7238 = vpop.f32.mrb[0].mxu0
    %v7239 = vadd.f32 0.0, %v7238
    %v7240 = vpop.f32.mrb[0].mxu0
    %7241 = vmatprep.mubr.f32.mxu0 0.0
    %7242 = vmatmul.mubr.f32.gmra.mrb[0].mxu0 %v7154
    %v7243 = vpop.f32.mrb[0].mxu0
    %v7244 = vadd.f32 0.0, %v7243
    %v7245 = vpop.f32.mrb[0].mxu0
    %7246 = vmatprep.mubr.f32.mxu0 0.0
    %7247 = vmatmul.mubr.f32.gmra.mrb[0].mxu0 %v7155
    %v7248 = vpop.f32.mrb[0].mxu0
    %v7249 = vadd.f32 0.0, %v7248
    %v7250 = vpop.f32.mrb[0].mxu0
    %7251 = vdwg.mxu0
    %v7252 = vadd.f32 %v7150, %v7239
    %v7253 = vadd.f32 %v7151, %v7244
    %v7254 = vadd.f32 %v7152, %v7249
    %v7255 = vld [vmem:[%s4295 + $0x6] sm:$0xff]
    %v7256 = vld [vmem:[%s4295 + $0xe] sm:$0xff]
    %v7257 = vld [vmem:[%s4295 + $0x16] sm:$0x1]
    %v7258 = vld [vmem:[%s3153] sm:$0xff]
    %v7259 = vld [vmem:[%s3153 + $0x8] sm:$0xff]
    %v7260 = vld [vmem:[%s3153 + $0x10] sm:$0xff]
    %v7261 = vld [vmem:[%s3153 + $0x18] sm:$0xff]
    %v7262 = vld [vmem:[%s3153 + $0x20] sm:$0xff]
    %v7263 = vld [vmem:[%s3153 + $0x28] sm:$0xff]
    %v7264 = vld [vmem:[%s3153 + $0x30] sm:$0xff]
    %v7265 = vld [vmem:[%s3153 + $0x38] sm:$0xff]
    %v7266 = vld [vmem:[%s3153 + $0x40] sm:$0xff]
    %v7267 = vld [vmem:[%s3153 + $0x48] sm:$0xff]
    %v7268 = vld [vmem:[%s3153 + $0x50] sm:$0xff]
    %v7269 = vld [vmem:[%s3153 + $0x58] sm:$0xff]
    %v7270 = vld [vmem:[%s3153 + $0x60] sm:$0xff]
    %v7271 = vld [vmem:[%s3153 + $0x68] sm:$0xff]
    %v7272 = vld [vmem:[%s3153 + $0x70] sm:$0xff]
    %v7273 = vld [vmem:[%s3153 + $0x78] sm:$0xff]
    %7274 = vmatprep.subr.mxu0 0.0
    %7275 = vmatpush1.msra.mxu0 %v7258
    %7276 = vmatprep.subr.mxu0 0.0
    %7277 = vmatpush1.msra.mxu0 %v7259
    %7278 = vmatprep.subr.mxu0 0.0
    %7279 = vmatpush1.msra.mxu0 %v7260
    %7280 = vmatprep.subr.mxu0 0.0
    %7281 = vmatpush1.msra.mxu0 %v7261
    %7282 = vmatprep.subr.mxu0 0.0
    %7283 = vmatpush1.msra.mxu0 %v7262
    %7284 = vmatprep.subr.mxu0 0.0
    %7285 = vmatpush1.msra.mxu0 %v7263
    %7286 = vmatprep.subr.mxu0 0.0
    %7287 = vmatpush1.msra.mxu0 %v7264
    %7288 = vmatprep.subr.mxu0 0.0
    %7289 = vmatpush1.msra.mxu0 %v7265
    %7290 = vmatprep.subr.mxu0 0.0
    %7291 = vmatpush1.msra.mxu0 %v7266
    %7292 = vmatprep.subr.mxu0 0.0
    %7293 = vmatpush1.msra.mxu0 %v7267
    %7294 = vmatprep.subr.mxu0 0.0
    %7295 = vmatpush1.msra.mxu0 %v7268
    %7296 = vmatprep.subr.mxu0 0.0
    %7297 = vmatpush1.msra.mxu0 %v7269
    %7298 = vmatprep.subr.mxu0 0.0
    %7299 = vmatpush1.msra.mxu0 %v7270
    %7300 = vmatprep.subr.mxu0 0.0
    %7301 = vmatpush1.msra.mxu0 %v7271
    %7302 = vmatprep.subr.mxu0 0.0
    %7303 = vmatpush1.msra.mxu0 %v7272
    %7304 = vmatprep.subr.mxu0 0.0
    %7305 = vmatpush1.msra.mxu0 %v7273
    %7306 = vmatprep.subr.mxu0 0.0
    %7307 = vmatpush1.msra.mxu0 0.0
    %7308 = vmatprep.subr.mxu0 0.0
    %7309 = vmatpush1.msra.mxu0 0.0
    %7310 = vmatprep.subr.mxu0 0.0
    %7311 = vmatpush1.msra.mxu0 0.0
    %7312 = vmatprep.subr.mxu0 0.0
    %7313 = vmatpush1.msra.mxu0 0.0
    %7314 = vmatprep.subr.mxu0 0.0
    %7315 = vmatpush1.msra.mxu0 0.0
    %7316 = vmatprep.subr.mxu0 0.0
    %7317 = vmatpush1.msra.mxu0 0.0
    %7318 = vmatprep.subr.mxu0 0.0
    %7319 = vmatpush1.msra.mxu0 0.0
    %7320 = vmatprep.subr.mxu0 0.0
    %7321 = vmatpush1.msra.mxu0 0.0
    %7322 = vmatprep.subr.mxu0 0.0
    %7323 = vmatpush1.msra.mxu0 0.0
    %7324 = vmatprep.subr.mxu0 0.0
    %7325 = vmatpush1.msra.mxu0 0.0
    %7326 = vmatprep.subr.mxu0 0.0
    %7327 = vmatpush1.msra.mxu0 0.0
    %7328 = vmatprep.subr.mxu0 0.0
    %7329 = vmatpush1.msra.mxu0 0.0
    %7330 = vmatprep.subr.mxu0 0.0
    %7331 = vmatpush1.msra.mxu0 0.0
    %7332 = vmatprep.subr.mxu0 0.0
    %7333 = vmatpush1.msra.mxu0 0.0
    %7334 = vmatprep.subr.mxu0 0.0
    %7335 = vmatpush1.msra.mxu0 0.0
    %7336 = vmatprep.subr.mxu0 0.0
    %7337 = vmatpush1.msra.mxu0 0.0
    %7338 = vmatprep.mubr.f32.mxu0 0.0
    %7339 = vmatmul.mubr.f32.gmra.mrb[0].mxu0 %v7255
    %v7340 = vpop.f32.mrb[0].mxu0
    %v7341 = vadd.f32 0.0, %v7340
    %v7342 = vpop.f32.mrb[0].mxu0
    %7343 = vmatprep.mubr.f32.mxu0 0.0
    %7344 = vmatmul.mubr.f32.gmra.mrb[0].mxu0 %v7256
    %v7345 = vpop.f32.mrb[0].mxu0
    %v7346 = vadd.f32 0.0, %v7345
    %v7347 = vpop.f32.mrb[0].mxu0
    %7348 = vmatprep.mubr.f32.mxu0 0.0
    %7349 = vmatmul.mubr.f32.gmra.mrb[0].mxu0 %v7257
    %v7350 = vpop.f32.mrb[0].mxu0
    %v7351 = vadd.f32 0.0, %v7350
    %v7352 = vpop.f32.mrb[0].mxu0
    %7353 = vdwg.mxu0
    %v7354 = vadd.f32 %v7252, %v7341
    %v7355 = vadd.f32 %v7253, %v7346
    %v7356 = vadd.f32 %v7254, %v7351
    %v7357 = vld [vmem:[%s4295 + $0x7] sm:$0xff]
    %v7358 = vld [vmem:[%s4295 + $0xf] sm:$0xff]
    %v7359 = vld [vmem:[%s4295 + $0x17] sm:$0x1]
    %v7360 = vld [vmem:[%s3256] sm:$0xff]
    %v7361 = vld [vmem:[%s3256 + $0x8] sm:$0xff]
    %v7362 = vld [vmem:[%s3256 + $0x10] sm:$0xff]
    %v7363 = vld [vmem:[%s3256 + $0x18] sm:$0xff]
    %v7364 = vld [vmem:[%s3256 + $0x20] sm:$0xff]
    %v7365 = vld [vmem:[%s3256 + $0x28] sm:$0xff]
    %v7366 = vld [vmem:[%s3256 + $0x30] sm:$0xff]
    %v7367 = vld [vmem:[%s3256 + $0x38] sm:$0xff]
    %v7368 = vld [vmem:[%s3256 + $0x40] sm:$0xff]
    %v7369 = vld [vmem:[%s3256 + $0x48] sm:$0xff]
    %v7370 = vld [vmem:[%s3256 + $0x50] sm:$0xff]
    %v7371 = vld [vmem:[%s3256 + $0x58] sm:$0xff]
    %v7372 = vld [vmem:[%s3256 + $0x60] sm:$0xff]
    %v7373 = vld [vmem:[%s3256 + $0x68] sm:$0xff]
    %v7374 = vld [vmem:[%s3256 + $0x70] sm:$0xff]
    %v7375 = vld [vmem:[%s3256 + $0x78] sm:$0xff]
    %7376 = vmatprep.subr.mxu0 0.0
    %7377 = vmatpush1.msra.mxu0 %v7360
    %7378 = vmatprep.subr.mxu0 0.0
    %7379 = vmatpush1.msra.mxu0 %v7361
    %7380 = vmatprep.subr.mxu0 0.0
    %7381 = vmatpush1.msra.mxu0 %v7362
    %7382 = vmatprep.subr.mxu0 0.0
    %7383 = vmatpush1.msra.mxu0 %v7363
    %7384 = vmatprep.subr.mxu0 0.0
    %7385 = vmatpush1.msra.mxu0 %v7364
    %7386 = vmatprep.subr.mxu0 0.0
    %7387 = vmatpush1.msra.mxu0 %v7365
    %7388 = vmatprep.subr.mxu0 0.0
    %7389 = vmatpush1.msra.mxu0 %v7366
    %7390 = vmatprep.subr.mxu0 0.0
    %7391 = vmatpush1.msra.mxu0 %v7367
    %7392 = vmatprep.subr.mxu0 0.0
    %7393 = vmatpush1.msra.mxu0 %v7368
    %7394 = vmatprep.subr.mxu0 0.0
    %7395 = vmatpush1.msra.mxu0 %v7369
    %7396 = vmatprep.subr.mxu0 0.0
    %7397 = vmatpush1.msra.mxu0 %v7370
    %7398 = vmatprep.subr.mxu0 0.0
    %7399 = vmatpush1.msra.mxu0 %v7371
    %7400 = vmatprep.subr.mxu0 0.0
    %7401 = vmatpush1.msra.mxu0 %v7372
    %7402 = vmatprep.subr.mxu0 0.0
    %7403 = vmatpush1.msra.mxu0 %v7373
    %7404 = vmatprep.subr.mxu0 0.0
    %7405 = vmatpush1.msra.mxu0 %v7374
    %7406 = vmatprep.subr.mxu0 0.0
    %7407 = vmatpush1.msra.mxu0 %v7375
    %7408 = vmatprep.subr.mxu0 0.0
    %7409 = vmatpush1.msra.mxu0 0.0
    %7410 = vmatprep.subr.mxu0 0.0
    %7411 = vmatpush1.msra.mxu0 0.0
    %7412 = vmatprep.subr.mxu0 0.0
    %7413 = vmatpush1.msra.mxu0 0.0
    %7414 = vmatprep.subr.mxu0 0.0
    %7415 = vmatpush1.msra.mxu0 0.0
    %7416 = vmatprep.subr.mxu0 0.0
    %7417 = vmatpush1.msra.mxu0 0.0
    %7418 = vmatprep.subr.mxu0 0.0
    %7419 = vmatpush1.msra.mxu0 0.0
    %7420 = vmatprep.subr.mxu0 0.0
    %7421 = vmatpush1.msra.mxu0 0.0
    %7422 = vmatprep.subr.mxu0 0.0
    %7423 = vmatpush1.msra.mxu0 0.0
    %7424 = vmatprep.subr.mxu0 0.0
    %7425 = vmatpush1.msra.mxu0 0.0
    %7426 = vmatprep.subr.mxu0 0.0
    %7427 = vmatpush1.msra.mxu0 0.0
    %7428 = vmatprep.subr.mxu0 0.0
    %7429 = vmatpush1.msra.mxu0 0.0
    %7430 = vmatprep.subr.mxu0 0.0
    %7431 = vmatpush1.msra.mxu0 0.0
    %7432 = vmatprep.subr.mxu0 0.0
    %7433 = vmatpush1.msra.mxu0 0.0
    %7434 = vmatprep.subr.mxu0 0.0
    %7435 = vmatpush1.msra.mxu0 0.0
    %7436 = vmatprep.subr.mxu0 0.0
    %7437 = vmatpush1.msra.mxu0 0.0
    %7438 = vmatprep.subr.mxu0 0.0
    %7439 = vmatpush1.msra.mxu0 0.0
    %7440 = vmatprep.mubr.f32.mxu0 0.0
    %7441 = vmatmul.mubr.f32.gmra.mrb[0].mxu0 %v7357
    %v7442 = vpop.f32.mrb[0].mxu0
    %v7443 = vadd.f32 0.0, %v7442
    %v7444 = vpop.f32.mrb[0].mxu0
    %7445 = vmatprep.mubr.f32.mxu0 0.0
    %7446 = vmatmul.mubr.f32.gmra.mrb[0].mxu0 %v7358
    %v7447 = vpop.f32.mrb[0].mxu0
    %v7448 = vadd.f32 0.0, %v7447
    %v7449 = vpop.f32.mrb[0].mxu0
    %7450 = vmatprep.mubr.f32.mxu0 0.0
    %7451 = vmatmul.mubr.f32.gmra.mrb[0].mxu0 %v7359
    %v7452 = vpop.f32.mrb[0].mxu0
    %v7453 = vadd.f32 0.0, %v7452
    %v7454 = vpop.f32.mrb[0].mxu0
    %7455 = vdwg.mxu0
    %v7456 = vadd.f32 %v7354, %v7443
    %v7457 = vadd.f32 %v7355, %v7448
    %v7458 = vadd.f32 %v7356, %v7453
    %v7459 = vld [vmem:[%s3356] sm:$0x1]
    %v7461 = vlaneseq
    %v7462 = vshrl.u32 %v7461, 7
    %v7463 = vsub.s32 0, %v7462
    %v7464 = vrot.slane %v7459, %v7463
    %v7466 = vadd.f32 %v7456, %v7464
    %v7467 = vadd.f32 %v7457, %v7464
    %v7468 = vadd.f32 %v7458, %v7464
    %v7469 = vmax.f32 %v7466, 0.0
    %v7470 = vmax.f32 %v7467, 0.0
    %v7471 = vmax.f32 %v7468, 0.0
    %v7472 = vld [vmem:[%s3370] sm:$0x1]
    %v7474 = vlaneseq
    %v7475 = vshrl.u32 %v7474, 7
    %v7476 = vsub.s32 0, %v7475
    %v7477 = vrot.slane %v7472, %v7476
    %v7479 = vmul.f32 %v7469, %v7477
    %v7480 = vmul.f32 %v7470, %v7477
    %v7481 = vmul.f32 %v7471, %v7477
    %v7482 = vld [vmem:[%s3381] sm:$0x1]
    %v7484 = vlaneseq
    %v7485 = vshrl.u32 %v7484, 7
    %v7486 = vsub.s32 0, %v7485
    %v7487 = vrot.slane %v7482, %v7486
    %v7489 = vadd.f32 %v7479, %v7487
    %v7490 = vadd.f32 %v7480, %v7487
    %v7491 = vadd.f32 %v7481, %v7487
    %v7492 = vsel %vm283, -inf, %v7489
    %v7493 = vsel %vm284, -inf, %v7490
    %v7496 = vrot.slane %v7492, 7
    %v7497 = vrot.slane %v7493, 7
    %v7498 = vsel %vm289, %v7496, %v7497
    %v7502 = vmax.f32 %v7489, %v7496
    %v7503 = vmax.f32 %v7490, %v7498
    %v7504 = vmax.f32 %v7491, %v7497
    %v7508 = vrot.slane %v7502, 1
    %v7509 = vrot.slane %v7503, 1
    %v7510 = vsel %vm302, %v7508, %v7509
    %v7511 = vrot.slane %v7504, 1
    %v7512 = vsel %vm302, %v7509, %v7511
    %7515 = vst [vmem:[%s4448 + $0x30] sm:$0xff] %v7510
    %7516 = vst [vmem:[%s4448 + $0x70] sm:$0xff] %v7512
    %v7517 = vld [vmem:[%s4295] sm:$0xff]
    %v7518 = vld [vmem:[%s4295 + $0x8] sm:$0xff]
    %v7519 = vld [vmem:[%s4295 + $0x10] sm:$0x1]
    %v7520 = vld [vmem:[#allocation14] sm:$0xff]
    %v7521 = vld [vmem:[#allocation14 + $0x8] sm:$0xff]
    %v7522 = vld [vmem:[#allocation14 + $0x10] sm:$0xff]
    %v7523 = vld [vmem:[#allocation14 + $0x18] sm:$0xff]
    %v7524 = vld [vmem:[#allocation14 + $0x20] sm:$0xff]
    %v7525 = vld [vmem:[#allocation14 + $0x28] sm:$0xff]
    %v7526 = vld [vmem:[#allocation14 + $0x30] sm:$0xff]
    %v7527 = vld [vmem:[#allocation14 + $0x38] sm:$0xff]
    %v7528 = vld [vmem:[#allocation14 + $0x40] sm:$0xff]
    %v7529 = vld [vmem:[#allocation14 + $0x48] sm:$0xff]
    %v7530 = vld [vmem:[#allocation14 + $0x50] sm:$0xff]
    %v7531 = vld [vmem:[#allocation14 + $0x58] sm:$0xff]
    %v7532 = vld [vmem:[#allocation14 + $0x60] sm:$0xff]
    %v7533 = vld [vmem:[#allocation14 + $0x68] sm:$0xff]
    %v7534 = vld [vmem:[#allocation14 + $0x70] sm:$0xff]
    %v7535 = vld [vmem:[#allocation14 + $0x78] sm:$0xff]
    %v7536 = vld [vmem:[%s4295 + $0x1] sm:$0xff]
    %v7537 = vld [vmem:[%s4295 + $0x9] sm:$0xff]
    %v7538 = vld [vmem:[%s4295 + $0x11] sm:$0x1]
    %v7539 = vld [vmem:[%s3439] sm:$0xff]
    %v7540 = vld [vmem:[%s3439 + $0x8] sm:$0xff]
    %v7541 = vld [vmem:[%s3439 + $0x10] sm:$0xff]
    %v7542 = vld [vmem:[%s3439 + $0x18] sm:$0xff]
    %v7543 = vld [vmem:[%s3439 + $0x20] sm:$0xff]
    %v7544 = vld [vmem:[%s3439 + $0x28] sm:$0xff]
    %v7545 = vld [vmem:[%s3439 + $0x30] sm:$0xff]
    %v7546 = vld [vmem:[%s3439 + $0x38] sm:$0xff]
    %v7547 = vld [vmem:[%s3439 + $0x40] sm:$0xff]
    %v7548 = vld [vmem:[%s3439 + $0x48] sm:$0xff]
    %v7549 = vld [vmem:[%s3439 + $0x50] sm:$0xff]
    %v7550 = vld [vmem:[%s3439 + $0x58] sm:$0xff]
    %v7551 = vld [vmem:[%s3439 + $0x60] sm:$0xff]
    %v7552 = vld [vmem:[%s3439 + $0x68] sm:$0xff]
    %v7553 = vld [vmem:[%s3439 + $0x70] sm:$0xff]
    %v7554 = vld [vmem:[%s3439 + $0x78] sm:$0xff]
    %7555 = vmatprep.subr.mxu0 0.0
    %7556 = vmatpush1.msra.mxu0 %v7539
    %7557 = vmatprep.subr.mxu0 0.0
    %7558 = vmatpush1.msra.mxu0 %v7540
    %7559 = vmatprep.subr.mxu0 0.0
    %7560 = vmatpush1.msra.mxu0 %v7541
    %7561 = vmatprep.subr.mxu0 0.0
    %7562 = vmatpush1.msra.mxu0 %v7542
    %7563 = vmatprep.subr.mxu0 0.0
    %7564 = vmatpush1.msra.mxu0 %v7543
    %7565 = vmatprep.subr.mxu0 0.0
    %7566 = vmatpush1.msra.mxu0 %v7544
    %7567 = vmatprep.subr.mxu0 0.0
    %7568 = vmatpush1.msra.mxu0 %v7545
    %7569 = vmatprep.subr.mxu0 0.0
    %7570 = vmatpush1.msra.mxu0 %v7546
    %7571 = vmatprep.subr.mxu0 0.0
    %7572 = vmatpush1.msra.mxu0 %v7547
    %7573 = vmatprep.subr.mxu0 0.0
    %7574 = vmatpush1.msra.mxu0 %v7548
    %7575 = vmatprep.subr.mxu0 0.0
    %7576 = vmatpush1.msra.mxu0 %v7549
    %7577 = vmatprep.subr.mxu0 0.0
    %7578 = vmatpush1.msra.mxu0 %v7550
    %7579 = vmatprep.subr.mxu0 0.0
    %7580 = vmatpush1.msra.mxu0 %v7551
    %7581 = vmatprep.subr.mxu0 0.0
    %7582 = vmatpush1.msra.mxu0 %v7552
    %7583 = vmatprep.subr.mxu0 0.0
    %7584 = vmatpush1.msra.mxu0 %v7553
    %7585 = vmatprep.subr.mxu0 0.0
    %7586 = vmatpush1.msra.mxu0 %v7554
    %7587 = vmatprep.subr.mxu0 0.0
    %7588 = vmatpush1.msra.mxu0 0.0
    %7589 = vmatprep.subr.mxu0 0.0
    %7590 = vmatpush1.msra.mxu0 0.0
    %7591 = vmatprep.subr.mxu0 0.0
    %7592 = vmatpush1.msra.mxu0 0.0
    %7593 = vmatprep.subr.mxu0 0.0
    %7594 = vmatpush1.msra.mxu0 0.0
    %7595 = vmatprep.subr.mxu0 0.0
    %7596 = vmatpush1.msra.mxu0 0.0
    %7597 = vmatprep.subr.mxu0 0.0
    %7598 = vmatpush1.msra.mxu0 0.0
    %7599 = vmatprep.subr.mxu0 0.0
    %7600 = vmatpush1.msra.mxu0 0.0
    %7601 = vmatprep.subr.mxu0 0.0
    %7602 = vmatpush1.msra.mxu0 0.0
    %7603 = vmatprep.subr.mxu0 0.0
    %7604 = vmatpush1.msra.mxu0 0.0
    %7605 = vmatprep.subr.mxu0 0.0
    %7606 = vmatpush1.msra.mxu0 0.0
    %7607 = vmatprep.subr.mxu0 0.0
    %7608 = vmatpush1.msra.mxu0 0.0
    %7609 = vmatprep.subr.mxu0 0.0
    %7610 = vmatpush1.msra.mxu0 0.0
    %7611 = vmatprep.subr.mxu0 0.0
    %7612 = vmatpush1.msra.mxu0 0.0
    %7613 = vmatprep.subr.mxu0 0.0
    %7614 = vmatpush1.msra.mxu0 0.0
    %7615 = vmatprep.subr.mxu0 0.0
    %7616 = vmatpush1.msra.mxu0 0.0
    %7617 = vmatprep.subr.mxu0 0.0
    %7618 = vmatpush1.msra.mxu0 0.0
    %7619 = vmatprep.mubr.f32.mxu0 0.0
    %7620 = vmatmul.mubr.f32.gmra.mrb[0].mxu0 %v7536
    %v7621 = vpop.f32.mrb[0].mxu0
    %v7622 = vadd.f32 0.0, %v7621
    %v7623 = vpop.f32.mrb[0].mxu0
    %7624 = vmatprep.mubr.f32.mxu0 0.0
    %7625 = vmatmul.mubr.f32.gmra.mrb[0].mxu0 %v7537
    %v7626 = vpop.f32.mrb[0].mxu0
    %v7627 = vadd.f32 0.0, %v7626
    %v7628 = vpop.f32.mrb[0].mxu0
    %7629 = vmatprep.mubr.f32.mxu0 0.0
    %7630 = vmatmul.mubr.f32.gmra.mrb[0].mxu0 %v7538
    %v7631 = vpop.f32.mrb[0].mxu0
    %v7632 = vadd.f32 0.0, %v7631
    %v7633 = vpop.f32.mrb[0].mxu0
    %7634 = vdwg.mxu0
    %7635 = vmatprep.subr.mxu0 0.0
    %7636 = vmatpush1.msra.mxu0 %v7520
    %7637 = vmatprep.subr.mxu0 0.0
    %7638 = vmatpush1.msra.mxu0 %v7521
    %7639 = vmatprep.subr.mxu0 0.0
    %7640 = vmatpush1.msra.mxu0 %v7522
    %7641 = vmatprep.subr.mxu0 0.0
    %7642 = vmatpush1.msra.mxu0 %v7523
    %7643 = vmatprep.subr.mxu0 0.0
    %7644 = vmatpush1.msra.mxu0 %v7524
    %7645 = vmatprep.subr.mxu0 0.0
    %7646 = vmatpush1.msra.mxu0 %v7525
    %7647 = vmatprep.subr.mxu0 0.0
    %7648 = vmatpush1.msra.mxu0 %v7526
    %7649 = vmatprep.subr.mxu0 0.0
    %7650 = vmatpush1.msra.mxu0 %v7527
    %7651 = vmatprep.subr.mxu0 0.0
    %7652 = vmatpush1.msra.mxu0 %v7528
    %7653 = vmatprep.subr.mxu0 0.0
    %7654 = vmatpush1.msra.mxu0 %v7529
    %7655 = vmatprep.subr.mxu0 0.0
    %7656 = vmatpush1.msra.mxu0 %v7530
    %7657 = vmatprep.subr.mxu0 0.0
    %7658 = vmatpush1.msra.mxu0 %v7531
    %7659 = vmatprep.subr.mxu0 0.0
    %7660 = vmatpush1.msra.mxu0 %v7532
    %7661 = vmatprep.subr.mxu0 0.0
    %7662 = vmatpush1.msra.mxu0 %v7533
    %7663 = vmatprep.subr.mxu0 0.0
    %7664 = vmatpush1.msra.mxu0 %v7534
    %7665 = vmatprep.subr.mxu0 0.0
    %7666 = vmatpush1.msra.mxu0 %v7535
    %7667 = vmatprep.subr.mxu0 0.0
    %7668 = vmatpush1.msra.mxu0 0.0
    %7669 = vmatprep.subr.mxu0 0.0
    %7670 = vmatpush1.msra.mxu0 0.0
    %7671 = vmatprep.subr.mxu0 0.0
    %7672 = vmatpush1.msra.mxu0 0.0
    %7673 = vmatprep.subr.mxu0 0.0
    %7674 = vmatpush1.msra.mxu0 0.0
    %7675 = vmatprep.subr.mxu0 0.0
    %7676 = vmatpush1.msra.mxu0 0.0
    %7677 = vmatprep.subr.mxu0 0.0
    %7678 = vmatpush1.msra.mxu0 0.0
    %7679 = vmatprep.subr.mxu0 0.0
    %7680 = vmatpush1.msra.mxu0 0.0
    %7681 = vmatprep.subr.mxu0 0.0
    %7682 = vmatpush1.msra.mxu0 0.0
    %7683 = vmatprep.subr.mxu0 0.0
    %7684 = vmatpush1.msra.mxu0 0.0
    %7685 = vmatprep.subr.mxu0 0.0
    %7686 = vmatpush1.msra.mxu0 0.0
    %7687 = vmatprep.subr.mxu0 0.0
    %7688 = vmatpush1.msra.mxu0 0.0
    %7689 = vmatprep.subr.mxu0 0.0
    %7690 = vmatpush1.msra.mxu0 0.0
    %7691 = vmatprep.subr.mxu0 0.0
    %7692 = vmatpush1.msra.mxu0 0.0
    %7693 = vmatprep.subr.mxu0 0.0
    %7694 = vmatpush1.msra.mxu0 0.0
    %7695 = vmatprep.subr.mxu0 0.0
    %7696 = vmatpush1.msra.mxu0 0.0
    %7697 = vmatprep.subr.mxu0 0.0
    %7698 = vmatpush1.msra.mxu0 0.0
    %7699 = vmatprep.mubr.f32.mxu0 0.0
    %7700 = vmatmul.mubr.f32.gmra.mrb[0].mxu0 %v7517
    %v7701 = vpop.f32.mrb[0].mxu0
    %v7702 = vadd.f32 %v7622, %v7701
    %v7703 = vpop.f32.mrb[0].mxu0
    %7704 = vmatprep.mubr.f32.mxu0 0.0
    %7705 = vmatmul.mubr.f32.gmra.mrb[0].mxu0 %v7518
    %v7706 = vpop.f32.mrb[0].mxu0
    %v7707 = vadd.f32 %v7627, %v7706
    %v7708 = vpop.f32.mrb[0].mxu0
    %7709 = vmatprep.mubr.f32.mxu0 0.0
    %7710 = vmatmul.mubr.f32.gmra.mrb[0].mxu0 %v7519
    %v7711 = vpop.f32.mrb[0].mxu0
    %v7712 = vadd.f32 %v7632, %v7711
    %v7713 = vpop.f32.mrb[0].mxu0
    %7714 = vdwg.mxu0
    %v7715 = vld [vmem:[%s4295 + $0x2] sm:$0xff]
    %v7716 = vld [vmem:[%s4295 + $0xa] sm:$0xff]
    %v7717 = vld [vmem:[%s4295 + $0x12] sm:$0x1]
    %v7718 = vld [vmem:[%s3619] sm:$0xff]
    %v7719 = vld [vmem:[%s3619 + $0x8] sm:$0xff]
    %v7720 = vld [vmem:[%s3619 + $0x10] sm:$0xff]
    %v7721 = vld [vmem:[%s3619 + $0x18] sm:$0xff]
    %v7722 = vld [vmem:[%s3619 + $0x20] sm:$0xff]
    %v7723 = vld [vmem:[%s3619 + $0x28] sm:$0xff]
    %v7724 = vld [vmem:[%s3619 + $0x30] sm:$0xff]
    %v7725 = vld [vmem:[%s3619 + $0x38] sm:$0xff]
    %v7726 = vld [vmem:[%s3619 + $0x40] sm:$0xff]
    %v7727 = vld [vmem:[%s3619 + $0x48] sm:$0xff]
    %v7728 = vld [vmem:[%s3619 + $0x50] sm:$0xff]
    %v7729 = vld [vmem:[%s3619 + $0x58] sm:$0xff]
    %v7730 = vld [vmem:[%s3619 + $0x60] sm:$0xff]
    %v7731 = vld [vmem:[%s3619 + $0x68] sm:$0xff]
    %v7732 = vld [vmem:[%s3619 + $0x70] sm:$0xff]
    %v7733 = vld [vmem:[%s3619 + $0x78] sm:$0xff]
    %7734 = vmatprep.subr.mxu0 0.0
    %7735 = vmatpush1.msra.mxu0 %v7718
    %7736 = vmatprep.subr.mxu0 0.0
    %7737 = vmatpush1.msra.mxu0 %v7719
    %7738 = vmatprep.subr.mxu0 0.0
    %7739 = vmatpush1.msra.mxu0 %v7720
    %7740 = vmatprep.subr.mxu0 0.0
    %7741 = vmatpush1.msra.mxu0 %v7721
    %7742 = vmatprep.subr.mxu0 0.0
    %7743 = vmatpush1.msra.mxu0 %v7722
    %7744 = vmatprep.subr.mxu0 0.0
    %7745 = vmatpush1.msra.mxu0 %v7723
    %7746 = vmatprep.subr.mxu0 0.0
    %7747 = vmatpush1.msra.mxu0 %v7724
    %7748 = vmatprep.subr.mxu0 0.0
    %7749 = vmatpush1.msra.mxu0 %v7725
    %7750 = vmatprep.subr.mxu0 0.0
    %7751 = vmatpush1.msra.mxu0 %v7726
    %7752 = vmatprep.subr.mxu0 0.0
    %7753 = vmatpush1.msra.mxu0 %v7727
    %7754 = vmatprep.subr.mxu0 0.0
    %7755 = vmatpush1.msra.mxu0 %v7728
    %7756 = vmatprep.subr.mxu0 0.0
    %7757 = vmatpush1.msra.mxu0 %v7729
    %7758 = vmatprep.subr.mxu0 0.0
    %7759 = vmatpush1.msra.mxu0 %v7730
    %7760 = vmatprep.subr.mxu0 0.0
    %7761 = vmatpush1.msra.mxu0 %v7731
    %7762 = vmatprep.subr.mxu0 0.0
    %7763 = vmatpush1.msra.mxu0 %v7732
    %7764 = vmatprep.subr.mxu0 0.0
    %7765 = vmatpush1.msra.mxu0 %v7733
    %7766 = vmatprep.subr.mxu0 0.0
    %7767 = vmatpush1.msra.mxu0 0.0
    %7768 = vmatprep.subr.mxu0 0.0
    %7769 = vmatpush1.msra.mxu0 0.0
    %7770 = vmatprep.subr.mxu0 0.0
    %7771 = vmatpush1.msra.mxu0 0.0
    %7772 = vmatprep.subr.mxu0 0.0
    %7773 = vmatpush1.msra.mxu0 0.0
    %7774 = vmatprep.subr.mxu0 0.0
    %7775 = vmatpush1.msra.mxu0 0.0
    %7776 = vmatprep.subr.mxu0 0.0
    %7777 = vmatpush1.msra.mxu0 0.0
    %7778 = vmatprep.subr.mxu0 0.0
    %7779 = vmatpush1.msra.mxu0 0.0
    %7780 = vmatprep.subr.mxu0 0.0
    %7781 = vmatpush1.msra.mxu0 0.0
    %7782 = vmatprep.subr.mxu0 0.0
    %7783 = vmatpush1.msra.mxu0 0.0
    %7784 = vmatprep.subr.mxu0 0.0
    %7785 = vmatpush1.msra.mxu0 0.0
    %7786 = vmatprep.subr.mxu0 0.0
    %7787 = vmatpush1.msra.mxu0 0.0
    %7788 = vmatprep.subr.mxu0 0.0
    %7789 = vmatpush1.msra.mxu0 0.0
    %7790 = vmatprep.subr.mxu0 0.0
    %7791 = vmatpush1.msra.mxu0 0.0
    %7792 = vmatprep.subr.mxu0 0.0
    %7793 = vmatpush1.msra.mxu0 0.0
    %7794 = vmatprep.subr.mxu0 0.0
    %7795 = vmatpush1.msra.mxu0 0.0
    %7796 = vmatprep.subr.mxu0 0.0
    %7797 = vmatpush1.msra.mxu0 0.0
    %7798 = vmatprep.mubr.f32.mxu0 0.0
    %7799 = vmatmul.mubr.f32.gmra.mrb[0].mxu0 %v7715
    %v7800 = vpop.f32.mrb[0].mxu0
    %v7801 = vadd.f32 0.0, %v7800
    %v7802 = vpop.f32.mrb[0].mxu0
    %7803 = vmatprep.mubr.f32.mxu0 0.0
    %7804 = vmatmul.mubr.f32.gmra.mrb[0].mxu0 %v7716
    %v7805 = vpop.f32.mrb[0].mxu0
    %v7806 = vadd.f32 0.0, %v7805
    %v7807 = vpop.f32.mrb[0].mxu0
    %7808 = vmatprep.mubr.f32.mxu0 0.0
    %7809 = vmatmul.mubr.f32.gmra.mrb[0].mxu0 %v7717
    %v7810 = vpop.f32.mrb[0].mxu0
    %v7811 = vadd.f32 0.0, %v7810
    %v7812 = vpop.f32.mrb[0].mxu0
    %7813 = vdwg.mxu0
    %v7814 = vadd.f32 %v7702, %v7801
    %v7815 = vadd.f32 %v7707, %v7806
    %v7816 = vadd.f32 %v7712, %v7811
    %v7817 = vld [vmem:[%s4295 + $0x3] sm:$0xff]
    %v7818 = vld [vmem:[%s4295 + $0xb] sm:$0xff]
    %v7819 = vld [vmem:[%s4295 + $0x13] sm:$0x1]
    %v7820 = vld [vmem:[%s3722] sm:$0xff]
    %v7821 = vld [vmem:[%s3722 + $0x8] sm:$0xff]
    %v7822 = vld [vmem:[%s3722 + $0x10] sm:$0xff]
    %v7823 = vld [vmem:[%s3722 + $0x18] sm:$0xff]
    %v7824 = vld [vmem:[%s3722 + $0x20] sm:$0xff]
    %v7825 = vld [vmem:[%s3722 + $0x28] sm:$0xff]
    %v7826 = vld [vmem:[%s3722 + $0x30] sm:$0xff]
    %v7827 = vld [vmem:[%s3722 + $0x38] sm:$0xff]
    %v7828 = vld [vmem:[%s3722 + $0x40] sm:$0xff]
    %v7829 = vld [vmem:[%s3722 + $0x48] sm:$0xff]
    %v7830 = vld [vmem:[%s3722 + $0x50] sm:$0xff]
    %v7831 = vld [vmem:[%s3722 + $0x58] sm:$0xff]
    %v7832 = vld [vmem:[%s3722 + $0x60] sm:$0xff]
    %v7833 = vld [vmem:[%s3722 + $0x68] sm:$0xff]
    %v7834 = vld [vmem:[%s3722 + $0x70] sm:$0xff]
    %v7835 = vld [vmem:[%s3722 + $0x78] sm:$0xff]
    %7836 = vmatprep.subr.mxu0 0.0
    %7837 = vmatpush1.msra.mxu0 %v7820
    %7838 = vmatprep.subr.mxu0 0.0
    %7839 = vmatpush1.msra.mxu0 %v7821
    %7840 = vmatprep.subr.mxu0 0.0
    %7841 = vmatpush1.msra.mxu0 %v7822
    %7842 = vmatprep.subr.mxu0 0.0
    %7843 = vmatpush1.msra.mxu0 %v7823
    %7844 = vmatprep.subr.mxu0 0.0
    %7845 = vmatpush1.msra.mxu0 %v7824
    %7846 = vmatprep.subr.mxu0 0.0
    %7847 = vmatpush1.msra.mxu0 %v7825
    %7848 = vmatprep.subr.mxu0 0.0
    %7849 = vmatpush1.msra.mxu0 %v7826
    %7850 = vmatprep.subr.mxu0 0.0
    %7851 = vmatpush1.msra.mxu0 %v7827
    %7852 = vmatprep.subr.mxu0 0.0
    %7853 = vmatpush1.msra.mxu0 %v7828
    %7854 = vmatprep.subr.mxu0 0.0
    %7855 = vmatpush1.msra.mxu0 %v7829
    %7856 = vmatprep.subr.mxu0 0.0
    %7857 = vmatpush1.msra.mxu0 %v7830
    %7858 = vmatprep.subr.mxu0 0.0
    %7859 = vmatpush1.msra.mxu0 %v7831
    %7860 = vmatprep.subr.mxu0 0.0
    %7861 = vmatpush1.msra.mxu0 %v7832
    %7862 = vmatprep.subr.mxu0 0.0
    %7863 = vmatpush1.msra.mxu0 %v7833
    %7864 = vmatprep.subr.mxu0 0.0
    %7865 = vmatpush1.msra.mxu0 %v7834
    %7866 = vmatprep.subr.mxu0 0.0
    %7867 = vmatpush1.msra.mxu0 %v7835
    %7868 = vmatprep.subr.mxu0 0.0
    %7869 = vmatpush1.msra.mxu0 0.0
    %7870 = vmatprep.subr.mxu0 0.0
    %7871 = vmatpush1.msra.mxu0 0.0
    %7872 = vmatprep.subr.mxu0 0.0
    %7873 = vmatpush1.msra.mxu0 0.0
    %7874 = vmatprep.subr.mxu0 0.0
    %7875 = vmatpush1.msra.mxu0 0.0
    %7876 = vmatprep.subr.mxu0 0.0
    %7877 = vmatpush1.msra.mxu0 0.0
    %7878 = vmatprep.subr.mxu0 0.0
    %7879 = vmatpush1.msra.mxu0 0.0
    %7880 = vmatprep.subr.mxu0 0.0
    %7881 = vmatpush1.msra.mxu0 0.0
    %7882 = vmatprep.subr.mxu0 0.0
    %7883 = vmatpush1.msra.mxu0 0.0
    %7884 = vmatprep.subr.mxu0 0.0
    %7885 = vmatpush1.msra.mxu0 0.0
    %7886 = vmatprep.subr.mxu0 0.0
    %7887 = vmatpush1.msra.mxu0 0.0
    %7888 = vmatprep.subr.mxu0 0.0
    %7889 = vmatpush1.msra.mxu0 0.0
    %7890 = vmatprep.subr.mxu0 0.0
    %7891 = vmatpush1.msra.mxu0 0.0
    %7892 = vmatprep.subr.mxu0 0.0
    %7893 = vmatpush1.msra.mxu0 0.0
    %7894 = vmatprep.subr.mxu0 0.0
    %7895 = vmatpush1.msra.mxu0 0.0
    %7896 = vmatprep.subr.mxu0 0.0
    %7897 = vmatpush1.msra.mxu0 0.0
    %7898 = vmatprep.subr.mxu0 0.0
    %7899 = vmatpush1.msra.mxu0 0.0
    %7900 = vmatprep.mubr.f32.mxu0 0.0
    %7901 = vmatmul.mubr.f32.gmra.mrb[0].mxu0 %v7817
    %v7902 = vpop.f32.mrb[0].mxu0
    %v7903 = vadd.f32 0.0, %v7902
    %v7904 = vpop.f32.mrb[0].mxu0
    %7905 = vmatprep.mubr.f32.mxu0 0.0
    %7906 = vmatmul.mubr.f32.gmra.mrb[0].mxu0 %v7818
    %v7907 = vpop.f32.mrb[0].mxu0
    %v7908 = vadd.f32 0.0, %v7907
    %v7909 = vpop.f32.mrb[0].mxu0
    %7910 = vmatprep.mubr.f32.mxu0 0.0
    %7911 = vmatmul.mubr.f32.gmra.mrb[0].mxu0 %v7819
    %v7912 = vpop.f32.mrb[0].mxu0
    %v7913 = vadd.f32 0.0, %v7912
    %v7914 = vpop.f32.mrb[0].mxu0
    %7915 = vdwg.mxu0
    %v7916 = vadd.f32 %v7814, %v7903
    %v7917 = vadd.f32 %v7815, %v7908
    %v7918 = vadd.f32 %v7816, %v7913
    %v7919 = vld [vmem:[%s4295 + $0x4] sm:$0xff]
    %v7920 = vld [vmem:[%s4295 + $0xc] sm:$0xff]
    %v7921 = vld [vmem:[%s4295 + $0x14] sm:$0x1]
    %v7922 = vld [vmem:[%s3825] sm:$0xff]
    %v7923 = vld [vmem:[%s3825 + $0x8] sm:$0xff]
    %v7924 = vld [vmem:[%s3825 + $0x10] sm:$0xff]
    %v7925 = vld [vmem:[%s3825 + $0x18] sm:$0xff]
    %v7926 = vld [vmem:[%s3825 + $0x20] sm:$0xff]
    %v7927 = vld [vmem:[%s3825 + $0x28] sm:$0xff]
    %v7928 = vld [vmem:[%s3825 + $0x30] sm:$0xff]
    %v7929 = vld [vmem:[%s3825 + $0x38] sm:$0xff]
    %v7930 = vld [vmem:[%s3825 + $0x40] sm:$0xff]
    %v7931 = vld [vmem:[%s3825 + $0x48] sm:$0xff]
    %v7932 = vld [vmem:[%s3825 + $0x50] sm:$0xff]
    %v7933 = vld [vmem:[%s3825 + $0x58] sm:$0xff]
    %v7934 = vld [vmem:[%s3825 + $0x60] sm:$0xff]
    %v7935 = vld [vmem:[%s3825 + $0x68] sm:$0xff]
    %v7936 = vld [vmem:[%s3825 + $0x70] sm:$0xff]
    %v7937 = vld [vmem:[%s3825 + $0x78] sm:$0xff]
    %7938 = vmatprep.subr.mxu0 0.0
    %7939 = vmatpush1.msra.mxu0 %v7922
    %7940 = vmatprep.subr.mxu0 0.0
    %7941 = vmatpush1.msra.mxu0 %v7923
    %7942 = vmatprep.subr.mxu0 0.0
    %7943 = vmatpush1.msra.mxu0 %v7924
    %7944 = vmatprep.subr.mxu0 0.0
    %7945 = vmatpush1.msra.mxu0 %v7925
    %7946 = vmatprep.subr.mxu0 0.0
    %7947 = vmatpush1.msra.mxu0 %v7926
    %7948 = vmatprep.subr.mxu0 0.0
    %7949 = vmatpush1.msra.mxu0 %v7927
    %7950 = vmatprep.subr.mxu0 0.0
    %7951 = vmatpush1.msra.mxu0 %v7928
    %7952 = vmatprep.subr.mxu0 0.0
    %7953 = vmatpush1.msra.mxu0 %v7929
    %7954 = vmatprep.subr.mxu0 0.0
    %7955 = vmatpush1.msra.mxu0 %v7930
    %7956 = vmatprep.subr.mxu0 0.0
    %7957 = vmatpush1.msra.mxu0 %v7931
    %7958 = vmatprep.subr.mxu0 0.0
    %7959 = vmatpush1.msra.mxu0 %v7932
    %7960 = vmatprep.subr.mxu0 0.0
    %7961 = vmatpush1.msra.mxu0 %v7933
    %7962 = vmatprep.subr.mxu0 0.0
    %7963 = vmatpush1.msra.mxu0 %v7934
    %7964 = vmatprep.subr.mxu0 0.0
    %7965 = vmatpush1.msra.mxu0 %v7935
    %7966 = vmatprep.subr.mxu0 0.0
    %7967 = vmatpush1.msra.mxu0 %v7936
    %7968 = vmatprep.subr.mxu0 0.0
    %7969 = vmatpush1.msra.mxu0 %v7937
    %7970 = vmatprep.subr.mxu0 0.0
    %7971 = vmatpush1.msra.mxu0 0.0
    %7972 = vmatprep.subr.mxu0 0.0
    %7973 = vmatpush1.msra.mxu0 0.0
    %7974 = vmatprep.subr.mxu0 0.0
    %7975 = vmatpush1.msra.mxu0 0.0
    %7976 = vmatprep.subr.mxu0 0.0
    %7977 = vmatpush1.msra.mxu0 0.0
    %7978 = vmatprep.subr.mxu0 0.0
    %7979 = vmatpush1.msra.mxu0 0.0
    %7980 = vmatprep.subr.mxu0 0.0
    %7981 = vmatpush1.msra.mxu0 0.0
    %7982 = vmatprep.subr.mxu0 0.0
    %7983 = vmatpush1.msra.mxu0 0.0
    %7984 = vmatprep.subr.mxu0 0.0
    %7985 = vmatpush1.msra.mxu0 0.0
    %7986 = vmatprep.subr.mxu0 0.0
    %7987 = vmatpush1.msra.mxu0 0.0
    %7988 = vmatprep.subr.mxu0 0.0
    %7989 = vmatpush1.msra.mxu0 0.0
    %7990 = vmatprep.subr.mxu0 0.0
    %7991 = vmatpush1.msra.mxu0 0.0
    %7992 = vmatprep.subr.mxu0 0.0
    %7993 = vmatpush1.msra.mxu0 0.0
    %7994 = vmatprep.subr.mxu0 0.0
    %7995 = vmatpush1.msra.mxu0 0.0
    %7996 = vmatprep.subr.mxu0 0.0
    %7997 = vmatpush1.msra.mxu0 0.0
    %7998 = vmatprep.subr.mxu0 0.0
    %7999 = vmatpush1.msra.mxu0 0.0
    %8000 = vmatprep.subr.mxu0 0.0
    %8001 = vmatpush1.msra.mxu0 0.0
    %8002 = vmatprep.mubr.f32.mxu0 0.0
    %8003 = vmatmul.mubr.f32.gmra.mrb[0].mxu0 %v7919
    %v8004 = vpop.f32.mrb[0].mxu0
    %v8005 = vadd.f32 0.0, %v8004
    %v8006 = vpop.f32.mrb[0].mxu0
    %8007 = vmatprep.mubr.f32.mxu0 0.0
    %8008 = vmatmul.mubr.f32.gmra.mrb[0].mxu0 %v7920
    %v8009 = vpop.f32.mrb[0].mxu0
    %v8010 = vadd.f32 0.0, %v8009
    %v8011 = vpop.f32.mrb[0].mxu0
    %8012 = vmatprep.mubr.f32.mxu0 0.0
    %8013 = vmatmul.mubr.f32.gmra.mrb[0].mxu0 %v7921
    %v8014 = vpop.f32.mrb[0].mxu0
    %v8015 = vadd.f32 0.0, %v8014
    %v8016 = vpop.f32.mrb[0].mxu0
    %8017 = vdwg.mxu0
    %v8018 = vadd.f32 %v7916, %v8005
    %v8019 = vadd.f32 %v7917, %v8010
    %v8020 = vadd.f32 %v7918, %v8015
    %v8021 = vld [vmem:[%s4295 + $0x5] sm:$0xff]
    %v8022 = vld [vmem:[%s4295 + $0xd] sm:$0xff]
    %v8023 = vld [vmem:[%s4295 + $0x15] sm:$0x1]
    %v8024 = vld [vmem:[%s3928] sm:$0xff]
    %v8025 = vld [vmem:[%s3928 + $0x8] sm:$0xff]
    %v8026 = vld [vmem:[%s3928 + $0x10] sm:$0xff]
    %v8027 = vld [vmem:[%s3928 + $0x18] sm:$0xff]
    %v8028 = vld [vmem:[%s3928 + $0x20] sm:$0xff]
    %v8029 = vld [vmem:[%s3928 + $0x28] sm:$0xff]
    %v8030 = vld [vmem:[%s3928 + $0x30] sm:$0xff]
    %v8031 = vld [vmem:[%s3928 + $0x38] sm:$0xff]
    %v8032 = vld [vmem:[%s3928 + $0x40] sm:$0xff]
    %v8033 = vld [vmem:[%s3928 + $0x48] sm:$0xff]
    %v8034 = vld [vmem:[%s3928 + $0x50] sm:$0xff]
    %v8035 = vld [vmem:[%s3928 + $0x58] sm:$0xff]
    %v8036 = vld [vmem:[%s3928 + $0x60] sm:$0xff]
    %v8037 = vld [vmem:[%s3928 + $0x68] sm:$0xff]
    %v8038 = vld [vmem:[%s3928 + $0x70] sm:$0xff]
    %v8039 = vld [vmem:[%s3928 + $0x78] sm:$0xff]
    %8040 = vmatprep.subr.mxu0 0.0
    %8041 = vmatpush1.msra.mxu0 %v8024
    %8042 = vmatprep.subr.mxu0 0.0
    %8043 = vmatpush1.msra.mxu0 %v8025
    %8044 = vmatprep.subr.mxu0 0.0
    %8045 = vmatpush1.msra.mxu0 %v8026
    %8046 = vmatprep.subr.mxu0 0.0
    %8047 = vmatpush1.msra.mxu0 %v8027
    %8048 = vmatprep.subr.mxu0 0.0
    %8049 = vmatpush1.msra.mxu0 %v8028
    %8050 = vmatprep.subr.mxu0 0.0
    %8051 = vmatpush1.msra.mxu0 %v8029
    %8052 = vmatprep.subr.mxu0 0.0
    %8053 = vmatpush1.msra.mxu0 %v8030
    %8054 = vmatprep.subr.mxu0 0.0
    %8055 = vmatpush1.msra.mxu0 %v8031
    %8056 = vmatprep.subr.mxu0 0.0
    %8057 = vmatpush1.msra.mxu0 %v8032
    %8058 = vmatprep.subr.mxu0 0.0
    %8059 = vmatpush1.msra.mxu0 %v8033
    %8060 = vmatprep.subr.mxu0 0.0
    %8061 = vmatpush1.msra.mxu0 %v8034
    %8062 = vmatprep.subr.mxu0 0.0
    %8063 = vmatpush1.msra.mxu0 %v8035
    %8064 = vmatprep.subr.mxu0 0.0
    %8065 = vmatpush1.msra.mxu0 %v8036
    %8066 = vmatprep.subr.mxu0 0.0
    %8067 = vmatpush1.msra.mxu0 %v8037
    %8068 = vmatprep.subr.mxu0 0.0
    %8069 = vmatpush1.msra.mxu0 %v8038
    %8070 = vmatprep.subr.mxu0 0.0
    %8071 = vmatpush1.msra.mxu0 %v8039
    %8072 = vmatprep.subr.mxu0 0.0
    %8073 = vmatpush1.msra.mxu0 0.0
    %8074 = vmatprep.subr.mxu0 0.0
    %8075 = vmatpush1.msra.mxu0 0.0
    %8076 = vmatprep.subr.mxu0 0.0
    %8077 = vmatpush1.msra.mxu0 0.0
    %8078 = vmatprep.subr.mxu0 0.0
    %8079 = vmatpush1.msra.mxu0 0.0
    %8080 = vmatprep.subr.mxu0 0.0
    %8081 = vmatpush1.msra.mxu0 0.0
    %8082 = vmatprep.subr.mxu0 0.0
    %8083 = vmatpush1.msra.mxu0 0.0
    %8084 = vmatprep.subr.mxu0 0.0
    %8085 = vmatpush1.msra.mxu0 0.0
    %8086 = vmatprep.subr.mxu0 0.0
    %8087 = vmatpush1.msra.mxu0 0.0
    %8088 = vmatprep.subr.mxu0 0.0
    %8089 = vmatpush1.msra.mxu0 0.0
    %8090 = vmatprep.subr.mxu0 0.0
    %8091 = vmatpush1.msra.mxu0 0.0
    %8092 = vmatprep.subr.mxu0 0.0
    %8093 = vmatpush1.msra.mxu0 0.0
    %8094 = vmatprep.subr.mxu0 0.0
    %8095 = vmatpush1.msra.mxu0 0.0
    %8096 = vmatprep.subr.mxu0 0.0
    %8097 = vmatpush1.msra.mxu0 0.0
    %8098 = vmatprep.subr.mxu0 0.0
    %8099 = vmatpush1.msra.mxu0 0.0
    %8100 = vmatprep.subr.mxu0 0.0
    %8101 = vmatpush1.msra.mxu0 0.0
    %8102 = vmatprep.subr.mxu0 0.0
    %8103 = vmatpush1.msra.mxu0 0.0
    %8104 = vmatprep.mubr.f32.mxu0 0.0
    %8105 = vmatmul.mubr.f32.gmra.mrb[0].mxu0 %v8021
    %v8106 = vpop.f32.mrb[0].mxu0
    %v8107 = vadd.f32 0.0, %v8106
    %v8108 = vpop.f32.mrb[0].mxu0
    %8109 = vmatprep.mubr.f32.mxu0 0.0
    %8110 = vmatmul.mubr.f32.gmra.mrb[0].mxu0 %v8022
    %v8111 = vpop.f32.mrb[0].mxu0
    %v8112 = vadd.f32 0.0, %v8111
    %v8113 = vpop.f32.mrb[0].mxu0
    %8114 = vmatprep.mubr.f32.mxu0 0.0
    %8115 = vmatmul.mubr.f32.gmra.mrb[0].mxu0 %v8023
    %v8116 = vpop.f32.mrb[0].mxu0
    %v8117 = vadd.f32 0.0, %v8116
    %v8118 = vpop.f32.mrb[0].mxu0
    %8119 = vdwg.mxu0
    %v8120 = vadd.f32 %v8018, %v8107
    %v8121 = vadd.f32 %v8019, %v8112
    %v8122 = vadd.f32 %v8020, %v8117
    %v8123 = vld [vmem:[%s4295 + $0x6] sm:$0xff]
    %v8124 = vld [vmem:[%s4295 + $0xe] sm:$0xff]
    %v8125 = vld [vmem:[%s4295 + $0x16] sm:$0x1]
    %v8126 = vld [vmem:[%s4031] sm:$0xff]
    %v8127 = vld [vmem:[%s4031 + $0x8] sm:$0xff]
    %v8128 = vld [vmem:[%s4031 + $0x10] sm:$0xff]
    %v8129 = vld [vmem:[%s4031 + $0x18] sm:$0xff]
    %v8130 = vld [vmem:[%s4031 + $0x20] sm:$0xff]
    %v8131 = vld [vmem:[%s4031 + $0x28] sm:$0xff]
    %v8132 = vld [vmem:[%s4031 + $0x30] sm:$0xff]
    %v8133 = vld [vmem:[%s4031 + $0x38] sm:$0xff]
    %v8134 = vld [vmem:[%s4031 + $0x40] sm:$0xff]
    %v8135 = vld [vmem:[%s4031 + $0x48] sm:$0xff]
    %v8136 = vld [vmem:[%s4031 + $0x50] sm:$0xff]
    %v8137 = vld [vmem:[%s4031 + $0x58] sm:$0xff]
    %v8138 = vld [vmem:[%s4031 + $0x60] sm:$0xff]
    %v8139 = vld [vmem:[%s4031 + $0x68] sm:$0xff]
    %v8140 = vld [vmem:[%s4031 + $0x70] sm:$0xff]
    %v8141 = vld [vmem:[%s4031 + $0x78] sm:$0xff]
    %8142 = vmatprep.subr.mxu0 0.0
    %8143 = vmatpush1.msra.mxu0 %v8126
    %8144 = vmatprep.subr.mxu0 0.0
    %8145 = vmatpush1.msra.mxu0 %v8127
    %8146 = vmatprep.subr.mxu0 0.0
    %8147 = vmatpush1.msra.mxu0 %v8128
    %8148 = vmatprep.subr.mxu0 0.0
    %8149 = vmatpush1.msra.mxu0 %v8129
    %8150 = vmatprep.subr.mxu0 0.0
    %8151 = vmatpush1.msra.mxu0 %v8130
    %8152 = vmatprep.subr.mxu0 0.0
    %8153 = vmatpush1.msra.mxu0 %v8131
    %8154 = vmatprep.subr.mxu0 0.0
    %8155 = vmatpush1.msra.mxu0 %v8132
    %8156 = vmatprep.subr.mxu0 0.0
    %8157 = vmatpush1.msra.mxu0 %v8133
    %8158 = vmatprep.subr.mxu0 0.0
    %8159 = vmatpush1.msra.mxu0 %v8134
    %8160 = vmatprep.subr.mxu0 0.0
    %8161 = vmatpush1.msra.mxu0 %v8135
    %8162 = vmatprep.subr.mxu0 0.0
    %8163 = vmatpush1.msra.mxu0 %v8136
    %8164 = vmatprep.subr.mxu0 0.0
    %8165 = vmatpush1.msra.mxu0 %v8137
    %8166 = vmatprep.subr.mxu0 0.0
    %8167 = vmatpush1.msra.mxu0 %v8138
    %8168 = vmatprep.subr.mxu0 0.0
    %8169 = vmatpush1.msra.mxu0 %v8139
    %8170 = vmatprep.subr.mxu0 0.0
    %8171 = vmatpush1.msra.mxu0 %v8140
    %8172 = vmatprep.subr.mxu0 0.0
    %8173 = vmatpush1.msra.mxu0 %v8141
    %8174 = vmatprep.subr.mxu0 0.0
    %8175 = vmatpush1.msra.mxu0 0.0
    %8176 = vmatprep.subr.mxu0 0.0
    %8177 = vmatpush1.msra.mxu0 0.0
    %8178 = vmatprep.subr.mxu0 0.0
    %8179 = vmatpush1.msra.mxu0 0.0
    %8180 = vmatprep.subr.mxu0 0.0
    %8181 = vmatpush1.msra.mxu0 0.0
    %8182 = vmatprep.subr.mxu0 0.0
    %8183 = vmatpush1.msra.mxu0 0.0
    %8184 = vmatprep.subr.mxu0 0.0
    %8185 = vmatpush1.msra.mxu0 0.0
    %8186 = vmatprep.subr.mxu0 0.0
    %8187 = vmatpush1.msra.mxu0 0.0
    %8188 = vmatprep.subr.mxu0 0.0
    %8189 = vmatpush1.msra.mxu0 0.0
    %8190 = vmatprep.subr.mxu0 0.0
    %8191 = vmatpush1.msra.mxu0 0.0
    %8192 = vmatprep.subr.mxu0 0.0
    %8193 = vmatpush1.msra.mxu0 0.0
    %8194 = vmatprep.subr.mxu0 0.0
    %8195 = vmatpush1.msra.mxu0 0.0
    %8196 = vmatprep.subr.mxu0 0.0
    %8197 = vmatpush1.msra.mxu0 0.0
    %8198 = vmatprep.subr.mxu0 0.0
    %8199 = vmatpush1.msra.mxu0 0.0
    %8200 = vmatprep.subr.mxu0 0.0
    %8201 = vmatpush1.msra.mxu0 0.0
    %8202 = vmatprep.subr.mxu0 0.0
    %8203 = vmatpush1.msra.mxu0 0.0
    %8204 = vmatprep.subr.mxu0 0.0
    %8205 = vmatpush1.msra.mxu0 0.0
    %8206 = vmatprep.mubr.f32.mxu0 0.0
    %8207 = vmatmul.mubr.f32.gmra.mrb[0].mxu0 %v8123
    %v8208 = vpop.f32.mrb[0].mxu0
    %v8209 = vadd.f32 0.0, %v8208
    %v8210 = vpop.f32.mrb[0].mxu0
    %8211 = vmatprep.mubr.f32.mxu0 0.0
    %8212 = vmatmul.mubr.f32.gmra.mrb[0].mxu0 %v8124
    %v8213 = vpop.f32.mrb[0].mxu0
    %v8214 = vadd.f32 0.0, %v8213
    %v8215 = vpop.f32.mrb[0].mxu0
    %8216 = vmatprep.mubr.f32.mxu0 0.0
    %8217 = vmatmul.mubr.f32.gmra.mrb[0].mxu0 %v8125
    %v8218 = vpop.f32.mrb[0].mxu0
    %v8219 = vadd.f32 0.0, %v8218
    %v8220 = vpop.f32.mrb[0].mxu0
    %8221 = vdwg.mxu0
    %v8222 = vadd.f32 %v8120, %v8209
    %v8223 = vadd.f32 %v8121, %v8214
    %v8224 = vadd.f32 %v8122, %v8219
    %v8225 = vld [vmem:[%s4295 + $0x7] sm:$0xff]
    %v8226 = vld [vmem:[%s4295 + $0xf] sm:$0xff]
    %v8227 = vld [vmem:[%s4295 + $0x17] sm:$0x1]
    %v8228 = vld [vmem:[%s4134] sm:$0xff]
    %v8229 = vld [vmem:[%s4134 + $0x8] sm:$0xff]
    %v8230 = vld [vmem:[%s4134 + $0x10] sm:$0xff]
    %v8231 = vld [vmem:[%s4134 + $0x18] sm:$0xff]
    %v8232 = vld [vmem:[%s4134 + $0x20] sm:$0xff]
    %v8233 = vld [vmem:[%s4134 + $0x28] sm:$0xff]
    %v8234 = vld [vmem:[%s4134 + $0x30] sm:$0xff]
    %v8235 = vld [vmem:[%s4134 + $0x38] sm:$0xff]
    %v8236 = vld [vmem:[%s4134 + $0x40] sm:$0xff]
    %v8237 = vld [vmem:[%s4134 + $0x48] sm:$0xff]
    %v8238 = vld [vmem:[%s4134 + $0x50] sm:$0xff]
    %v8239 = vld [vmem:[%s4134 + $0x58] sm:$0xff]
    %v8240 = vld [vmem:[%s4134 + $0x60] sm:$0xff]
    %v8241 = vld [vmem:[%s4134 + $0x68] sm:$0xff]
    %v8242 = vld [vmem:[%s4134 + $0x70] sm:$0xff]
    %v8243 = vld [vmem:[%s4134 + $0x78] sm:$0xff]
    %8244 = vmatprep.subr.mxu0 0.0
    %8245 = vmatpush1.msra.mxu0 %v8228
    %8246 = vmatprep.subr.mxu0 0.0
    %8247 = vmatpush1.msra.mxu0 %v8229
    %8248 = vmatprep.subr.mxu0 0.0
    %8249 = vmatpush1.msra.mxu0 %v8230
    %8250 = vmatprep.subr.mxu0 0.0
    %8251 = vmatpush1.msra.mxu0 %v8231
    %8252 = vmatprep.subr.mxu0 0.0
    %8253 = vmatpush1.msra.mxu0 %v8232
    %8254 = vmatprep.subr.mxu0 0.0
    %8255 = vmatpush1.msra.mxu0 %v8233
    %8256 = vmatprep.subr.mxu0 0.0
    %8257 = vmatpush1.msra.mxu0 %v8234
    %8258 = vmatprep.subr.mxu0 0.0
    %8259 = vmatpush1.msra.mxu0 %v8235
    %8260 = vmatprep.subr.mxu0 0.0
    %8261 = vmatpush1.msra.mxu0 %v8236
    %8262 = vmatprep.subr.mxu0 0.0
    %8263 = vmatpush1.msra.mxu0 %v8237
    %8264 = vmatprep.subr.mxu0 0.0
    %8265 = vmatpush1.msra.mxu0 %v8238
    %8266 = vmatprep.subr.mxu0 0.0
    %8267 = vmatpush1.msra.mxu0 %v8239
    %8268 = vmatprep.subr.mxu0 0.0
    %8269 = vmatpush1.msra.mxu0 %v8240
    %8270 = vmatprep.subr.mxu0 0.0
    %8271 = vmatpush1.msra.mxu0 %v8241
    %8272 = vmatprep.subr.mxu0 0.0
    %8273 = vmatpush1.msra.mxu0 %v8242
    %8274 = vmatprep.subr.mxu0 0.0
    %8275 = vmatpush1.msra.mxu0 %v8243
    %8276 = vmatprep.subr.mxu0 0.0
    %8277 = vmatpush1.msra.mxu0 0.0
    %8278 = vmatprep.subr.mxu0 0.0
    %8279 = vmatpush1.msra.mxu0 0.0
    %8280 = vmatprep.subr.mxu0 0.0
    %8281 = vmatpush1.msra.mxu0 0.0
    %8282 = vmatprep.subr.mxu0 0.0
    %8283 = vmatpush1.msra.mxu0 0.0
    %8284 = vmatprep.subr.mxu0 0.0
    %8285 = vmatpush1.msra.mxu0 0.0
    %8286 = vmatprep.subr.mxu0 0.0
    %8287 = vmatpush1.msra.mxu0 0.0
    %8288 = vmatprep.subr.mxu0 0.0
    %8289 = vmatpush1.msra.mxu0 0.0
    %8290 = vmatprep.subr.mxu0 0.0
    %8291 = vmatpush1.msra.mxu0 0.0
    %8292 = vmatprep.subr.mxu0 0.0
    %8293 = vmatpush1.msra.mxu0 0.0
    %8294 = vmatprep.subr.mxu0 0.0
    %8295 = vmatpush1.msra.mxu0 0.0
    %8296 = vmatprep.subr.mxu0 0.0
    %8297 = vmatpush1.msra.mxu0 0.0
    %8298 = vmatprep.subr.mxu0 0.0
    %8299 = vmatpush1.msra.mxu0 0.0
    %8300 = vmatprep.subr.mxu0 0.0
    %8301 = vmatpush1.msra.mxu0 0.0
    %8302 = vmatprep.subr.mxu0 0.0
    %8303 = vmatpush1.msra.mxu0 0.0
    %8304 = vmatprep.subr.mxu0 0.0
    %8305 = vmatpush1.msra.mxu0 0.0
    %8306 = vmatprep.subr.mxu0 0.0
    %8307 = vmatpush1.msra.mxu0 0.0
    %8308 = vmatprep.mubr.f32.mxu0 0.0
    %8309 = vmatmul.mubr.f32.gmra.mrb[0].mxu0 %v8225
    %v8310 = vpop.f32.mrb[0].mxu0
    %v8311 = vadd.f32 0.0, %v8310
    %v8312 = vpop.f32.mrb[0].mxu0
    %8313 = vmatprep.mubr.f32.mxu0 0.0
    %8314 = vmatmul.mubr.f32.gmra.mrb[0].mxu0 %v8226
    %v8315 = vpop.f32.mrb[0].mxu0
    %v8316 = vadd.f32 0.0, %v8315
    %v8317 = vpop.f32.mrb[0].mxu0
    %8318 = vmatprep.mubr.f32.mxu0 0.0
    %8319 = vmatmul.mubr.f32.gmra.mrb[0].mxu0 %v8227
    %v8320 = vpop.f32.mrb[0].mxu0
    %v8321 = vadd.f32 0.0, %v8320
    %v8322 = vpop.f32.mrb[0].mxu0
    %8323 = vdwg.mxu0
    %v8324 = vadd.f32 %v8222, %v8311
    %v8325 = vadd.f32 %v8223, %v8316
    %v8326 = vadd.f32 %v8224, %v8321
    %v8327 = vld [vmem:[%s4234] sm:$0x1]
    %v8329 = vlaneseq
    %v8330 = vshrl.u32 %v8329, 7
    %v8331 = vsub.s32 0, %v8330
    %v8332 = vrot.slane %v8327, %v8331
    %v8334 = vadd.f32 %v8324, %v8332
    %v8335 = vadd.f32 %v8325, %v8332
    %v8336 = vadd.f32 %v8326, %v8332
    %v8337 = vmax.f32 %v8334, 0.0
    %v8338 = vmax.f32 %v8335, 0.0
    %v8339 = vmax.f32 %v8336, 0.0
    %v8340 = vld [vmem:[%s4248] sm:$0x1]
    %v8342 = vlaneseq
    %v8343 = vshrl.u32 %v8342, 7
    %v8344 = vsub.s32 0, %v8343
    %v8345 = vrot.slane %v8340, %v8344
    %v8347 = vmul.f32 %v8337, %v8345
    %v8348 = vmul.f32 %v8338, %v8345
    %v8349 = vmul.f32 %v8339, %v8345
    %v8350 = vld [vmem:[%s4259] sm:$0x1]
    %v8352 = vlaneseq
    %v8353 = vshrl.u32 %v8352, 7
    %v8354 = vsub.s32 0, %v8353
    %v8355 = vrot.slane %v8350, %v8354
    %v8357 = vadd.f32 %v8347, %v8355
    %v8358 = vadd.f32 %v8348, %v8355
    %v8359 = vadd.f32 %v8349, %v8355
    %v8360 = vsel %vm283, -inf, %v8357
    %v8361 = vsel %vm284, -inf, %v8358
    %v8364 = vrot.slane %v8360, 7
    %v8365 = vrot.slane %v8361, 7
    %v8366 = vsel %vm289, %v8364, %v8365
    %v8370 = vmax.f32 %v8357, %v8364
    %v8371 = vmax.f32 %v8358, %v8366
    %v8372 = vmax.f32 %v8359, %v8365
    %v8376 = vrot.slane %v8370, 1
    %v8377 = vrot.slane %v8371, 1
    %v8378 = vsel %vm302, %v8376, %v8377
    %v8379 = vrot.slane %v8372, 1
    %v8380 = vsel %vm302, %v8377, %v8379
    %8383 = vst [vmem:[%s4448 + $0x38] sm:$0xff] %v8378
    %8384 = vst [vmem:[%s4448 + $0x78] sm:$0xff] %v8380
    // Predicated region
    $region82: #{tpu_custom_call.1} parent=1 // pred_check
      _
    $region83: #{tpu_custom_call.1} parent=1 // pred_check_branch
      %8386 = sbr.rel (0) target = $region85
    $region84: #{tpu_custom_call.1} parent=1 // pred_region
      %s8388 = ssub.s32 4096, 4096
      %8389 = vsyncadd [#allocation4], %s8388
      %s8390 = sshll.u32 [#allocation16], 4
      %s8391 = int_to_ptr.vmem [resolvable:$true] %s8390
      %8396 = dma.vmem_to_hbm [thread:$0]  %s8391, 4096, %s12, [#allocation4], 1024, 1024, 64
    $region85: #{tpu_custom_call.1} parent=1 // pred_fallthru
      _
    // Predicated region
    $region86: #{tpu_custom_call.1} parent=1 // pred_check
      _
    $region87: #{tpu_custom_call.1} parent=1 // pred_check_branch
      %8398 = sbr.rel (0) target = $region89
    $region88: #{tpu_custom_call.1} parent=1 // pred_region
      %8399 = dma.done [#allocation4], 4096
    $region89: #{tpu_custom_call.1} parent=1 // pred_fallthru
      _
    %8400 = vsyncpa [#allocation3], 1
    %8401 = vsyncpa [#allocation6], 1
    %8402 = vsyncpa [#allocation9], 1
    %8403 = vsyncpa [#allocation12], 1
    %8404 = vsyncpa [#allocation15], 1
    %8405 = vsyncpa [#allocation4], 1

</llo_original>
